<compile_context>
chip_gen: v6e
topology: v6e:2x2x1
jax: 0.10.0
libtpu: 0.0.40
codegen_flags: <defaults>
</compile_context>

<pallas_src>
import functools

import jax
import jax.numpy as jnp
from jax.experimental import pallas as pl
from jax.experimental.pallas import tpu as pltpu


# ----------------------------- Pallas kernel -------------------------------

def nerf_mlp_kernel(x_ref, d_ref, wA_ref, bA_ref, wB_ref, bB_ref,
                    wC_ref, bC_ref, out_ref):
    bf16 = jnp.bfloat16
    f32 = jnp.float32

    def lin(a, w, b):
        # a:(M,K) bf16, w:(K,N) bf16, b:(1,N) f32 -> (M,N) f32 (MXU, f32 acc).
        return jnp.dot(a, w, preferred_element_type=f32) + b

    def relu_bf16(v):
        return jnp.maximum(v, 0.0).astype(bf16)

    x = x_ref[...]   # (M,64) bf16, lanes 0:60 valid, rest zero
    d = d_ref[...]   # (M,64) bf16, lanes 0:24 valid, rest zero

    # Slab A row layout (all bf16, 256 output lanes):
    #   fc1   [0,64)    fc2 [64,320)    fc3 [320,576)   fc4 [576,832)
    #   fc5   [832,1088) fc6_x [1088,1152) fc6_h [1152,1408)
    #   fc7   [1408,1664) fc8 [1664,1920)
    h = relu_bf16(lin(x, wA_ref[0:64, :],      bA_ref[0:1, :]))    # fc1
    h = relu_bf16(lin(h, wA_ref[64:320, :],    bA_ref[1:2, :]))    # fc2
    h = relu_bf16(lin(h, wA_ref[320:576, :],   bA_ref[2:3, :]))    # fc3
    h = relu_bf16(lin(h, wA_ref[576:832, :],   bA_ref[3:4, :]))    # fc4
    fc5 = relu_bf16(lin(h, wA_ref[832:1088, :], bA_ref[4:5, :]))   # fc5

    # fc6(cat(x, fc5)) as two accumulating dots -- no lane concat in VMEM.
    h6 = jnp.dot(x, wA_ref[1088:1152, :], preferred_element_type=f32)
    h6 = h6 + jnp.dot(fc5, wA_ref[1152:1408, :], preferred_element_type=f32)
    h = relu_bf16(h6 + bA_ref[5:6, :])                              # fc6
    h = relu_bf16(lin(h, wA_ref[1408:1664, :], bA_ref[6:7, :]))     # fc7
    fc8 = relu_bf16(lin(h, wA_ref[1664:1920, :], bA_ref[7:8, :]))   # fc8

    # fc9 (no activation): clean (M,256)x(256,256) MXU matmul.
    fc9 = lin(fc8, wB_ref[...], bB_ref[0:1, :]).astype(bf16)

    # addiSig off the MXU: VPU multiply + XLU lane reduce + bias.
    # bB row 1 = addiSig weight row (bf16-quantized, stored f32); row 2 = bias.
    sigma = (jnp.sum(fc8.astype(f32) * bB_ref[1:2, :], axis=-1, keepdims=True)
             + bB_ref[2:3, 0:1])                                    # (M,1) f32

    # fc10(cat(fc9, dire)) as two accumulating dots.
    # Slab C rows: fc10_a [0,256), fc10_d [256,320), fc11 [320,448).
    h10 = jnp.dot(fc9, wC_ref[0:256, :], preferred_element_type=f32)
    h10 = h10 + jnp.dot(d, wC_ref[256:320, :], preferred_element_type=f32)
    fc10 = relu_bf16(h10 + bC_ref[0:1, :])                          # (M,128) bf16

    rgb = jax.nn.sigmoid(lin(fc10, wC_ref[320:448, :], bC_ref[1:2, :]))  # (M,128) f32

    # Single lane-dense output: lanes 0..2 = rgb, lane 3 = sigma, rest unused.
    lane = jax.lax.broadcasted_iota(jnp.int32, rgb.shape, 1)
    out_ref[...] = jnp.where(lane == 3, sigma, rgb)


# --------------------------- parameter packing -------------------------------

def pack_params(params):
    """One-time packing of torch-style params into 3 bf16 weight slabs + 3 f32
    bias slabs (hoisted out of the per-call forward)."""
    (w1, b1, w2, b2, w3, b3, w4, b4, w5, b5, w6, b6, w7, b7, w8, b8,
     w9, b9, wsig, bsig, w10, b10, w11, b11) = params
    f32, bf16 = jnp.float32, jnp.bfloat16

    def pad_rows(w, rows):
        out = jnp.zeros((rows, w.shape[1]), f32)
        return out.at[: w.shape[0], :].set(w)

    def pad_cols(w, cols):
        out = jnp.zeros((w.shape[0], cols), f32)
        return out.at[:, : w.shape[1]].set(w)

    # Slab A: fc1 (60->64 rows), fc2..fc5, fc6 split into its x-part (60->64
    # rows) and its fc5-part (256 rows), fc7, fc8.
    wA = jnp.concatenate([
        pad_rows(w1, 64),            # [0, 64)      fc1
        w2,                          # [64, 320)    fc2
        w3,                          # [320, 576)   fc3
        w4,                          # [576, 832)   fc4
        w5,                          # [832, 1088)  fc5
        pad_rows(w6[:60, :], 64),    # [1088, 1152) fc6_x (rows for x)
        w6[60:, :],                  # [1152, 1408) fc6_h (rows for fc5)
        w7,                          # [1408, 1664) fc7
        w8,                          # [1664, 1920) fc8
    ], axis=0).astype(bf16)                                       # (1920, 256)
    bA = jnp.stack([b1, b2, b3, b4, b5, b6, b7, b8], axis=0).astype(f32)  # (8,256)

    # Slab B: fc9 weights only (addiSig is computed on the VPU/XLU).
    wB = w9.astype(bf16)                                          # (256, 256)
    wsig_q = wsig[:, 0].astype(bf16).astype(f32)  # quantize like an MXU operand
    bB = jnp.zeros((8, 256), f32)
    bB = bB.at[0, :].set(b9)          # fc9 bias
    bB = bB.at[1, :].set(wsig_q)      # addiSig weight row
    bB = bB.at[2, :].set(bsig[0])     # addiSig bias (broadcast along lanes)

    # Slab C: fc10 split into fc9-part (256 rows) and dire-part (24->64 rows),
    # then fc11 padded to 128 output lanes.
    wC = jnp.concatenate([
        w10[:256, :],                # [0, 256)    fc10_a (rows for fc9)
        pad_rows(w10[256:, :], 64),  # [256, 320)  fc10_d (rows for dire)
        pad_cols(w11, 128),          # [320, 448)  fc11 (128, 3->128)
    ], axis=0).astype(bf16)                                       # (448, 128)
    bC = jnp.zeros((2, 128), f32).at[0, :].set(b10).at[1, :3].set(b11)

    return (wA, bA, wB, bB, wC, bC)


# ------------------------------- wrapper ------------------------------------

@functools.partial(jax.jit, static_argnames=("block_m",))
def nerf_forward(x, dire, packed, block_m=512):
    """x: (B,60) or (60,), dire: (B,24) or (24,).
    Returns (sigma: (B,1), rgb: (B,3)) (or (1,), (3,) for 1-D inputs)."""
    wA, bA, wB, bB, wC, bC = packed

    squeeze = x.ndim == 1
    if squeeze:
        x = x[None, :]
        dire = dire[None, :]
    B = x.shape[0]
    Bp = ((B + block_m - 1) // block_m) * block_m

    # bf16 cast + minimal lane pad to the 64-lane bf16 tile (not 128).
    x_p = jnp.pad(x.astype(jnp.bfloat16), ((0, Bp - B), (0, 64 - 60)))
    d_p = jnp.pad(dire.astype(jnp.bfloat16), ((0, Bp - B), (0, 64 - 24)))

    grid = (Bp // block_m,)
    batch_spec = pl.BlockSpec((block_m, 64), lambda i: (i, 0))
    out_spec = pl.BlockSpec((block_m, 128), lambda i: (i, 0))
    # Constant index_map -> weights stay resident in VMEM (no re-DMA per step).
    resident = lambda shape: pl.BlockSpec(shape, lambda i: (0, 0))

    out = pl.pallas_call(
        nerf_mlp_kernel,
        out_shape=jax.ShapeDtypeStruct((Bp, 128), jnp.float32),
        grid_spec=pltpu.PrefetchScalarGridSpec(
            num_scalar_prefetch=0,
            grid=grid,
            in_specs=[
                batch_spec,                 # x  (block_m, 64)
                batch_spec,                 # dire (block_m, 64)
                resident((1920, 256)),      # slab A weights
                resident((8, 256)),         # slab A biases
                resident((256, 256)),       # fc9 weights
                resident((8, 256)),         # fc9 bias + addiSig row/bias
                resident((448, 128)),       # fc10_a/fc10_d/fc11 weights
                resident((2, 128)),         # fc10/fc11 biases
            ],
            out_specs=out_spec,
        ),
        compiler_params=pltpu.CompilerParams(
            dimension_semantics=("parallel",),
        ),
    )(x_p, d_p, wA, bA, wB, bB, wC, bC)

    sigma = out[:B, 3:4]
    rgb = out[:B, 0:3]
    if squeeze:
        return sigma[0], rgb[0]
    return sigma, rgb


# --------------------------- parameter creation ------------------------------

def init_params(key):
    """Deterministic init mirroring torch.nn.Linear default U(-1/sqrt(in), 1/sqrt(in)).
    Weights are stored as (in_features, out_features)."""
    dims = [
        (60, 256), (256, 256), (256, 256), (256, 256), (256, 256),   # fc1..fc5
        (316, 256), (256, 256), (256, 256), (256, 256),              # fc6..fc9
        (256, 1),                                                    # addiSig
        (280, 128), (128, 3),                                        # fc10, fc11
    ]
    params = []
    for fan_in, fan_out in dims:
        key, kw, kb = jax.random.split(key, 3)
        bound = 1.0 / jnp.sqrt(fan_in)
        w = jax.random.uniform(kw, (fan_in, fan_out), jnp.float32, -bound, bound)
        b = jax.random.uniform(kb, (fan_out,), jnp.float32, -bound, bound)
        params += [w, b]
    return tuple(params)


def reference_forward(x, dire, params, compute_dtype=jnp.float32):
    """Pure-JAX (batched) reference matching the PyTorch forward.
    compute_dtype=bfloat16 mirrors the kernel's matmul-input casts exactly."""
    (w1, b1, w2, b2, w3, b3, w4, b4, w5, b5, w6, b6, w7, b7, w8, b8,
     w9, b9, wsig, bsig, w10, b10, w11, b11) = params
    c = lambda a: a.astype(compute_dtype)
    lin = lambda a, w, b: jnp.dot(c(a), c(w), preferred_element_type=jnp.float32) + b
    relu = lambda v: jnp.maximum(v, 0.0)
    f1 = relu(lin(x, w1, b1))
    f2 = relu(lin(f1, w2, b2))
    f3 = relu(lin(f2, w3, b3))
    f4 = relu(lin(f3, w4, b4))
    f5 = relu(lin(f4, w5, b5))
    f6 = relu(lin(jnp.concatenate([x, f5], axis=-1), w6, b6))
    f7 = relu(lin(f6, w7, b7))
    f8 = relu(lin(f7, w8, b8))
    f9 = lin(f8, w9, b9)
    f10 = relu(lin(jnp.concatenate([f9, dire], axis=-1), w10, b10))
    sigma = lin(f8, wsig, bsig)
    rgb = jax.nn.sigmoid(lin(f10, w11, b11))
    return sigma, rgb


# --------------------------------- main --------------------------------------

if __name__ == "__main__":
    key = jax.random.PRNGKey(0)
    key, kx, kd, kp = jax.random.split(key, 4)

    B = 2048                                              # ray batch (grid of 4)
    x = jax.random.uniform(kx, (B, 60), jnp.float32)      # position encodings
    dire = jax.random.uniform(kd, (B, 24), jnp.float32)   # direction encodings
    params = init_params(kp)
    packed = pack_params(params)                          # one-time weight prep

    sigma, rgb = nerf_forward(x, dire, packed, block_m=512)
    jax.block_until_ready((sigma, rgb))

    assert sigma.shape == (B, 1) and rgb.shape == (B, 3)

    # Tight check against a reference that mirrors the kernel's bf16 matmul
    # inputs (catches packing / fusion bugs).
    sigma_bf, rgb_bf = reference_forward(x, dire, params, compute_dtype=jnp.bfloat16)
    assert jnp.allclose(sigma, sigma_bf, atol=1e-2, rtol=1e-2)
    assert jnp.allclose(rgb, rgb_bf, atol=1e-2, rtol=1e-2)

    # Loose check against the full-f32 reference (bf16 weight quantization drift).
    sigma_f32, rgb_f32 = reference_forward(x, dire, params)
    assert jnp.allclose(sigma, sigma_f32, atol=5e-2, rtol=5e-2)
    assert jnp.allclose(rgb, rgb_f32, atol=5e-2, rtol=5e-2)

    print("KERNEL_OK")
</pallas_src>

<mosaic_0001>
module attributes {stable_mosaic.version = 11 : i64} {
  func.func @nerf_mlp_kernel(%arg0: i32, %arg1: memref<512x64xbf16, #tpu.memory_space<vmem>>, %arg2: memref<512x64xbf16, #tpu.memory_space<vmem>>, %arg3: memref<1920x256xbf16, #tpu.memory_space<vmem>>, %arg4: memref<8x256xf32, #tpu.memory_space<vmem>>, %arg5: memref<256x256xbf16, #tpu.memory_space<vmem>>, %arg6: memref<8x256xf32, #tpu.memory_space<vmem>>, %arg7: memref<448x128xbf16, #tpu.memory_space<vmem>>, %arg8: memref<2x128xf32, #tpu.memory_space<vmem>>, %arg9: memref<512x128xf32, #tpu.memory_space<vmem>>) attributes {dimension_semantics = [#tpu.dimension_semantics<parallel>], iteration_bounds = array<i64: 4>, scalar_prefetch = 0 : i64, scratch_operands = 0 : i64, tpu.core_type = #tpu.core_type<tc>, window_params = [{transform_indices = @transform_0, window_bounds = array<i64: 512, 64>}, {transform_indices = @transform_1, window_bounds = array<i64: 512, 64>}, {pipeline_mode = #tpu.pipeline_mode<synchronous>, transform_indices = @transform_2, window_bounds = array<i64: 1920, 256>}, {pipeline_mode = #tpu.pipeline_mode<synchronous>, transform_indices = @transform_3, window_bounds = array<i64: 8, 256>}, {pipeline_mode = #tpu.pipeline_mode<synchronous>, transform_indices = @transform_4, window_bounds = array<i64: 256, 256>}, {pipeline_mode = #tpu.pipeline_mode<synchronous>, transform_indices = @transform_5, window_bounds = array<i64: 8, 256>}, {pipeline_mode = #tpu.pipeline_mode<synchronous>, transform_indices = @transform_6, window_bounds = array<i64: 448, 128>}, {pipeline_mode = #tpu.pipeline_mode<synchronous>, transform_indices = @transform_7, window_bounds = array<i64: 2, 128>}, {transform_indices = @transform_8, window_bounds = array<i64: 512, 128>}]} {
    %c0 = arith.constant 0 : index
    %c0_0 = arith.constant 0 : index
    %0 = vector.load %arg1[%c0, %c0_0] : memref<512x64xbf16, #tpu.memory_space<vmem>>, vector<512x64xbf16>
    %c0_1 = arith.constant 0 : index
    %c0_2 = arith.constant 0 : index
    %1 = vector.load %arg2[%c0_1, %c0_2] : memref<512x64xbf16, #tpu.memory_space<vmem>>, vector<512x64xbf16>
    %c0_3 = arith.constant 0 : index
    %c0_4 = arith.constant 0 : index
    %2 = vector.load %arg3[%c0_3, %c0_4] : memref<1920x256xbf16, #tpu.memory_space<vmem>>, vector<64x256xbf16>
    %c0_5 = arith.constant 0 : index
    %c0_6 = arith.constant 0 : index
    %3 = vector.load %arg4[%c0_5, %c0_6] : memref<8x256xf32, #tpu.memory_space<vmem>>, vector<1x256xf32>
    %cst = arith.constant dense<0.000000e+00> : vector<512x256xf32>
    %4 = tpu.matmul %0, %2, %cst {dimension_numbers = #tpu.dot_dimension_numbers<[1], [0], [0], [1], [0, 0, 1, 1], [], []>} : vector<512x64xbf16>, vector<64x256xbf16>, vector<512x256xf32> -> vector<512x256xf32>
    %5 = vector.broadcast %3 : vector<1x256xf32> to vector<512x256xf32>
    %6 = arith.addf %4, %5 : vector<512x256xf32>
    %cst_7 = arith.constant 0.000000e+00 : f32
    %7 = vector.broadcast %cst_7 : f32 to vector<512x256xf32>
    %8 = arith.maximumf %6, %7 : vector<512x256xf32>
    %9 = arith.truncf %8 : vector<512x256xf32> to vector<512x256xbf16>
    %c64 = arith.constant 64 : index
    %c0_8 = arith.constant 0 : index
    %10 = vector.load %arg3[%c64, %c0_8] : memref<1920x256xbf16, #tpu.memory_space<vmem>>, vector<256x256xbf16>
    %c1 = arith.constant 1 : index
    %c0_9 = arith.constant 0 : index
    %11 = vector.load %arg4[%c1, %c0_9] : memref<8x256xf32, #tpu.memory_space<vmem>>, vector<1x256xf32>
    %cst_10 = arith.constant dense<0.000000e+00> : vector<512x256xf32>
    %12 = tpu.matmul %9, %10, %cst_10 {dimension_numbers = #tpu.dot_dimension_numbers<[1], [0], [0], [1], [0, 0, 1, 1], [], []>} : vector<512x256xbf16>, vector<256x256xbf16>, vector<512x256xf32> -> vector<512x256xf32>
    %13 = vector.broadcast %11 : vector<1x256xf32> to vector<512x256xf32>
    %14 = arith.addf %12, %13 : vector<512x256xf32>
    %cst_11 = arith.constant 0.000000e+00 : f32
    %15 = vector.broadcast %cst_11 : f32 to vector<512x256xf32>
    %16 = arith.maximumf %14, %15 : vector<512x256xf32>
    %17 = arith.truncf %16 : vector<512x256xf32> to vector<512x256xbf16>
    %c320 = arith.constant 320 : index
    %c0_12 = arith.constant 0 : index
    %18 = vector.load %arg3[%c320, %c0_12] : memref<1920x256xbf16, #tpu.memory_space<vmem>>, vector<256x256xbf16>
    %c2 = arith.constant 2 : index
    %c0_13 = arith.constant 0 : index
    %19 = vector.load %arg4[%c2, %c0_13] : memref<8x256xf32, #tpu.memory_space<vmem>>, vector<1x256xf32>
    %cst_14 = arith.constant dense<0.000000e+00> : vector<512x256xf32>
    %20 = tpu.matmul %17, %18, %cst_14 {dimension_numbers = #tpu.dot_dimension_numbers<[1], [0], [0], [1], [0, 0, 1, 1], [], []>} : vector<512x256xbf16>, vector<256x256xbf16>, vector<512x256xf32> -> vector<512x256xf32>
    %21 = vector.broadcast %19 : vector<1x256xf32> to vector<512x256xf32>
    %22 = arith.addf %20, %21 : vector<512x256xf32>
    %cst_15 = arith.constant 0.000000e+00 : f32
    %23 = vector.broadcast %cst_15 : f32 to vector<512x256xf32>
    %24 = arith.maximumf %22, %23 : vector<512x256xf32>
    %25 = arith.truncf %24 : vector<512x256xf32> to vector<512x256xbf16>
    %c576 = arith.constant 576 : index
    %c0_16 = arith.constant 0 : index
    %26 = vector.load %arg3[%c576, %c0_16] : memref<1920x256xbf16, #tpu.memory_space<vmem>>, vector<256x256xbf16>
    %c3 = arith.constant 3 : index
    %c0_17 = arith.constant 0 : index
    %27 = vector.load %arg4[%c3, %c0_17] : memref<8x256xf32, #tpu.memory_space<vmem>>, vector<1x256xf32>
    %cst_18 = arith.constant dense<0.000000e+00> : vector<512x256xf32>
    %28 = tpu.matmul %25, %26, %cst_18 {dimension_numbers = #tpu.dot_dimension_numbers<[1], [0], [0], [1], [0, 0, 1, 1], [], []>} : vector<512x256xbf16>, vector<256x256xbf16>, vector<512x256xf32> -> vector<512x256xf32>
    %29 = vector.broadcast %27 : vector<1x256xf32> to vector<512x256xf32>
    %30 = arith.addf %28, %29 : vector<512x256xf32>
    %cst_19 = arith.constant 0.000000e+00 : f32
    %31 = vector.broadcast %cst_19 : f32 to vector<512x256xf32>
    %32 = arith.maximumf %30, %31 : vector<512x256xf32>
    %33 = arith.truncf %32 : vector<512x256xf32> to vector<512x256xbf16>
    %c832 = arith.constant 832 : index
    %c0_20 = arith.constant 0 : index
    %34 = vector.load %arg3[%c832, %c0_20] : memref<1920x256xbf16, #tpu.memory_space<vmem>>, vector<256x256xbf16>
    %c4 = arith.constant 4 : index
    %c0_21 = arith.constant 0 : index
    %35 = vector.load %arg4[%c4, %c0_21] : memref<8x256xf32, #tpu.memory_space<vmem>>, vector<1x256xf32>
    %cst_22 = arith.constant dense<0.000000e+00> : vector<512x256xf32>
    %36 = tpu.matmul %33, %34, %cst_22 {dimension_numbers = #tpu.dot_dimension_numbers<[1], [0], [0], [1], [0, 0, 1, 1], [], []>} : vector<512x256xbf16>, vector<256x256xbf16>, vector<512x256xf32> -> vector<512x256xf32>
    %37 = vector.broadcast %35 : vector<1x256xf32> to vector<512x256xf32>
    %38 = arith.addf %36, %37 : vector<512x256xf32>
    %cst_23 = arith.constant 0.000000e+00 : f32
    %39 = vector.broadcast %cst_23 : f32 to vector<512x256xf32>
    %40 = arith.maximumf %38, %39 : vector<512x256xf32>
    %41 = arith.truncf %40 : vector<512x256xf32> to vector<512x256xbf16>
    %c1088 = arith.constant 1088 : index
    %c0_24 = arith.constant 0 : index
    %42 = vector.load %arg3[%c1088, %c0_24] : memref<1920x256xbf16, #tpu.memory_space<vmem>>, vector<64x256xbf16>
    %cst_25 = arith.constant dense<0.000000e+00> : vector<512x256xf32>
    %43 = tpu.matmul %0, %42, %cst_25 {dimension_numbers = #tpu.dot_dimension_numbers<[1], [0], [0], [1], [0, 0, 1, 1], [], []>} : vector<512x64xbf16>, vector<64x256xbf16>, vector<512x256xf32> -> vector<512x256xf32>
    %c1152 = arith.constant 1152 : index
    %c0_26 = arith.constant 0 : index
    %44 = vector.load %arg3[%c1152, %c0_26] : memref<1920x256xbf16, #tpu.memory_space<vmem>>, vector<256x256xbf16>
    %cst_27 = arith.constant dense<0.000000e+00> : vector<512x256xf32>
    %45 = tpu.matmul %41, %44, %cst_27 {dimension_numbers = #tpu.dot_dimension_numbers<[1], [0], [0], [1], [0, 0, 1, 1], [], []>} : vector<512x256xbf16>, vector<256x256xbf16>, vector<512x256xf32> -> vector<512x256xf32>
    %46 = arith.addf %43, %45 : vector<512x256xf32>
    %c5 = arith.constant 5 : index
    %c0_28 = arith.constant 0 : index
    %47 = vector.load %arg4[%c5, %c0_28] : memref<8x256xf32, #tpu.memory_space<vmem>>, vector<1x256xf32>
    %48 = vector.broadcast %47 : vector<1x256xf32> to vector<512x256xf32>
    %49 = arith.addf %46, %48 : vector<512x256xf32>
    %cst_29 = arith.constant 0.000000e+00 : f32
    %50 = vector.broadcast %cst_29 : f32 to vector<512x256xf32>
    %51 = arith.maximumf %49, %50 : vector<512x256xf32>
    %52 = arith.truncf %51 : vector<512x256xf32> to vector<512x256xbf16>
    %c1408 = arith.constant 1408 : index
    %c0_30 = arith.constant 0 : index
    %53 = vector.load %arg3[%c1408, %c0_30] : memref<1920x256xbf16, #tpu.memory_space<vmem>>, vector<256x256xbf16>
    %c6 = arith.constant 6 : index
    %c0_31 = arith.constant 0 : index
    %54 = vector.load %arg4[%c6, %c0_31] : memref<8x256xf32, #tpu.memory_space<vmem>>, vector<1x256xf32>
    %cst_32 = arith.constant dense<0.000000e+00> : vector<512x256xf32>
    %55 = tpu.matmul %52, %53, %cst_32 {dimension_numbers = #tpu.dot_dimension_numbers<[1], [0], [0], [1], [0, 0, 1, 1], [], []>} : vector<512x256xbf16>, vector<256x256xbf16>, vector<512x256xf32> -> vector<512x256xf32>
    %56 = vector.broadcast %54 : vector<1x256xf32> to vector<512x256xf32>
    %57 = arith.addf %55, %56 : vector<512x256xf32>
    %cst_33 = arith.constant 0.000000e+00 : f32
    %58 = vector.broadcast %cst_33 : f32 to vector<512x256xf32>
    %59 = arith.maximumf %57, %58 : vector<512x256xf32>
    %60 = arith.truncf %59 : vector<512x256xf32> to vector<512x256xbf16>
    %c1664 = arith.constant 1664 : index
    %c0_34 = arith.constant 0 : index
    %61 = vector.load %arg3[%c1664, %c0_34] : memref<1920x256xbf16, #tpu.memory_space<vmem>>, vector<256x256xbf16>
    %c7 = arith.constant 7 : index
    %c0_35 = arith.constant 0 : index
    %62 = vector.load %arg4[%c7, %c0_35] : memref<8x256xf32, #tpu.memory_space<vmem>>, vector<1x256xf32>
    %cst_36 = arith.constant dense<0.000000e+00> : vector<512x256xf32>
    %63 = tpu.matmul %60, %61, %cst_36 {dimension_numbers = #tpu.dot_dimension_numbers<[1], [0], [0], [1], [0, 0, 1, 1], [], []>} : vector<512x256xbf16>, vector<256x256xbf16>, vector<512x256xf32> -> vector<512x256xf32>
    %64 = vector.broadcast %62 : vector<1x256xf32> to vector<512x256xf32>
    %65 = arith.addf %63, %64 : vector<512x256xf32>
    %cst_37 = arith.constant 0.000000e+00 : f32
    %66 = vector.broadcast %cst_37 : f32 to vector<512x256xf32>
    %67 = arith.maximumf %65, %66 : vector<512x256xf32>
    %68 = arith.truncf %67 : vector<512x256xf32> to vector<512x256xbf16>
    %c0_38 = arith.constant 0 : index
    %c0_39 = arith.constant 0 : index
    %69 = vector.load %arg5[%c0_38, %c0_39] : memref<256x256xbf16, #tpu.memory_space<vmem>>, vector<256x256xbf16>
    %c0_40 = arith.constant 0 : index
    %c0_41 = arith.constant 0 : index
    %70 = vector.load %arg6[%c0_40, %c0_41] : memref<8x256xf32, #tpu.memory_space<vmem>>, vector<1x256xf32>
    %cst_42 = arith.constant dense<0.000000e+00> : vector<512x256xf32>
    %71 = tpu.matmul %68, %69, %cst_42 {dimension_numbers = #tpu.dot_dimension_numbers<[1], [0], [0], [1], [0, 0, 1, 1], [], []>} : vector<512x256xbf16>, vector<256x256xbf16>, vector<512x256xf32> -> vector<512x256xf32>
    %72 = vector.broadcast %70 : vector<1x256xf32> to vector<512x256xf32>
    %73 = arith.addf %71, %72 : vector<512x256xf32>
    %74 = arith.truncf %73 : vector<512x256xf32> to vector<512x256xbf16>
    %75 = arith.extf %68 : vector<512x256xbf16> to vector<512x256xf32>
    %c1_43 = arith.constant 1 : index
    %c0_44 = arith.constant 0 : index
    %76 = vector.load %arg6[%c1_43, %c0_44] : memref<8x256xf32, #tpu.memory_space<vmem>>, vector<1x256xf32>
    %77 = vector.broadcast %76 : vector<1x256xf32> to vector<512x256xf32>
    %78 = arith.mulf %75, %77 : vector<512x256xf32>
    %cst_45 = arith.constant dense<0.000000e+00> : vector<512xf32>
    %79 = vector.multi_reduction <add>, %78, %cst_45 [1] : vector<512x256xf32> to vector<512xf32>
    %80 = vector.shape_cast %79 : vector<512xf32> to vector<512x1xf32>
    %c2_46 = arith.constant 2 : index
    %c0_47 = arith.constant 0 : index
    %81 = vector.load %arg6[%c2_46, %c0_47] : memref<8x256xf32, #tpu.memory_space<vmem>>, vector<1x1xf32>
    %82 = vector.broadcast %81 : vector<1x1xf32> to vector<512x1xf32>
    %83 = arith.addf %80, %82 : vector<512x1xf32>
    %c0_48 = arith.constant 0 : index
    %c0_49 = arith.constant 0 : index
    %84 = vector.load %arg7[%c0_48, %c0_49] : memref<448x128xbf16, #tpu.memory_space<vmem>>, vector<256x128xbf16>
    %cst_50 = arith.constant dense<0.000000e+00> : vector<512x128xf32>
    %85 = tpu.matmul %74, %84, %cst_50 {dimension_numbers = #tpu.dot_dimension_numbers<[1], [0], [0], [1], [0, 0, 1, 1], [], []>} : vector<512x256xbf16>, vector<256x128xbf16>, vector<512x128xf32> -> vector<512x128xf32>
    %c256 = arith.constant 256 : index
    %c0_51 = arith.constant 0 : index
    %86 = vector.load %arg7[%c256, %c0_51] : memref<448x128xbf16, #tpu.memory_space<vmem>>, vector<64x128xbf16>
    %cst_52 = arith.constant dense<0.000000e+00> : vector<512x128xf32>
    %87 = tpu.matmul %1, %86, %cst_52 {dimension_numbers = #tpu.dot_dimension_numbers<[1], [0], [0], [1], [0, 0, 1, 1], [], []>} : vector<512x64xbf16>, vector<64x128xbf16>, vector<512x128xf32> -> vector<512x128xf32>
    %88 = arith.addf %85, %87 : vector<512x128xf32>
    %c0_53 = arith.constant 0 : index
    %c0_54 = arith.constant 0 : index
    %89 = vector.load %arg8[%c0_53, %c0_54] : memref<2x128xf32, #tpu.memory_space<vmem>>, vector<1x128xf32>
    %90 = vector.broadcast %89 : vector<1x128xf32> to vector<512x128xf32>
    %91 = arith.addf %88, %90 : vector<512x128xf32>
    %cst_55 = arith.constant 0.000000e+00 : f32
    %92 = vector.broadcast %cst_55 : f32 to vector<512x128xf32>
    %93 = arith.maximumf %91, %92 : vector<512x128xf32>
    %94 = arith.truncf %93 : vector<512x128xf32> to vector<512x128xbf16>
    %c320_56 = arith.constant 320 : index
    %c0_57 = arith.constant 0 : index
    %95 = vector.load %arg7[%c320_56, %c0_57] : memref<448x128xbf16, #tpu.memory_space<vmem>>, vector<128x128xbf16>
    %c1_58 = arith.constant 1 : index
    %c0_59 = arith.constant 0 : index
    %96 = vector.load %arg8[%c1_58, %c0_59] : memref<2x128xf32, #tpu.memory_space<vmem>>, vector<1x128xf32>
    %cst_60 = arith.constant dense<0.000000e+00> : vector<512x128xf32>
    %97 = tpu.matmul %94, %95, %cst_60 {dimension_numbers = #tpu.dot_dimension_numbers<[1], [0], [0], [1], [0, 0, 1, 1], [], []>} : vector<512x128xbf16>, vector<128x128xbf16>, vector<512x128xf32> -> vector<512x128xf32>
    %98 = vector.broadcast %96 : vector<1x128xf32> to vector<512x128xf32>
    %99 = arith.addf %97, %98 : vector<512x128xf32>
    %100 = arith.negf %99 : vector<512x128xf32>
    %101 = math.exp %100 : vector<512x128xf32>
    %cst_61 = arith.constant 1.000000e+00 : f32
    %102 = vector.broadcast %cst_61 : f32 to vector<512x128xf32>
    %103 = arith.addf %102, %101 : vector<512x128xf32>
    %104 = arith.divf %102, %103 : vector<512x128xf32>
    %105 = tpu.iota {dimensions = array<i32: 1>} : vector<512x128xi32>
    %c3_i32 = arith.constant 3 : i32
    %106 = vector.broadcast %c3_i32 : i32 to vector<512x128xi32>
    %107 = arith.cmpi eq, %105, %106 : vector<512x128xi32>
    %108 = vector.shape_cast %83 : vector<512x1xf32> to vector<512x1xf32>
    %109 = vector.broadcast %108 : vector<512x1xf32> to vector<512x128xf32>
    %110 = arith.select %107, %109, %104 : vector<512x128xi1>, vector<512x128xf32>
    %c0_62 = arith.constant 0 : index
    %c0_63 = arith.constant 0 : index
    %111 = vector.load %arg9[%c0_62, %c0_63] : memref<512x128xf32, #tpu.memory_space<vmem>>, vector<512x128xf32>
    tpu.vector_store %arg9[%c0_62, %c0_63], %110 {strides = array<i32>} : memref<512x128xf32, #tpu.memory_space<vmem>>, vector<512x128xf32>,
    return
  }
  func.func @transform_0(%arg0: i32) -> (i32, i32) {
    %c0_i32 = arith.constant 0 : i32
    %c0_i32_0 = arith.constant 0 : i32
    return %arg0, %c0_i32 : i32, i32
  }
  func.func @transform_1(%arg0: i32) -> (i32, i32) {
    %c0_i32 = arith.constant 0 : i32
    %c0_i32_0 = arith.constant 0 : i32
    return %arg0, %c0_i32 : i32, i32
  }
  func.func @transform_2(%arg0: i32) -> (i32, i32) {
    %c0_i32 = arith.constant 0 : i32
    %c0_i32_0 = arith.constant 0 : i32
    %c0_i32_1 = arith.constant 0 : i32
    return %c0_i32, %c0_i32_0 : i32, i32
  }
  func.func @transform_3(%arg0: i32) -> (i32, i32) {
    %c0_i32 = arith.constant 0 : i32
    %c0_i32_0 = arith.constant 0 : i32
    %c0_i32_1 = arith.constant 0 : i32
    return %c0_i32, %c0_i32_0 : i32, i32
  }
  func.func @transform_4(%arg0: i32) -> (i32, i32) {
    %c0_i32 = arith.constant 0 : i32
    %c0_i32_0 = arith.constant 0 : i32
    %c0_i32_1 = arith.constant 0 : i32
    return %c0_i32, %c0_i32_0 : i32, i32
  }
  func.func @transform_5(%arg0: i32) -> (i32, i32) {
    %c0_i32 = arith.constant 0 : i32
    %c0_i32_0 = arith.constant 0 : i32
    %c0_i32_1 = arith.constant 0 : i32
    return %c0_i32, %c0_i32_0 : i32, i32
  }
  func.func @transform_6(%arg0: i32) -> (i32, i32) {
    %c0_i32 = arith.constant 0 : i32
    %c0_i32_0 = arith.constant 0 : i32
    %c0_i32_1 = arith.constant 0 : i32
    return %c0_i32, %c0_i32_0 : i32, i32
  }
  func.func @transform_7(%arg0: i32) -> (i32, i32) {
    %c0_i32 = arith.constant 0 : i32
    %c0_i32_0 = arith.constant 0 : i32
    %c0_i32_1 = arith.constant 0 : i32
    return %c0_i32, %c0_i32_0 : i32, i32
  }
  func.func @transform_8(%arg0: i32) -> (i32, i32) {
    %c0_i32 = arith.constant 0 : i32
    %c0_i32_0 = arith.constant 0 : i32
    return %arg0, %c0_i32 : i32, i32
  }
}

</mosaic_0001>

<llo_original>
// kernel: nerf_forward.1
$region0: #{nerf_forward.1}
  #allocation0 [shape = 'u32[]', space=smem, size = 0x4, offset = 0x4, fixed_abs, tag = 'smem constant byte address 0x4 - core index']
  #allocation1 [shape = 'u32[144,128]{1,0:T(1,128)}', space=vmem, size = 0x12000, scoped, tag = 'internal scratch']
  %s0 = inlined_call_operand.vmem [shape: bf16[2048,64], index: 0, kind: input, shape index: {}]
  %s1 = inlined_call_operand.vmem [shape: bf16[2048,64], index: 1, kind: input, shape index: {}]
  %s2 = inlined_call_operand.vmem [shape: bf16[1920,256], index: 2, kind: input, shape index: {}]
  %s3 = inlined_call_operand.vmem [shape: f32[8,256], index: 3, kind: input, shape index: {}]
  %s4 = inlined_call_operand.vmem [shape: bf16[256,256], index: 4, kind: input, shape index: {}]
  %s5 = inlined_call_operand.vmem [shape: f32[8,256], index: 5, kind: input, shape index: {}]
  %s6 = inlined_call_operand.vmem [shape: bf16[448,128], index: 6, kind: input, shape index: {}]
  %s7 = inlined_call_operand.vmem [shape: f32[2,128], index: 7, kind: input, shape index: {}]
  %s8 = inlined_call_operand.vmem [shape: f32[2048,128], index: 8, kind: output, shape index: {}]
  %s9 = sld [smem:[#allocation0]]
  $region65: #{nerf_forward.1} parent=0
    _
  %s11 = ssub.s32 1, %s9
  %s12 = scalar_select 0, %s11, %s9
  loop: start=0, step=1, limit=6
  $region2: #{nerf_forward.1} parent=0 // loop_pre_header
    _
  $region3: #{nerf_forward.1} parent=0 // loop_header
    %s14 = sphi 0, %s18
    %p15 = scmp.ge.s32.totalorder %s14, 6
    %s24 = sphi 0, %s26
    %s27 = sphi 0, %s24
    %s28 = sphi 0, %s27
    %s44 = sphi 0, %s28
    %s50 = sphi 0, %s52
    %s53 = sphi 0, %s50
    %s54 = sphi 0, %s53
    %s70 = sphi 0, %s54
    %s74 = sphi 0, %s74
    %s76 = sphi 0, %s74
    %s77 = sphi 0, %s76
    %s91 = sphi 0, %s77
    %s95 = sphi 0, %s95
    %s97 = sphi 0, %s95
    %s98 = sphi 0, %s97
    %s112 = sphi 0, %s98
    %s116 = sphi 0, %s116
    %s118 = sphi 0, %s116
    %s119 = sphi 0, %s118
    %s133 = sphi 0, %s119
    %s137 = sphi 0, %s137
    %s139 = sphi 0, %s137
    %s140 = sphi 0, %s139
    %s154 = sphi 0, %s140
    %s158 = sphi 0, %s158
    %s160 = sphi 0, %s158
    %s161 = sphi 0, %s160
    %s175 = sphi 0, %s161
    %s179 = sphi 0, %s179
    %s181 = sphi 0, %s179
    %s182 = sphi 0, %s181
    %s196 = sphi 0, %s182
    %s202 = sphi 0, %s204
    %s205 = sphi 0, %s202
    %s206 = sphi 0, %s205
    %s222 = sphi 0, %s206
  $region4: #{nerf_forward.1} parent=0 // loop_header_branch
    %17 = sbr.rel (%p15) target = $region8
  $region5: #{nerf_forward.1} parent=0 // loop_body
    %s19 = ssub.s32 %s14, 1
    %s20 = ssub.s32 %s14, 2
    %s21 = sadd.s32 %s14, 1
    %s22 = ssub.s32 %s14, %s21
    %p23 = scmp.eq.s32.totalorder %s22, 0
    %s25 = sadd.s32 %s24, 1
    %s26 = scalar_select %p23, %s24, %s25
    %p29 = pneg %p23
    %p30 = scmp.eq.s32.totalorder %s14, 3
    %p31 = por %p29, %p30
    %p32 = scmp.ne.s32.totalorder %s24, %s27
    %p33 = scmp.eq.s32.totalorder %s14, 0
    %p34 = por %p32, %p33
    %p35 = scmp.ne.s32.totalorder %s24, %s27
    %p36 = scmp.eq.s32.totalorder %s19, 3
    %p37 = por %p35, %p36
    %p38 = scmp.ne.s32.totalorder %s27, %s28
    %p39 = scmp.eq.s32.totalorder %s19, 0
    %p40 = por %p38, %p39
    %p41 = scmp.ne.s32.totalorder %s27, %s28
    %p42 = scmp.eq.s32.totalorder %s20, 3
    %p43 = por %p41, %p42
    %p45 = scmp.ne.s32.totalorder %s28, %s44
    %p46 = scmp.eq.s32.totalorder %s20, 0
    %p47 = por %p45, %p46
    %s48 = ssub.s32 %s14, %s21
    %p49 = scmp.eq.s32.totalorder %s48, 0
    %s51 = sadd.s32 %s50, 1
    %s52 = scalar_select %p49, %s50, %s51
    %p55 = pneg %p49
    %p56 = scmp.eq.s32.totalorder %s14, 3
    %p57 = por %p55, %p56
    %p58 = scmp.ne.s32.totalorder %s50, %s53
    %p59 = scmp.eq.s32.totalorder %s14, 0
    %p60 = por %p58, %p59
    %p61 = scmp.ne.s32.totalorder %s50, %s53
    %p62 = scmp.eq.s32.totalorder %s19, 3
    %p63 = por %p61, %p62
    %p64 = scmp.ne.s32.totalorder %s53, %s54
    %p65 = scmp.eq.s32.totalorder %s19, 0
    %p66 = por %p64, %p65
    %p67 = scmp.ne.s32.totalorder %s53, %s54
    %p68 = scmp.eq.s32.totalorder %s20, 3
    %p69 = por %p67, %p68
    %p71 = scmp.ne.s32.totalorder %s54, %s70
    %p72 = scmp.eq.s32.totalorder %s20, 0
    %p73 = por %p71, %p72
    %s75 = sadd.s32 %s74, 1
    %p78 = scmp.eq.s32.totalorder %s14, 3
    %p79 = scmp.ne.s32.totalorder %s74, %s76
    %p80 = scmp.eq.s32.totalorder %s14, 0
    %p81 = por %p79, %p80
    %p82 = scmp.ne.s32.totalorder %s74, %s76
    %p83 = scmp.eq.s32.totalorder %s19, 3
    %p84 = por %p82, %p83
    %p85 = scmp.ne.s32.totalorder %s76, %s77
    %p86 = scmp.eq.s32.totalorder %s19, 0
    %p87 = por %p85, %p86
    %p88 = scmp.ne.s32.totalorder %s76, %s77
    %p89 = scmp.eq.s32.totalorder %s20, 3
    %p90 = por %p88, %p89
    %p92 = scmp.ne.s32.totalorder %s77, %s91
    %p93 = scmp.eq.s32.totalorder %s20, 0
    %p94 = por %p92, %p93
    %s96 = sadd.s32 %s95, 1
    %p99 = scmp.eq.s32.totalorder %s14, 3
    %p100 = scmp.ne.s32.totalorder %s95, %s97
    %p101 = scmp.eq.s32.totalorder %s14, 0
    %p102 = por %p100, %p101
    %p103 = scmp.ne.s32.totalorder %s95, %s97
    %p104 = scmp.eq.s32.totalorder %s19, 3
    %p105 = por %p103, %p104
    %p106 = scmp.ne.s32.totalorder %s97, %s98
    %p107 = scmp.eq.s32.totalorder %s19, 0
    %p108 = por %p106, %p107
    %p109 = scmp.ne.s32.totalorder %s97, %s98
    %p110 = scmp.eq.s32.totalorder %s20, 3
    %p111 = por %p109, %p110
    %p113 = scmp.ne.s32.totalorder %s98, %s112
    %p114 = scmp.eq.s32.totalorder %s20, 0
    %p115 = por %p113, %p114
    %s117 = sadd.s32 %s116, 1
    %p120 = scmp.eq.s32.totalorder %s14, 3
    %p121 = scmp.ne.s32.totalorder %s116, %s118
    %p122 = scmp.eq.s32.totalorder %s14, 0
    %p123 = por %p121, %p122
    %p124 = scmp.ne.s32.totalorder %s116, %s118
    %p125 = scmp.eq.s32.totalorder %s19, 3
    %p126 = por %p124, %p125
    %p127 = scmp.ne.s32.totalorder %s118, %s119
    %p128 = scmp.eq.s32.totalorder %s19, 0
    %p129 = por %p127, %p128
    %p130 = scmp.ne.s32.totalorder %s118, %s119
    %p131 = scmp.eq.s32.totalorder %s20, 3
    %p132 = por %p130, %p131
    %p134 = scmp.ne.s32.totalorder %s119, %s133
    %p135 = scmp.eq.s32.totalorder %s20, 0
    %p136 = por %p134, %p135
    %s138 = sadd.s32 %s137, 1
    %p141 = scmp.eq.s32.totalorder %s14, 3
    %p142 = scmp.ne.s32.totalorder %s137, %s139
    %p143 = scmp.eq.s32.totalorder %s14, 0
    %p144 = por %p142, %p143
    %p145 = scmp.ne.s32.totalorder %s137, %s139
    %p146 = scmp.eq.s32.totalorder %s19, 3
    %p147 = por %p145, %p146
    %p148 = scmp.ne.s32.totalorder %s139, %s140
    %p149 = scmp.eq.s32.totalorder %s19, 0
    %p150 = por %p148, %p149
    %p151 = scmp.ne.s32.totalorder %s139, %s140
    %p152 = scmp.eq.s32.totalorder %s20, 3
    %p153 = por %p151, %p152
    %p155 = scmp.ne.s32.totalorder %s140, %s154
    %p156 = scmp.eq.s32.totalorder %s20, 0
    %p157 = por %p155, %p156
    %s159 = sadd.s32 %s158, 1
    %p162 = scmp.eq.s32.totalorder %s14, 3
    %p163 = scmp.ne.s32.totalorder %s158, %s160
    %p164 = scmp.eq.s32.totalorder %s14, 0
    %p165 = por %p163, %p164
    %p166 = scmp.ne.s32.totalorder %s158, %s160
    %p167 = scmp.eq.s32.totalorder %s19, 3
    %p168 = por %p166, %p167
    %p169 = scmp.ne.s32.totalorder %s160, %s161
    %p170 = scmp.eq.s32.totalorder %s19, 0
    %p171 = por %p169, %p170
    %p172 = scmp.ne.s32.totalorder %s160, %s161
    %p173 = scmp.eq.s32.totalorder %s20, 3
    %p174 = por %p172, %p173
    %p176 = scmp.ne.s32.totalorder %s161, %s175
    %p177 = scmp.eq.s32.totalorder %s20, 0
    %p178 = por %p176, %p177
    %s180 = sadd.s32 %s179, 1
    %p183 = scmp.eq.s32.totalorder %s14, 3
    %p184 = scmp.ne.s32.totalorder %s179, %s181
    %p185 = scmp.eq.s32.totalorder %s14, 0
    %p186 = por %p184, %p185
    %p187 = scmp.ne.s32.totalorder %s179, %s181
    %p188 = scmp.eq.s32.totalorder %s19, 3
    %p189 = por %p187, %p188
    %p190 = scmp.ne.s32.totalorder %s181, %s182
    %p191 = scmp.eq.s32.totalorder %s19, 0
    %p192 = por %p190, %p191
    %p193 = scmp.ne.s32.totalorder %s181, %s182
    %p194 = scmp.eq.s32.totalorder %s20, 3
    %p195 = por %p193, %p194
    %p197 = scmp.ne.s32.totalorder %s182, %s196
    %p198 = scmp.eq.s32.totalorder %s20, 0
    %p199 = por %p197, %p198
    %s200 = ssub.s32 %s14, %s21
    %p201 = scmp.eq.s32.totalorder %s200, 0
    %s203 = sadd.s32 %s202, 1
    %s204 = scalar_select %p201, %s202, %s203
    %p207 = pneg %p201
    %p208 = scmp.eq.s32.totalorder %s14, 3
    %p209 = por %p207, %p208
    %p210 = scmp.ne.s32.totalorder %s202, %s205
    %p211 = scmp.eq.s32.totalorder %s14, 0
    %p212 = por %p210, %p211
    %p213 = scmp.ne.s32.totalorder %s202, %s205
    %p214 = scmp.eq.s32.totalorder %s19, 3
    %p215 = por %p213, %p214
    %p216 = scmp.ne.s32.totalorder %s205, %s206
    %p217 = scmp.eq.s32.totalorder %s19, 0
    %p218 = por %p216, %p217
    %p219 = scmp.ne.s32.totalorder %s205, %s206
    %p220 = scmp.eq.s32.totalorder %s20, 3
    %p221 = por %p219, %p220
    %p223 = scmp.ne.s32.totalorder %s206, %s222
    %p224 = scmp.eq.s32.totalorder %s20, 0
    %p225 = por %p223, %p224
    %p226 = scmp.le.s32.totalorder 1, %s14
    %p227 = scmp.lt.s32.totalorder %s14, 5
    %p228 = pnand %p226, %p227
    %p229 = pneg %p228
    // Predicated region
    $region9: #{nerf_forward.1} parent=5 // pred_check
      _
    $region10: #{nerf_forward.1} parent=5 // pred_check_branch
      %231 = sbr.rel (%p228) target = $region12
    $region11: #{nerf_forward.1} parent=5 // pred_region
      %s232 = ssub.s32 %s14, 1
      // Predicated region
      $region13: #{nerf_forward.1} parent=11 // pred_check
        %p233 = pneg %p87
      $region14: #{nerf_forward.1} parent=11 // pred_check_branch
        %235 = sbr.rel (%p233) target = $region16
      $region15: #{nerf_forward.1} parent=11 // pred_region
        _
      $region16: #{nerf_forward.1} parent=11 // pred_fallthru
        _
      // Predicated region
      $region17: #{nerf_forward.1} parent=11 // pred_check
        %p236 = pneg %p108
      $region18: #{nerf_forward.1} parent=11 // pred_check_branch
        %238 = sbr.rel (%p236) target = $region20
      $region19: #{nerf_forward.1} parent=11 // pred_region
        _
      $region20: #{nerf_forward.1} parent=11 // pred_fallthru
        _
      // Predicated region
      $region21: #{nerf_forward.1} parent=11 // pred_check
        %p239 = pneg %p129
      $region22: #{nerf_forward.1} parent=11 // pred_check_branch
        %241 = sbr.rel (%p239) target = $region24
      $region23: #{nerf_forward.1} parent=11 // pred_region
        _
      $region24: #{nerf_forward.1} parent=11 // pred_fallthru
        _
      // Predicated region
      $region25: #{nerf_forward.1} parent=11 // pred_check
        %p242 = pneg %p150
      $region26: #{nerf_forward.1} parent=11 // pred_check_branch
        %244 = sbr.rel (%p242) target = $region28
      $region27: #{nerf_forward.1} parent=11 // pred_region
        _
      $region28: #{nerf_forward.1} parent=11 // pred_fallthru
        _
      // Predicated region
      $region29: #{nerf_forward.1} parent=11 // pred_check
        %p245 = pneg %p171
      $region30: #{nerf_forward.1} parent=11 // pred_check_branch
        %247 = sbr.rel (%p245) target = $region32
      $region31: #{nerf_forward.1} parent=11 // pred_region
        _
      $region32: #{nerf_forward.1} parent=11 // pred_fallthru
        _
      // Predicated region
      $region33: #{nerf_forward.1} parent=11 // pred_check
        %p248 = pneg %p192
      $region34: #{nerf_forward.1} parent=11 // pred_check_branch
        %250 = sbr.rel (%p248) target = $region36
      $region35: #{nerf_forward.1} parent=11 // pred_region
        _
      $region36: #{nerf_forward.1} parent=11 // pred_fallthru
        _
    $region12: #{nerf_forward.1} parent=5 // pred_fallthru
      _
    %p251 = scmp.lt.s32.totalorder %s14, 4
    // Predicated region
    $region37: #{nerf_forward.1} parent=5 // pred_check
      %p252 = pneg %p251
    $region38: #{nerf_forward.1} parent=5 // pred_check_branch
      %254 = sbr.rel (%p252) target = $region40
    $region39: #{nerf_forward.1} parent=5 // pred_region
      // Predicated region
      $region41: #{nerf_forward.1} parent=39 // pred_check
        %p255 = pneg %p34
      $region42: #{nerf_forward.1} parent=39 // pred_check_branch
        %257 = sbr.rel (%p255) target = $region44
      $region43: #{nerf_forward.1} parent=39 // pred_region
        %s258 = smul.u32 64, %s14
        %p259 = scmp.lt.s32.totalorder %s258, 255
        %s260 = scalar_select %p259, %s258, 255
        %s261 = smul.addr %s260, 4
        %s262 = scalar_lea.vmem %s0, %s261
        %s263 = smul.u32 64, %s14
      $region44: #{nerf_forward.1} parent=39 // pred_fallthru
        _
      // Predicated region
      $region45: #{nerf_forward.1} parent=39 // pred_check
        %p264 = pneg %p60
      $region46: #{nerf_forward.1} parent=39 // pred_check_branch
        %266 = sbr.rel (%p264) target = $region48
      $region47: #{nerf_forward.1} parent=39 // pred_region
        %s267 = smul.u32 64, %s14
        %p268 = scmp.lt.s32.totalorder %s267, 255
        %s269 = scalar_select %p268, %s267, 255
        %s270 = smul.addr %s269, 4
        %s271 = scalar_lea.vmem %s1, %s270
        %s272 = smul.u32 64, %s14
      $region48: #{nerf_forward.1} parent=39 // pred_fallthru
        _
    $region40: #{nerf_forward.1} parent=5 // pred_fallthru
      _
    %p273 = scmp.le.s32.totalorder 1, %s14
    %p274 = scmp.lt.s32.totalorder %s14, 5
    %p275 = pnand %p273, %p274
    %p276 = pneg %p275
    // Predicated region
    $region49: #{nerf_forward.1} parent=5 // pred_check
      _
    $region50: #{nerf_forward.1} parent=5 // pred_check_branch
      %278 = sbr.rel (%p275) target = $region52
    $region51: #{nerf_forward.1} parent=5 // pred_region
      %s279 = ssub.s32 %s14, 1
      %s280 = smul.u32 64, %s19
      %p281 = scmp.lt.s32.totalorder %s280, 255
      %s282 = scalar_select %p281, %s280, 255
      %s283 = smul.addr %s282, 4
      %s284 = scalar_lea.vmem %s0, %s283
      %p285 = pneg %p40
      %p286 = pneg %p37
      %s287 = smul.u32 64, %s19
      %p288 = scmp.lt.s32.totalorder %s287, 255
      %s289 = scalar_select %p288, %s287, 255
      %s290 = smul.addr %s289, 4
      %s291 = scalar_lea.vmem %s1, %s290
      %p292 = pneg %p66
      %p293 = pneg %p63
      %p294 = pneg %p87
      %p295 = pneg %p84
      %p296 = pneg %p108
      %p297 = pneg %p105
      %p298 = pneg %p129
      %p299 = pneg %p126
      %p300 = pneg %p150
      %p301 = pneg %p147
      %p302 = pneg %p171
      %p303 = pneg %p168
      %p304 = pneg %p192
      %p305 = pneg %p189
      %p306 = pneg %p218
      %p307 = pneg %p215
      %s308 = smul.u32 64, %s19
      %p309 = scmp.lt.s32.totalorder %s308, 255
      %s310 = scalar_select %p309, %s308, 255
      %s311 = smul.addr %s310, 8
      %s312 = scalar_lea.vmem %s8, %s311
      %s313 = smul.u32 64, %s19
      %p314 = scmp.lt.s32.totalorder %s313, 255
      %s315 = scalar_select %p314, %s313, 255
      %s316 = smul.addr %s315, 4
      %s317 = scalar_lea.vmem %s0, %s316
      %s318 = smul.u32 64, %s19
      %s319 = smul.u32 64, %s19
      %p320 = scmp.lt.s32.totalorder %s319, 255
      %s321 = scalar_select %p320, %s319, 255
      %s322 = smul.addr %s321, 4
      %s323 = scalar_lea.vmem %s1, %s322
      %s324 = smul.u32 64, %s19
      %s325 = smul.u32 64, %s19
      %p326 = scmp.lt.s32.totalorder %s325, 255
      %s327 = scalar_select %p326, %s325, 255
      %s328 = smul.addr %s327, 8
      %s329 = scalar_lea.vmem %s8, %s328
      %s330 = smul.u32 64, %s19
      %v332 = vld [vmem:[%s317] sm:$0xf]
      %v333 = vld [vmem:[%s317 + $0x4] sm:$0xf]
      %v334 = vld [vmem:[%s317 + $0x8] sm:$0xf]
      %v335 = vld [vmem:[%s317 + $0xc] sm:$0xf]
      %v336 = vld [vmem:[%s317 + $0x10] sm:$0xf]
      %v337 = vld [vmem:[%s317 + $0x14] sm:$0xf]
      %v338 = vld [vmem:[%s317 + $0x18] sm:$0xf]
      %v339 = vld [vmem:[%s317 + $0x1c] sm:$0xf]
      %v340 = vld [vmem:[%s317 + $0x20] sm:$0xf]
      %v341 = vld [vmem:[%s317 + $0x24] sm:$0xf]
      %v342 = vld [vmem:[%s317 + $0x28] sm:$0xf]
      %v343 = vld [vmem:[%s317 + $0x2c] sm:$0xf]
      %v344 = vld [vmem:[%s317 + $0x30] sm:$0xf]
      %v345 = vld [vmem:[%s317 + $0x34] sm:$0xf]
      %v346 = vld [vmem:[%s317 + $0x38] sm:$0xf]
      %v347 = vld [vmem:[%s317 + $0x3c] sm:$0xf]
      %v348 = vld [vmem:[%s317 + $0x40] sm:$0xf]
      %v349 = vld [vmem:[%s317 + $0x44] sm:$0xf]
      %v350 = vld [vmem:[%s317 + $0x48] sm:$0xf]
      %v351 = vld [vmem:[%s317 + $0x4c] sm:$0xf]
      %v352 = vld [vmem:[%s317 + $0x50] sm:$0xf]
      %v353 = vld [vmem:[%s317 + $0x54] sm:$0xf]
      %v354 = vld [vmem:[%s317 + $0x58] sm:$0xf]
      %v355 = vld [vmem:[%s317 + $0x5c] sm:$0xf]
      %v356 = vld [vmem:[%s317 + $0x60] sm:$0xf]
      %v357 = vld [vmem:[%s317 + $0x64] sm:$0xf]
      %v358 = vld [vmem:[%s317 + $0x68] sm:$0xf]
      %v359 = vld [vmem:[%s317 + $0x6c] sm:$0xf]
      %v360 = vld [vmem:[%s317 + $0x70] sm:$0xf]
      %v361 = vld [vmem:[%s317 + $0x74] sm:$0xf]
      %v362 = vld [vmem:[%s317 + $0x78] sm:$0xf]
      %v363 = vld [vmem:[%s317 + $0x7c] sm:$0xf]
      %v364 = vld [vmem:[%s317 + $0x80] sm:$0xf]
      %v365 = vld [vmem:[%s317 + $0x84] sm:$0xf]
      %v366 = vld [vmem:[%s317 + $0x88] sm:$0xf]
      %v367 = vld [vmem:[%s317 + $0x8c] sm:$0xf]
      %v368 = vld [vmem:[%s317 + $0x90] sm:$0xf]
      %v369 = vld [vmem:[%s317 + $0x94] sm:$0xf]
      %v370 = vld [vmem:[%s317 + $0x98] sm:$0xf]
      %v371 = vld [vmem:[%s317 + $0x9c] sm:$0xf]
      %v372 = vld [vmem:[%s317 + $0xa0] sm:$0xf]
      %v373 = vld [vmem:[%s317 + $0xa4] sm:$0xf]
      %v374 = vld [vmem:[%s317 + $0xa8] sm:$0xf]
      %v375 = vld [vmem:[%s317 + $0xac] sm:$0xf]
      %v376 = vld [vmem:[%s317 + $0xb0] sm:$0xf]
      %v377 = vld [vmem:[%s317 + $0xb4] sm:$0xf]
      %v378 = vld [vmem:[%s317 + $0xb8] sm:$0xf]
      %v379 = vld [vmem:[%s317 + $0xbc] sm:$0xf]
      %v380 = vld [vmem:[%s317 + $0xc0] sm:$0xf]
      %v381 = vld [vmem:[%s317 + $0xc4] sm:$0xf]
      %v382 = vld [vmem:[%s317 + $0xc8] sm:$0xf]
      %v383 = vld [vmem:[%s317 + $0xcc] sm:$0xf]
      %v384 = vld [vmem:[%s317 + $0xd0] sm:$0xf]
      %v385 = vld [vmem:[%s317 + $0xd4] sm:$0xf]
      %v386 = vld [vmem:[%s317 + $0xd8] sm:$0xf]
      %v387 = vld [vmem:[%s317 + $0xdc] sm:$0xf]
      %v388 = vld [vmem:[%s317 + $0xe0] sm:$0xf]
      %v389 = vld [vmem:[%s317 + $0xe4] sm:$0xf]
      %v390 = vld [vmem:[%s317 + $0xe8] sm:$0xf]
      %v391 = vld [vmem:[%s317 + $0xec] sm:$0xf]
      %v392 = vld [vmem:[%s317 + $0xf0] sm:$0xf]
      %v393 = vld [vmem:[%s317 + $0xf4] sm:$0xf]
      %v394 = vld [vmem:[%s317 + $0xf8] sm:$0xf]
      %v395 = vld [vmem:[%s317 + $0xfc] sm:$0xf]
      %v396 = vld [vmem:[%s323] sm:$0xf]
      %v397 = vld [vmem:[%s323 + $0x4] sm:$0xf]
      %v398 = vld [vmem:[%s323 + $0x8] sm:$0xf]
      %v399 = vld [vmem:[%s323 + $0xc] sm:$0xf]
      %v400 = vld [vmem:[%s323 + $0x10] sm:$0xf]
      %v401 = vld [vmem:[%s323 + $0x14] sm:$0xf]
      %v402 = vld [vmem:[%s323 + $0x18] sm:$0xf]
      %v403 = vld [vmem:[%s323 + $0x1c] sm:$0xf]
      %v404 = vld [vmem:[%s323 + $0x20] sm:$0xf]
      %v405 = vld [vmem:[%s323 + $0x24] sm:$0xf]
      %v406 = vld [vmem:[%s323 + $0x28] sm:$0xf]
      %v407 = vld [vmem:[%s323 + $0x2c] sm:$0xf]
      %v408 = vld [vmem:[%s323 + $0x30] sm:$0xf]
      %v409 = vld [vmem:[%s323 + $0x34] sm:$0xf]
      %v410 = vld [vmem:[%s323 + $0x38] sm:$0xf]
      %v411 = vld [vmem:[%s323 + $0x3c] sm:$0xf]
      %v412 = vld [vmem:[%s323 + $0x40] sm:$0xf]
      %v413 = vld [vmem:[%s323 + $0x44] sm:$0xf]
      %v414 = vld [vmem:[%s323 + $0x48] sm:$0xf]
      %v415 = vld [vmem:[%s323 + $0x4c] sm:$0xf]
      %v416 = vld [vmem:[%s323 + $0x50] sm:$0xf]
      %v417 = vld [vmem:[%s323 + $0x54] sm:$0xf]
      %v418 = vld [vmem:[%s323 + $0x58] sm:$0xf]
      %v419 = vld [vmem:[%s323 + $0x5c] sm:$0xf]
      %v420 = vld [vmem:[%s323 + $0x60] sm:$0xf]
      %v421 = vld [vmem:[%s323 + $0x64] sm:$0xf]
      %v422 = vld [vmem:[%s323 + $0x68] sm:$0xf]
      %v423 = vld [vmem:[%s323 + $0x6c] sm:$0xf]
      %v424 = vld [vmem:[%s323 + $0x70] sm:$0xf]
      %v425 = vld [vmem:[%s323 + $0x74] sm:$0xf]
      %v426 = vld [vmem:[%s323 + $0x78] sm:$0xf]
      %v427 = vld [vmem:[%s323 + $0x7c] sm:$0xf]
      %v428 = vld [vmem:[%s323 + $0x80] sm:$0xf]
      %v429 = vld [vmem:[%s323 + $0x84] sm:$0xf]
      %v430 = vld [vmem:[%s323 + $0x88] sm:$0xf]
      %v431 = vld [vmem:[%s323 + $0x8c] sm:$0xf]
      %v432 = vld [vmem:[%s323 + $0x90] sm:$0xf]
      %v433 = vld [vmem:[%s323 + $0x94] sm:$0xf]
      %v434 = vld [vmem:[%s323 + $0x98] sm:$0xf]
      %v435 = vld [vmem:[%s323 + $0x9c] sm:$0xf]
      %v436 = vld [vmem:[%s323 + $0xa0] sm:$0xf]
      %v437 = vld [vmem:[%s323 + $0xa4] sm:$0xf]
      %v438 = vld [vmem:[%s323 + $0xa8] sm:$0xf]
      %v439 = vld [vmem:[%s323 + $0xac] sm:$0xf]
      %v440 = vld [vmem:[%s323 + $0xb0] sm:$0xf]
      %v441 = vld [vmem:[%s323 + $0xb4] sm:$0xf]
      %v442 = vld [vmem:[%s323 + $0xb8] sm:$0xf]
      %v443 = vld [vmem:[%s323 + $0xbc] sm:$0xf]
      %v444 = vld [vmem:[%s323 + $0xc0] sm:$0xf]
      %v445 = vld [vmem:[%s323 + $0xc4] sm:$0xf]
      %v446 = vld [vmem:[%s323 + $0xc8] sm:$0xf]
      %v447 = vld [vmem:[%s323 + $0xcc] sm:$0xf]
      %v448 = vld [vmem:[%s323 + $0xd0] sm:$0xf]
      %v449 = vld [vmem:[%s323 + $0xd4] sm:$0xf]
      %v450 = vld [vmem:[%s323 + $0xd8] sm:$0xf]
      %v451 = vld [vmem:[%s323 + $0xdc] sm:$0xf]
      %v452 = vld [vmem:[%s323 + $0xe0] sm:$0xf]
      %v453 = vld [vmem:[%s323 + $0xe4] sm:$0xf]
      %v454 = vld [vmem:[%s323 + $0xe8] sm:$0xf]
      %v455 = vld [vmem:[%s323 + $0xec] sm:$0xf]
      %v456 = vld [vmem:[%s323 + $0xf0] sm:$0xf]
      %v457 = vld [vmem:[%s323 + $0xf4] sm:$0xf]
      %v458 = vld [vmem:[%s323 + $0xf8] sm:$0xf]
      %v459 = vld [vmem:[%s323 + $0xfc] sm:$0xf]
      %v460 = vld [vmem:[%s2] sm:$0xff]
      %v461 = vld [vmem:[%s2 + $0x8] sm:$0xff]
      %v462 = vld [vmem:[%s2 + $0x10] sm:$0xff]
      %v463 = vld [vmem:[%s2 + $0x18] sm:$0xff]
      %v464 = vld [vmem:[%s2 + $0x20] sm:$0xff]
      %v465 = vld [vmem:[%s2 + $0x28] sm:$0xff]
      %v466 = vld [vmem:[%s2 + $0x30] sm:$0xff]
      %v467 = vld [vmem:[%s2 + $0x38] sm:$0xff]
      %v468 = vld [vmem:[%s3] ss:$8 sm:$0x3]
      %v470 = vlaneseq
      %v471 = vshrl.u32 %v470, 7
      %v472 = vsub.s32 0, %v471
      %v473 = vrot.slane %v468, %v472
      %v474 = vlaneseq
      %v475 = vshrl.u32 %v474, 7
      %v476 = vsub.s32 1, %v475
      %v477 = vrot.slane %v468, %v476
      %v544 = vunpack.c.l.b16 %v332
      %v545 = vunpack.c.l.b16 %v333
      %v546 = vunpack.c.l.b16 %v334
      %v547 = vunpack.c.l.b16 %v335
      %v548 = vunpack.c.l.b16 %v336
      %v549 = vunpack.c.l.b16 %v337
      %v550 = vunpack.c.l.b16 %v338
      %v551 = vunpack.c.l.b16 %v339
      %v552 = vunpack.c.l.b16 %v340
      %v553 = vunpack.c.l.b16 %v341
      %v554 = vunpack.c.l.b16 %v342
      %v555 = vunpack.c.l.b16 %v343
      %v556 = vunpack.c.l.b16 %v344
      %v557 = vunpack.c.l.b16 %v345
      %v558 = vunpack.c.l.b16 %v346
      %v559 = vunpack.c.l.b16 %v347
      %v560 = vunpack.c.l.b16 %v348
      %v561 = vunpack.c.l.b16 %v349
      %v562 = vunpack.c.l.b16 %v350
      %v563 = vunpack.c.l.b16 %v351
      %v564 = vunpack.c.l.b16 %v352
      %v565 = vunpack.c.l.b16 %v353
      %v566 = vunpack.c.l.b16 %v354
      %v567 = vunpack.c.l.b16 %v355
      %v568 = vunpack.c.l.b16 %v356
      %v569 = vunpack.c.l.b16 %v357
      %v570 = vunpack.c.l.b16 %v358
      %v571 = vunpack.c.l.b16 %v359
      %v572 = vunpack.c.l.b16 %v360
      %v573 = vunpack.c.l.b16 %v361
      %v574 = vunpack.c.l.b16 %v362
      %v575 = vunpack.c.l.b16 %v363
      %v576 = vunpack.c.l.b16 %v364
      %v577 = vunpack.c.l.b16 %v365
      %v578 = vunpack.c.l.b16 %v366
      %v579 = vunpack.c.l.b16 %v367
      %v580 = vunpack.c.l.b16 %v368
      %v581 = vunpack.c.l.b16 %v369
      %v582 = vunpack.c.l.b16 %v370
      %v583 = vunpack.c.l.b16 %v371
      %v584 = vunpack.c.l.b16 %v372
      %v585 = vunpack.c.l.b16 %v373
      %v586 = vunpack.c.l.b16 %v374
      %v587 = vunpack.c.l.b16 %v375
      %v588 = vunpack.c.l.b16 %v376
      %v589 = vunpack.c.l.b16 %v377
      %v590 = vunpack.c.l.b16 %v378
      %v591 = vunpack.c.l.b16 %v379
      %v592 = vunpack.c.l.b16 %v380
      %v593 = vunpack.c.l.b16 %v381
      %v594 = vunpack.c.l.b16 %v382
      %v595 = vunpack.c.l.b16 %v383
      %v596 = vunpack.c.l.b16 %v384
      %v597 = vunpack.c.l.b16 %v385
      %v598 = vunpack.c.l.b16 %v386
      %v599 = vunpack.c.l.b16 %v387
      %v600 = vunpack.c.l.b16 %v388
      %v601 = vunpack.c.l.b16 %v389
      %v602 = vunpack.c.l.b16 %v390
      %v603 = vunpack.c.l.b16 %v391
      %v604 = vunpack.c.l.b16 %v392
      %v605 = vunpack.c.l.b16 %v393
      %v606 = vunpack.c.l.b16 %v394
      %v607 = vunpack.c.l.b16 %v395
      %v608 = vpack.c.b16 %v545, %v544
      %v609 = vpack.c.b16 %v547, %v546
      %v610 = vpack.c.b16 %v549, %v548
      %v611 = vpack.c.b16 %v551, %v550
      %v612 = vpack.c.b16 %v553, %v552
      %v613 = vpack.c.b16 %v555, %v554
      %v614 = vpack.c.b16 %v557, %v556
      %v615 = vpack.c.b16 %v559, %v558
      %v616 = vpack.c.b16 %v561, %v560
      %v617 = vpack.c.b16 %v563, %v562
      %v618 = vpack.c.b16 %v565, %v564
      %v619 = vpack.c.b16 %v567, %v566
      %v620 = vpack.c.b16 %v569, %v568
      %v621 = vpack.c.b16 %v571, %v570
      %v622 = vpack.c.b16 %v573, %v572
      %v623 = vpack.c.b16 %v575, %v574
      %v624 = vpack.c.b16 %v577, %v576
      %v625 = vpack.c.b16 %v579, %v578
      %v626 = vpack.c.b16 %v581, %v580
      %v627 = vpack.c.b16 %v583, %v582
      %v628 = vpack.c.b16 %v585, %v584
      %v629 = vpack.c.b16 %v587, %v586
      %v630 = vpack.c.b16 %v589, %v588
      %v631 = vpack.c.b16 %v591, %v590
      %v632 = vpack.c.b16 %v593, %v592
      %v633 = vpack.c.b16 %v595, %v594
      %v634 = vpack.c.b16 %v597, %v596
      %v635 = vpack.c.b16 %v599, %v598
      %v636 = vpack.c.b16 %v601, %v600
      %v637 = vpack.c.b16 %v603, %v602
      %v638 = vpack.c.b16 %v605, %v604
      %v639 = vpack.c.b16 %v607, %v606
      %v648 = vunpack.c.l.b16 %v460
      %v649 = vunpack.c.h.b16 %v460
      %v650 = vunpack.c.l.b16 %v461
      %v651 = vunpack.c.h.b16 %v461
      %v652 = vunpack.c.l.b16 %v462
      %v653 = vunpack.c.h.b16 %v462
      %v654 = vunpack.c.l.b16 %v463
      %v655 = vunpack.c.h.b16 %v463
      %v656 = vunpack.c.l.b16 %v464
      %v657 = vunpack.c.h.b16 %v464
      %v658 = vunpack.c.l.b16 %v465
      %v659 = vunpack.c.h.b16 %v465
      %v660 = vunpack.c.l.b16 %v466
      %v661 = vunpack.c.h.b16 %v466
      %v662 = vunpack.c.l.b16 %v467
      %v663 = vunpack.c.h.b16 %v467
      %v664 = vpack.c.b16 %v650, %v648
      %v665 = vpack.c.b16 %v651, %v649
      %v666 = vpack.c.b16 %v654, %v652
      %v667 = vpack.c.b16 %v655, %v653
      %v668 = vpack.c.b16 %v658, %v656
      %v669 = vpack.c.b16 %v659, %v657
      %v670 = vpack.c.b16 %v662, %v660
      %v671 = vpack.c.b16 %v663, %v661
      %vm680 = vcmask 523264
      %v682 = vsel %vm680, %v608, 0
      %v685 = vsel %vm680, %v609, 0
      %v688 = vsel %vm680, %v610, 0
      %v691 = vsel %vm680, %v611, 0
      %v694 = vsel %vm680, %v612, 0
      %v697 = vsel %vm680, %v613, 0
      %v700 = vsel %vm680, %v614, 0
      %v703 = vsel %vm680, %v615, 0
      %v706 = vsel %vm680, %v616, 0
      %v709 = vsel %vm680, %v617, 0
      %v712 = vsel %vm680, %v618, 0
      %v715 = vsel %vm680, %v619, 0
      %v718 = vsel %vm680, %v620, 0
      %v721 = vsel %vm680, %v621, 0
      %v724 = vsel %vm680, %v622, 0
      %v727 = vsel %vm680, %v623, 0
      %v730 = vsel %vm680, %v624, 0
      %v733 = vsel %vm680, %v625, 0
      %v736 = vsel %vm680, %v626, 0
      %v739 = vsel %vm680, %v627, 0
      %v742 = vsel %vm680, %v628, 0
      %v745 = vsel %vm680, %v629, 0
      %v748 = vsel %vm680, %v630, 0
      %v751 = vsel %vm680, %v631, 0
      %v754 = vsel %vm680, %v632, 0
      %v757 = vsel %vm680, %v633, 0
      %v760 = vsel %vm680, %v634, 0
      %v763 = vsel %vm680, %v635, 0
      %v766 = vsel %vm680, %v636, 0
      %v769 = vsel %vm680, %v637, 0
      %v772 = vsel %vm680, %v638, 0
      %v775 = vsel %vm680, %v639, 0
      %777 = vmatprep.subr.bf16.mxu0 0
      %778 = vmatpush1.bf16.msra.mxu0 0
      %779 = vmatprep.subr.bf16.mxu0 0
      %780 = vmatpush1.bf16.msra.mxu0 0
      %781 = vmatprep.subr.bf16.mxu0 0
      %782 = vmatpush1.bf16.msra.mxu0 0
      %783 = vmatprep.subr.bf16.mxu0 0
      %784 = vmatpush1.bf16.msra.mxu0 0
      %785 = vmatprep.subr.bf16.mxu0 %v671
      %786 = vmatpush1.bf16.msra.mxu0 %v670
      %787 = vmatprep.subr.bf16.mxu0 %v669
      %788 = vmatpush1.bf16.msra.mxu0 %v668
      %789 = vmatprep.subr.bf16.mxu0 %v667
      %790 = vmatpush1.bf16.msra.mxu0 %v666
      %791 = vmatprep.subr.bf16.mxu0 %v665
      %792 = vmatpush1.bf16.msra.mxu0 %v664
      %793 = vmatprep.subr.bf16.mxu0 0
      %794 = vmatpush2.bf16.msra.mxu0 0
      %795 = vmatprep.subr.bf16.mxu0 0
      %796 = vmatpush2.bf16.msra.mxu0 0
      %797 = vmatprep.subr.bf16.mxu0 0
      %798 = vmatpush2.bf16.msra.mxu0 0
      %799 = vmatprep.subr.bf16.mxu0 0
      %800 = vmatpush2.bf16.msra.mxu0 0
      %801 = vmatprep.subr.bf16.mxu0 0
      %802 = vmatpush2.bf16.msra.mxu0 0
      %803 = vmatprep.subr.bf16.mxu0 0
      %804 = vmatpush2.bf16.msra.mxu0 0
      %805 = vmatprep.subr.bf16.mxu0 0
      %806 = vmatpush2.bf16.msra.mxu0 0
      %807 = vmatprep.subr.bf16.mxu0 0
      %808 = vmatpush2.bf16.msra.mxu0 0
      %809 = vmatprep.mubr.bf16.mxu0 0
      %810 = vmatmul.mubr.bf16.gmra.mxu0 %v682
      %v811 = vpop.f32.mrf.mxu0
      %v812 = vadd.f32 %v473, %v811
      %v813 = vpop.f32.mrf.mxu0
      %v814 = vadd.f32 %v477, %v813
      %v815 = vpop.f32.mrf.mxu0
      %v816 = vadd.f32 %v473, %v815
      %v817 = vpop.f32.mrf.mxu0
      %v818 = vadd.f32 %v477, %v817
      %819 = vmatprep.mubr.bf16.mxu0 0
      %820 = vmatmul.mubr.bf16.gmra.mxu0 %v685
      %v821 = vpop.f32.mrf.mxu0
      %v822 = vadd.f32 %v473, %v821
      %v823 = vpop.f32.mrf.mxu0
      %v824 = vadd.f32 %v477, %v823
      %v825 = vpop.f32.mrf.mxu0
      %v826 = vadd.f32 %v473, %v825
      %v827 = vpop.f32.mrf.mxu0
      %v828 = vadd.f32 %v477, %v827
      %829 = vmatprep.mubr.bf16.mxu0 0
      %830 = vmatmul.mubr.bf16.gmra.mxu0 %v688
      %v831 = vpop.f32.mrf.mxu0
      %v832 = vadd.f32 %v473, %v831
      %v833 = vpop.f32.mrf.mxu0
      %v834 = vadd.f32 %v477, %v833
      %v835 = vpop.f32.mrf.mxu0
      %v836 = vadd.f32 %v473, %v835
      %v837 = vpop.f32.mrf.mxu0
      %v838 = vadd.f32 %v477, %v837
      %839 = vmatprep.mubr.bf16.mxu0 0
      %840 = vmatmul.mubr.bf16.gmra.mxu0 %v691
      %v841 = vpop.f32.mrf.mxu0
      %v842 = vadd.f32 %v473, %v841
      %v843 = vpop.f32.mrf.mxu0
      %v844 = vadd.f32 %v477, %v843
      %v845 = vpop.f32.mrf.mxu0
      %v846 = vadd.f32 %v473, %v845
      %v847 = vpop.f32.mrf.mxu0
      %v848 = vadd.f32 %v477, %v847
      %849 = vmatprep.mubr.bf16.mxu0 0
      %850 = vmatmul.mubr.bf16.gmra.mxu0 %v694
      %v851 = vpop.f32.mrf.mxu0
      %v852 = vadd.f32 %v473, %v851
      %v853 = vpop.f32.mrf.mxu0
      %v854 = vadd.f32 %v477, %v853
      %v855 = vpop.f32.mrf.mxu0
      %v856 = vadd.f32 %v473, %v855
      %v857 = vpop.f32.mrf.mxu0
      %v858 = vadd.f32 %v477, %v857
      %859 = vmatprep.mubr.bf16.mxu0 0
      %860 = vmatmul.mubr.bf16.gmra.mxu0 %v697
      %v861 = vpop.f32.mrf.mxu0
      %v862 = vadd.f32 %v473, %v861
      %v863 = vpop.f32.mrf.mxu0
      %v864 = vadd.f32 %v477, %v863
      %v865 = vpop.f32.mrf.mxu0
      %v866 = vadd.f32 %v473, %v865
      %v867 = vpop.f32.mrf.mxu0
      %v868 = vadd.f32 %v477, %v867
      %869 = vmatprep.mubr.bf16.mxu0 0
      %870 = vmatmul.mubr.bf16.gmra.mxu0 %v700
      %v871 = vpop.f32.mrf.mxu0
      %v872 = vadd.f32 %v473, %v871
      %v873 = vpop.f32.mrf.mxu0
      %v874 = vadd.f32 %v477, %v873
      %v875 = vpop.f32.mrf.mxu0
      %v876 = vadd.f32 %v473, %v875
      %v877 = vpop.f32.mrf.mxu0
      %v878 = vadd.f32 %v477, %v877
      %879 = vmatprep.mubr.bf16.mxu0 0
      %880 = vmatmul.mubr.bf16.gmra.mxu0 %v703
      %v881 = vpop.f32.mrf.mxu0
      %v882 = vadd.f32 %v473, %v881
      %v883 = vpop.f32.mrf.mxu0
      %v884 = vadd.f32 %v477, %v883
      %v885 = vpop.f32.mrf.mxu0
      %v886 = vadd.f32 %v473, %v885
      %v887 = vpop.f32.mrf.mxu0
      %v888 = vadd.f32 %v477, %v887
      %889 = vmatprep.mubr.bf16.mxu0 0
      %890 = vmatmul.mubr.bf16.gmra.mxu0 %v706
      %v891 = vpop.f32.mrf.mxu0
      %v892 = vadd.f32 %v473, %v891
      %v893 = vpop.f32.mrf.mxu0
      %v894 = vadd.f32 %v477, %v893
      %v895 = vpop.f32.mrf.mxu0
      %v896 = vadd.f32 %v473, %v895
      %v897 = vpop.f32.mrf.mxu0
      %v898 = vadd.f32 %v477, %v897
      %899 = vmatprep.mubr.bf16.mxu0 0
      %900 = vmatmul.mubr.bf16.gmra.mxu0 %v709
      %v901 = vpop.f32.mrf.mxu0
      %v902 = vadd.f32 %v473, %v901
      %v903 = vpop.f32.mrf.mxu0
      %v904 = vadd.f32 %v477, %v903
      %v905 = vpop.f32.mrf.mxu0
      %v906 = vadd.f32 %v473, %v905
      %v907 = vpop.f32.mrf.mxu0
      %v908 = vadd.f32 %v477, %v907
      %909 = vmatprep.mubr.bf16.mxu0 0
      %910 = vmatmul.mubr.bf16.gmra.mxu0 %v712
      %v911 = vpop.f32.mrf.mxu0
      %v912 = vadd.f32 %v473, %v911
      %v913 = vpop.f32.mrf.mxu0
      %v914 = vadd.f32 %v477, %v913
      %v915 = vpop.f32.mrf.mxu0
      %v916 = vadd.f32 %v473, %v915
      %v917 = vpop.f32.mrf.mxu0
      %v918 = vadd.f32 %v477, %v917
      %919 = vmatprep.mubr.bf16.mxu0 0
      %920 = vmatmul.mubr.bf16.gmra.mxu0 %v715
      %v921 = vpop.f32.mrf.mxu0
      %v922 = vadd.f32 %v473, %v921
      %v923 = vpop.f32.mrf.mxu0
      %v924 = vadd.f32 %v477, %v923
      %v925 = vpop.f32.mrf.mxu0
      %v926 = vadd.f32 %v473, %v925
      %v927 = vpop.f32.mrf.mxu0
      %v928 = vadd.f32 %v477, %v927
      %929 = vmatprep.mubr.bf16.mxu0 0
      %930 = vmatmul.mubr.bf16.gmra.mxu0 %v718
      %v931 = vpop.f32.mrf.mxu0
      %v932 = vadd.f32 %v473, %v931
      %v933 = vpop.f32.mrf.mxu0
      %v934 = vadd.f32 %v477, %v933
      %v935 = vpop.f32.mrf.mxu0
      %v936 = vadd.f32 %v473, %v935
      %v937 = vpop.f32.mrf.mxu0
      %v938 = vadd.f32 %v477, %v937
      %939 = vmatprep.mubr.bf16.mxu0 0
      %940 = vmatmul.mubr.bf16.gmra.mxu0 %v721
      %v941 = vpop.f32.mrf.mxu0
      %v942 = vadd.f32 %v473, %v941
      %v943 = vpop.f32.mrf.mxu0
      %v944 = vadd.f32 %v477, %v943
      %v945 = vpop.f32.mrf.mxu0
      %v946 = vadd.f32 %v473, %v945
      %v947 = vpop.f32.mrf.mxu0
      %v948 = vadd.f32 %v477, %v947
      %949 = vmatprep.mubr.bf16.mxu0 0
      %950 = vmatmul.mubr.bf16.gmra.mxu0 %v724
      %v951 = vpop.f32.mrf.mxu0
      %v952 = vadd.f32 %v473, %v951
      %v953 = vpop.f32.mrf.mxu0
      %v954 = vadd.f32 %v477, %v953
      %v955 = vpop.f32.mrf.mxu0
      %v956 = vadd.f32 %v473, %v955
      %v957 = vpop.f32.mrf.mxu0
      %v958 = vadd.f32 %v477, %v957
      %959 = vmatprep.mubr.bf16.mxu0 0
      %960 = vmatmul.mubr.bf16.gmra.mxu0 %v727
      %v961 = vpop.f32.mrf.mxu0
      %v962 = vadd.f32 %v473, %v961
      %v963 = vpop.f32.mrf.mxu0
      %v964 = vadd.f32 %v477, %v963
      %v965 = vpop.f32.mrf.mxu0
      %v966 = vadd.f32 %v473, %v965
      %v967 = vpop.f32.mrf.mxu0
      %v968 = vadd.f32 %v477, %v967
      %969 = vmatprep.mubr.bf16.mxu0 0
      %970 = vmatmul.mubr.bf16.gmra.mxu0 %v730
      %v971 = vpop.f32.mrf.mxu0
      %v972 = vadd.f32 %v473, %v971
      %v973 = vpop.f32.mrf.mxu0
      %v974 = vadd.f32 %v477, %v973
      %v975 = vpop.f32.mrf.mxu0
      %v976 = vadd.f32 %v473, %v975
      %v977 = vpop.f32.mrf.mxu0
      %v978 = vadd.f32 %v477, %v977
      %979 = vmatprep.mubr.bf16.mxu0 0
      %980 = vmatmul.mubr.bf16.gmra.mxu0 %v733
      %v981 = vpop.f32.mrf.mxu0
      %v982 = vadd.f32 %v473, %v981
      %v983 = vpop.f32.mrf.mxu0
      %v984 = vadd.f32 %v477, %v983
      %v985 = vpop.f32.mrf.mxu0
      %v986 = vadd.f32 %v473, %v985
      %v987 = vpop.f32.mrf.mxu0
      %v988 = vadd.f32 %v477, %v987
      %989 = vmatprep.mubr.bf16.mxu0 0
      %990 = vmatmul.mubr.bf16.gmra.mxu0 %v736
      %v991 = vpop.f32.mrf.mxu0
      %v992 = vadd.f32 %v473, %v991
      %v993 = vpop.f32.mrf.mxu0
      %v994 = vadd.f32 %v477, %v993
      %v995 = vpop.f32.mrf.mxu0
      %v996 = vadd.f32 %v473, %v995
      %v997 = vpop.f32.mrf.mxu0
      %v998 = vadd.f32 %v477, %v997
      %999 = vmatprep.mubr.bf16.mxu0 0
      %1000 = vmatmul.mubr.bf16.gmra.mxu0 %v739
      %v1001 = vpop.f32.mrf.mxu0
      %v1002 = vadd.f32 %v473, %v1001
      %v1003 = vpop.f32.mrf.mxu0
      %v1004 = vadd.f32 %v477, %v1003
      %v1005 = vpop.f32.mrf.mxu0
      %v1006 = vadd.f32 %v473, %v1005
      %v1007 = vpop.f32.mrf.mxu0
      %v1008 = vadd.f32 %v477, %v1007
      %1009 = vmatprep.mubr.bf16.mxu0 0
      %1010 = vmatmul.mubr.bf16.gmra.mxu0 %v742
      %v1011 = vpop.f32.mrf.mxu0
      %v1012 = vadd.f32 %v473, %v1011
      %v1013 = vpop.f32.mrf.mxu0
      %v1014 = vadd.f32 %v477, %v1013
      %v1015 = vpop.f32.mrf.mxu0
      %v1016 = vadd.f32 %v473, %v1015
      %v1017 = vpop.f32.mrf.mxu0
      %v1018 = vadd.f32 %v477, %v1017
      %1019 = vmatprep.mubr.bf16.mxu0 0
      %1020 = vmatmul.mubr.bf16.gmra.mxu0 %v745
      %v1021 = vpop.f32.mrf.mxu0
      %v1022 = vadd.f32 %v473, %v1021
      %v1023 = vpop.f32.mrf.mxu0
      %v1024 = vadd.f32 %v477, %v1023
      %v1025 = vpop.f32.mrf.mxu0
      %v1026 = vadd.f32 %v473, %v1025
      %v1027 = vpop.f32.mrf.mxu0
      %v1028 = vadd.f32 %v477, %v1027
      %1029 = vmatprep.mubr.bf16.mxu0 0
      %1030 = vmatmul.mubr.bf16.gmra.mxu0 %v748
      %v1031 = vpop.f32.mrf.mxu0
      %v1032 = vadd.f32 %v473, %v1031
      %v1033 = vpop.f32.mrf.mxu0
      %v1034 = vadd.f32 %v477, %v1033
      %v1035 = vpop.f32.mrf.mxu0
      %v1036 = vadd.f32 %v473, %v1035
      %v1037 = vpop.f32.mrf.mxu0
      %v1038 = vadd.f32 %v477, %v1037
      %1039 = vmatprep.mubr.bf16.mxu0 0
      %1040 = vmatmul.mubr.bf16.gmra.mxu0 %v751
      %v1041 = vpop.f32.mrf.mxu0
      %v1042 = vadd.f32 %v473, %v1041
      %v1043 = vpop.f32.mrf.mxu0
      %v1044 = vadd.f32 %v477, %v1043
      %v1045 = vpop.f32.mrf.mxu0
      %v1046 = vadd.f32 %v473, %v1045
      %v1047 = vpop.f32.mrf.mxu0
      %v1048 = vadd.f32 %v477, %v1047
      %1049 = vmatprep.mubr.bf16.mxu0 0
      %1050 = vmatmul.mubr.bf16.gmra.mxu0 %v754
      %v1051 = vpop.f32.mrf.mxu0
      %v1052 = vadd.f32 %v473, %v1051
      %v1053 = vpop.f32.mrf.mxu0
      %v1054 = vadd.f32 %v477, %v1053
      %v1055 = vpop.f32.mrf.mxu0
      %v1056 = vadd.f32 %v473, %v1055
      %v1057 = vpop.f32.mrf.mxu0
      %v1058 = vadd.f32 %v477, %v1057
      %1059 = vmatprep.mubr.bf16.mxu0 0
      %1060 = vmatmul.mubr.bf16.gmra.mxu0 %v757
      %v1061 = vpop.f32.mrf.mxu0
      %v1062 = vadd.f32 %v473, %v1061
      %v1063 = vpop.f32.mrf.mxu0
      %v1064 = vadd.f32 %v477, %v1063
      %v1065 = vpop.f32.mrf.mxu0
      %v1066 = vadd.f32 %v473, %v1065
      %v1067 = vpop.f32.mrf.mxu0
      %v1068 = vadd.f32 %v477, %v1067
      %1069 = vmatprep.mubr.bf16.mxu0 0
      %1070 = vmatmul.mubr.bf16.gmra.mxu0 %v760
      %v1071 = vpop.f32.mrf.mxu0
      %v1072 = vadd.f32 %v473, %v1071
      %v1073 = vpop.f32.mrf.mxu0
      %v1074 = vadd.f32 %v477, %v1073
      %v1075 = vpop.f32.mrf.mxu0
      %v1076 = vadd.f32 %v473, %v1075
      %v1077 = vpop.f32.mrf.mxu0
      %v1078 = vadd.f32 %v477, %v1077
      %1079 = vmatprep.mubr.bf16.mxu0 0
      %1080 = vmatmul.mubr.bf16.gmra.mxu0 %v763
      %v1081 = vpop.f32.mrf.mxu0
      %v1082 = vadd.f32 %v473, %v1081
      %v1083 = vpop.f32.mrf.mxu0
      %v1084 = vadd.f32 %v477, %v1083
      %v1085 = vpop.f32.mrf.mxu0
      %v1086 = vadd.f32 %v473, %v1085
      %v1087 = vpop.f32.mrf.mxu0
      %v1088 = vadd.f32 %v477, %v1087
      %1089 = vmatprep.mubr.bf16.mxu0 0
      %1090 = vmatmul.mubr.bf16.gmra.mxu0 %v766
      %v1091 = vpop.f32.mrf.mxu0
      %v1092 = vadd.f32 %v473, %v1091
      %v1093 = vpop.f32.mrf.mxu0
      %v1094 = vadd.f32 %v477, %v1093
      %v1095 = vpop.f32.mrf.mxu0
      %v1096 = vadd.f32 %v473, %v1095
      %v1097 = vpop.f32.mrf.mxu0
      %v1098 = vadd.f32 %v477, %v1097
      %1099 = vmatprep.mubr.bf16.mxu0 0
      %1100 = vmatmul.mubr.bf16.gmra.mxu0 %v769
      %v1101 = vpop.f32.mrf.mxu0
      %v1102 = vadd.f32 %v473, %v1101
      %v1103 = vpop.f32.mrf.mxu0
      %v1104 = vadd.f32 %v477, %v1103
      %v1105 = vpop.f32.mrf.mxu0
      %v1106 = vadd.f32 %v473, %v1105
      %v1107 = vpop.f32.mrf.mxu0
      %v1108 = vadd.f32 %v477, %v1107
      %1109 = vmatprep.mubr.bf16.mxu0 0
      %1110 = vmatmul.mubr.bf16.gmra.mxu0 %v772
      %v1111 = vpop.f32.mrf.mxu0
      %v1112 = vadd.f32 %v473, %v1111
      %v1113 = vpop.f32.mrf.mxu0
      %v1114 = vadd.f32 %v477, %v1113
      %v1115 = vpop.f32.mrf.mxu0
      %v1116 = vadd.f32 %v473, %v1115
      %v1117 = vpop.f32.mrf.mxu0
      %v1118 = vadd.f32 %v477, %v1117
      %1119 = vmatprep.mubr.bf16.mxu0 0
      %1120 = vmatmul.mubr.bf16.gmra.mxu0 %v775
      %v1121 = vpop.f32.mrf.mxu0
      %v1122 = vadd.f32 %v473, %v1121
      %v1123 = vpop.f32.mrf.mxu0
      %v1124 = vadd.f32 %v477, %v1123
      %v1125 = vpop.f32.mrf.mxu0
      %v1126 = vadd.f32 %v473, %v1125
      %v1127 = vpop.f32.mrf.mxu0
      %v1128 = vadd.f32 %v477, %v1127
      %1129 = vdwg.mxu0
      %v1130 = vmax.f32 %v812, 0.0
      %v1131 = vmax.f32 %v814, 0.0
      %v1132 = vmax.f32 %v816, 0.0
      %v1133 = vmax.f32 %v818, 0.0
      %v1134 = vmax.f32 %v822, 0.0
      %v1135 = vmax.f32 %v824, 0.0
      %v1136 = vmax.f32 %v826, 0.0
      %v1137 = vmax.f32 %v828, 0.0
      %v1138 = vmax.f32 %v832, 0.0
      %v1139 = vmax.f32 %v834, 0.0
      %v1140 = vmax.f32 %v836, 0.0
      %v1141 = vmax.f32 %v838, 0.0
      %v1142 = vmax.f32 %v842, 0.0
      %v1143 = vmax.f32 %v844, 0.0
      %v1144 = vmax.f32 %v846, 0.0
      %v1145 = vmax.f32 %v848, 0.0
      %v1146 = vmax.f32 %v852, 0.0
      %v1147 = vmax.f32 %v854, 0.0
      %v1148 = vmax.f32 %v856, 0.0
      %v1149 = vmax.f32 %v858, 0.0
      %v1150 = vmax.f32 %v862, 0.0
      %v1151 = vmax.f32 %v864, 0.0
      %v1152 = vmax.f32 %v866, 0.0
      %v1153 = vmax.f32 %v868, 0.0
      %v1154 = vmax.f32 %v872, 0.0
      %v1155 = vmax.f32 %v874, 0.0
      %v1156 = vmax.f32 %v876, 0.0
      %v1157 = vmax.f32 %v878, 0.0
      %v1158 = vmax.f32 %v882, 0.0
      %v1159 = vmax.f32 %v884, 0.0
      %v1160 = vmax.f32 %v886, 0.0
      %v1161 = vmax.f32 %v888, 0.0
      %v1162 = vmax.f32 %v892, 0.0
      %v1163 = vmax.f32 %v894, 0.0
      %v1164 = vmax.f32 %v896, 0.0
      %v1165 = vmax.f32 %v898, 0.0
      %v1166 = vmax.f32 %v902, 0.0
      %v1167 = vmax.f32 %v904, 0.0
      %v1168 = vmax.f32 %v906, 0.0
      %v1169 = vmax.f32 %v908, 0.0
      %v1170 = vmax.f32 %v912, 0.0
      %v1171 = vmax.f32 %v914, 0.0
      %v1172 = vmax.f32 %v916, 0.0
      %v1173 = vmax.f32 %v918, 0.0
      %v1174 = vmax.f32 %v922, 0.0
      %v1175 = vmax.f32 %v924, 0.0
      %v1176 = vmax.f32 %v926, 0.0
      %v1177 = vmax.f32 %v928, 0.0
      %v1178 = vmax.f32 %v932, 0.0
      %v1179 = vmax.f32 %v934, 0.0
      %v1180 = vmax.f32 %v936, 0.0
      %v1181 = vmax.f32 %v938, 0.0
      %v1182 = vmax.f32 %v942, 0.0
      %v1183 = vmax.f32 %v944, 0.0
      %v1184 = vmax.f32 %v946, 0.0
      %v1185 = vmax.f32 %v948, 0.0
      %v1186 = vmax.f32 %v952, 0.0
      %v1187 = vmax.f32 %v954, 0.0
      %v1188 = vmax.f32 %v956, 0.0
      %v1189 = vmax.f32 %v958, 0.0
      %v1190 = vmax.f32 %v962, 0.0
      %v1191 = vmax.f32 %v964, 0.0
      %v1192 = vmax.f32 %v966, 0.0
      %v1193 = vmax.f32 %v968, 0.0
      %v1194 = vmax.f32 %v972, 0.0
      %v1195 = vmax.f32 %v974, 0.0
      %v1196 = vmax.f32 %v976, 0.0
      %v1197 = vmax.f32 %v978, 0.0
      %v1198 = vmax.f32 %v982, 0.0
      %v1199 = vmax.f32 %v984, 0.0
      %v1200 = vmax.f32 %v986, 0.0
      %v1201 = vmax.f32 %v988, 0.0
      %v1202 = vmax.f32 %v992, 0.0
      %v1203 = vmax.f32 %v994, 0.0
      %v1204 = vmax.f32 %v996, 0.0
      %v1205 = vmax.f32 %v998, 0.0
      %v1206 = vmax.f32 %v1002, 0.0
      %v1207 = vmax.f32 %v1004, 0.0
      %v1208 = vmax.f32 %v1006, 0.0
      %v1209 = vmax.f32 %v1008, 0.0
      %v1210 = vmax.f32 %v1012, 0.0
      %v1211 = vmax.f32 %v1014, 0.0
      %v1212 = vmax.f32 %v1016, 0.0
      %v1213 = vmax.f32 %v1018, 0.0
      %v1214 = vmax.f32 %v1022, 0.0
      %v1215 = vmax.f32 %v1024, 0.0
      %v1216 = vmax.f32 %v1026, 0.0
      %v1217 = vmax.f32 %v1028, 0.0
      %v1218 = vmax.f32 %v1032, 0.0
      %v1219 = vmax.f32 %v1034, 0.0
      %v1220 = vmax.f32 %v1036, 0.0
      %v1221 = vmax.f32 %v1038, 0.0
      %v1222 = vmax.f32 %v1042, 0.0
      %v1223 = vmax.f32 %v1044, 0.0
      %v1224 = vmax.f32 %v1046, 0.0
      %v1225 = vmax.f32 %v1048, 0.0
      %v1226 = vmax.f32 %v1052, 0.0
      %v1227 = vmax.f32 %v1054, 0.0
      %v1228 = vmax.f32 %v1056, 0.0
      %v1229 = vmax.f32 %v1058, 0.0
      %v1230 = vmax.f32 %v1062, 0.0
      %v1231 = vmax.f32 %v1064, 0.0
      %v1232 = vmax.f32 %v1066, 0.0
      %v1233 = vmax.f32 %v1068, 0.0
      %v1234 = vmax.f32 %v1072, 0.0
      %v1235 = vmax.f32 %v1074, 0.0
      %v1236 = vmax.f32 %v1076, 0.0
      %v1237 = vmax.f32 %v1078, 0.0
      %v1238 = vmax.f32 %v1082, 0.0
      %v1239 = vmax.f32 %v1084, 0.0
      %v1240 = vmax.f32 %v1086, 0.0
      %v1241 = vmax.f32 %v1088, 0.0
      %v1242 = vmax.f32 %v1092, 0.0
      %v1243 = vmax.f32 %v1094, 0.0
      %v1244 = vmax.f32 %v1096, 0.0
      %v1245 = vmax.f32 %v1098, 0.0
      %v1246 = vmax.f32 %v1102, 0.0
      %v1247 = vmax.f32 %v1104, 0.0
      %v1248 = vmax.f32 %v1106, 0.0
      %v1249 = vmax.f32 %v1108, 0.0
      %v1250 = vmax.f32 %v1112, 0.0
      %v1251 = vmax.f32 %v1114, 0.0
      %v1252 = vmax.f32 %v1116, 0.0
      %v1253 = vmax.f32 %v1118, 0.0
      %v1254 = vmax.f32 %v1122, 0.0
      %v1255 = vmax.f32 %v1124, 0.0
      %v1256 = vmax.f32 %v1126, 0.0
      %v1257 = vmax.f32 %v1128, 0.0
      %v1258 = vpack.c.bf16 %v1132, %v1130
      %v1259 = vpack.c.bf16 %v1133, %v1131
      %v1260 = vpack.c.bf16 %v1136, %v1134
      %v1261 = vpack.c.bf16 %v1137, %v1135
      %v1262 = vpack.c.bf16 %v1140, %v1138
      %v1263 = vpack.c.bf16 %v1141, %v1139
      %v1264 = vpack.c.bf16 %v1144, %v1142
      %v1265 = vpack.c.bf16 %v1145, %v1143
      %v1266 = vpack.c.bf16 %v1148, %v1146
      %v1267 = vpack.c.bf16 %v1149, %v1147
      %v1268 = vpack.c.bf16 %v1152, %v1150
      %v1269 = vpack.c.bf16 %v1153, %v1151
      %v1270 = vpack.c.bf16 %v1156, %v1154
      %v1271 = vpack.c.bf16 %v1157, %v1155
      %v1272 = vpack.c.bf16 %v1160, %v1158
      %v1273 = vpack.c.bf16 %v1161, %v1159
      %v1274 = vpack.c.bf16 %v1164, %v1162
      %v1275 = vpack.c.bf16 %v1165, %v1163
      %v1276 = vpack.c.bf16 %v1168, %v1166
      %v1277 = vpack.c.bf16 %v1169, %v1167
      %v1278 = vpack.c.bf16 %v1172, %v1170
      %v1279 = vpack.c.bf16 %v1173, %v1171
      %v1280 = vpack.c.bf16 %v1176, %v1174
      %v1281 = vpack.c.bf16 %v1177, %v1175
      %v1282 = vpack.c.bf16 %v1180, %v1178
      %v1283 = vpack.c.bf16 %v1181, %v1179
      %v1284 = vpack.c.bf16 %v1184, %v1182
      %v1285 = vpack.c.bf16 %v1185, %v1183
      %v1286 = vpack.c.bf16 %v1188, %v1186
      %v1287 = vpack.c.bf16 %v1189, %v1187
      %v1288 = vpack.c.bf16 %v1192, %v1190
      %v1289 = vpack.c.bf16 %v1193, %v1191
      %v1290 = vpack.c.bf16 %v1196, %v1194
      %v1291 = vpack.c.bf16 %v1197, %v1195
      %v1292 = vpack.c.bf16 %v1200, %v1198
      %v1293 = vpack.c.bf16 %v1201, %v1199
      %v1294 = vpack.c.bf16 %v1204, %v1202
      %v1295 = vpack.c.bf16 %v1205, %v1203
      %v1296 = vpack.c.bf16 %v1208, %v1206
      %v1297 = vpack.c.bf16 %v1209, %v1207
      %v1298 = vpack.c.bf16 %v1212, %v1210
      %v1299 = vpack.c.bf16 %v1213, %v1211
      %v1300 = vpack.c.bf16 %v1216, %v1214
      %v1301 = vpack.c.bf16 %v1217, %v1215
      %v1302 = vpack.c.bf16 %v1220, %v1218
      %v1303 = vpack.c.bf16 %v1221, %v1219
      %v1304 = vpack.c.bf16 %v1224, %v1222
      %v1305 = vpack.c.bf16 %v1225, %v1223
      %v1306 = vpack.c.bf16 %v1228, %v1226
      %v1307 = vpack.c.bf16 %v1229, %v1227
      %v1308 = vpack.c.bf16 %v1232, %v1230
      %v1309 = vpack.c.bf16 %v1233, %v1231
      %v1310 = vpack.c.bf16 %v1236, %v1234
      %v1311 = vpack.c.bf16 %v1237, %v1235
      %v1312 = vpack.c.bf16 %v1240, %v1238
      %v1313 = vpack.c.bf16 %v1241, %v1239
      %v1314 = vpack.c.bf16 %v1244, %v1242
      %v1315 = vpack.c.bf16 %v1245, %v1243
      %v1316 = vpack.c.bf16 %v1248, %v1246
      %v1317 = vpack.c.bf16 %v1249, %v1247
      %v1318 = vpack.c.bf16 %v1252, %v1250
      %v1319 = vpack.c.bf16 %v1253, %v1251
      %v1320 = vpack.c.bf16 %v1256, %v1254
      %v1321 = vpack.c.bf16 %v1257, %v1255
      %v1322 = vld [vmem:[%s2 + $0x40] sm:$0xff]
      %v1323 = vld [vmem:[%s2 + $0x48] sm:$0xff]
      %v1324 = vld [vmem:[%s2 + $0x50] sm:$0xff]
      %v1325 = vld [vmem:[%s2 + $0x58] sm:$0xff]
      %v1326 = vld [vmem:[%s2 + $0x60] sm:$0xff]
      %v1327 = vld [vmem:[%s2 + $0x68] sm:$0xff]
      %v1328 = vld [vmem:[%s2 + $0x70] sm:$0xff]
      %v1329 = vld [vmem:[%s2 + $0x78] sm:$0xff]
      %v1330 = vld [vmem:[%s2 + $0x80] sm:$0xff]
      %v1331 = vld [vmem:[%s2 + $0x88] sm:$0xff]
      %v1332 = vld [vmem:[%s2 + $0x90] sm:$0xff]
      %v1333 = vld [vmem:[%s2 + $0x98] sm:$0xff]
      %v1334 = vld [vmem:[%s2 + $0xa0] sm:$0xff]
      %v1335 = vld [vmem:[%s2 + $0xa8] sm:$0xff]
      %v1336 = vld [vmem:[%s2 + $0xb0] sm:$0xff]
      %v1337 = vld [vmem:[%s2 + $0xb8] sm:$0xff]
      %v1338 = vld [vmem:[%s2 + $0xc0] sm:$0xff]
      %v1339 = vld [vmem:[%s2 + $0xc8] sm:$0xff]
      %v1340 = vld [vmem:[%s2 + $0xd0] sm:$0xff]
      %v1341 = vld [vmem:[%s2 + $0xd8] sm:$0xff]
      %v1342 = vld [vmem:[%s2 + $0xe0] sm:$0xff]
      %v1343 = vld [vmem:[%s2 + $0xe8] sm:$0xff]
      %v1344 = vld [vmem:[%s2 + $0xf0] sm:$0xff]
      %v1345 = vld [vmem:[%s2 + $0xf8] sm:$0xff]
      %v1346 = vld [vmem:[%s2 + $0x100] sm:$0xff]
      %v1347 = vld [vmem:[%s2 + $0x108] sm:$0xff]
      %v1348 = vld [vmem:[%s2 + $0x110] sm:$0xff]
      %v1349 = vld [vmem:[%s2 + $0x118] sm:$0xff]
      %v1350 = vld [vmem:[%s2 + $0x120] sm:$0xff]
      %v1351 = vld [vmem:[%s2 + $0x128] sm:$0xff]
      %v1352 = vld [vmem:[%s2 + $0x130] sm:$0xff]
      %v1353 = vld [vmem:[%s2 + $0x138] sm:$0xff]
      %s1354 = scalar_lea.vmem %s3, 1
      %v1355 = vld [vmem:[%s1354] ss:$8 sm:$0x3]
      %v1357 = vlaneseq
      %v1358 = vshrl.u32 %v1357, 7
      %v1359 = vsub.s32 0, %v1358
      %v1360 = vrot.slane %v1355, %v1359
      %v1361 = vlaneseq
      %v1362 = vshrl.u32 %v1361, 7
      %v1363 = vsub.s32 1, %v1362
      %v1364 = vrot.slane %v1355, %v1363
      %v1399 = vunpack.c.l.b16 %v1322
      %v1400 = vunpack.c.h.b16 %v1322
      %v1401 = vunpack.c.l.b16 %v1323
      %v1402 = vunpack.c.h.b16 %v1323
      %v1403 = vunpack.c.l.b16 %v1324
      %v1404 = vunpack.c.h.b16 %v1324
      %v1405 = vunpack.c.l.b16 %v1325
      %v1406 = vunpack.c.h.b16 %v1325
      %v1407 = vunpack.c.l.b16 %v1326
      %v1408 = vunpack.c.h.b16 %v1326
      %v1409 = vunpack.c.l.b16 %v1327
      %v1410 = vunpack.c.h.b16 %v1327
      %v1411 = vunpack.c.l.b16 %v1328
      %v1412 = vunpack.c.h.b16 %v1328
      %v1413 = vunpack.c.l.b16 %v1329
      %v1414 = vunpack.c.h.b16 %v1329
      %v1415 = vunpack.c.l.b16 %v1330
      %v1416 = vunpack.c.h.b16 %v1330
      %v1417 = vunpack.c.l.b16 %v1331
      %v1418 = vunpack.c.h.b16 %v1331
      %v1419 = vunpack.c.l.b16 %v1332
      %v1420 = vunpack.c.h.b16 %v1332
      %v1421 = vunpack.c.l.b16 %v1333
      %v1422 = vunpack.c.h.b16 %v1333
      %v1423 = vunpack.c.l.b16 %v1334
      %v1424 = vunpack.c.h.b16 %v1334
      %v1425 = vunpack.c.l.b16 %v1335
      %v1426 = vunpack.c.h.b16 %v1335
      %v1427 = vunpack.c.l.b16 %v1336
      %v1428 = vunpack.c.h.b16 %v1336
      %v1429 = vunpack.c.l.b16 %v1337
      %v1430 = vunpack.c.h.b16 %v1337
      %v1431 = vunpack.c.l.b16 %v1338
      %v1432 = vunpack.c.h.b16 %v1338
      %v1433 = vunpack.c.l.b16 %v1339
      %v1434 = vunpack.c.h.b16 %v1339
      %v1435 = vunpack.c.l.b16 %v1340
      %v1436 = vunpack.c.h.b16 %v1340
      %v1437 = vunpack.c.l.b16 %v1341
      %v1438 = vunpack.c.h.b16 %v1341
      %v1439 = vunpack.c.l.b16 %v1342
      %v1440 = vunpack.c.h.b16 %v1342
      %v1441 = vunpack.c.l.b16 %v1343
      %v1442 = vunpack.c.h.b16 %v1343
      %v1443 = vunpack.c.l.b16 %v1344
      %v1444 = vunpack.c.h.b16 %v1344
      %v1445 = vunpack.c.l.b16 %v1345
      %v1446 = vunpack.c.h.b16 %v1345
      %v1447 = vunpack.c.l.b16 %v1346
      %v1448 = vunpack.c.h.b16 %v1346
      %v1449 = vunpack.c.l.b16 %v1347
      %v1450 = vunpack.c.h.b16 %v1347
      %v1451 = vunpack.c.l.b16 %v1348
      %v1452 = vunpack.c.h.b16 %v1348
      %v1453 = vunpack.c.l.b16 %v1349
      %v1454 = vunpack.c.h.b16 %v1349
      %v1455 = vunpack.c.l.b16 %v1350
      %v1456 = vunpack.c.h.b16 %v1350
      %v1457 = vunpack.c.l.b16 %v1351
      %v1458 = vunpack.c.h.b16 %v1351
      %v1459 = vunpack.c.l.b16 %v1352
      %v1460 = vunpack.c.h.b16 %v1352
      %v1461 = vunpack.c.l.b16 %v1353
      %v1462 = vunpack.c.h.b16 %v1353
      %v1463 = vpack.c.b16 %v1401, %v1399
      %v1464 = vpack.c.b16 %v1402, %v1400
      %v1465 = vpack.c.b16 %v1405, %v1403
      %v1466 = vpack.c.b16 %v1406, %v1404
      %v1467 = vpack.c.b16 %v1409, %v1407
      %v1468 = vpack.c.b16 %v1410, %v1408
      %v1469 = vpack.c.b16 %v1413, %v1411
      %v1470 = vpack.c.b16 %v1414, %v1412
      %v1471 = vpack.c.b16 %v1417, %v1415
      %v1472 = vpack.c.b16 %v1418, %v1416
      %v1473 = vpack.c.b16 %v1421, %v1419
      %v1474 = vpack.c.b16 %v1422, %v1420
      %v1475 = vpack.c.b16 %v1425, %v1423
      %v1476 = vpack.c.b16 %v1426, %v1424
      %v1477 = vpack.c.b16 %v1429, %v1427
      %v1478 = vpack.c.b16 %v1430, %v1428
      %v1479 = vpack.c.b16 %v1433, %v1431
      %v1480 = vpack.c.b16 %v1434, %v1432
      %v1481 = vpack.c.b16 %v1437, %v1435
      %v1482 = vpack.c.b16 %v1438, %v1436
      %v1483 = vpack.c.b16 %v1441, %v1439
      %v1484 = vpack.c.b16 %v1442, %v1440
      %v1485 = vpack.c.b16 %v1445, %v1443
      %v1486 = vpack.c.b16 %v1446, %v1444
      %v1487 = vpack.c.b16 %v1449, %v1447
      %v1488 = vpack.c.b16 %v1450, %v1448
      %v1489 = vpack.c.b16 %v1453, %v1451
      %v1490 = vpack.c.b16 %v1454, %v1452
      %v1491 = vpack.c.b16 %v1457, %v1455
      %v1492 = vpack.c.b16 %v1458, %v1456
      %v1493 = vpack.c.b16 %v1461, %v1459
      %v1494 = vpack.c.b16 %v1462, %v1460
      %1527 = vmatprep.subr.bf16.mxu0 %v1478
      %1528 = vmatpush1.bf16.msra.mxu0 %v1477
      %1529 = vmatprep.subr.bf16.mxu0 %v1476
      %1530 = vmatpush1.bf16.msra.mxu0 %v1475
      %1531 = vmatprep.subr.bf16.mxu0 %v1474
      %1532 = vmatpush1.bf16.msra.mxu0 %v1473
      %1533 = vmatprep.subr.bf16.mxu0 %v1472
      %1534 = vmatpush1.bf16.msra.mxu0 %v1471
      %1535 = vmatprep.subr.bf16.mxu0 %v1470
      %1536 = vmatpush1.bf16.msra.mxu0 %v1469
      %1537 = vmatprep.subr.bf16.mxu0 %v1468
      %1538 = vmatpush1.bf16.msra.mxu0 %v1467
      %1539 = vmatprep.subr.bf16.mxu0 %v1466
      %1540 = vmatpush1.bf16.msra.mxu0 %v1465
      %1541 = vmatprep.subr.bf16.mxu0 %v1464
      %1542 = vmatpush1.bf16.msra.mxu0 %v1463
      %1543 = vmatprep.subr.bf16.mxu0 %v1494
      %1544 = vmatpush2.bf16.msra.mxu0 %v1493
      %1545 = vmatprep.subr.bf16.mxu0 %v1492
      %1546 = vmatpush2.bf16.msra.mxu0 %v1491
      %1547 = vmatprep.subr.bf16.mxu0 %v1490
      %1548 = vmatpush2.bf16.msra.mxu0 %v1489
      %1549 = vmatprep.subr.bf16.mxu0 %v1488
      %1550 = vmatpush2.bf16.msra.mxu0 %v1487
      %1551 = vmatprep.subr.bf16.mxu0 %v1486
      %1552 = vmatpush2.bf16.msra.mxu0 %v1485
      %1553 = vmatprep.subr.bf16.mxu0 %v1484
      %1554 = vmatpush2.bf16.msra.mxu0 %v1483
      %1555 = vmatprep.subr.bf16.mxu0 %v1482
      %1556 = vmatpush2.bf16.msra.mxu0 %v1481
      %1557 = vmatprep.subr.bf16.mxu0 %v1480
      %1558 = vmatpush2.bf16.msra.mxu0 %v1479
      %1559 = vmatprep.mubr.bf16.mxu0 %v1259
      %1560 = vmatmul.mubr.bf16.gmra.mxu0 %v1258
      %v1561 = vpop.f32.mrf.mxu0
      %v1562 = vadd.f32 %v1360, %v1561
      %v1563 = vpop.f32.mrf.mxu0
      %v1564 = vadd.f32 %v1364, %v1563
      %v1565 = vpop.f32.mrf.mxu0
      %v1566 = vadd.f32 %v1360, %v1565
      %v1567 = vpop.f32.mrf.mxu0
      %v1568 = vadd.f32 %v1364, %v1567
      %1569 = vmatprep.mubr.bf16.mxu0 %v1261
      %1570 = vmatmul.mubr.bf16.gmra.mxu0 %v1260
      %v1571 = vpop.f32.mrf.mxu0
      %v1572 = vadd.f32 %v1360, %v1571
      %v1573 = vpop.f32.mrf.mxu0
      %v1574 = vadd.f32 %v1364, %v1573
      %v1575 = vpop.f32.mrf.mxu0
      %v1576 = vadd.f32 %v1360, %v1575
      %v1577 = vpop.f32.mrf.mxu0
      %v1578 = vadd.f32 %v1364, %v1577
      %1579 = vmatprep.mubr.bf16.mxu0 %v1263
      %1580 = vmatmul.mubr.bf16.gmra.mxu0 %v1262
      %v1581 = vpop.f32.mrf.mxu0
      %v1582 = vadd.f32 %v1360, %v1581
      %v1583 = vpop.f32.mrf.mxu0
      %v1584 = vadd.f32 %v1364, %v1583
      %v1585 = vpop.f32.mrf.mxu0
      %v1586 = vadd.f32 %v1360, %v1585
      %v1587 = vpop.f32.mrf.mxu0
      %v1588 = vadd.f32 %v1364, %v1587
      %1589 = vmatprep.mubr.bf16.mxu0 %v1265
      %1590 = vmatmul.mubr.bf16.gmra.mxu0 %v1264
      %v1591 = vpop.f32.mrf.mxu0
      %v1592 = vadd.f32 %v1360, %v1591
      %v1593 = vpop.f32.mrf.mxu0
      %v1594 = vadd.f32 %v1364, %v1593
      %v1595 = vpop.f32.mrf.mxu0
      %v1596 = vadd.f32 %v1360, %v1595
      %v1597 = vpop.f32.mrf.mxu0
      %v1598 = vadd.f32 %v1364, %v1597
      %1599 = vmatprep.mubr.bf16.mxu0 %v1267
      %1600 = vmatmul.mubr.bf16.gmra.mxu0 %v1266
      %v1601 = vpop.f32.mrf.mxu0
      %v1602 = vadd.f32 %v1360, %v1601
      %v1603 = vpop.f32.mrf.mxu0
      %v1604 = vadd.f32 %v1364, %v1603
      %v1605 = vpop.f32.mrf.mxu0
      %v1606 = vadd.f32 %v1360, %v1605
      %v1607 = vpop.f32.mrf.mxu0
      %v1608 = vadd.f32 %v1364, %v1607
      %1609 = vmatprep.mubr.bf16.mxu0 %v1269
      %1610 = vmatmul.mubr.bf16.gmra.mxu0 %v1268
      %v1611 = vpop.f32.mrf.mxu0
      %v1612 = vadd.f32 %v1360, %v1611
      %v1613 = vpop.f32.mrf.mxu0
      %v1614 = vadd.f32 %v1364, %v1613
      %v1615 = vpop.f32.mrf.mxu0
      %v1616 = vadd.f32 %v1360, %v1615
      %v1617 = vpop.f32.mrf.mxu0
      %v1618 = vadd.f32 %v1364, %v1617
      %1619 = vmatprep.mubr.bf16.mxu0 %v1271
      %1620 = vmatmul.mubr.bf16.gmra.mxu0 %v1270
      %v1621 = vpop.f32.mrf.mxu0
      %v1622 = vadd.f32 %v1360, %v1621
      %v1623 = vpop.f32.mrf.mxu0
      %v1624 = vadd.f32 %v1364, %v1623
      %v1625 = vpop.f32.mrf.mxu0
      %v1626 = vadd.f32 %v1360, %v1625
      %v1627 = vpop.f32.mrf.mxu0
      %v1628 = vadd.f32 %v1364, %v1627
      %1629 = vmatprep.mubr.bf16.mxu0 %v1273
      %1630 = vmatmul.mubr.bf16.gmra.mxu0 %v1272
      %v1631 = vpop.f32.mrf.mxu0
      %v1632 = vadd.f32 %v1360, %v1631
      %v1633 = vpop.f32.mrf.mxu0
      %v1634 = vadd.f32 %v1364, %v1633
      %v1635 = vpop.f32.mrf.mxu0
      %v1636 = vadd.f32 %v1360, %v1635
      %v1637 = vpop.f32.mrf.mxu0
      %v1638 = vadd.f32 %v1364, %v1637
      %1639 = vmatprep.mubr.bf16.mxu0 %v1275
      %1640 = vmatmul.mubr.bf16.gmra.mxu0 %v1274
      %v1641 = vpop.f32.mrf.mxu0
      %v1642 = vadd.f32 %v1360, %v1641
      %v1643 = vpop.f32.mrf.mxu0
      %v1644 = vadd.f32 %v1364, %v1643
      %v1645 = vpop.f32.mrf.mxu0
      %v1646 = vadd.f32 %v1360, %v1645
      %v1647 = vpop.f32.mrf.mxu0
      %v1648 = vadd.f32 %v1364, %v1647
      %1649 = vmatprep.mubr.bf16.mxu0 %v1277
      %1650 = vmatmul.mubr.bf16.gmra.mxu0 %v1276
      %v1651 = vpop.f32.mrf.mxu0
      %v1652 = vadd.f32 %v1360, %v1651
      %v1653 = vpop.f32.mrf.mxu0
      %v1654 = vadd.f32 %v1364, %v1653
      %v1655 = vpop.f32.mrf.mxu0
      %v1656 = vadd.f32 %v1360, %v1655
      %v1657 = vpop.f32.mrf.mxu0
      %v1658 = vadd.f32 %v1364, %v1657
      %1659 = vmatprep.mubr.bf16.mxu0 %v1279
      %1660 = vmatmul.mubr.bf16.gmra.mxu0 %v1278
      %v1661 = vpop.f32.mrf.mxu0
      %v1662 = vadd.f32 %v1360, %v1661
      %v1663 = vpop.f32.mrf.mxu0
      %v1664 = vadd.f32 %v1364, %v1663
      %v1665 = vpop.f32.mrf.mxu0
      %v1666 = vadd.f32 %v1360, %v1665
      %v1667 = vpop.f32.mrf.mxu0
      %v1668 = vadd.f32 %v1364, %v1667
      %1669 = vmatprep.mubr.bf16.mxu0 %v1281
      %1670 = vmatmul.mubr.bf16.gmra.mxu0 %v1280
      %v1671 = vpop.f32.mrf.mxu0
      %v1672 = vadd.f32 %v1360, %v1671
      %v1673 = vpop.f32.mrf.mxu0
      %v1674 = vadd.f32 %v1364, %v1673
      %v1675 = vpop.f32.mrf.mxu0
      %v1676 = vadd.f32 %v1360, %v1675
      %v1677 = vpop.f32.mrf.mxu0
      %v1678 = vadd.f32 %v1364, %v1677
      %1679 = vmatprep.mubr.bf16.mxu0 %v1283
      %1680 = vmatmul.mubr.bf16.gmra.mxu0 %v1282
      %v1681 = vpop.f32.mrf.mxu0
      %v1682 = vadd.f32 %v1360, %v1681
      %v1683 = vpop.f32.mrf.mxu0
      %v1684 = vadd.f32 %v1364, %v1683
      %v1685 = vpop.f32.mrf.mxu0
      %v1686 = vadd.f32 %v1360, %v1685
      %v1687 = vpop.f32.mrf.mxu0
      %v1688 = vadd.f32 %v1364, %v1687
      %1689 = vmatprep.mubr.bf16.mxu0 %v1285
      %1690 = vmatmul.mubr.bf16.gmra.mxu0 %v1284
      %v1691 = vpop.f32.mrf.mxu0
      %v1692 = vadd.f32 %v1360, %v1691
      %v1693 = vpop.f32.mrf.mxu0
      %v1694 = vadd.f32 %v1364, %v1693
      %v1695 = vpop.f32.mrf.mxu0
      %v1696 = vadd.f32 %v1360, %v1695
      %v1697 = vpop.f32.mrf.mxu0
      %v1698 = vadd.f32 %v1364, %v1697
      %1699 = vmatprep.mubr.bf16.mxu0 %v1287
      %1700 = vmatmul.mubr.bf16.gmra.mxu0 %v1286
      %v1701 = vpop.f32.mrf.mxu0
      %v1702 = vadd.f32 %v1360, %v1701
      %v1703 = vpop.f32.mrf.mxu0
      %v1704 = vadd.f32 %v1364, %v1703
      %v1705 = vpop.f32.mrf.mxu0
      %v1706 = vadd.f32 %v1360, %v1705
      %v1707 = vpop.f32.mrf.mxu0
      %v1708 = vadd.f32 %v1364, %v1707
      %1709 = vmatprep.mubr.bf16.mxu0 %v1289
      %1710 = vmatmul.mubr.bf16.gmra.mxu0 %v1288
      %v1711 = vpop.f32.mrf.mxu0
      %v1712 = vadd.f32 %v1360, %v1711
      %v1713 = vpop.f32.mrf.mxu0
      %v1714 = vadd.f32 %v1364, %v1713
      %v1715 = vpop.f32.mrf.mxu0
      %v1716 = vadd.f32 %v1360, %v1715
      %v1717 = vpop.f32.mrf.mxu0
      %v1718 = vadd.f32 %v1364, %v1717
      %1719 = vmatprep.mubr.bf16.mxu0 %v1291
      %1720 = vmatmul.mubr.bf16.gmra.mxu0 %v1290
      %v1721 = vpop.f32.mrf.mxu0
      %v1722 = vadd.f32 %v1360, %v1721
      %v1723 = vpop.f32.mrf.mxu0
      %v1724 = vadd.f32 %v1364, %v1723
      %v1725 = vpop.f32.mrf.mxu0
      %v1726 = vadd.f32 %v1360, %v1725
      %v1727 = vpop.f32.mrf.mxu0
      %v1728 = vadd.f32 %v1364, %v1727
      %1729 = vmatprep.mubr.bf16.mxu0 %v1293
      %1730 = vmatmul.mubr.bf16.gmra.mxu0 %v1292
      %v1731 = vpop.f32.mrf.mxu0
      %v1732 = vadd.f32 %v1360, %v1731
      %v1733 = vpop.f32.mrf.mxu0
      %v1734 = vadd.f32 %v1364, %v1733
      %v1735 = vpop.f32.mrf.mxu0
      %v1736 = vadd.f32 %v1360, %v1735
      %v1737 = vpop.f32.mrf.mxu0
      %v1738 = vadd.f32 %v1364, %v1737
      %1739 = vmatprep.mubr.bf16.mxu0 %v1295
      %1740 = vmatmul.mubr.bf16.gmra.mxu0 %v1294
      %v1741 = vpop.f32.mrf.mxu0
      %v1742 = vadd.f32 %v1360, %v1741
      %v1743 = vpop.f32.mrf.mxu0
      %v1744 = vadd.f32 %v1364, %v1743
      %v1745 = vpop.f32.mrf.mxu0
      %v1746 = vadd.f32 %v1360, %v1745
      %v1747 = vpop.f32.mrf.mxu0
      %v1748 = vadd.f32 %v1364, %v1747
      %1749 = vmatprep.mubr.bf16.mxu0 %v1297
      %1750 = vmatmul.mubr.bf16.gmra.mxu0 %v1296
      %v1751 = vpop.f32.mrf.mxu0
      %v1752 = vadd.f32 %v1360, %v1751
      %v1753 = vpop.f32.mrf.mxu0
      %v1754 = vadd.f32 %v1364, %v1753
      %v1755 = vpop.f32.mrf.mxu0
      %v1756 = vadd.f32 %v1360, %v1755
      %v1757 = vpop.f32.mrf.mxu0
      %v1758 = vadd.f32 %v1364, %v1757
      %1759 = vmatprep.mubr.bf16.mxu0 %v1299
      %1760 = vmatmul.mubr.bf16.gmra.mxu0 %v1298
      %v1761 = vpop.f32.mrf.mxu0
      %v1762 = vadd.f32 %v1360, %v1761
      %v1763 = vpop.f32.mrf.mxu0
      %v1764 = vadd.f32 %v1364, %v1763
      %v1765 = vpop.f32.mrf.mxu0
      %v1766 = vadd.f32 %v1360, %v1765
      %v1767 = vpop.f32.mrf.mxu0
      %v1768 = vadd.f32 %v1364, %v1767
      %1769 = vmatprep.mubr.bf16.mxu0 %v1301
      %1770 = vmatmul.mubr.bf16.gmra.mxu0 %v1300
      %v1771 = vpop.f32.mrf.mxu0
      %v1772 = vadd.f32 %v1360, %v1771
      %v1773 = vpop.f32.mrf.mxu0
      %v1774 = vadd.f32 %v1364, %v1773
      %v1775 = vpop.f32.mrf.mxu0
      %v1776 = vadd.f32 %v1360, %v1775
      %v1777 = vpop.f32.mrf.mxu0
      %v1778 = vadd.f32 %v1364, %v1777
      %1779 = vmatprep.mubr.bf16.mxu0 %v1303
      %1780 = vmatmul.mubr.bf16.gmra.mxu0 %v1302
      %v1781 = vpop.f32.mrf.mxu0
      %v1782 = vadd.f32 %v1360, %v1781
      %v1783 = vpop.f32.mrf.mxu0
      %v1784 = vadd.f32 %v1364, %v1783
      %v1785 = vpop.f32.mrf.mxu0
      %v1786 = vadd.f32 %v1360, %v1785
      %v1787 = vpop.f32.mrf.mxu0
      %v1788 = vadd.f32 %v1364, %v1787
      %1789 = vmatprep.mubr.bf16.mxu0 %v1305
      %1790 = vmatmul.mubr.bf16.gmra.mxu0 %v1304
      %v1791 = vpop.f32.mrf.mxu0
      %v1792 = vadd.f32 %v1360, %v1791
      %v1793 = vpop.f32.mrf.mxu0
      %v1794 = vadd.f32 %v1364, %v1793
      %v1795 = vpop.f32.mrf.mxu0
      %v1796 = vadd.f32 %v1360, %v1795
      %v1797 = vpop.f32.mrf.mxu0
      %v1798 = vadd.f32 %v1364, %v1797
      %1799 = vmatprep.mubr.bf16.mxu0 %v1307
      %1800 = vmatmul.mubr.bf16.gmra.mxu0 %v1306
      %v1801 = vpop.f32.mrf.mxu0
      %v1802 = vadd.f32 %v1360, %v1801
      %v1803 = vpop.f32.mrf.mxu0
      %v1804 = vadd.f32 %v1364, %v1803
      %v1805 = vpop.f32.mrf.mxu0
      %v1806 = vadd.f32 %v1360, %v1805
      %v1807 = vpop.f32.mrf.mxu0
      %v1808 = vadd.f32 %v1364, %v1807
      %1809 = vmatprep.mubr.bf16.mxu0 %v1309
      %1810 = vmatmul.mubr.bf16.gmra.mxu0 %v1308
      %v1811 = vpop.f32.mrf.mxu0
      %v1812 = vadd.f32 %v1360, %v1811
      %v1813 = vpop.f32.mrf.mxu0
      %v1814 = vadd.f32 %v1364, %v1813
      %v1815 = vpop.f32.mrf.mxu0
      %v1816 = vadd.f32 %v1360, %v1815
      %v1817 = vpop.f32.mrf.mxu0
      %v1818 = vadd.f32 %v1364, %v1817
      %1819 = vmatprep.mubr.bf16.mxu0 %v1311
      %1820 = vmatmul.mubr.bf16.gmra.mxu0 %v1310
      %v1821 = vpop.f32.mrf.mxu0
      %v1822 = vadd.f32 %v1360, %v1821
      %v1823 = vpop.f32.mrf.mxu0
      %v1824 = vadd.f32 %v1364, %v1823
      %v1825 = vpop.f32.mrf.mxu0
      %v1826 = vadd.f32 %v1360, %v1825
      %v1827 = vpop.f32.mrf.mxu0
      %v1828 = vadd.f32 %v1364, %v1827
      %1829 = vmatprep.mubr.bf16.mxu0 %v1313
      %1830 = vmatmul.mubr.bf16.gmra.mxu0 %v1312
      %v1831 = vpop.f32.mrf.mxu0
      %v1832 = vadd.f32 %v1360, %v1831
      %v1833 = vpop.f32.mrf.mxu0
      %v1834 = vadd.f32 %v1364, %v1833
      %v1835 = vpop.f32.mrf.mxu0
      %v1836 = vadd.f32 %v1360, %v1835
      %v1837 = vpop.f32.mrf.mxu0
      %v1838 = vadd.f32 %v1364, %v1837
      %1839 = vmatprep.mubr.bf16.mxu0 %v1315
      %1840 = vmatmul.mubr.bf16.gmra.mxu0 %v1314
      %v1841 = vpop.f32.mrf.mxu0
      %v1842 = vadd.f32 %v1360, %v1841
      %v1843 = vpop.f32.mrf.mxu0
      %v1844 = vadd.f32 %v1364, %v1843
      %v1845 = vpop.f32.mrf.mxu0
      %v1846 = vadd.f32 %v1360, %v1845
      %v1847 = vpop.f32.mrf.mxu0
      %v1848 = vadd.f32 %v1364, %v1847
      %1849 = vmatprep.mubr.bf16.mxu0 %v1317
      %1850 = vmatmul.mubr.bf16.gmra.mxu0 %v1316
      %v1851 = vpop.f32.mrf.mxu0
      %v1852 = vadd.f32 %v1360, %v1851
      %v1853 = vpop.f32.mrf.mxu0
      %v1854 = vadd.f32 %v1364, %v1853
      %v1855 = vpop.f32.mrf.mxu0
      %v1856 = vadd.f32 %v1360, %v1855
      %v1857 = vpop.f32.mrf.mxu0
      %v1858 = vadd.f32 %v1364, %v1857
      %1859 = vmatprep.mubr.bf16.mxu0 %v1319
      %1860 = vmatmul.mubr.bf16.gmra.mxu0 %v1318
      %v1861 = vpop.f32.mrf.mxu0
      %v1862 = vadd.f32 %v1360, %v1861
      %v1863 = vpop.f32.mrf.mxu0
      %v1864 = vadd.f32 %v1364, %v1863
      %v1865 = vpop.f32.mrf.mxu0
      %v1866 = vadd.f32 %v1360, %v1865
      %v1867 = vpop.f32.mrf.mxu0
      %v1868 = vadd.f32 %v1364, %v1867
      %1869 = vmatprep.mubr.bf16.mxu0 %v1321
      %1870 = vmatmul.mubr.bf16.gmra.mxu0 %v1320
      %v1871 = vpop.f32.mrf.mxu0
      %v1872 = vadd.f32 %v1360, %v1871
      %v1873 = vpop.f32.mrf.mxu0
      %v1874 = vadd.f32 %v1364, %v1873
      %v1875 = vpop.f32.mrf.mxu0
      %v1876 = vadd.f32 %v1360, %v1875
      %v1877 = vpop.f32.mrf.mxu0
      %v1878 = vadd.f32 %v1364, %v1877
      %1879 = vdwg.mxu0
      %v1880 = vmax.f32 %v1562, 0.0
      %v1881 = vmax.f32 %v1564, 0.0
      %v1882 = vmax.f32 %v1566, 0.0
      %v1883 = vmax.f32 %v1568, 0.0
      %v1884 = vmax.f32 %v1572, 0.0
      %v1885 = vmax.f32 %v1574, 0.0
      %v1886 = vmax.f32 %v1576, 0.0
      %v1887 = vmax.f32 %v1578, 0.0
      %v1888 = vmax.f32 %v1582, 0.0
      %v1889 = vmax.f32 %v1584, 0.0
      %v1890 = vmax.f32 %v1586, 0.0
      %v1891 = vmax.f32 %v1588, 0.0
      %v1892 = vmax.f32 %v1592, 0.0
      %v1893 = vmax.f32 %v1594, 0.0
      %v1894 = vmax.f32 %v1596, 0.0
      %v1895 = vmax.f32 %v1598, 0.0
      %v1896 = vmax.f32 %v1602, 0.0
      %v1897 = vmax.f32 %v1604, 0.0
      %v1898 = vmax.f32 %v1606, 0.0
      %v1899 = vmax.f32 %v1608, 0.0
      %v1900 = vmax.f32 %v1612, 0.0
      %v1901 = vmax.f32 %v1614, 0.0
      %v1902 = vmax.f32 %v1616, 0.0
      %v1903 = vmax.f32 %v1618, 0.0
      %v1904 = vmax.f32 %v1622, 0.0
      %v1905 = vmax.f32 %v1624, 0.0
      %v1906 = vmax.f32 %v1626, 0.0
      %v1907 = vmax.f32 %v1628, 0.0
      %v1908 = vmax.f32 %v1632, 0.0
      %v1909 = vmax.f32 %v1634, 0.0
      %v1910 = vmax.f32 %v1636, 0.0
      %v1911 = vmax.f32 %v1638, 0.0
      %v1912 = vmax.f32 %v1642, 0.0
      %v1913 = vmax.f32 %v1644, 0.0
      %v1914 = vmax.f32 %v1646, 0.0
      %v1915 = vmax.f32 %v1648, 0.0
      %v1916 = vmax.f32 %v1652, 0.0
      %v1917 = vmax.f32 %v1654, 0.0
      %v1918 = vmax.f32 %v1656, 0.0
      %v1919 = vmax.f32 %v1658, 0.0
      %v1920 = vmax.f32 %v1662, 0.0
      %v1921 = vmax.f32 %v1664, 0.0
      %v1922 = vmax.f32 %v1666, 0.0
      %v1923 = vmax.f32 %v1668, 0.0
      %v1924 = vmax.f32 %v1672, 0.0
      %v1925 = vmax.f32 %v1674, 0.0
      %v1926 = vmax.f32 %v1676, 0.0
      %v1927 = vmax.f32 %v1678, 0.0
      %v1928 = vmax.f32 %v1682, 0.0
      %v1929 = vmax.f32 %v1684, 0.0
      %v1930 = vmax.f32 %v1686, 0.0
      %v1931 = vmax.f32 %v1688, 0.0
      %v1932 = vmax.f32 %v1692, 0.0
      %v1933 = vmax.f32 %v1694, 0.0
      %v1934 = vmax.f32 %v1696, 0.0
      %v1935 = vmax.f32 %v1698, 0.0
      %v1936 = vmax.f32 %v1702, 0.0
      %v1937 = vmax.f32 %v1704, 0.0
      %v1938 = vmax.f32 %v1706, 0.0
      %v1939 = vmax.f32 %v1708, 0.0
      %v1940 = vmax.f32 %v1712, 0.0
      %v1941 = vmax.f32 %v1714, 0.0
      %v1942 = vmax.f32 %v1716, 0.0
      %v1943 = vmax.f32 %v1718, 0.0
      %v1944 = vmax.f32 %v1722, 0.0
      %v1945 = vmax.f32 %v1724, 0.0
      %v1946 = vmax.f32 %v1726, 0.0
      %v1947 = vmax.f32 %v1728, 0.0
      %v1948 = vmax.f32 %v1732, 0.0
      %v1949 = vmax.f32 %v1734, 0.0
      %v1950 = vmax.f32 %v1736, 0.0
      %v1951 = vmax.f32 %v1738, 0.0
      %v1952 = vmax.f32 %v1742, 0.0
      %v1953 = vmax.f32 %v1744, 0.0
      %v1954 = vmax.f32 %v1746, 0.0
      %v1955 = vmax.f32 %v1748, 0.0
      %v1956 = vmax.f32 %v1752, 0.0
      %v1957 = vmax.f32 %v1754, 0.0
      %v1958 = vmax.f32 %v1756, 0.0
      %v1959 = vmax.f32 %v1758, 0.0
      %v1960 = vmax.f32 %v1762, 0.0
      %v1961 = vmax.f32 %v1764, 0.0
      %v1962 = vmax.f32 %v1766, 0.0
      %v1963 = vmax.f32 %v1768, 0.0
      %v1964 = vmax.f32 %v1772, 0.0
      %v1965 = vmax.f32 %v1774, 0.0
      %v1966 = vmax.f32 %v1776, 0.0
      %v1967 = vmax.f32 %v1778, 0.0
      %v1968 = vmax.f32 %v1782, 0.0
      %v1969 = vmax.f32 %v1784, 0.0
      %v1970 = vmax.f32 %v1786, 0.0
      %v1971 = vmax.f32 %v1788, 0.0
      %v1972 = vmax.f32 %v1792, 0.0
      %v1973 = vmax.f32 %v1794, 0.0
      %v1974 = vmax.f32 %v1796, 0.0
      %v1975 = vmax.f32 %v1798, 0.0
      %v1976 = vmax.f32 %v1802, 0.0
      %v1977 = vmax.f32 %v1804, 0.0
      %v1978 = vmax.f32 %v1806, 0.0
      %v1979 = vmax.f32 %v1808, 0.0
      %v1980 = vmax.f32 %v1812, 0.0
      %v1981 = vmax.f32 %v1814, 0.0
      %v1982 = vmax.f32 %v1816, 0.0
      %v1983 = vmax.f32 %v1818, 0.0
      %v1984 = vmax.f32 %v1822, 0.0
      %v1985 = vmax.f32 %v1824, 0.0
      %v1986 = vmax.f32 %v1826, 0.0
      %v1987 = vmax.f32 %v1828, 0.0
      %v1988 = vmax.f32 %v1832, 0.0
      %v1989 = vmax.f32 %v1834, 0.0
      %v1990 = vmax.f32 %v1836, 0.0
      %v1991 = vmax.f32 %v1838, 0.0
      %v1992 = vmax.f32 %v1842, 0.0
      %v1993 = vmax.f32 %v1844, 0.0
      %v1994 = vmax.f32 %v1846, 0.0
      %v1995 = vmax.f32 %v1848, 0.0
      %v1996 = vmax.f32 %v1852, 0.0
      %v1997 = vmax.f32 %v1854, 0.0
      %v1998 = vmax.f32 %v1856, 0.0
      %v1999 = vmax.f32 %v1858, 0.0
      %v2000 = vmax.f32 %v1862, 0.0
      %v2001 = vmax.f32 %v1864, 0.0
      %v2002 = vmax.f32 %v1866, 0.0
      %v2003 = vmax.f32 %v1868, 0.0
      %v2004 = vmax.f32 %v1872, 0.0
      %v2005 = vmax.f32 %v1874, 0.0
      %v2006 = vmax.f32 %v1876, 0.0
      %v2007 = vmax.f32 %v1878, 0.0
      %v2008 = vpack.c.bf16 %v1882, %v1880
      %v2009 = vpack.c.bf16 %v1883, %v1881
      %v2010 = vpack.c.bf16 %v1886, %v1884
      %v2011 = vpack.c.bf16 %v1887, %v1885
      %v2012 = vpack.c.bf16 %v1890, %v1888
      %v2013 = vpack.c.bf16 %v1891, %v1889
      %v2014 = vpack.c.bf16 %v1894, %v1892
      %v2015 = vpack.c.bf16 %v1895, %v1893
      %v2016 = vpack.c.bf16 %v1898, %v1896
      %v2017 = vpack.c.bf16 %v1899, %v1897
      %v2018 = vpack.c.bf16 %v1902, %v1900
      %v2019 = vpack.c.bf16 %v1903, %v1901
      %v2020 = vpack.c.bf16 %v1906, %v1904
      %v2021 = vpack.c.bf16 %v1907, %v1905
      %v2022 = vpack.c.bf16 %v1910, %v1908
      %v2023 = vpack.c.bf16 %v1911, %v1909
      %v2024 = vpack.c.bf16 %v1914, %v1912
      %v2025 = vpack.c.bf16 %v1915, %v1913
      %v2026 = vpack.c.bf16 %v1918, %v1916
      %v2027 = vpack.c.bf16 %v1919, %v1917
      %v2028 = vpack.c.bf16 %v1922, %v1920
      %v2029 = vpack.c.bf16 %v1923, %v1921
      %v2030 = vpack.c.bf16 %v1926, %v1924
      %v2031 = vpack.c.bf16 %v1927, %v1925
      %v2032 = vpack.c.bf16 %v1930, %v1928
      %v2033 = vpack.c.bf16 %v1931, %v1929
      %v2034 = vpack.c.bf16 %v1934, %v1932
      %v2035 = vpack.c.bf16 %v1935, %v1933
      %v2036 = vpack.c.bf16 %v1938, %v1936
      %v2037 = vpack.c.bf16 %v1939, %v1937
      %v2038 = vpack.c.bf16 %v1942, %v1940
      %v2039 = vpack.c.bf16 %v1943, %v1941
      %v2040 = vpack.c.bf16 %v1946, %v1944
      %v2041 = vpack.c.bf16 %v1947, %v1945
      %v2042 = vpack.c.bf16 %v1950, %v1948
      %v2043 = vpack.c.bf16 %v1951, %v1949
      %v2044 = vpack.c.bf16 %v1954, %v1952
      %v2045 = vpack.c.bf16 %v1955, %v1953
      %v2046 = vpack.c.bf16 %v1958, %v1956
      %v2047 = vpack.c.bf16 %v1959, %v1957
      %v2048 = vpack.c.bf16 %v1962, %v1960
      %v2049 = vpack.c.bf16 %v1963, %v1961
      %v2050 = vpack.c.bf16 %v1966, %v1964
      %v2051 = vpack.c.bf16 %v1967, %v1965
      %v2052 = vpack.c.bf16 %v1970, %v1968
      %v2053 = vpack.c.bf16 %v1971, %v1969
      %v2054 = vpack.c.bf16 %v1974, %v1972
      %v2055 = vpack.c.bf16 %v1975, %v1973
      %v2056 = vpack.c.bf16 %v1978, %v1976
      %v2057 = vpack.c.bf16 %v1979, %v1977
      %v2058 = vpack.c.bf16 %v1982, %v1980
      %v2059 = vpack.c.bf16 %v1983, %v1981
      %v2060 = vpack.c.bf16 %v1986, %v1984
      %v2061 = vpack.c.bf16 %v1987, %v1985
      %v2062 = vpack.c.bf16 %v1990, %v1988
      %v2063 = vpack.c.bf16 %v1991, %v1989
      %v2064 = vpack.c.bf16 %v1994, %v1992
      %v2065 = vpack.c.bf16 %v1995, %v1993
      %v2066 = vpack.c.bf16 %v1998, %v1996
      %v2067 = vpack.c.bf16 %v1999, %v1997
      %v2068 = vpack.c.bf16 %v2002, %v2000
      %v2069 = vpack.c.bf16 %v2003, %v2001
      %v2070 = vpack.c.bf16 %v2006, %v2004
      %v2071 = vpack.c.bf16 %v2007, %v2005
      %v2072 = vld [vmem:[%s2 + $0x140] sm:$0xff]
      %v2073 = vld [vmem:[%s2 + $0x148] sm:$0xff]
      %v2074 = vld [vmem:[%s2 + $0x150] sm:$0xff]
      %v2075 = vld [vmem:[%s2 + $0x158] sm:$0xff]
      %v2076 = vld [vmem:[%s2 + $0x160] sm:$0xff]
      %v2077 = vld [vmem:[%s2 + $0x168] sm:$0xff]
      %v2078 = vld [vmem:[%s2 + $0x170] sm:$0xff]
      %v2079 = vld [vmem:[%s2 + $0x178] sm:$0xff]
      %v2080 = vld [vmem:[%s2 + $0x180] sm:$0xff]
      %v2081 = vld [vmem:[%s2 + $0x188] sm:$0xff]
      %v2082 = vld [vmem:[%s2 + $0x190] sm:$0xff]
      %v2083 = vld [vmem:[%s2 + $0x198] sm:$0xff]
      %v2084 = vld [vmem:[%s2 + $0x1a0] sm:$0xff]
      %v2085 = vld [vmem:[%s2 + $0x1a8] sm:$0xff]
      %v2086 = vld [vmem:[%s2 + $0x1b0] sm:$0xff]
      %v2087 = vld [vmem:[%s2 + $0x1b8] sm:$0xff]
      %v2088 = vld [vmem:[%s2 + $0x1c0] sm:$0xff]
      %v2089 = vld [vmem:[%s2 + $0x1c8] sm:$0xff]
      %v2090 = vld [vmem:[%s2 + $0x1d0] sm:$0xff]
      %v2091 = vld [vmem:[%s2 + $0x1d8] sm:$0xff]
      %v2092 = vld [vmem:[%s2 + $0x1e0] sm:$0xff]
      %v2093 = vld [vmem:[%s2 + $0x1e8] sm:$0xff]
      %v2094 = vld [vmem:[%s2 + $0x1f0] sm:$0xff]
      %v2095 = vld [vmem:[%s2 + $0x1f8] sm:$0xff]
      %v2096 = vld [vmem:[%s2 + $0x200] sm:$0xff]
      %v2097 = vld [vmem:[%s2 + $0x208] sm:$0xff]
      %v2098 = vld [vmem:[%s2 + $0x210] sm:$0xff]
      %v2099 = vld [vmem:[%s2 + $0x218] sm:$0xff]
      %v2100 = vld [vmem:[%s2 + $0x220] sm:$0xff]
      %v2101 = vld [vmem:[%s2 + $0x228] sm:$0xff]
      %v2102 = vld [vmem:[%s2 + $0x230] sm:$0xff]
      %v2103 = vld [vmem:[%s2 + $0x238] sm:$0xff]
      %s2104 = scalar_lea.vmem %s3, 2
      %v2105 = vld [vmem:[%s2104] ss:$8 sm:$0x3]
      %v2107 = vlaneseq
      %v2108 = vshrl.u32 %v2107, 7
      %v2109 = vsub.s32 0, %v2108
      %v2110 = vrot.slane %v2105, %v2109
      %v2111 = vlaneseq
      %v2112 = vshrl.u32 %v2111, 7
      %v2113 = vsub.s32 1, %v2112
      %v2114 = vrot.slane %v2105, %v2113
      %v2149 = vunpack.c.l.b16 %v2072
      %v2150 = vunpack.c.h.b16 %v2072
      %v2151 = vunpack.c.l.b16 %v2073
      %v2152 = vunpack.c.h.b16 %v2073
      %v2153 = vunpack.c.l.b16 %v2074
      %v2154 = vunpack.c.h.b16 %v2074
      %v2155 = vunpack.c.l.b16 %v2075
      %v2156 = vunpack.c.h.b16 %v2075
      %v2157 = vunpack.c.l.b16 %v2076
      %v2158 = vunpack.c.h.b16 %v2076
      %v2159 = vunpack.c.l.b16 %v2077
      %v2160 = vunpack.c.h.b16 %v2077
      %v2161 = vunpack.c.l.b16 %v2078
      %v2162 = vunpack.c.h.b16 %v2078
      %v2163 = vunpack.c.l.b16 %v2079
      %v2164 = vunpack.c.h.b16 %v2079
      %v2165 = vunpack.c.l.b16 %v2080
      %v2166 = vunpack.c.h.b16 %v2080
      %v2167 = vunpack.c.l.b16 %v2081
      %v2168 = vunpack.c.h.b16 %v2081
      %v2169 = vunpack.c.l.b16 %v2082
      %v2170 = vunpack.c.h.b16 %v2082
      %v2171 = vunpack.c.l.b16 %v2083
      %v2172 = vunpack.c.h.b16 %v2083
      %v2173 = vunpack.c.l.b16 %v2084
      %v2174 = vunpack.c.h.b16 %v2084
      %v2175 = vunpack.c.l.b16 %v2085
      %v2176 = vunpack.c.h.b16 %v2085
      %v2177 = vunpack.c.l.b16 %v2086
      %v2178 = vunpack.c.h.b16 %v2086
      %v2179 = vunpack.c.l.b16 %v2087
      %v2180 = vunpack.c.h.b16 %v2087
      %v2181 = vunpack.c.l.b16 %v2088
      %v2182 = vunpack.c.h.b16 %v2088
      %v2183 = vunpack.c.l.b16 %v2089
      %v2184 = vunpack.c.h.b16 %v2089
      %v2185 = vunpack.c.l.b16 %v2090
      %v2186 = vunpack.c.h.b16 %v2090
      %v2187 = vunpack.c.l.b16 %v2091
      %v2188 = vunpack.c.h.b16 %v2091
      %v2189 = vunpack.c.l.b16 %v2092
      %v2190 = vunpack.c.h.b16 %v2092
      %v2191 = vunpack.c.l.b16 %v2093
      %v2192 = vunpack.c.h.b16 %v2093
      %v2193 = vunpack.c.l.b16 %v2094
      %v2194 = vunpack.c.h.b16 %v2094
      %v2195 = vunpack.c.l.b16 %v2095
      %v2196 = vunpack.c.h.b16 %v2095
      %v2197 = vunpack.c.l.b16 %v2096
      %v2198 = vunpack.c.h.b16 %v2096
      %v2199 = vunpack.c.l.b16 %v2097
      %v2200 = vunpack.c.h.b16 %v2097
      %v2201 = vunpack.c.l.b16 %v2098
      %v2202 = vunpack.c.h.b16 %v2098
      %v2203 = vunpack.c.l.b16 %v2099
      %v2204 = vunpack.c.h.b16 %v2099
      %v2205 = vunpack.c.l.b16 %v2100
      %v2206 = vunpack.c.h.b16 %v2100
      %v2207 = vunpack.c.l.b16 %v2101
      %v2208 = vunpack.c.h.b16 %v2101
      %v2209 = vunpack.c.l.b16 %v2102
      %v2210 = vunpack.c.h.b16 %v2102
      %v2211 = vunpack.c.l.b16 %v2103
      %v2212 = vunpack.c.h.b16 %v2103
      %v2213 = vpack.c.b16 %v2151, %v2149
      %v2214 = vpack.c.b16 %v2152, %v2150
      %v2215 = vpack.c.b16 %v2155, %v2153
      %v2216 = vpack.c.b16 %v2156, %v2154
      %v2217 = vpack.c.b16 %v2159, %v2157
      %v2218 = vpack.c.b16 %v2160, %v2158
      %v2219 = vpack.c.b16 %v2163, %v2161
      %v2220 = vpack.c.b16 %v2164, %v2162
      %v2221 = vpack.c.b16 %v2167, %v2165
      %v2222 = vpack.c.b16 %v2168, %v2166
      %v2223 = vpack.c.b16 %v2171, %v2169
      %v2224 = vpack.c.b16 %v2172, %v2170
      %v2225 = vpack.c.b16 %v2175, %v2173
      %v2226 = vpack.c.b16 %v2176, %v2174
      %v2227 = vpack.c.b16 %v2179, %v2177
      %v2228 = vpack.c.b16 %v2180, %v2178
      %v2229 = vpack.c.b16 %v2183, %v2181
      %v2230 = vpack.c.b16 %v2184, %v2182
      %v2231 = vpack.c.b16 %v2187, %v2185
      %v2232 = vpack.c.b16 %v2188, %v2186
      %v2233 = vpack.c.b16 %v2191, %v2189
      %v2234 = vpack.c.b16 %v2192, %v2190
      %v2235 = vpack.c.b16 %v2195, %v2193
      %v2236 = vpack.c.b16 %v2196, %v2194
      %v2237 = vpack.c.b16 %v2199, %v2197
      %v2238 = vpack.c.b16 %v2200, %v2198
      %v2239 = vpack.c.b16 %v2203, %v2201
      %v2240 = vpack.c.b16 %v2204, %v2202
      %v2241 = vpack.c.b16 %v2207, %v2205
      %v2242 = vpack.c.b16 %v2208, %v2206
      %v2243 = vpack.c.b16 %v2211, %v2209
      %v2244 = vpack.c.b16 %v2212, %v2210
      %2277 = vmatprep.subr.bf16.mxu0 %v2228
      %2278 = vmatpush1.bf16.msra.mxu0 %v2227
      %2279 = vmatprep.subr.bf16.mxu0 %v2226
      %2280 = vmatpush1.bf16.msra.mxu0 %v2225
      %2281 = vmatprep.subr.bf16.mxu0 %v2224
      %2282 = vmatpush1.bf16.msra.mxu0 %v2223
      %2283 = vmatprep.subr.bf16.mxu0 %v2222
      %2284 = vmatpush1.bf16.msra.mxu0 %v2221
      %2285 = vmatprep.subr.bf16.mxu0 %v2220
      %2286 = vmatpush1.bf16.msra.mxu0 %v2219
      %2287 = vmatprep.subr.bf16.mxu0 %v2218
      %2288 = vmatpush1.bf16.msra.mxu0 %v2217
      %2289 = vmatprep.subr.bf16.mxu0 %v2216
      %2290 = vmatpush1.bf16.msra.mxu0 %v2215
      %2291 = vmatprep.subr.bf16.mxu0 %v2214
      %2292 = vmatpush1.bf16.msra.mxu0 %v2213
      %2293 = vmatprep.subr.bf16.mxu0 %v2244
      %2294 = vmatpush2.bf16.msra.mxu0 %v2243
      %2295 = vmatprep.subr.bf16.mxu0 %v2242
      %2296 = vmatpush2.bf16.msra.mxu0 %v2241
      %2297 = vmatprep.subr.bf16.mxu0 %v2240
      %2298 = vmatpush2.bf16.msra.mxu0 %v2239
      %2299 = vmatprep.subr.bf16.mxu0 %v2238
      %2300 = vmatpush2.bf16.msra.mxu0 %v2237
      %2301 = vmatprep.subr.bf16.mxu0 %v2236
      %2302 = vmatpush2.bf16.msra.mxu0 %v2235
      %2303 = vmatprep.subr.bf16.mxu0 %v2234
      %2304 = vmatpush2.bf16.msra.mxu0 %v2233
      %2305 = vmatprep.subr.bf16.mxu0 %v2232
      %2306 = vmatpush2.bf16.msra.mxu0 %v2231
      %2307 = vmatprep.subr.bf16.mxu0 %v2230
      %2308 = vmatpush2.bf16.msra.mxu0 %v2229
      %2309 = vmatprep.mubr.bf16.mxu0 %v2009
      %2310 = vmatmul.mubr.bf16.gmra.mxu0 %v2008
      %v2311 = vpop.f32.mrf.mxu0
      %v2312 = vadd.f32 %v2110, %v2311
      %v2313 = vpop.f32.mrf.mxu0
      %v2314 = vadd.f32 %v2114, %v2313
      %v2315 = vpop.f32.mrf.mxu0
      %v2316 = vadd.f32 %v2110, %v2315
      %v2317 = vpop.f32.mrf.mxu0
      %v2318 = vadd.f32 %v2114, %v2317
      %2319 = vmatprep.mubr.bf16.mxu0 %v2011
      %2320 = vmatmul.mubr.bf16.gmra.mxu0 %v2010
      %v2321 = vpop.f32.mrf.mxu0
      %v2322 = vadd.f32 %v2110, %v2321
      %v2323 = vpop.f32.mrf.mxu0
      %v2324 = vadd.f32 %v2114, %v2323
      %v2325 = vpop.f32.mrf.mxu0
      %v2326 = vadd.f32 %v2110, %v2325
      %v2327 = vpop.f32.mrf.mxu0
      %v2328 = vadd.f32 %v2114, %v2327
      %2329 = vmatprep.mubr.bf16.mxu0 %v2013
      %2330 = vmatmul.mubr.bf16.gmra.mxu0 %v2012
      %v2331 = vpop.f32.mrf.mxu0
      %v2332 = vadd.f32 %v2110, %v2331
      %v2333 = vpop.f32.mrf.mxu0
      %v2334 = vadd.f32 %v2114, %v2333
      %v2335 = vpop.f32.mrf.mxu0
      %v2336 = vadd.f32 %v2110, %v2335
      %v2337 = vpop.f32.mrf.mxu0
      %v2338 = vadd.f32 %v2114, %v2337
      %2339 = vmatprep.mubr.bf16.mxu0 %v2015
      %2340 = vmatmul.mubr.bf16.gmra.mxu0 %v2014
      %v2341 = vpop.f32.mrf.mxu0
      %v2342 = vadd.f32 %v2110, %v2341
      %v2343 = vpop.f32.mrf.mxu0
      %v2344 = vadd.f32 %v2114, %v2343
      %v2345 = vpop.f32.mrf.mxu0
      %v2346 = vadd.f32 %v2110, %v2345
      %v2347 = vpop.f32.mrf.mxu0
      %v2348 = vadd.f32 %v2114, %v2347
      %2349 = vmatprep.mubr.bf16.mxu0 %v2017
      %2350 = vmatmul.mubr.bf16.gmra.mxu0 %v2016
      %v2351 = vpop.f32.mrf.mxu0
      %v2352 = vadd.f32 %v2110, %v2351
      %v2353 = vpop.f32.mrf.mxu0
      %v2354 = vadd.f32 %v2114, %v2353
      %v2355 = vpop.f32.mrf.mxu0
      %v2356 = vadd.f32 %v2110, %v2355
      %v2357 = vpop.f32.mrf.mxu0
      %v2358 = vadd.f32 %v2114, %v2357
      %2359 = vmatprep.mubr.bf16.mxu0 %v2019
      %2360 = vmatmul.mubr.bf16.gmra.mxu0 %v2018
      %v2361 = vpop.f32.mrf.mxu0
      %v2362 = vadd.f32 %v2110, %v2361
      %v2363 = vpop.f32.mrf.mxu0
      %v2364 = vadd.f32 %v2114, %v2363
      %v2365 = vpop.f32.mrf.mxu0
      %v2366 = vadd.f32 %v2110, %v2365
      %v2367 = vpop.f32.mrf.mxu0
      %v2368 = vadd.f32 %v2114, %v2367
      %2369 = vmatprep.mubr.bf16.mxu0 %v2021
      %2370 = vmatmul.mubr.bf16.gmra.mxu0 %v2020
      %v2371 = vpop.f32.mrf.mxu0
      %v2372 = vadd.f32 %v2110, %v2371
      %v2373 = vpop.f32.mrf.mxu0
      %v2374 = vadd.f32 %v2114, %v2373
      %v2375 = vpop.f32.mrf.mxu0
      %v2376 = vadd.f32 %v2110, %v2375
      %v2377 = vpop.f32.mrf.mxu0
      %v2378 = vadd.f32 %v2114, %v2377
      %2379 = vmatprep.mubr.bf16.mxu0 %v2023
      %2380 = vmatmul.mubr.bf16.gmra.mxu0 %v2022
      %v2381 = vpop.f32.mrf.mxu0
      %v2382 = vadd.f32 %v2110, %v2381
      %v2383 = vpop.f32.mrf.mxu0
      %v2384 = vadd.f32 %v2114, %v2383
      %v2385 = vpop.f32.mrf.mxu0
      %v2386 = vadd.f32 %v2110, %v2385
      %v2387 = vpop.f32.mrf.mxu0
      %v2388 = vadd.f32 %v2114, %v2387
      %2389 = vmatprep.mubr.bf16.mxu0 %v2025
      %2390 = vmatmul.mubr.bf16.gmra.mxu0 %v2024
      %v2391 = vpop.f32.mrf.mxu0
      %v2392 = vadd.f32 %v2110, %v2391
      %v2393 = vpop.f32.mrf.mxu0
      %v2394 = vadd.f32 %v2114, %v2393
      %v2395 = vpop.f32.mrf.mxu0
      %v2396 = vadd.f32 %v2110, %v2395
      %v2397 = vpop.f32.mrf.mxu0
      %v2398 = vadd.f32 %v2114, %v2397
      %2399 = vmatprep.mubr.bf16.mxu0 %v2027
      %2400 = vmatmul.mubr.bf16.gmra.mxu0 %v2026
      %v2401 = vpop.f32.mrf.mxu0
      %v2402 = vadd.f32 %v2110, %v2401
      %v2403 = vpop.f32.mrf.mxu0
      %v2404 = vadd.f32 %v2114, %v2403
      %v2405 = vpop.f32.mrf.mxu0
      %v2406 = vadd.f32 %v2110, %v2405
      %v2407 = vpop.f32.mrf.mxu0
      %v2408 = vadd.f32 %v2114, %v2407
      %2409 = vmatprep.mubr.bf16.mxu0 %v2029
      %2410 = vmatmul.mubr.bf16.gmra.mxu0 %v2028
      %v2411 = vpop.f32.mrf.mxu0
      %v2412 = vadd.f32 %v2110, %v2411
      %v2413 = vpop.f32.mrf.mxu0
      %v2414 = vadd.f32 %v2114, %v2413
      %v2415 = vpop.f32.mrf.mxu0
      %v2416 = vadd.f32 %v2110, %v2415
      %v2417 = vpop.f32.mrf.mxu0
      %v2418 = vadd.f32 %v2114, %v2417
      %2419 = vmatprep.mubr.bf16.mxu0 %v2031
      %2420 = vmatmul.mubr.bf16.gmra.mxu0 %v2030
      %v2421 = vpop.f32.mrf.mxu0
      %v2422 = vadd.f32 %v2110, %v2421
      %v2423 = vpop.f32.mrf.mxu0
      %v2424 = vadd.f32 %v2114, %v2423
      %v2425 = vpop.f32.mrf.mxu0
      %v2426 = vadd.f32 %v2110, %v2425
      %v2427 = vpop.f32.mrf.mxu0
      %v2428 = vadd.f32 %v2114, %v2427
      %2429 = vmatprep.mubr.bf16.mxu0 %v2033
      %2430 = vmatmul.mubr.bf16.gmra.mxu0 %v2032
      %v2431 = vpop.f32.mrf.mxu0
      %v2432 = vadd.f32 %v2110, %v2431
      %v2433 = vpop.f32.mrf.mxu0
      %v2434 = vadd.f32 %v2114, %v2433
      %v2435 = vpop.f32.mrf.mxu0
      %v2436 = vadd.f32 %v2110, %v2435
      %v2437 = vpop.f32.mrf.mxu0
      %v2438 = vadd.f32 %v2114, %v2437
      %2439 = vmatprep.mubr.bf16.mxu0 %v2035
      %2440 = vmatmul.mubr.bf16.gmra.mxu0 %v2034
      %v2441 = vpop.f32.mrf.mxu0
      %v2442 = vadd.f32 %v2110, %v2441
      %v2443 = vpop.f32.mrf.mxu0
      %v2444 = vadd.f32 %v2114, %v2443
      %v2445 = vpop.f32.mrf.mxu0
      %v2446 = vadd.f32 %v2110, %v2445
      %v2447 = vpop.f32.mrf.mxu0
      %v2448 = vadd.f32 %v2114, %v2447
      %2449 = vmatprep.mubr.bf16.mxu0 %v2037
      %2450 = vmatmul.mubr.bf16.gmra.mxu0 %v2036
      %v2451 = vpop.f32.mrf.mxu0
      %v2452 = vadd.f32 %v2110, %v2451
      %v2453 = vpop.f32.mrf.mxu0
      %v2454 = vadd.f32 %v2114, %v2453
      %v2455 = vpop.f32.mrf.mxu0
      %v2456 = vadd.f32 %v2110, %v2455
      %v2457 = vpop.f32.mrf.mxu0
      %v2458 = vadd.f32 %v2114, %v2457
      %2459 = vmatprep.mubr.bf16.mxu0 %v2039
      %2460 = vmatmul.mubr.bf16.gmra.mxu0 %v2038
      %v2461 = vpop.f32.mrf.mxu0
      %v2462 = vadd.f32 %v2110, %v2461
      %v2463 = vpop.f32.mrf.mxu0
      %v2464 = vadd.f32 %v2114, %v2463
      %v2465 = vpop.f32.mrf.mxu0
      %v2466 = vadd.f32 %v2110, %v2465
      %v2467 = vpop.f32.mrf.mxu0
      %v2468 = vadd.f32 %v2114, %v2467
      %2469 = vmatprep.mubr.bf16.mxu0 %v2041
      %2470 = vmatmul.mubr.bf16.gmra.mxu0 %v2040
      %v2471 = vpop.f32.mrf.mxu0
      %v2472 = vadd.f32 %v2110, %v2471
      %v2473 = vpop.f32.mrf.mxu0
      %v2474 = vadd.f32 %v2114, %v2473
      %v2475 = vpop.f32.mrf.mxu0
      %v2476 = vadd.f32 %v2110, %v2475
      %v2477 = vpop.f32.mrf.mxu0
      %v2478 = vadd.f32 %v2114, %v2477
      %2479 = vmatprep.mubr.bf16.mxu0 %v2043
      %2480 = vmatmul.mubr.bf16.gmra.mxu0 %v2042
      %v2481 = vpop.f32.mrf.mxu0
      %v2482 = vadd.f32 %v2110, %v2481
      %v2483 = vpop.f32.mrf.mxu0
      %v2484 = vadd.f32 %v2114, %v2483
      %v2485 = vpop.f32.mrf.mxu0
      %v2486 = vadd.f32 %v2110, %v2485
      %v2487 = vpop.f32.mrf.mxu0
      %v2488 = vadd.f32 %v2114, %v2487
      %2489 = vmatprep.mubr.bf16.mxu0 %v2045
      %2490 = vmatmul.mubr.bf16.gmra.mxu0 %v2044
      %v2491 = vpop.f32.mrf.mxu0
      %v2492 = vadd.f32 %v2110, %v2491
      %v2493 = vpop.f32.mrf.mxu0
      %v2494 = vadd.f32 %v2114, %v2493
      %v2495 = vpop.f32.mrf.mxu0
      %v2496 = vadd.f32 %v2110, %v2495
      %v2497 = vpop.f32.mrf.mxu0
      %v2498 = vadd.f32 %v2114, %v2497
      %2499 = vmatprep.mubr.bf16.mxu0 %v2047
      %2500 = vmatmul.mubr.bf16.gmra.mxu0 %v2046
      %v2501 = vpop.f32.mrf.mxu0
      %v2502 = vadd.f32 %v2110, %v2501
      %v2503 = vpop.f32.mrf.mxu0
      %v2504 = vadd.f32 %v2114, %v2503
      %v2505 = vpop.f32.mrf.mxu0
      %v2506 = vadd.f32 %v2110, %v2505
      %v2507 = vpop.f32.mrf.mxu0
      %v2508 = vadd.f32 %v2114, %v2507
      %2509 = vmatprep.mubr.bf16.mxu0 %v2049
      %2510 = vmatmul.mubr.bf16.gmra.mxu0 %v2048
      %v2511 = vpop.f32.mrf.mxu0
      %v2512 = vadd.f32 %v2110, %v2511
      %v2513 = vpop.f32.mrf.mxu0
      %v2514 = vadd.f32 %v2114, %v2513
      %v2515 = vpop.f32.mrf.mxu0
      %v2516 = vadd.f32 %v2110, %v2515
      %v2517 = vpop.f32.mrf.mxu0
      %v2518 = vadd.f32 %v2114, %v2517
      %2519 = vmatprep.mubr.bf16.mxu0 %v2051
      %2520 = vmatmul.mubr.bf16.gmra.mxu0 %v2050
      %v2521 = vpop.f32.mrf.mxu0
      %v2522 = vadd.f32 %v2110, %v2521
      %v2523 = vpop.f32.mrf.mxu0
      %v2524 = vadd.f32 %v2114, %v2523
      %v2525 = vpop.f32.mrf.mxu0
      %v2526 = vadd.f32 %v2110, %v2525
      %v2527 = vpop.f32.mrf.mxu0
      %v2528 = vadd.f32 %v2114, %v2527
      %2529 = vmatprep.mubr.bf16.mxu0 %v2053
      %2530 = vmatmul.mubr.bf16.gmra.mxu0 %v2052
      %v2531 = vpop.f32.mrf.mxu0
      %v2532 = vadd.f32 %v2110, %v2531
      %v2533 = vpop.f32.mrf.mxu0
      %v2534 = vadd.f32 %v2114, %v2533
      %v2535 = vpop.f32.mrf.mxu0
      %v2536 = vadd.f32 %v2110, %v2535
      %v2537 = vpop.f32.mrf.mxu0
      %v2538 = vadd.f32 %v2114, %v2537
      %2539 = vmatprep.mubr.bf16.mxu0 %v2055
      %2540 = vmatmul.mubr.bf16.gmra.mxu0 %v2054
      %v2541 = vpop.f32.mrf.mxu0
      %v2542 = vadd.f32 %v2110, %v2541
      %v2543 = vpop.f32.mrf.mxu0
      %v2544 = vadd.f32 %v2114, %v2543
      %v2545 = vpop.f32.mrf.mxu0
      %v2546 = vadd.f32 %v2110, %v2545
      %v2547 = vpop.f32.mrf.mxu0
      %v2548 = vadd.f32 %v2114, %v2547
      %2549 = vmatprep.mubr.bf16.mxu0 %v2057
      %2550 = vmatmul.mubr.bf16.gmra.mxu0 %v2056
      %v2551 = vpop.f32.mrf.mxu0
      %v2552 = vadd.f32 %v2110, %v2551
      %v2553 = vpop.f32.mrf.mxu0
      %v2554 = vadd.f32 %v2114, %v2553
      %v2555 = vpop.f32.mrf.mxu0
      %v2556 = vadd.f32 %v2110, %v2555
      %v2557 = vpop.f32.mrf.mxu0
      %v2558 = vadd.f32 %v2114, %v2557
      %2559 = vmatprep.mubr.bf16.mxu0 %v2059
      %2560 = vmatmul.mubr.bf16.gmra.mxu0 %v2058
      %v2561 = vpop.f32.mrf.mxu0
      %v2562 = vadd.f32 %v2110, %v2561
      %v2563 = vpop.f32.mrf.mxu0
      %v2564 = vadd.f32 %v2114, %v2563
      %v2565 = vpop.f32.mrf.mxu0
      %v2566 = vadd.f32 %v2110, %v2565
      %v2567 = vpop.f32.mrf.mxu0
      %v2568 = vadd.f32 %v2114, %v2567
      %2569 = vmatprep.mubr.bf16.mxu0 %v2061
      %2570 = vmatmul.mubr.bf16.gmra.mxu0 %v2060
      %v2571 = vpop.f32.mrf.mxu0
      %v2572 = vadd.f32 %v2110, %v2571
      %v2573 = vpop.f32.mrf.mxu0
      %v2574 = vadd.f32 %v2114, %v2573
      %v2575 = vpop.f32.mrf.mxu0
      %v2576 = vadd.f32 %v2110, %v2575
      %v2577 = vpop.f32.mrf.mxu0
      %v2578 = vadd.f32 %v2114, %v2577
      %2579 = vmatprep.mubr.bf16.mxu0 %v2063
      %2580 = vmatmul.mubr.bf16.gmra.mxu0 %v2062
      %v2581 = vpop.f32.mrf.mxu0
      %v2582 = vadd.f32 %v2110, %v2581
      %v2583 = vpop.f32.mrf.mxu0
      %v2584 = vadd.f32 %v2114, %v2583
      %v2585 = vpop.f32.mrf.mxu0
      %v2586 = vadd.f32 %v2110, %v2585
      %v2587 = vpop.f32.mrf.mxu0
      %v2588 = vadd.f32 %v2114, %v2587
      %2589 = vmatprep.mubr.bf16.mxu0 %v2065
      %2590 = vmatmul.mubr.bf16.gmra.mxu0 %v2064
      %v2591 = vpop.f32.mrf.mxu0
      %v2592 = vadd.f32 %v2110, %v2591
      %v2593 = vpop.f32.mrf.mxu0
      %v2594 = vadd.f32 %v2114, %v2593
      %v2595 = vpop.f32.mrf.mxu0
      %v2596 = vadd.f32 %v2110, %v2595
      %v2597 = vpop.f32.mrf.mxu0
      %v2598 = vadd.f32 %v2114, %v2597
      %2599 = vmatprep.mubr.bf16.mxu0 %v2067
      %2600 = vmatmul.mubr.bf16.gmra.mxu0 %v2066
      %v2601 = vpop.f32.mrf.mxu0
      %v2602 = vadd.f32 %v2110, %v2601
      %v2603 = vpop.f32.mrf.mxu0
      %v2604 = vadd.f32 %v2114, %v2603
      %v2605 = vpop.f32.mrf.mxu0
      %v2606 = vadd.f32 %v2110, %v2605
      %v2607 = vpop.f32.mrf.mxu0
      %v2608 = vadd.f32 %v2114, %v2607
      %2609 = vmatprep.mubr.bf16.mxu0 %v2069
      %2610 = vmatmul.mubr.bf16.gmra.mxu0 %v2068
      %v2611 = vpop.f32.mrf.mxu0
      %v2612 = vadd.f32 %v2110, %v2611
      %v2613 = vpop.f32.mrf.mxu0
      %v2614 = vadd.f32 %v2114, %v2613
      %v2615 = vpop.f32.mrf.mxu0
      %v2616 = vadd.f32 %v2110, %v2615
      %v2617 = vpop.f32.mrf.mxu0
      %v2618 = vadd.f32 %v2114, %v2617
      %2619 = vmatprep.mubr.bf16.mxu0 %v2071
      %2620 = vmatmul.mubr.bf16.gmra.mxu0 %v2070
      %v2621 = vpop.f32.mrf.mxu0
      %v2622 = vadd.f32 %v2110, %v2621
      %v2623 = vpop.f32.mrf.mxu0
      %v2624 = vadd.f32 %v2114, %v2623
      %v2625 = vpop.f32.mrf.mxu0
      %v2626 = vadd.f32 %v2110, %v2625
      %v2627 = vpop.f32.mrf.mxu0
      %v2628 = vadd.f32 %v2114, %v2627
      %2629 = vdwg.mxu0
      %v2630 = vmax.f32 %v2312, 0.0
      %v2631 = vmax.f32 %v2314, 0.0
      %v2632 = vmax.f32 %v2316, 0.0
      %v2633 = vmax.f32 %v2318, 0.0
      %v2634 = vmax.f32 %v2322, 0.0
      %v2635 = vmax.f32 %v2324, 0.0
      %v2636 = vmax.f32 %v2326, 0.0
      %v2637 = vmax.f32 %v2328, 0.0
      %v2638 = vmax.f32 %v2332, 0.0
      %v2639 = vmax.f32 %v2334, 0.0
      %v2640 = vmax.f32 %v2336, 0.0
      %v2641 = vmax.f32 %v2338, 0.0
      %v2642 = vmax.f32 %v2342, 0.0
      %v2643 = vmax.f32 %v2344, 0.0
      %v2644 = vmax.f32 %v2346, 0.0
      %v2645 = vmax.f32 %v2348, 0.0
      %v2646 = vmax.f32 %v2352, 0.0
      %v2647 = vmax.f32 %v2354, 0.0
      %v2648 = vmax.f32 %v2356, 0.0
      %v2649 = vmax.f32 %v2358, 0.0
      %v2650 = vmax.f32 %v2362, 0.0
      %v2651 = vmax.f32 %v2364, 0.0
      %v2652 = vmax.f32 %v2366, 0.0
      %v2653 = vmax.f32 %v2368, 0.0
      %v2654 = vmax.f32 %v2372, 0.0
      %v2655 = vmax.f32 %v2374, 0.0
      %v2656 = vmax.f32 %v2376, 0.0
      %v2657 = vmax.f32 %v2378, 0.0
      %v2658 = vmax.f32 %v2382, 0.0
      %v2659 = vmax.f32 %v2384, 0.0
      %v2660 = vmax.f32 %v2386, 0.0
      %v2661 = vmax.f32 %v2388, 0.0
      %v2662 = vmax.f32 %v2392, 0.0
      %v2663 = vmax.f32 %v2394, 0.0
      %v2664 = vmax.f32 %v2396, 0.0
      %v2665 = vmax.f32 %v2398, 0.0
      %v2666 = vmax.f32 %v2402, 0.0
      %v2667 = vmax.f32 %v2404, 0.0
      %v2668 = vmax.f32 %v2406, 0.0
      %v2669 = vmax.f32 %v2408, 0.0
      %v2670 = vmax.f32 %v2412, 0.0
      %v2671 = vmax.f32 %v2414, 0.0
      %v2672 = vmax.f32 %v2416, 0.0
      %v2673 = vmax.f32 %v2418, 0.0
      %v2674 = vmax.f32 %v2422, 0.0
      %v2675 = vmax.f32 %v2424, 0.0
      %v2676 = vmax.f32 %v2426, 0.0
      %v2677 = vmax.f32 %v2428, 0.0
      %v2678 = vmax.f32 %v2432, 0.0
      %v2679 = vmax.f32 %v2434, 0.0
      %v2680 = vmax.f32 %v2436, 0.0
      %v2681 = vmax.f32 %v2438, 0.0
      %v2682 = vmax.f32 %v2442, 0.0
      %v2683 = vmax.f32 %v2444, 0.0
      %v2684 = vmax.f32 %v2446, 0.0
      %v2685 = vmax.f32 %v2448, 0.0
      %v2686 = vmax.f32 %v2452, 0.0
      %v2687 = vmax.f32 %v2454, 0.0
      %v2688 = vmax.f32 %v2456, 0.0
      %v2689 = vmax.f32 %v2458, 0.0
      %v2690 = vmax.f32 %v2462, 0.0
      %v2691 = vmax.f32 %v2464, 0.0
      %v2692 = vmax.f32 %v2466, 0.0
      %v2693 = vmax.f32 %v2468, 0.0
      %v2694 = vmax.f32 %v2472, 0.0
      %v2695 = vmax.f32 %v2474, 0.0
      %v2696 = vmax.f32 %v2476, 0.0
      %v2697 = vmax.f32 %v2478, 0.0
      %v2698 = vmax.f32 %v2482, 0.0
      %v2699 = vmax.f32 %v2484, 0.0
      %v2700 = vmax.f32 %v2486, 0.0
      %v2701 = vmax.f32 %v2488, 0.0
      %v2702 = vmax.f32 %v2492, 0.0
      %v2703 = vmax.f32 %v2494, 0.0
      %v2704 = vmax.f32 %v2496, 0.0
      %v2705 = vmax.f32 %v2498, 0.0
      %v2706 = vmax.f32 %v2502, 0.0
      %v2707 = vmax.f32 %v2504, 0.0
      %v2708 = vmax.f32 %v2506, 0.0
      %v2709 = vmax.f32 %v2508, 0.0
      %v2710 = vmax.f32 %v2512, 0.0
      %v2711 = vmax.f32 %v2514, 0.0
      %v2712 = vmax.f32 %v2516, 0.0
      %v2713 = vmax.f32 %v2518, 0.0
      %v2714 = vmax.f32 %v2522, 0.0
      %v2715 = vmax.f32 %v2524, 0.0
      %v2716 = vmax.f32 %v2526, 0.0
      %v2717 = vmax.f32 %v2528, 0.0
      %v2718 = vmax.f32 %v2532, 0.0
      %v2719 = vmax.f32 %v2534, 0.0
      %v2720 = vmax.f32 %v2536, 0.0
      %v2721 = vmax.f32 %v2538, 0.0
      %v2722 = vmax.f32 %v2542, 0.0
      %v2723 = vmax.f32 %v2544, 0.0
      %v2724 = vmax.f32 %v2546, 0.0
      %v2725 = vmax.f32 %v2548, 0.0
      %v2726 = vmax.f32 %v2552, 0.0
      %v2727 = vmax.f32 %v2554, 0.0
      %v2728 = vmax.f32 %v2556, 0.0
      %v2729 = vmax.f32 %v2558, 0.0
      %v2730 = vmax.f32 %v2562, 0.0
      %v2731 = vmax.f32 %v2564, 0.0
      %v2732 = vmax.f32 %v2566, 0.0
      %v2733 = vmax.f32 %v2568, 0.0
      %v2734 = vmax.f32 %v2572, 0.0
      %v2735 = vmax.f32 %v2574, 0.0
      %v2736 = vmax.f32 %v2576, 0.0
      %v2737 = vmax.f32 %v2578, 0.0
      %v2738 = vmax.f32 %v2582, 0.0
      %v2739 = vmax.f32 %v2584, 0.0
      %v2740 = vmax.f32 %v2586, 0.0
      %v2741 = vmax.f32 %v2588, 0.0
      %v2742 = vmax.f32 %v2592, 0.0
      %v2743 = vmax.f32 %v2594, 0.0
      %v2744 = vmax.f32 %v2596, 0.0
      %v2745 = vmax.f32 %v2598, 0.0
      %v2746 = vmax.f32 %v2602, 0.0
      %v2747 = vmax.f32 %v2604, 0.0
      %v2748 = vmax.f32 %v2606, 0.0
      %v2749 = vmax.f32 %v2608, 0.0
      %v2750 = vmax.f32 %v2612, 0.0
      %v2751 = vmax.f32 %v2614, 0.0
      %v2752 = vmax.f32 %v2616, 0.0
      %v2753 = vmax.f32 %v2618, 0.0
      %v2754 = vmax.f32 %v2622, 0.0
      %v2755 = vmax.f32 %v2624, 0.0
      %v2756 = vmax.f32 %v2626, 0.0
      %v2757 = vmax.f32 %v2628, 0.0
      %v2758 = vpack.c.bf16 %v2632, %v2630
      %v2759 = vpack.c.bf16 %v2633, %v2631
      %v2760 = vpack.c.bf16 %v2636, %v2634
      %v2761 = vpack.c.bf16 %v2637, %v2635
      %v2762 = vpack.c.bf16 %v2640, %v2638
      %v2763 = vpack.c.bf16 %v2641, %v2639
      %v2764 = vpack.c.bf16 %v2644, %v2642
      %v2765 = vpack.c.bf16 %v2645, %v2643
      %v2766 = vpack.c.bf16 %v2648, %v2646
      %v2767 = vpack.c.bf16 %v2649, %v2647
      %v2768 = vpack.c.bf16 %v2652, %v2650
      %v2769 = vpack.c.bf16 %v2653, %v2651
      %v2770 = vpack.c.bf16 %v2656, %v2654
      %v2771 = vpack.c.bf16 %v2657, %v2655
      %v2772 = vpack.c.bf16 %v2660, %v2658
      %v2773 = vpack.c.bf16 %v2661, %v2659
      %v2774 = vpack.c.bf16 %v2664, %v2662
      %v2775 = vpack.c.bf16 %v2665, %v2663
      %v2776 = vpack.c.bf16 %v2668, %v2666
      %v2777 = vpack.c.bf16 %v2669, %v2667
      %v2778 = vpack.c.bf16 %v2672, %v2670
      %v2779 = vpack.c.bf16 %v2673, %v2671
      %v2780 = vpack.c.bf16 %v2676, %v2674
      %v2781 = vpack.c.bf16 %v2677, %v2675
      %v2782 = vpack.c.bf16 %v2680, %v2678
      %v2783 = vpack.c.bf16 %v2681, %v2679
      %v2784 = vpack.c.bf16 %v2684, %v2682
      %v2785 = vpack.c.bf16 %v2685, %v2683
      %v2786 = vpack.c.bf16 %v2688, %v2686
      %v2787 = vpack.c.bf16 %v2689, %v2687
      %v2788 = vpack.c.bf16 %v2692, %v2690
      %v2789 = vpack.c.bf16 %v2693, %v2691
      %v2790 = vpack.c.bf16 %v2696, %v2694
      %v2791 = vpack.c.bf16 %v2697, %v2695
      %v2792 = vpack.c.bf16 %v2700, %v2698
      %v2793 = vpack.c.bf16 %v2701, %v2699
      %v2794 = vpack.c.bf16 %v2704, %v2702
      %v2795 = vpack.c.bf16 %v2705, %v2703
      %v2796 = vpack.c.bf16 %v2708, %v2706
      %v2797 = vpack.c.bf16 %v2709, %v2707
      %v2798 = vpack.c.bf16 %v2712, %v2710
      %v2799 = vpack.c.bf16 %v2713, %v2711
      %v2800 = vpack.c.bf16 %v2716, %v2714
      %v2801 = vpack.c.bf16 %v2717, %v2715
      %v2802 = vpack.c.bf16 %v2720, %v2718
      %v2803 = vpack.c.bf16 %v2721, %v2719
      %v2804 = vpack.c.bf16 %v2724, %v2722
      %v2805 = vpack.c.bf16 %v2725, %v2723
      %v2806 = vpack.c.bf16 %v2728, %v2726
      %v2807 = vpack.c.bf16 %v2729, %v2727
      %v2808 = vpack.c.bf16 %v2732, %v2730
      %v2809 = vpack.c.bf16 %v2733, %v2731
      %v2810 = vpack.c.bf16 %v2736, %v2734
      %v2811 = vpack.c.bf16 %v2737, %v2735
      %v2812 = vpack.c.bf16 %v2740, %v2738
      %v2813 = vpack.c.bf16 %v2741, %v2739
      %v2814 = vpack.c.bf16 %v2744, %v2742
      %v2815 = vpack.c.bf16 %v2745, %v2743
      %v2816 = vpack.c.bf16 %v2748, %v2746
      %v2817 = vpack.c.bf16 %v2749, %v2747
      %v2818 = vpack.c.bf16 %v2752, %v2750
      %v2819 = vpack.c.bf16 %v2753, %v2751
      %v2820 = vpack.c.bf16 %v2756, %v2754
      %v2821 = vpack.c.bf16 %v2757, %v2755
      %v2822 = vld [vmem:[%s2 + $0x240] sm:$0xff]
      %v2823 = vld [vmem:[%s2 + $0x248] sm:$0xff]
      %v2824 = vld [vmem:[%s2 + $0x250] sm:$0xff]
      %v2825 = vld [vmem:[%s2 + $0x258] sm:$0xff]
      %v2826 = vld [vmem:[%s2 + $0x260] sm:$0xff]
      %v2827 = vld [vmem:[%s2 + $0x268] sm:$0xff]
      %v2828 = vld [vmem:[%s2 + $0x270] sm:$0xff]
      %v2829 = vld [vmem:[%s2 + $0x278] sm:$0xff]
      %v2830 = vld [vmem:[%s2 + $0x280] sm:$0xff]
      %v2831 = vld [vmem:[%s2 + $0x288] sm:$0xff]
      %v2832 = vld [vmem:[%s2 + $0x290] sm:$0xff]
      %v2833 = vld [vmem:[%s2 + $0x298] sm:$0xff]
      %v2834 = vld [vmem:[%s2 + $0x2a0] sm:$0xff]
      %v2835 = vld [vmem:[%s2 + $0x2a8] sm:$0xff]
      %v2836 = vld [vmem:[%s2 + $0x2b0] sm:$0xff]
      %v2837 = vld [vmem:[%s2 + $0x2b8] sm:$0xff]
      %v2838 = vld [vmem:[%s2 + $0x2c0] sm:$0xff]
      %v2839 = vld [vmem:[%s2 + $0x2c8] sm:$0xff]
      %v2840 = vld [vmem:[%s2 + $0x2d0] sm:$0xff]
      %v2841 = vld [vmem:[%s2 + $0x2d8] sm:$0xff]
      %v2842 = vld [vmem:[%s2 + $0x2e0] sm:$0xff]
      %v2843 = vld [vmem:[%s2 + $0x2e8] sm:$0xff]
      %v2844 = vld [vmem:[%s2 + $0x2f0] sm:$0xff]
      %v2845 = vld [vmem:[%s2 + $0x2f8] sm:$0xff]
      %v2846 = vld [vmem:[%s2 + $0x300] sm:$0xff]
      %v2847 = vld [vmem:[%s2 + $0x308] sm:$0xff]
      %v2848 = vld [vmem:[%s2 + $0x310] sm:$0xff]
      %v2849 = vld [vmem:[%s2 + $0x318] sm:$0xff]
      %v2850 = vld [vmem:[%s2 + $0x320] sm:$0xff]
      %v2851 = vld [vmem:[%s2 + $0x328] sm:$0xff]
      %v2852 = vld [vmem:[%s2 + $0x330] sm:$0xff]
      %v2853 = vld [vmem:[%s2 + $0x338] sm:$0xff]
      %s2854 = scalar_lea.vmem %s3, 3
      %v2855 = vld [vmem:[%s2854] ss:$8 sm:$0x3]
      %v2857 = vlaneseq
      %v2858 = vshrl.u32 %v2857, 7
      %v2859 = vsub.s32 0, %v2858
      %v2860 = vrot.slane %v2855, %v2859
      %v2861 = vlaneseq
      %v2862 = vshrl.u32 %v2861, 7
      %v2863 = vsub.s32 1, %v2862
      %v2864 = vrot.slane %v2855, %v2863
      %v2899 = vunpack.c.l.b16 %v2822
      %v2900 = vunpack.c.h.b16 %v2822
      %v2901 = vunpack.c.l.b16 %v2823
      %v2902 = vunpack.c.h.b16 %v2823
      %v2903 = vunpack.c.l.b16 %v2824
      %v2904 = vunpack.c.h.b16 %v2824
      %v2905 = vunpack.c.l.b16 %v2825
      %v2906 = vunpack.c.h.b16 %v2825
      %v2907 = vunpack.c.l.b16 %v2826
      %v2908 = vunpack.c.h.b16 %v2826
      %v2909 = vunpack.c.l.b16 %v2827
      %v2910 = vunpack.c.h.b16 %v2827
      %v2911 = vunpack.c.l.b16 %v2828
      %v2912 = vunpack.c.h.b16 %v2828
      %v2913 = vunpack.c.l.b16 %v2829
      %v2914 = vunpack.c.h.b16 %v2829
      %v2915 = vunpack.c.l.b16 %v2830
      %v2916 = vunpack.c.h.b16 %v2830
      %v2917 = vunpack.c.l.b16 %v2831
      %v2918 = vunpack.c.h.b16 %v2831
      %v2919 = vunpack.c.l.b16 %v2832
      %v2920 = vunpack.c.h.b16 %v2832
      %v2921 = vunpack.c.l.b16 %v2833
      %v2922 = vunpack.c.h.b16 %v2833
      %v2923 = vunpack.c.l.b16 %v2834
      %v2924 = vunpack.c.h.b16 %v2834
      %v2925 = vunpack.c.l.b16 %v2835
      %v2926 = vunpack.c.h.b16 %v2835
      %v2927 = vunpack.c.l.b16 %v2836
      %v2928 = vunpack.c.h.b16 %v2836
      %v2929 = vunpack.c.l.b16 %v2837
      %v2930 = vunpack.c.h.b16 %v2837
      %v2931 = vunpack.c.l.b16 %v2838
      %v2932 = vunpack.c.h.b16 %v2838
      %v2933 = vunpack.c.l.b16 %v2839
      %v2934 = vunpack.c.h.b16 %v2839
      %v2935 = vunpack.c.l.b16 %v2840
      %v2936 = vunpack.c.h.b16 %v2840
      %v2937 = vunpack.c.l.b16 %v2841
      %v2938 = vunpack.c.h.b16 %v2841
      %v2939 = vunpack.c.l.b16 %v2842
      %v2940 = vunpack.c.h.b16 %v2842
      %v2941 = vunpack.c.l.b16 %v2843
      %v2942 = vunpack.c.h.b16 %v2843
      %v2943 = vunpack.c.l.b16 %v2844
      %v2944 = vunpack.c.h.b16 %v2844
      %v2945 = vunpack.c.l.b16 %v2845
      %v2946 = vunpack.c.h.b16 %v2845
      %v2947 = vunpack.c.l.b16 %v2846
      %v2948 = vunpack.c.h.b16 %v2846
      %v2949 = vunpack.c.l.b16 %v2847
      %v2950 = vunpack.c.h.b16 %v2847
      %v2951 = vunpack.c.l.b16 %v2848
      %v2952 = vunpack.c.h.b16 %v2848
      %v2953 = vunpack.c.l.b16 %v2849
      %v2954 = vunpack.c.h.b16 %v2849
      %v2955 = vunpack.c.l.b16 %v2850
      %v2956 = vunpack.c.h.b16 %v2850
      %v2957 = vunpack.c.l.b16 %v2851
      %v2958 = vunpack.c.h.b16 %v2851
      %v2959 = vunpack.c.l.b16 %v2852
      %v2960 = vunpack.c.h.b16 %v2852
      %v2961 = vunpack.c.l.b16 %v2853
      %v2962 = vunpack.c.h.b16 %v2853
      %v2963 = vpack.c.b16 %v2901, %v2899
      %v2964 = vpack.c.b16 %v2902, %v2900
      %v2965 = vpack.c.b16 %v2905, %v2903
      %v2966 = vpack.c.b16 %v2906, %v2904
      %v2967 = vpack.c.b16 %v2909, %v2907
      %v2968 = vpack.c.b16 %v2910, %v2908
      %v2969 = vpack.c.b16 %v2913, %v2911
      %v2970 = vpack.c.b16 %v2914, %v2912
      %v2971 = vpack.c.b16 %v2917, %v2915
      %v2972 = vpack.c.b16 %v2918, %v2916
      %v2973 = vpack.c.b16 %v2921, %v2919
      %v2974 = vpack.c.b16 %v2922, %v2920
      %v2975 = vpack.c.b16 %v2925, %v2923
      %v2976 = vpack.c.b16 %v2926, %v2924
      %v2977 = vpack.c.b16 %v2929, %v2927
      %v2978 = vpack.c.b16 %v2930, %v2928
      %v2979 = vpack.c.b16 %v2933, %v2931
      %v2980 = vpack.c.b16 %v2934, %v2932
      %v2981 = vpack.c.b16 %v2937, %v2935
      %v2982 = vpack.c.b16 %v2938, %v2936
      %v2983 = vpack.c.b16 %v2941, %v2939
      %v2984 = vpack.c.b16 %v2942, %v2940
      %v2985 = vpack.c.b16 %v2945, %v2943
      %v2986 = vpack.c.b16 %v2946, %v2944
      %v2987 = vpack.c.b16 %v2949, %v2947
      %v2988 = vpack.c.b16 %v2950, %v2948
      %v2989 = vpack.c.b16 %v2953, %v2951
      %v2990 = vpack.c.b16 %v2954, %v2952
      %v2991 = vpack.c.b16 %v2957, %v2955
      %v2992 = vpack.c.b16 %v2958, %v2956
      %v2993 = vpack.c.b16 %v2961, %v2959
      %v2994 = vpack.c.b16 %v2962, %v2960
      %3027 = vmatprep.subr.bf16.mxu0 %v2978
      %3028 = vmatpush1.bf16.msra.mxu0 %v2977
      %3029 = vmatprep.subr.bf16.mxu0 %v2976
      %3030 = vmatpush1.bf16.msra.mxu0 %v2975
      %3031 = vmatprep.subr.bf16.mxu0 %v2974
      %3032 = vmatpush1.bf16.msra.mxu0 %v2973
      %3033 = vmatprep.subr.bf16.mxu0 %v2972
      %3034 = vmatpush1.bf16.msra.mxu0 %v2971
      %3035 = vmatprep.subr.bf16.mxu0 %v2970
      %3036 = vmatpush1.bf16.msra.mxu0 %v2969
      %3037 = vmatprep.subr.bf16.mxu0 %v2968
      %3038 = vmatpush1.bf16.msra.mxu0 %v2967
      %3039 = vmatprep.subr.bf16.mxu0 %v2966
      %3040 = vmatpush1.bf16.msra.mxu0 %v2965
      %3041 = vmatprep.subr.bf16.mxu0 %v2964
      %3042 = vmatpush1.bf16.msra.mxu0 %v2963
      %3043 = vmatprep.subr.bf16.mxu0 %v2994
      %3044 = vmatpush2.bf16.msra.mxu0 %v2993
      %3045 = vmatprep.subr.bf16.mxu0 %v2992
      %3046 = vmatpush2.bf16.msra.mxu0 %v2991
      %3047 = vmatprep.subr.bf16.mxu0 %v2990
      %3048 = vmatpush2.bf16.msra.mxu0 %v2989
      %3049 = vmatprep.subr.bf16.mxu0 %v2988
      %3050 = vmatpush2.bf16.msra.mxu0 %v2987
      %3051 = vmatprep.subr.bf16.mxu0 %v2986
      %3052 = vmatpush2.bf16.msra.mxu0 %v2985
      %3053 = vmatprep.subr.bf16.mxu0 %v2984
      %3054 = vmatpush2.bf16.msra.mxu0 %v2983
      %3055 = vmatprep.subr.bf16.mxu0 %v2982
      %3056 = vmatpush2.bf16.msra.mxu0 %v2981
      %3057 = vmatprep.subr.bf16.mxu0 %v2980
      %3058 = vmatpush2.bf16.msra.mxu0 %v2979
      %3059 = vmatprep.mubr.bf16.mxu0 %v2759
      %3060 = vmatmul.mubr.bf16.gmra.mxu0 %v2758
      %v3061 = vpop.f32.mrf.mxu0
      %v3062 = vadd.f32 %v2860, %v3061
      %v3063 = vpop.f32.mrf.mxu0
      %v3064 = vadd.f32 %v2864, %v3063
      %v3065 = vpop.f32.mrf.mxu0
      %v3066 = vadd.f32 %v2860, %v3065
      %v3067 = vpop.f32.mrf.mxu0
      %v3068 = vadd.f32 %v2864, %v3067
      %3069 = vmatprep.mubr.bf16.mxu0 %v2761
      %3070 = vmatmul.mubr.bf16.gmra.mxu0 %v2760
      %v3071 = vpop.f32.mrf.mxu0
      %v3072 = vadd.f32 %v2860, %v3071
      %v3073 = vpop.f32.mrf.mxu0
      %v3074 = vadd.f32 %v2864, %v3073
      %v3075 = vpop.f32.mrf.mxu0
      %v3076 = vadd.f32 %v2860, %v3075
      %v3077 = vpop.f32.mrf.mxu0
      %v3078 = vadd.f32 %v2864, %v3077
      %3079 = vmatprep.mubr.bf16.mxu0 %v2763
      %3080 = vmatmul.mubr.bf16.gmra.mxu0 %v2762
      %v3081 = vpop.f32.mrf.mxu0
      %v3082 = vadd.f32 %v2860, %v3081
      %v3083 = vpop.f32.mrf.mxu0
      %v3084 = vadd.f32 %v2864, %v3083
      %v3085 = vpop.f32.mrf.mxu0
      %v3086 = vadd.f32 %v2860, %v3085
      %v3087 = vpop.f32.mrf.mxu0
      %v3088 = vadd.f32 %v2864, %v3087
      %3089 = vmatprep.mubr.bf16.mxu0 %v2765
      %3090 = vmatmul.mubr.bf16.gmra.mxu0 %v2764
      %v3091 = vpop.f32.mrf.mxu0
      %v3092 = vadd.f32 %v2860, %v3091
      %v3093 = vpop.f32.mrf.mxu0
      %v3094 = vadd.f32 %v2864, %v3093
      %v3095 = vpop.f32.mrf.mxu0
      %v3096 = vadd.f32 %v2860, %v3095
      %v3097 = vpop.f32.mrf.mxu0
      %v3098 = vadd.f32 %v2864, %v3097
      %3099 = vmatprep.mubr.bf16.mxu0 %v2767
      %3100 = vmatmul.mubr.bf16.gmra.mxu0 %v2766
      %v3101 = vpop.f32.mrf.mxu0
      %v3102 = vadd.f32 %v2860, %v3101
      %v3103 = vpop.f32.mrf.mxu0
      %v3104 = vadd.f32 %v2864, %v3103
      %v3105 = vpop.f32.mrf.mxu0
      %v3106 = vadd.f32 %v2860, %v3105
      %v3107 = vpop.f32.mrf.mxu0
      %v3108 = vadd.f32 %v2864, %v3107
      %3109 = vmatprep.mubr.bf16.mxu0 %v2769
      %3110 = vmatmul.mubr.bf16.gmra.mxu0 %v2768
      %v3111 = vpop.f32.mrf.mxu0
      %v3112 = vadd.f32 %v2860, %v3111
      %v3113 = vpop.f32.mrf.mxu0
      %v3114 = vadd.f32 %v2864, %v3113
      %v3115 = vpop.f32.mrf.mxu0
      %v3116 = vadd.f32 %v2860, %v3115
      %v3117 = vpop.f32.mrf.mxu0
      %v3118 = vadd.f32 %v2864, %v3117
      %3119 = vmatprep.mubr.bf16.mxu0 %v2771
      %3120 = vmatmul.mubr.bf16.gmra.mxu0 %v2770
      %v3121 = vpop.f32.mrf.mxu0
      %v3122 = vadd.f32 %v2860, %v3121
      %v3123 = vpop.f32.mrf.mxu0
      %v3124 = vadd.f32 %v2864, %v3123
      %v3125 = vpop.f32.mrf.mxu0
      %v3126 = vadd.f32 %v2860, %v3125
      %v3127 = vpop.f32.mrf.mxu0
      %v3128 = vadd.f32 %v2864, %v3127
      %3129 = vmatprep.mubr.bf16.mxu0 %v2773
      %3130 = vmatmul.mubr.bf16.gmra.mxu0 %v2772
      %v3131 = vpop.f32.mrf.mxu0
      %v3132 = vadd.f32 %v2860, %v3131
      %v3133 = vpop.f32.mrf.mxu0
      %v3134 = vadd.f32 %v2864, %v3133
      %v3135 = vpop.f32.mrf.mxu0
      %v3136 = vadd.f32 %v2860, %v3135
      %v3137 = vpop.f32.mrf.mxu0
      %v3138 = vadd.f32 %v2864, %v3137
      %3139 = vmatprep.mubr.bf16.mxu0 %v2775
      %3140 = vmatmul.mubr.bf16.gmra.mxu0 %v2774
      %v3141 = vpop.f32.mrf.mxu0
      %v3142 = vadd.f32 %v2860, %v3141
      %v3143 = vpop.f32.mrf.mxu0
      %v3144 = vadd.f32 %v2864, %v3143
      %v3145 = vpop.f32.mrf.mxu0
      %v3146 = vadd.f32 %v2860, %v3145
      %v3147 = vpop.f32.mrf.mxu0
      %v3148 = vadd.f32 %v2864, %v3147
      %3149 = vmatprep.mubr.bf16.mxu0 %v2777
      %3150 = vmatmul.mubr.bf16.gmra.mxu0 %v2776
      %v3151 = vpop.f32.mrf.mxu0
      %v3152 = vadd.f32 %v2860, %v3151
      %v3153 = vpop.f32.mrf.mxu0
      %v3154 = vadd.f32 %v2864, %v3153
      %v3155 = vpop.f32.mrf.mxu0
      %v3156 = vadd.f32 %v2860, %v3155
      %v3157 = vpop.f32.mrf.mxu0
      %v3158 = vadd.f32 %v2864, %v3157
      %3159 = vmatprep.mubr.bf16.mxu0 %v2779
      %3160 = vmatmul.mubr.bf16.gmra.mxu0 %v2778
      %v3161 = vpop.f32.mrf.mxu0
      %v3162 = vadd.f32 %v2860, %v3161
      %v3163 = vpop.f32.mrf.mxu0
      %v3164 = vadd.f32 %v2864, %v3163
      %v3165 = vpop.f32.mrf.mxu0
      %v3166 = vadd.f32 %v2860, %v3165
      %v3167 = vpop.f32.mrf.mxu0
      %v3168 = vadd.f32 %v2864, %v3167
      %3169 = vmatprep.mubr.bf16.mxu0 %v2781
      %3170 = vmatmul.mubr.bf16.gmra.mxu0 %v2780
      %v3171 = vpop.f32.mrf.mxu0
      %v3172 = vadd.f32 %v2860, %v3171
      %v3173 = vpop.f32.mrf.mxu0
      %v3174 = vadd.f32 %v2864, %v3173
      %v3175 = vpop.f32.mrf.mxu0
      %v3176 = vadd.f32 %v2860, %v3175
      %v3177 = vpop.f32.mrf.mxu0
      %v3178 = vadd.f32 %v2864, %v3177
      %3179 = vmatprep.mubr.bf16.mxu0 %v2783
      %3180 = vmatmul.mubr.bf16.gmra.mxu0 %v2782
      %v3181 = vpop.f32.mrf.mxu0
      %v3182 = vadd.f32 %v2860, %v3181
      %v3183 = vpop.f32.mrf.mxu0
      %v3184 = vadd.f32 %v2864, %v3183
      %v3185 = vpop.f32.mrf.mxu0
      %v3186 = vadd.f32 %v2860, %v3185
      %v3187 = vpop.f32.mrf.mxu0
      %v3188 = vadd.f32 %v2864, %v3187
      %3189 = vmatprep.mubr.bf16.mxu0 %v2785
      %3190 = vmatmul.mubr.bf16.gmra.mxu0 %v2784
      %v3191 = vpop.f32.mrf.mxu0
      %v3192 = vadd.f32 %v2860, %v3191
      %v3193 = vpop.f32.mrf.mxu0
      %v3194 = vadd.f32 %v2864, %v3193
      %v3195 = vpop.f32.mrf.mxu0
      %v3196 = vadd.f32 %v2860, %v3195
      %v3197 = vpop.f32.mrf.mxu0
      %v3198 = vadd.f32 %v2864, %v3197
      %3199 = vmatprep.mubr.bf16.mxu0 %v2787
      %3200 = vmatmul.mubr.bf16.gmra.mxu0 %v2786
      %v3201 = vpop.f32.mrf.mxu0
      %v3202 = vadd.f32 %v2860, %v3201
      %v3203 = vpop.f32.mrf.mxu0
      %v3204 = vadd.f32 %v2864, %v3203
      %v3205 = vpop.f32.mrf.mxu0
      %v3206 = vadd.f32 %v2860, %v3205
      %v3207 = vpop.f32.mrf.mxu0
      %v3208 = vadd.f32 %v2864, %v3207
      %3209 = vmatprep.mubr.bf16.mxu0 %v2789
      %3210 = vmatmul.mubr.bf16.gmra.mxu0 %v2788
      %v3211 = vpop.f32.mrf.mxu0
      %v3212 = vadd.f32 %v2860, %v3211
      %v3213 = vpop.f32.mrf.mxu0
      %v3214 = vadd.f32 %v2864, %v3213
      %v3215 = vpop.f32.mrf.mxu0
      %v3216 = vadd.f32 %v2860, %v3215
      %v3217 = vpop.f32.mrf.mxu0
      %v3218 = vadd.f32 %v2864, %v3217
      %3219 = vmatprep.mubr.bf16.mxu0 %v2791
      %3220 = vmatmul.mubr.bf16.gmra.mxu0 %v2790
      %v3221 = vpop.f32.mrf.mxu0
      %v3222 = vadd.f32 %v2860, %v3221
      %v3223 = vpop.f32.mrf.mxu0
      %v3224 = vadd.f32 %v2864, %v3223
      %v3225 = vpop.f32.mrf.mxu0
      %v3226 = vadd.f32 %v2860, %v3225
      %v3227 = vpop.f32.mrf.mxu0
      %v3228 = vadd.f32 %v2864, %v3227
      %3229 = vmatprep.mubr.bf16.mxu0 %v2793
      %3230 = vmatmul.mubr.bf16.gmra.mxu0 %v2792
      %v3231 = vpop.f32.mrf.mxu0
      %v3232 = vadd.f32 %v2860, %v3231
      %v3233 = vpop.f32.mrf.mxu0
      %v3234 = vadd.f32 %v2864, %v3233
      %v3235 = vpop.f32.mrf.mxu0
      %v3236 = vadd.f32 %v2860, %v3235
      %v3237 = vpop.f32.mrf.mxu0
      %v3238 = vadd.f32 %v2864, %v3237
      %3239 = vmatprep.mubr.bf16.mxu0 %v2795
      %3240 = vmatmul.mubr.bf16.gmra.mxu0 %v2794
      %v3241 = vpop.f32.mrf.mxu0
      %v3242 = vadd.f32 %v2860, %v3241
      %v3243 = vpop.f32.mrf.mxu0
      %v3244 = vadd.f32 %v2864, %v3243
      %v3245 = vpop.f32.mrf.mxu0
      %v3246 = vadd.f32 %v2860, %v3245
      %v3247 = vpop.f32.mrf.mxu0
      %v3248 = vadd.f32 %v2864, %v3247
      %3249 = vmatprep.mubr.bf16.mxu0 %v2797
      %3250 = vmatmul.mubr.bf16.gmra.mxu0 %v2796
      %v3251 = vpop.f32.mrf.mxu0
      %v3252 = vadd.f32 %v2860, %v3251
      %v3253 = vpop.f32.mrf.mxu0
      %v3254 = vadd.f32 %v2864, %v3253
      %v3255 = vpop.f32.mrf.mxu0
      %v3256 = vadd.f32 %v2860, %v3255
      %v3257 = vpop.f32.mrf.mxu0
      %v3258 = vadd.f32 %v2864, %v3257
      %3259 = vmatprep.mubr.bf16.mxu0 %v2799
      %3260 = vmatmul.mubr.bf16.gmra.mxu0 %v2798
      %v3261 = vpop.f32.mrf.mxu0
      %v3262 = vadd.f32 %v2860, %v3261
      %v3263 = vpop.f32.mrf.mxu0
      %v3264 = vadd.f32 %v2864, %v3263
      %v3265 = vpop.f32.mrf.mxu0
      %v3266 = vadd.f32 %v2860, %v3265
      %v3267 = vpop.f32.mrf.mxu0
      %v3268 = vadd.f32 %v2864, %v3267
      %3269 = vmatprep.mubr.bf16.mxu0 %v2801
      %3270 = vmatmul.mubr.bf16.gmra.mxu0 %v2800
      %v3271 = vpop.f32.mrf.mxu0
      %v3272 = vadd.f32 %v2860, %v3271
      %v3273 = vpop.f32.mrf.mxu0
      %v3274 = vadd.f32 %v2864, %v3273
      %v3275 = vpop.f32.mrf.mxu0
      %v3276 = vadd.f32 %v2860, %v3275
      %v3277 = vpop.f32.mrf.mxu0
      %v3278 = vadd.f32 %v2864, %v3277
      %3279 = vmatprep.mubr.bf16.mxu0 %v2803
      %3280 = vmatmul.mubr.bf16.gmra.mxu0 %v2802
      %v3281 = vpop.f32.mrf.mxu0
      %v3282 = vadd.f32 %v2860, %v3281
      %v3283 = vpop.f32.mrf.mxu0
      %v3284 = vadd.f32 %v2864, %v3283
      %v3285 = vpop.f32.mrf.mxu0
      %v3286 = vadd.f32 %v2860, %v3285
      %v3287 = vpop.f32.mrf.mxu0
      %v3288 = vadd.f32 %v2864, %v3287
      %3289 = vmatprep.mubr.bf16.mxu0 %v2805
      %3290 = vmatmul.mubr.bf16.gmra.mxu0 %v2804
      %v3291 = vpop.f32.mrf.mxu0
      %v3292 = vadd.f32 %v2860, %v3291
      %v3293 = vpop.f32.mrf.mxu0
      %v3294 = vadd.f32 %v2864, %v3293
      %v3295 = vpop.f32.mrf.mxu0
      %v3296 = vadd.f32 %v2860, %v3295
      %v3297 = vpop.f32.mrf.mxu0
      %v3298 = vadd.f32 %v2864, %v3297
      %3299 = vmatprep.mubr.bf16.mxu0 %v2807
      %3300 = vmatmul.mubr.bf16.gmra.mxu0 %v2806
      %v3301 = vpop.f32.mrf.mxu0
      %v3302 = vadd.f32 %v2860, %v3301
      %v3303 = vpop.f32.mrf.mxu0
      %v3304 = vadd.f32 %v2864, %v3303
      %v3305 = vpop.f32.mrf.mxu0
      %v3306 = vadd.f32 %v2860, %v3305
      %v3307 = vpop.f32.mrf.mxu0
      %v3308 = vadd.f32 %v2864, %v3307
      %3309 = vmatprep.mubr.bf16.mxu0 %v2809
      %3310 = vmatmul.mubr.bf16.gmra.mxu0 %v2808
      %v3311 = vpop.f32.mrf.mxu0
      %v3312 = vadd.f32 %v2860, %v3311
      %v3313 = vpop.f32.mrf.mxu0
      %v3314 = vadd.f32 %v2864, %v3313
      %v3315 = vpop.f32.mrf.mxu0
      %v3316 = vadd.f32 %v2860, %v3315
      %v3317 = vpop.f32.mrf.mxu0
      %v3318 = vadd.f32 %v2864, %v3317
      %3319 = vmatprep.mubr.bf16.mxu0 %v2811
      %3320 = vmatmul.mubr.bf16.gmra.mxu0 %v2810
      %v3321 = vpop.f32.mrf.mxu0
      %v3322 = vadd.f32 %v2860, %v3321
      %v3323 = vpop.f32.mrf.mxu0
      %v3324 = vadd.f32 %v2864, %v3323
      %v3325 = vpop.f32.mrf.mxu0
      %v3326 = vadd.f32 %v2860, %v3325
      %v3327 = vpop.f32.mrf.mxu0
      %v3328 = vadd.f32 %v2864, %v3327
      %3329 = vmatprep.mubr.bf16.mxu0 %v2813
      %3330 = vmatmul.mubr.bf16.gmra.mxu0 %v2812
      %v3331 = vpop.f32.mrf.mxu0
      %v3332 = vadd.f32 %v2860, %v3331
      %v3333 = vpop.f32.mrf.mxu0
      %v3334 = vadd.f32 %v2864, %v3333
      %v3335 = vpop.f32.mrf.mxu0
      %v3336 = vadd.f32 %v2860, %v3335
      %v3337 = vpop.f32.mrf.mxu0
      %v3338 = vadd.f32 %v2864, %v3337
      %3339 = vmatprep.mubr.bf16.mxu0 %v2815
      %3340 = vmatmul.mubr.bf16.gmra.mxu0 %v2814
      %v3341 = vpop.f32.mrf.mxu0
      %v3342 = vadd.f32 %v2860, %v3341
      %v3343 = vpop.f32.mrf.mxu0
      %v3344 = vadd.f32 %v2864, %v3343
      %v3345 = vpop.f32.mrf.mxu0
      %v3346 = vadd.f32 %v2860, %v3345
      %v3347 = vpop.f32.mrf.mxu0
      %v3348 = vadd.f32 %v2864, %v3347
      %3349 = vmatprep.mubr.bf16.mxu0 %v2817
      %3350 = vmatmul.mubr.bf16.gmra.mxu0 %v2816
      %v3351 = vpop.f32.mrf.mxu0
      %v3352 = vadd.f32 %v2860, %v3351
      %v3353 = vpop.f32.mrf.mxu0
      %v3354 = vadd.f32 %v2864, %v3353
      %v3355 = vpop.f32.mrf.mxu0
      %v3356 = vadd.f32 %v2860, %v3355
      %v3357 = vpop.f32.mrf.mxu0
      %v3358 = vadd.f32 %v2864, %v3357
      %3359 = vmatprep.mubr.bf16.mxu0 %v2819
      %3360 = vmatmul.mubr.bf16.gmra.mxu0 %v2818
      %v3361 = vpop.f32.mrf.mxu0
      %v3362 = vadd.f32 %v2860, %v3361
      %v3363 = vpop.f32.mrf.mxu0
      %v3364 = vadd.f32 %v2864, %v3363
      %v3365 = vpop.f32.mrf.mxu0
      %v3366 = vadd.f32 %v2860, %v3365
      %v3367 = vpop.f32.mrf.mxu0
      %v3368 = vadd.f32 %v2864, %v3367
      %3369 = vmatprep.mubr.bf16.mxu0 %v2821
      %3370 = vmatmul.mubr.bf16.gmra.mxu0 %v2820
      %v3371 = vpop.f32.mrf.mxu0
      %v3372 = vadd.f32 %v2860, %v3371
      %v3373 = vpop.f32.mrf.mxu0
      %v3374 = vadd.f32 %v2864, %v3373
      %v3375 = vpop.f32.mrf.mxu0
      %v3376 = vadd.f32 %v2860, %v3375
      %v3377 = vpop.f32.mrf.mxu0
      %v3378 = vadd.f32 %v2864, %v3377
      %3379 = vdwg.mxu0
      %v3380 = vmax.f32 %v3062, 0.0
      %v3381 = vmax.f32 %v3064, 0.0
      %v3382 = vmax.f32 %v3066, 0.0
      %v3383 = vmax.f32 %v3068, 0.0
      %v3384 = vmax.f32 %v3072, 0.0
      %v3385 = vmax.f32 %v3074, 0.0
      %v3386 = vmax.f32 %v3076, 0.0
      %v3387 = vmax.f32 %v3078, 0.0
      %v3388 = vmax.f32 %v3082, 0.0
      %v3389 = vmax.f32 %v3084, 0.0
      %v3390 = vmax.f32 %v3086, 0.0
      %v3391 = vmax.f32 %v3088, 0.0
      %v3392 = vmax.f32 %v3092, 0.0
      %v3393 = vmax.f32 %v3094, 0.0
      %v3394 = vmax.f32 %v3096, 0.0
      %v3395 = vmax.f32 %v3098, 0.0
      %v3396 = vmax.f32 %v3102, 0.0
      %v3397 = vmax.f32 %v3104, 0.0
      %v3398 = vmax.f32 %v3106, 0.0
      %v3399 = vmax.f32 %v3108, 0.0
      %v3400 = vmax.f32 %v3112, 0.0
      %v3401 = vmax.f32 %v3114, 0.0
      %v3402 = vmax.f32 %v3116, 0.0
      %v3403 = vmax.f32 %v3118, 0.0
      %v3404 = vmax.f32 %v3122, 0.0
      %v3405 = vmax.f32 %v3124, 0.0
      %v3406 = vmax.f32 %v3126, 0.0
      %v3407 = vmax.f32 %v3128, 0.0
      %v3408 = vmax.f32 %v3132, 0.0
      %v3409 = vmax.f32 %v3134, 0.0
      %v3410 = vmax.f32 %v3136, 0.0
      %v3411 = vmax.f32 %v3138, 0.0
      %v3412 = vmax.f32 %v3142, 0.0
      %v3413 = vmax.f32 %v3144, 0.0
      %v3414 = vmax.f32 %v3146, 0.0
      %v3415 = vmax.f32 %v3148, 0.0
      %v3416 = vmax.f32 %v3152, 0.0
      %v3417 = vmax.f32 %v3154, 0.0
      %v3418 = vmax.f32 %v3156, 0.0
      %v3419 = vmax.f32 %v3158, 0.0
      %v3420 = vmax.f32 %v3162, 0.0
      %v3421 = vmax.f32 %v3164, 0.0
      %v3422 = vmax.f32 %v3166, 0.0
      %v3423 = vmax.f32 %v3168, 0.0
      %v3424 = vmax.f32 %v3172, 0.0
      %v3425 = vmax.f32 %v3174, 0.0
      %v3426 = vmax.f32 %v3176, 0.0
      %v3427 = vmax.f32 %v3178, 0.0
      %v3428 = vmax.f32 %v3182, 0.0
      %v3429 = vmax.f32 %v3184, 0.0
      %v3430 = vmax.f32 %v3186, 0.0
      %v3431 = vmax.f32 %v3188, 0.0
      %v3432 = vmax.f32 %v3192, 0.0
      %v3433 = vmax.f32 %v3194, 0.0
      %v3434 = vmax.f32 %v3196, 0.0
      %v3435 = vmax.f32 %v3198, 0.0
      %v3436 = vmax.f32 %v3202, 0.0
      %v3437 = vmax.f32 %v3204, 0.0
      %v3438 = vmax.f32 %v3206, 0.0
      %v3439 = vmax.f32 %v3208, 0.0
      %v3440 = vmax.f32 %v3212, 0.0
      %v3441 = vmax.f32 %v3214, 0.0
      %v3442 = vmax.f32 %v3216, 0.0
      %v3443 = vmax.f32 %v3218, 0.0
      %v3444 = vmax.f32 %v3222, 0.0
      %v3445 = vmax.f32 %v3224, 0.0
      %v3446 = vmax.f32 %v3226, 0.0
      %v3447 = vmax.f32 %v3228, 0.0
      %v3448 = vmax.f32 %v3232, 0.0
      %v3449 = vmax.f32 %v3234, 0.0
      %v3450 = vmax.f32 %v3236, 0.0
      %v3451 = vmax.f32 %v3238, 0.0
      %v3452 = vmax.f32 %v3242, 0.0
      %v3453 = vmax.f32 %v3244, 0.0
      %v3454 = vmax.f32 %v3246, 0.0
      %v3455 = vmax.f32 %v3248, 0.0
      %v3456 = vmax.f32 %v3252, 0.0
      %v3457 = vmax.f32 %v3254, 0.0
      %v3458 = vmax.f32 %v3256, 0.0
      %v3459 = vmax.f32 %v3258, 0.0
      %v3460 = vmax.f32 %v3262, 0.0
      %v3461 = vmax.f32 %v3264, 0.0
      %v3462 = vmax.f32 %v3266, 0.0
      %v3463 = vmax.f32 %v3268, 0.0
      %v3464 = vmax.f32 %v3272, 0.0
      %v3465 = vmax.f32 %v3274, 0.0
      %v3466 = vmax.f32 %v3276, 0.0
      %v3467 = vmax.f32 %v3278, 0.0
      %v3468 = vmax.f32 %v3282, 0.0
      %v3469 = vmax.f32 %v3284, 0.0
      %v3470 = vmax.f32 %v3286, 0.0
      %v3471 = vmax.f32 %v3288, 0.0
      %v3472 = vmax.f32 %v3292, 0.0
      %v3473 = vmax.f32 %v3294, 0.0
      %v3474 = vmax.f32 %v3296, 0.0
      %v3475 = vmax.f32 %v3298, 0.0
      %v3476 = vmax.f32 %v3302, 0.0
      %v3477 = vmax.f32 %v3304, 0.0
      %v3478 = vmax.f32 %v3306, 0.0
      %v3479 = vmax.f32 %v3308, 0.0
      %v3480 = vmax.f32 %v3312, 0.0
      %v3481 = vmax.f32 %v3314, 0.0
      %v3482 = vmax.f32 %v3316, 0.0
      %v3483 = vmax.f32 %v3318, 0.0
      %v3484 = vmax.f32 %v3322, 0.0
      %v3485 = vmax.f32 %v3324, 0.0
      %v3486 = vmax.f32 %v3326, 0.0
      %v3487 = vmax.f32 %v3328, 0.0
      %v3488 = vmax.f32 %v3332, 0.0
      %v3489 = vmax.f32 %v3334, 0.0
      %v3490 = vmax.f32 %v3336, 0.0
      %v3491 = vmax.f32 %v3338, 0.0
      %v3492 = vmax.f32 %v3342, 0.0
      %v3493 = vmax.f32 %v3344, 0.0
      %v3494 = vmax.f32 %v3346, 0.0
      %v3495 = vmax.f32 %v3348, 0.0
      %v3496 = vmax.f32 %v3352, 0.0
      %v3497 = vmax.f32 %v3354, 0.0
      %v3498 = vmax.f32 %v3356, 0.0
      %v3499 = vmax.f32 %v3358, 0.0
      %v3500 = vmax.f32 %v3362, 0.0
      %v3501 = vmax.f32 %v3364, 0.0
      %v3502 = vmax.f32 %v3366, 0.0
      %v3503 = vmax.f32 %v3368, 0.0
      %v3504 = vmax.f32 %v3372, 0.0
      %v3505 = vmax.f32 %v3374, 0.0
      %v3506 = vmax.f32 %v3376, 0.0
      %v3507 = vmax.f32 %v3378, 0.0
      %v3508 = vpack.c.bf16 %v3382, %v3380
      %v3509 = vpack.c.bf16 %v3383, %v3381
      %v3510 = vpack.c.bf16 %v3386, %v3384
      %v3511 = vpack.c.bf16 %v3387, %v3385
      %v3512 = vpack.c.bf16 %v3390, %v3388
      %v3513 = vpack.c.bf16 %v3391, %v3389
      %v3514 = vpack.c.bf16 %v3394, %v3392
      %v3515 = vpack.c.bf16 %v3395, %v3393
      %v3516 = vpack.c.bf16 %v3398, %v3396
      %v3517 = vpack.c.bf16 %v3399, %v3397
      %v3518 = vpack.c.bf16 %v3402, %v3400
      %v3519 = vpack.c.bf16 %v3403, %v3401
      %v3520 = vpack.c.bf16 %v3406, %v3404
      %v3521 = vpack.c.bf16 %v3407, %v3405
      %v3522 = vpack.c.bf16 %v3410, %v3408
      %v3523 = vpack.c.bf16 %v3411, %v3409
      %v3524 = vpack.c.bf16 %v3414, %v3412
      %v3525 = vpack.c.bf16 %v3415, %v3413
      %v3526 = vpack.c.bf16 %v3418, %v3416
      %v3527 = vpack.c.bf16 %v3419, %v3417
      %v3528 = vpack.c.bf16 %v3422, %v3420
      %v3529 = vpack.c.bf16 %v3423, %v3421
      %v3530 = vpack.c.bf16 %v3426, %v3424
      %v3531 = vpack.c.bf16 %v3427, %v3425
      %v3532 = vpack.c.bf16 %v3430, %v3428
      %v3533 = vpack.c.bf16 %v3431, %v3429
      %v3534 = vpack.c.bf16 %v3434, %v3432
      %v3535 = vpack.c.bf16 %v3435, %v3433
      %v3536 = vpack.c.bf16 %v3438, %v3436
      %v3537 = vpack.c.bf16 %v3439, %v3437
      %v3538 = vpack.c.bf16 %v3442, %v3440
      %v3539 = vpack.c.bf16 %v3443, %v3441
      %v3540 = vpack.c.bf16 %v3446, %v3444
      %v3541 = vpack.c.bf16 %v3447, %v3445
      %v3542 = vpack.c.bf16 %v3450, %v3448
      %v3543 = vpack.c.bf16 %v3451, %v3449
      %v3544 = vpack.c.bf16 %v3454, %v3452
      %v3545 = vpack.c.bf16 %v3455, %v3453
      %v3546 = vpack.c.bf16 %v3458, %v3456
      %v3547 = vpack.c.bf16 %v3459, %v3457
      %v3548 = vpack.c.bf16 %v3462, %v3460
      %v3549 = vpack.c.bf16 %v3463, %v3461
      %v3550 = vpack.c.bf16 %v3466, %v3464
      %v3551 = vpack.c.bf16 %v3467, %v3465
      %v3552 = vpack.c.bf16 %v3470, %v3468
      %v3553 = vpack.c.bf16 %v3471, %v3469
      %v3554 = vpack.c.bf16 %v3474, %v3472
      %v3555 = vpack.c.bf16 %v3475, %v3473
      %v3556 = vpack.c.bf16 %v3478, %v3476
      %v3557 = vpack.c.bf16 %v3479, %v3477
      %v3558 = vpack.c.bf16 %v3482, %v3480
      %v3559 = vpack.c.bf16 %v3483, %v3481
      %v3560 = vpack.c.bf16 %v3486, %v3484
      %v3561 = vpack.c.bf16 %v3487, %v3485
      %v3562 = vpack.c.bf16 %v3490, %v3488
      %v3563 = vpack.c.bf16 %v3491, %v3489
      %v3564 = vpack.c.bf16 %v3494, %v3492
      %v3565 = vpack.c.bf16 %v3495, %v3493
      %v3566 = vpack.c.bf16 %v3498, %v3496
      %v3567 = vpack.c.bf16 %v3499, %v3497
      %v3568 = vpack.c.bf16 %v3502, %v3500
      %v3569 = vpack.c.bf16 %v3503, %v3501
      %v3570 = vpack.c.bf16 %v3506, %v3504
      %v3571 = vpack.c.bf16 %v3507, %v3505
      %v3572 = vld [vmem:[%s2 + $0x340] sm:$0xff]
      %v3573 = vld [vmem:[%s2 + $0x348] sm:$0xff]
      %v3574 = vld [vmem:[%s2 + $0x350] sm:$0xff]
      %v3575 = vld [vmem:[%s2 + $0x358] sm:$0xff]
      %v3576 = vld [vmem:[%s2 + $0x360] sm:$0xff]
      %v3577 = vld [vmem:[%s2 + $0x368] sm:$0xff]
      %v3578 = vld [vmem:[%s2 + $0x370] sm:$0xff]
      %v3579 = vld [vmem:[%s2 + $0x378] sm:$0xff]
      %v3580 = vld [vmem:[%s2 + $0x380] sm:$0xff]
      %v3581 = vld [vmem:[%s2 + $0x388] sm:$0xff]
      %v3582 = vld [vmem:[%s2 + $0x390] sm:$0xff]
      %v3583 = vld [vmem:[%s2 + $0x398] sm:$0xff]
      %v3584 = vld [vmem:[%s2 + $0x3a0] sm:$0xff]
      %v3585 = vld [vmem:[%s2 + $0x3a8] sm:$0xff]
      %v3586 = vld [vmem:[%s2 + $0x3b0] sm:$0xff]
      %v3587 = vld [vmem:[%s2 + $0x3b8] sm:$0xff]
      %v3588 = vld [vmem:[%s2 + $0x3c0] sm:$0xff]
      %v3589 = vld [vmem:[%s2 + $0x3c8] sm:$0xff]
      %v3590 = vld [vmem:[%s2 + $0x3d0] sm:$0xff]
      %v3591 = vld [vmem:[%s2 + $0x3d8] sm:$0xff]
      %v3592 = vld [vmem:[%s2 + $0x3e0] sm:$0xff]
      %v3593 = vld [vmem:[%s2 + $0x3e8] sm:$0xff]
      %v3594 = vld [vmem:[%s2 + $0x3f0] sm:$0xff]
      %v3595 = vld [vmem:[%s2 + $0x3f8] sm:$0xff]
      %v3596 = vld [vmem:[%s2 + $0x400] sm:$0xff]
      %v3597 = vld [vmem:[%s2 + $0x408] sm:$0xff]
      %v3598 = vld [vmem:[%s2 + $0x410] sm:$0xff]
      %v3599 = vld [vmem:[%s2 + $0x418] sm:$0xff]
      %v3600 = vld [vmem:[%s2 + $0x420] sm:$0xff]
      %v3601 = vld [vmem:[%s2 + $0x428] sm:$0xff]
      %v3602 = vld [vmem:[%s2 + $0x430] sm:$0xff]
      %v3603 = vld [vmem:[%s2 + $0x438] sm:$0xff]
      %s3604 = scalar_lea.vmem %s3, 4
      %v3605 = vld [vmem:[%s3604] ss:$8 sm:$0x3]
      %v3607 = vlaneseq
      %v3608 = vshrl.u32 %v3607, 7
      %v3609 = vsub.s32 0, %v3608
      %v3610 = vrot.slane %v3605, %v3609
      %v3611 = vlaneseq
      %v3612 = vshrl.u32 %v3611, 7
      %v3613 = vsub.s32 1, %v3612
      %v3614 = vrot.slane %v3605, %v3613
      %v3649 = vunpack.c.l.b16 %v3572
      %v3650 = vunpack.c.h.b16 %v3572
      %v3651 = vunpack.c.l.b16 %v3573
      %v3652 = vunpack.c.h.b16 %v3573
      %v3653 = vunpack.c.l.b16 %v3574
      %v3654 = vunpack.c.h.b16 %v3574
      %v3655 = vunpack.c.l.b16 %v3575
      %v3656 = vunpack.c.h.b16 %v3575
      %v3657 = vunpack.c.l.b16 %v3576
      %v3658 = vunpack.c.h.b16 %v3576
      %v3659 = vunpack.c.l.b16 %v3577
      %v3660 = vunpack.c.h.b16 %v3577
      %v3661 = vunpack.c.l.b16 %v3578
      %v3662 = vunpack.c.h.b16 %v3578
      %v3663 = vunpack.c.l.b16 %v3579
      %v3664 = vunpack.c.h.b16 %v3579
      %v3665 = vunpack.c.l.b16 %v3580
      %v3666 = vunpack.c.h.b16 %v3580
      %v3667 = vunpack.c.l.b16 %v3581
      %v3668 = vunpack.c.h.b16 %v3581
      %v3669 = vunpack.c.l.b16 %v3582
      %v3670 = vunpack.c.h.b16 %v3582
      %v3671 = vunpack.c.l.b16 %v3583
      %v3672 = vunpack.c.h.b16 %v3583
      %v3673 = vunpack.c.l.b16 %v3584
      %v3674 = vunpack.c.h.b16 %v3584
      %v3675 = vunpack.c.l.b16 %v3585
      %v3676 = vunpack.c.h.b16 %v3585
      %v3677 = vunpack.c.l.b16 %v3586
      %v3678 = vunpack.c.h.b16 %v3586
      %v3679 = vunpack.c.l.b16 %v3587
      %v3680 = vunpack.c.h.b16 %v3587
      %v3681 = vunpack.c.l.b16 %v3588
      %v3682 = vunpack.c.h.b16 %v3588
      %v3683 = vunpack.c.l.b16 %v3589
      %v3684 = vunpack.c.h.b16 %v3589
      %v3685 = vunpack.c.l.b16 %v3590
      %v3686 = vunpack.c.h.b16 %v3590
      %v3687 = vunpack.c.l.b16 %v3591
      %v3688 = vunpack.c.h.b16 %v3591
      %v3689 = vunpack.c.l.b16 %v3592
      %v3690 = vunpack.c.h.b16 %v3592
      %v3691 = vunpack.c.l.b16 %v3593
      %v3692 = vunpack.c.h.b16 %v3593
      %v3693 = vunpack.c.l.b16 %v3594
      %v3694 = vunpack.c.h.b16 %v3594
      %v3695 = vunpack.c.l.b16 %v3595
      %v3696 = vunpack.c.h.b16 %v3595
      %v3697 = vunpack.c.l.b16 %v3596
      %v3698 = vunpack.c.h.b16 %v3596
      %v3699 = vunpack.c.l.b16 %v3597
      %v3700 = vunpack.c.h.b16 %v3597
      %v3701 = vunpack.c.l.b16 %v3598
      %v3702 = vunpack.c.h.b16 %v3598
      %v3703 = vunpack.c.l.b16 %v3599
      %v3704 = vunpack.c.h.b16 %v3599
      %v3705 = vunpack.c.l.b16 %v3600
      %v3706 = vunpack.c.h.b16 %v3600
      %v3707 = vunpack.c.l.b16 %v3601
      %v3708 = vunpack.c.h.b16 %v3601
      %v3709 = vunpack.c.l.b16 %v3602
      %v3710 = vunpack.c.h.b16 %v3602
      %v3711 = vunpack.c.l.b16 %v3603
      %v3712 = vunpack.c.h.b16 %v3603
      %v3713 = vpack.c.b16 %v3651, %v3649
      %v3714 = vpack.c.b16 %v3652, %v3650
      %v3715 = vpack.c.b16 %v3655, %v3653
      %v3716 = vpack.c.b16 %v3656, %v3654
      %v3717 = vpack.c.b16 %v3659, %v3657
      %v3718 = vpack.c.b16 %v3660, %v3658
      %v3719 = vpack.c.b16 %v3663, %v3661
      %v3720 = vpack.c.b16 %v3664, %v3662
      %v3721 = vpack.c.b16 %v3667, %v3665
      %v3722 = vpack.c.b16 %v3668, %v3666
      %v3723 = vpack.c.b16 %v3671, %v3669
      %v3724 = vpack.c.b16 %v3672, %v3670
      %v3725 = vpack.c.b16 %v3675, %v3673
      %v3726 = vpack.c.b16 %v3676, %v3674
      %v3727 = vpack.c.b16 %v3679, %v3677
      %v3728 = vpack.c.b16 %v3680, %v3678
      %v3729 = vpack.c.b16 %v3683, %v3681
      %v3730 = vpack.c.b16 %v3684, %v3682
      %v3731 = vpack.c.b16 %v3687, %v3685
      %v3732 = vpack.c.b16 %v3688, %v3686
      %v3733 = vpack.c.b16 %v3691, %v3689
      %v3734 = vpack.c.b16 %v3692, %v3690
      %v3735 = vpack.c.b16 %v3695, %v3693
      %v3736 = vpack.c.b16 %v3696, %v3694
      %v3737 = vpack.c.b16 %v3699, %v3697
      %v3738 = vpack.c.b16 %v3700, %v3698
      %v3739 = vpack.c.b16 %v3703, %v3701
      %v3740 = vpack.c.b16 %v3704, %v3702
      %v3741 = vpack.c.b16 %v3707, %v3705
      %v3742 = vpack.c.b16 %v3708, %v3706
      %v3743 = vpack.c.b16 %v3711, %v3709
      %v3744 = vpack.c.b16 %v3712, %v3710
      %3777 = vmatprep.subr.bf16.mxu0 %v3728
      %3778 = vmatpush1.bf16.msra.mxu0 %v3727
      %3779 = vmatprep.subr.bf16.mxu0 %v3726
      %3780 = vmatpush1.bf16.msra.mxu0 %v3725
      %3781 = vmatprep.subr.bf16.mxu0 %v3724
      %3782 = vmatpush1.bf16.msra.mxu0 %v3723
      %3783 = vmatprep.subr.bf16.mxu0 %v3722
      %3784 = vmatpush1.bf16.msra.mxu0 %v3721
      %3785 = vmatprep.subr.bf16.mxu0 %v3720
      %3786 = vmatpush1.bf16.msra.mxu0 %v3719
      %3787 = vmatprep.subr.bf16.mxu0 %v3718
      %3788 = vmatpush1.bf16.msra.mxu0 %v3717
      %3789 = vmatprep.subr.bf16.mxu0 %v3716
      %3790 = vmatpush1.bf16.msra.mxu0 %v3715
      %3791 = vmatprep.subr.bf16.mxu0 %v3714
      %3792 = vmatpush1.bf16.msra.mxu0 %v3713
      %3793 = vmatprep.subr.bf16.mxu0 %v3744
      %3794 = vmatpush2.bf16.msra.mxu0 %v3743
      %3795 = vmatprep.subr.bf16.mxu0 %v3742
      %3796 = vmatpush2.bf16.msra.mxu0 %v3741
      %3797 = vmatprep.subr.bf16.mxu0 %v3740
      %3798 = vmatpush2.bf16.msra.mxu0 %v3739
      %3799 = vmatprep.subr.bf16.mxu0 %v3738
      %3800 = vmatpush2.bf16.msra.mxu0 %v3737
      %3801 = vmatprep.subr.bf16.mxu0 %v3736
      %3802 = vmatpush2.bf16.msra.mxu0 %v3735
      %3803 = vmatprep.subr.bf16.mxu0 %v3734
      %3804 = vmatpush2.bf16.msra.mxu0 %v3733
      %3805 = vmatprep.subr.bf16.mxu0 %v3732
      %3806 = vmatpush2.bf16.msra.mxu0 %v3731
      %3807 = vmatprep.subr.bf16.mxu0 %v3730
      %3808 = vmatpush2.bf16.msra.mxu0 %v3729
      %3809 = vmatprep.mubr.bf16.mxu0 %v3509
      %3810 = vmatmul.mubr.bf16.gmra.mxu0 %v3508
      %v3811 = vpop.f32.mrf.mxu0
      %v3812 = vadd.f32 %v3610, %v3811
      %v3813 = vpop.f32.mrf.mxu0
      %v3814 = vadd.f32 %v3614, %v3813
      %v3815 = vpop.f32.mrf.mxu0
      %v3816 = vadd.f32 %v3610, %v3815
      %v3817 = vpop.f32.mrf.mxu0
      %v3818 = vadd.f32 %v3614, %v3817
      %3819 = vmatprep.mubr.bf16.mxu0 %v3511
      %3820 = vmatmul.mubr.bf16.gmra.mxu0 %v3510
      %v3821 = vpop.f32.mrf.mxu0
      %v3822 = vadd.f32 %v3610, %v3821
      %v3823 = vpop.f32.mrf.mxu0
      %v3824 = vadd.f32 %v3614, %v3823
      %v3825 = vpop.f32.mrf.mxu0
      %v3826 = vadd.f32 %v3610, %v3825
      %v3827 = vpop.f32.mrf.mxu0
      %v3828 = vadd.f32 %v3614, %v3827
      %3829 = vmatprep.mubr.bf16.mxu0 %v3513
      %3830 = vmatmul.mubr.bf16.gmra.mxu0 %v3512
      %v3831 = vpop.f32.mrf.mxu0
      %v3832 = vadd.f32 %v3610, %v3831
      %v3833 = vpop.f32.mrf.mxu0
      %v3834 = vadd.f32 %v3614, %v3833
      %v3835 = vpop.f32.mrf.mxu0
      %v3836 = vadd.f32 %v3610, %v3835
      %v3837 = vpop.f32.mrf.mxu0
      %v3838 = vadd.f32 %v3614, %v3837
      %3839 = vmatprep.mubr.bf16.mxu0 %v3515
      %3840 = vmatmul.mubr.bf16.gmra.mxu0 %v3514
      %v3841 = vpop.f32.mrf.mxu0
      %v3842 = vadd.f32 %v3610, %v3841
      %v3843 = vpop.f32.mrf.mxu0
      %v3844 = vadd.f32 %v3614, %v3843
      %v3845 = vpop.f32.mrf.mxu0
      %v3846 = vadd.f32 %v3610, %v3845
      %v3847 = vpop.f32.mrf.mxu0
      %v3848 = vadd.f32 %v3614, %v3847
      %3849 = vmatprep.mubr.bf16.mxu0 %v3517
      %3850 = vmatmul.mubr.bf16.gmra.mxu0 %v3516
      %v3851 = vpop.f32.mrf.mxu0
      %v3852 = vadd.f32 %v3610, %v3851
      %v3853 = vpop.f32.mrf.mxu0
      %v3854 = vadd.f32 %v3614, %v3853
      %v3855 = vpop.f32.mrf.mxu0
      %v3856 = vadd.f32 %v3610, %v3855
      %v3857 = vpop.f32.mrf.mxu0
      %v3858 = vadd.f32 %v3614, %v3857
      %3859 = vmatprep.mubr.bf16.mxu0 %v3519
      %3860 = vmatmul.mubr.bf16.gmra.mxu0 %v3518
      %v3861 = vpop.f32.mrf.mxu0
      %v3862 = vadd.f32 %v3610, %v3861
      %v3863 = vpop.f32.mrf.mxu0
      %v3864 = vadd.f32 %v3614, %v3863
      %v3865 = vpop.f32.mrf.mxu0
      %v3866 = vadd.f32 %v3610, %v3865
      %v3867 = vpop.f32.mrf.mxu0
      %v3868 = vadd.f32 %v3614, %v3867
      %3869 = vmatprep.mubr.bf16.mxu0 %v3521
      %3870 = vmatmul.mubr.bf16.gmra.mxu0 %v3520
      %v3871 = vpop.f32.mrf.mxu0
      %v3872 = vadd.f32 %v3610, %v3871
      %v3873 = vpop.f32.mrf.mxu0
      %v3874 = vadd.f32 %v3614, %v3873
      %v3875 = vpop.f32.mrf.mxu0
      %v3876 = vadd.f32 %v3610, %v3875
      %v3877 = vpop.f32.mrf.mxu0
      %v3878 = vadd.f32 %v3614, %v3877
      %3879 = vmatprep.mubr.bf16.mxu0 %v3523
      %3880 = vmatmul.mubr.bf16.gmra.mxu0 %v3522
      %v3881 = vpop.f32.mrf.mxu0
      %v3882 = vadd.f32 %v3610, %v3881
      %v3883 = vpop.f32.mrf.mxu0
      %v3884 = vadd.f32 %v3614, %v3883
      %v3885 = vpop.f32.mrf.mxu0
      %v3886 = vadd.f32 %v3610, %v3885
      %v3887 = vpop.f32.mrf.mxu0
      %v3888 = vadd.f32 %v3614, %v3887
      %3889 = vmatprep.mubr.bf16.mxu0 %v3525
      %3890 = vmatmul.mubr.bf16.gmra.mxu0 %v3524
      %v3891 = vpop.f32.mrf.mxu0
      %v3892 = vadd.f32 %v3610, %v3891
      %v3893 = vpop.f32.mrf.mxu0
      %v3894 = vadd.f32 %v3614, %v3893
      %v3895 = vpop.f32.mrf.mxu0
      %v3896 = vadd.f32 %v3610, %v3895
      %v3897 = vpop.f32.mrf.mxu0
      %v3898 = vadd.f32 %v3614, %v3897
      %3899 = vmatprep.mubr.bf16.mxu0 %v3527
      %3900 = vmatmul.mubr.bf16.gmra.mxu0 %v3526
      %v3901 = vpop.f32.mrf.mxu0
      %v3902 = vadd.f32 %v3610, %v3901
      %v3903 = vpop.f32.mrf.mxu0
      %v3904 = vadd.f32 %v3614, %v3903
      %v3905 = vpop.f32.mrf.mxu0
      %v3906 = vadd.f32 %v3610, %v3905
      %v3907 = vpop.f32.mrf.mxu0
      %v3908 = vadd.f32 %v3614, %v3907
      %3909 = vmatprep.mubr.bf16.mxu0 %v3529
      %3910 = vmatmul.mubr.bf16.gmra.mxu0 %v3528
      %v3911 = vpop.f32.mrf.mxu0
      %v3912 = vadd.f32 %v3610, %v3911
      %v3913 = vpop.f32.mrf.mxu0
      %v3914 = vadd.f32 %v3614, %v3913
      %v3915 = vpop.f32.mrf.mxu0
      %v3916 = vadd.f32 %v3610, %v3915
      %v3917 = vpop.f32.mrf.mxu0
      %v3918 = vadd.f32 %v3614, %v3917
      %3919 = vmatprep.mubr.bf16.mxu0 %v3531
      %3920 = vmatmul.mubr.bf16.gmra.mxu0 %v3530
      %v3921 = vpop.f32.mrf.mxu0
      %v3922 = vadd.f32 %v3610, %v3921
      %v3923 = vpop.f32.mrf.mxu0
      %v3924 = vadd.f32 %v3614, %v3923
      %v3925 = vpop.f32.mrf.mxu0
      %v3926 = vadd.f32 %v3610, %v3925
      %v3927 = vpop.f32.mrf.mxu0
      %v3928 = vadd.f32 %v3614, %v3927
      %3929 = vmatprep.mubr.bf16.mxu0 %v3533
      %3930 = vmatmul.mubr.bf16.gmra.mxu0 %v3532
      %v3931 = vpop.f32.mrf.mxu0
      %v3932 = vadd.f32 %v3610, %v3931
      %v3933 = vpop.f32.mrf.mxu0
      %v3934 = vadd.f32 %v3614, %v3933
      %v3935 = vpop.f32.mrf.mxu0
      %v3936 = vadd.f32 %v3610, %v3935
      %v3937 = vpop.f32.mrf.mxu0
      %v3938 = vadd.f32 %v3614, %v3937
      %3939 = vmatprep.mubr.bf16.mxu0 %v3535
      %3940 = vmatmul.mubr.bf16.gmra.mxu0 %v3534
      %v3941 = vpop.f32.mrf.mxu0
      %v3942 = vadd.f32 %v3610, %v3941
      %v3943 = vpop.f32.mrf.mxu0
      %v3944 = vadd.f32 %v3614, %v3943
      %v3945 = vpop.f32.mrf.mxu0
      %v3946 = vadd.f32 %v3610, %v3945
      %v3947 = vpop.f32.mrf.mxu0
      %v3948 = vadd.f32 %v3614, %v3947
      %3949 = vmatprep.mubr.bf16.mxu0 %v3537
      %3950 = vmatmul.mubr.bf16.gmra.mxu0 %v3536
      %v3951 = vpop.f32.mrf.mxu0
      %v3952 = vadd.f32 %v3610, %v3951
      %v3953 = vpop.f32.mrf.mxu0
      %v3954 = vadd.f32 %v3614, %v3953
      %v3955 = vpop.f32.mrf.mxu0
      %v3956 = vadd.f32 %v3610, %v3955
      %v3957 = vpop.f32.mrf.mxu0
      %v3958 = vadd.f32 %v3614, %v3957
      %3959 = vmatprep.mubr.bf16.mxu0 %v3539
      %3960 = vmatmul.mubr.bf16.gmra.mxu0 %v3538
      %v3961 = vpop.f32.mrf.mxu0
      %v3962 = vadd.f32 %v3610, %v3961
      %v3963 = vpop.f32.mrf.mxu0
      %v3964 = vadd.f32 %v3614, %v3963
      %v3965 = vpop.f32.mrf.mxu0
      %v3966 = vadd.f32 %v3610, %v3965
      %v3967 = vpop.f32.mrf.mxu0
      %v3968 = vadd.f32 %v3614, %v3967
      %3969 = vmatprep.mubr.bf16.mxu0 %v3541
      %3970 = vmatmul.mubr.bf16.gmra.mxu0 %v3540
      %v3971 = vpop.f32.mrf.mxu0
      %v3972 = vadd.f32 %v3610, %v3971
      %v3973 = vpop.f32.mrf.mxu0
      %v3974 = vadd.f32 %v3614, %v3973
      %v3975 = vpop.f32.mrf.mxu0
      %v3976 = vadd.f32 %v3610, %v3975
      %v3977 = vpop.f32.mrf.mxu0
      %v3978 = vadd.f32 %v3614, %v3977
      %3979 = vmatprep.mubr.bf16.mxu0 %v3543
      %3980 = vmatmul.mubr.bf16.gmra.mxu0 %v3542
      %v3981 = vpop.f32.mrf.mxu0
      %v3982 = vadd.f32 %v3610, %v3981
      %v3983 = vpop.f32.mrf.mxu0
      %v3984 = vadd.f32 %v3614, %v3983
      %v3985 = vpop.f32.mrf.mxu0
      %v3986 = vadd.f32 %v3610, %v3985
      %v3987 = vpop.f32.mrf.mxu0
      %v3988 = vadd.f32 %v3614, %v3987
      %3989 = vmatprep.mubr.bf16.mxu0 %v3545
      %3990 = vmatmul.mubr.bf16.gmra.mxu0 %v3544
      %v3991 = vpop.f32.mrf.mxu0
      %v3992 = vadd.f32 %v3610, %v3991
      %v3993 = vpop.f32.mrf.mxu0
      %v3994 = vadd.f32 %v3614, %v3993
      %v3995 = vpop.f32.mrf.mxu0
      %v3996 = vadd.f32 %v3610, %v3995
      %v3997 = vpop.f32.mrf.mxu0
      %v3998 = vadd.f32 %v3614, %v3997
      %3999 = vmatprep.mubr.bf16.mxu0 %v3547
      %4000 = vmatmul.mubr.bf16.gmra.mxu0 %v3546
      %v4001 = vpop.f32.mrf.mxu0
      %v4002 = vadd.f32 %v3610, %v4001
      %v4003 = vpop.f32.mrf.mxu0
      %v4004 = vadd.f32 %v3614, %v4003
      %v4005 = vpop.f32.mrf.mxu0
      %v4006 = vadd.f32 %v3610, %v4005
      %v4007 = vpop.f32.mrf.mxu0
      %v4008 = vadd.f32 %v3614, %v4007
      %4009 = vmatprep.mubr.bf16.mxu0 %v3549
      %4010 = vmatmul.mubr.bf16.gmra.mxu0 %v3548
      %v4011 = vpop.f32.mrf.mxu0
      %v4012 = vadd.f32 %v3610, %v4011
      %v4013 = vpop.f32.mrf.mxu0
      %v4014 = vadd.f32 %v3614, %v4013
      %v4015 = vpop.f32.mrf.mxu0
      %v4016 = vadd.f32 %v3610, %v4015
      %v4017 = vpop.f32.mrf.mxu0
      %v4018 = vadd.f32 %v3614, %v4017
      %4019 = vmatprep.mubr.bf16.mxu0 %v3551
      %4020 = vmatmul.mubr.bf16.gmra.mxu0 %v3550
      %v4021 = vpop.f32.mrf.mxu0
      %v4022 = vadd.f32 %v3610, %v4021
      %v4023 = vpop.f32.mrf.mxu0
      %v4024 = vadd.f32 %v3614, %v4023
      %v4025 = vpop.f32.mrf.mxu0
      %v4026 = vadd.f32 %v3610, %v4025
      %v4027 = vpop.f32.mrf.mxu0
      %v4028 = vadd.f32 %v3614, %v4027
      %4029 = vmatprep.mubr.bf16.mxu0 %v3553
      %4030 = vmatmul.mubr.bf16.gmra.mxu0 %v3552
      %v4031 = vpop.f32.mrf.mxu0
      %v4032 = vadd.f32 %v3610, %v4031
      %v4033 = vpop.f32.mrf.mxu0
      %v4034 = vadd.f32 %v3614, %v4033
      %v4035 = vpop.f32.mrf.mxu0
      %v4036 = vadd.f32 %v3610, %v4035
      %v4037 = vpop.f32.mrf.mxu0
      %v4038 = vadd.f32 %v3614, %v4037
      %4039 = vmatprep.mubr.bf16.mxu0 %v3555
      %4040 = vmatmul.mubr.bf16.gmra.mxu0 %v3554
      %v4041 = vpop.f32.mrf.mxu0
      %v4042 = vadd.f32 %v3610, %v4041
      %v4043 = vpop.f32.mrf.mxu0
      %v4044 = vadd.f32 %v3614, %v4043
      %v4045 = vpop.f32.mrf.mxu0
      %v4046 = vadd.f32 %v3610, %v4045
      %v4047 = vpop.f32.mrf.mxu0
      %v4048 = vadd.f32 %v3614, %v4047
      %4049 = vmatprep.mubr.bf16.mxu0 %v3557
      %4050 = vmatmul.mubr.bf16.gmra.mxu0 %v3556
      %v4051 = vpop.f32.mrf.mxu0
      %v4052 = vadd.f32 %v3610, %v4051
      %v4053 = vpop.f32.mrf.mxu0
      %v4054 = vadd.f32 %v3614, %v4053
      %v4055 = vpop.f32.mrf.mxu0
      %v4056 = vadd.f32 %v3610, %v4055
      %v4057 = vpop.f32.mrf.mxu0
      %v4058 = vadd.f32 %v3614, %v4057
      %4059 = vmatprep.mubr.bf16.mxu0 %v3559
      %4060 = vmatmul.mubr.bf16.gmra.mxu0 %v3558
      %v4061 = vpop.f32.mrf.mxu0
      %v4062 = vadd.f32 %v3610, %v4061
      %v4063 = vpop.f32.mrf.mxu0
      %v4064 = vadd.f32 %v3614, %v4063
      %v4065 = vpop.f32.mrf.mxu0
      %v4066 = vadd.f32 %v3610, %v4065
      %v4067 = vpop.f32.mrf.mxu0
      %v4068 = vadd.f32 %v3614, %v4067
      %4069 = vmatprep.mubr.bf16.mxu0 %v3561
      %4070 = vmatmul.mubr.bf16.gmra.mxu0 %v3560
      %v4071 = vpop.f32.mrf.mxu0
      %v4072 = vadd.f32 %v3610, %v4071
      %v4073 = vpop.f32.mrf.mxu0
      %v4074 = vadd.f32 %v3614, %v4073
      %v4075 = vpop.f32.mrf.mxu0
      %v4076 = vadd.f32 %v3610, %v4075
      %v4077 = vpop.f32.mrf.mxu0
      %v4078 = vadd.f32 %v3614, %v4077
      %4079 = vmatprep.mubr.bf16.mxu0 %v3563
      %4080 = vmatmul.mubr.bf16.gmra.mxu0 %v3562
      %v4081 = vpop.f32.mrf.mxu0
      %v4082 = vadd.f32 %v3610, %v4081
      %v4083 = vpop.f32.mrf.mxu0
      %v4084 = vadd.f32 %v3614, %v4083
      %v4085 = vpop.f32.mrf.mxu0
      %v4086 = vadd.f32 %v3610, %v4085
      %v4087 = vpop.f32.mrf.mxu0
      %v4088 = vadd.f32 %v3614, %v4087
      %4089 = vmatprep.mubr.bf16.mxu0 %v3565
      %4090 = vmatmul.mubr.bf16.gmra.mxu0 %v3564
      %v4091 = vpop.f32.mrf.mxu0
      %v4092 = vadd.f32 %v3610, %v4091
      %v4093 = vpop.f32.mrf.mxu0
      %v4094 = vadd.f32 %v3614, %v4093
      %v4095 = vpop.f32.mrf.mxu0
      %v4096 = vadd.f32 %v3610, %v4095
      %v4097 = vpop.f32.mrf.mxu0
      %v4098 = vadd.f32 %v3614, %v4097
      %4099 = vmatprep.mubr.bf16.mxu0 %v3567
      %4100 = vmatmul.mubr.bf16.gmra.mxu0 %v3566
      %v4101 = vpop.f32.mrf.mxu0
      %v4102 = vadd.f32 %v3610, %v4101
      %v4103 = vpop.f32.mrf.mxu0
      %v4104 = vadd.f32 %v3614, %v4103
      %v4105 = vpop.f32.mrf.mxu0
      %v4106 = vadd.f32 %v3610, %v4105
      %v4107 = vpop.f32.mrf.mxu0
      %v4108 = vadd.f32 %v3614, %v4107
      %4109 = vmatprep.mubr.bf16.mxu0 %v3569
      %4110 = vmatmul.mubr.bf16.gmra.mxu0 %v3568
      %v4111 = vpop.f32.mrf.mxu0
      %v4112 = vadd.f32 %v3610, %v4111
      %v4113 = vpop.f32.mrf.mxu0
      %v4114 = vadd.f32 %v3614, %v4113
      %v4115 = vpop.f32.mrf.mxu0
      %v4116 = vadd.f32 %v3610, %v4115
      %v4117 = vpop.f32.mrf.mxu0
      %v4118 = vadd.f32 %v3614, %v4117
      %4119 = vmatprep.mubr.bf16.mxu0 %v3571
      %4120 = vmatmul.mubr.bf16.gmra.mxu0 %v3570
      %v4121 = vpop.f32.mrf.mxu0
      %v4122 = vadd.f32 %v3610, %v4121
      %v4123 = vpop.f32.mrf.mxu0
      %v4124 = vadd.f32 %v3614, %v4123
      %v4125 = vpop.f32.mrf.mxu0
      %v4126 = vadd.f32 %v3610, %v4125
      %v4127 = vpop.f32.mrf.mxu0
      %v4128 = vadd.f32 %v3614, %v4127
      %4129 = vdwg.mxu0
      %v4130 = vmax.f32 %v3812, 0.0
      %v4131 = vmax.f32 %v3814, 0.0
      %v4132 = vmax.f32 %v3816, 0.0
      %v4133 = vmax.f32 %v3818, 0.0
      %v4134 = vmax.f32 %v3822, 0.0
      %v4135 = vmax.f32 %v3824, 0.0
      %v4136 = vmax.f32 %v3826, 0.0
      %v4137 = vmax.f32 %v3828, 0.0
      %v4138 = vmax.f32 %v3832, 0.0
      %v4139 = vmax.f32 %v3834, 0.0
      %v4140 = vmax.f32 %v3836, 0.0
      %v4141 = vmax.f32 %v3838, 0.0
      %v4142 = vmax.f32 %v3842, 0.0
      %v4143 = vmax.f32 %v3844, 0.0
      %v4144 = vmax.f32 %v3846, 0.0
      %v4145 = vmax.f32 %v3848, 0.0
      %v4146 = vmax.f32 %v3852, 0.0
      %v4147 = vmax.f32 %v3854, 0.0
      %v4148 = vmax.f32 %v3856, 0.0
      %v4149 = vmax.f32 %v3858, 0.0
      %v4150 = vmax.f32 %v3862, 0.0
      %v4151 = vmax.f32 %v3864, 0.0
      %v4152 = vmax.f32 %v3866, 0.0
      %v4153 = vmax.f32 %v3868, 0.0
      %v4154 = vmax.f32 %v3872, 0.0
      %v4155 = vmax.f32 %v3874, 0.0
      %v4156 = vmax.f32 %v3876, 0.0
      %v4157 = vmax.f32 %v3878, 0.0
      %v4158 = vmax.f32 %v3882, 0.0
      %v4159 = vmax.f32 %v3884, 0.0
      %v4160 = vmax.f32 %v3886, 0.0
      %v4161 = vmax.f32 %v3888, 0.0
      %v4162 = vmax.f32 %v3892, 0.0
      %v4163 = vmax.f32 %v3894, 0.0
      %v4164 = vmax.f32 %v3896, 0.0
      %v4165 = vmax.f32 %v3898, 0.0
      %v4166 = vmax.f32 %v3902, 0.0
      %v4167 = vmax.f32 %v3904, 0.0
      %v4168 = vmax.f32 %v3906, 0.0
      %v4169 = vmax.f32 %v3908, 0.0
      %v4170 = vmax.f32 %v3912, 0.0
      %v4171 = vmax.f32 %v3914, 0.0
      %v4172 = vmax.f32 %v3916, 0.0
      %v4173 = vmax.f32 %v3918, 0.0
      %v4174 = vmax.f32 %v3922, 0.0
      %v4175 = vmax.f32 %v3924, 0.0
      %v4176 = vmax.f32 %v3926, 0.0
      %v4177 = vmax.f32 %v3928, 0.0
      %v4178 = vmax.f32 %v3932, 0.0
      %v4179 = vmax.f32 %v3934, 0.0
      %v4180 = vmax.f32 %v3936, 0.0
      %v4181 = vmax.f32 %v3938, 0.0
      %v4182 = vmax.f32 %v3942, 0.0
      %v4183 = vmax.f32 %v3944, 0.0
      %v4184 = vmax.f32 %v3946, 0.0
      %v4185 = vmax.f32 %v3948, 0.0
      %v4186 = vmax.f32 %v3952, 0.0
      %v4187 = vmax.f32 %v3954, 0.0
      %v4188 = vmax.f32 %v3956, 0.0
      %v4189 = vmax.f32 %v3958, 0.0
      %v4190 = vmax.f32 %v3962, 0.0
      %v4191 = vmax.f32 %v3964, 0.0
      %v4192 = vmax.f32 %v3966, 0.0
      %v4193 = vmax.f32 %v3968, 0.0
      %v4194 = vmax.f32 %v3972, 0.0
      %v4195 = vmax.f32 %v3974, 0.0
      %v4196 = vmax.f32 %v3976, 0.0
      %v4197 = vmax.f32 %v3978, 0.0
      %v4198 = vmax.f32 %v3982, 0.0
      %v4199 = vmax.f32 %v3984, 0.0
      %v4200 = vmax.f32 %v3986, 0.0
      %v4201 = vmax.f32 %v3988, 0.0
      %v4202 = vmax.f32 %v3992, 0.0
      %v4203 = vmax.f32 %v3994, 0.0
      %v4204 = vmax.f32 %v3996, 0.0
      %v4205 = vmax.f32 %v3998, 0.0
      %v4206 = vmax.f32 %v4002, 0.0
      %v4207 = vmax.f32 %v4004, 0.0
      %v4208 = vmax.f32 %v4006, 0.0
      %v4209 = vmax.f32 %v4008, 0.0
      %v4210 = vmax.f32 %v4012, 0.0
      %v4211 = vmax.f32 %v4014, 0.0
      %v4212 = vmax.f32 %v4016, 0.0
      %v4213 = vmax.f32 %v4018, 0.0
      %v4214 = vmax.f32 %v4022, 0.0
      %v4215 = vmax.f32 %v4024, 0.0
      %v4216 = vmax.f32 %v4026, 0.0
      %v4217 = vmax.f32 %v4028, 0.0
      %v4218 = vmax.f32 %v4032, 0.0
      %v4219 = vmax.f32 %v4034, 0.0
      %v4220 = vmax.f32 %v4036, 0.0
      %v4221 = vmax.f32 %v4038, 0.0
      %v4222 = vmax.f32 %v4042, 0.0
      %v4223 = vmax.f32 %v4044, 0.0
      %v4224 = vmax.f32 %v4046, 0.0
      %v4225 = vmax.f32 %v4048, 0.0
      %v4226 = vmax.f32 %v4052, 0.0
      %v4227 = vmax.f32 %v4054, 0.0
      %v4228 = vmax.f32 %v4056, 0.0
      %v4229 = vmax.f32 %v4058, 0.0
      %v4230 = vmax.f32 %v4062, 0.0
      %v4231 = vmax.f32 %v4064, 0.0
      %v4232 = vmax.f32 %v4066, 0.0
      %v4233 = vmax.f32 %v4068, 0.0
      %v4234 = vmax.f32 %v4072, 0.0
      %v4235 = vmax.f32 %v4074, 0.0
      %v4236 = vmax.f32 %v4076, 0.0
      %v4237 = vmax.f32 %v4078, 0.0
      %v4238 = vmax.f32 %v4082, 0.0
      %v4239 = vmax.f32 %v4084, 0.0
      %v4240 = vmax.f32 %v4086, 0.0
      %v4241 = vmax.f32 %v4088, 0.0
      %v4242 = vmax.f32 %v4092, 0.0
      %v4243 = vmax.f32 %v4094, 0.0
      %v4244 = vmax.f32 %v4096, 0.0
      %v4245 = vmax.f32 %v4098, 0.0
      %v4246 = vmax.f32 %v4102, 0.0
      %v4247 = vmax.f32 %v4104, 0.0
      %v4248 = vmax.f32 %v4106, 0.0
      %v4249 = vmax.f32 %v4108, 0.0
      %v4250 = vmax.f32 %v4112, 0.0
      %v4251 = vmax.f32 %v4114, 0.0
      %v4252 = vmax.f32 %v4116, 0.0
      %v4253 = vmax.f32 %v4118, 0.0
      %v4254 = vmax.f32 %v4122, 0.0
      %v4255 = vmax.f32 %v4124, 0.0
      %v4256 = vmax.f32 %v4126, 0.0
      %v4257 = vmax.f32 %v4128, 0.0
      %v4258 = vpack.c.bf16 %v4132, %v4130
      %v4259 = vpack.c.bf16 %v4133, %v4131
      %v4260 = vpack.c.bf16 %v4136, %v4134
      %v4261 = vpack.c.bf16 %v4137, %v4135
      %v4262 = vpack.c.bf16 %v4140, %v4138
      %v4263 = vpack.c.bf16 %v4141, %v4139
      %v4264 = vpack.c.bf16 %v4144, %v4142
      %v4265 = vpack.c.bf16 %v4145, %v4143
      %v4266 = vpack.c.bf16 %v4148, %v4146
      %v4267 = vpack.c.bf16 %v4149, %v4147
      %v4268 = vpack.c.bf16 %v4152, %v4150
      %v4269 = vpack.c.bf16 %v4153, %v4151
      %v4270 = vpack.c.bf16 %v4156, %v4154
      %v4271 = vpack.c.bf16 %v4157, %v4155
      %v4272 = vpack.c.bf16 %v4160, %v4158
      %v4273 = vpack.c.bf16 %v4161, %v4159
      %v4274 = vpack.c.bf16 %v4164, %v4162
      %v4275 = vpack.c.bf16 %v4165, %v4163
      %v4276 = vpack.c.bf16 %v4168, %v4166
      %v4277 = vpack.c.bf16 %v4169, %v4167
      %v4278 = vpack.c.bf16 %v4172, %v4170
      %v4279 = vpack.c.bf16 %v4173, %v4171
      %v4280 = vpack.c.bf16 %v4176, %v4174
      %v4281 = vpack.c.bf16 %v4177, %v4175
      %v4282 = vpack.c.bf16 %v4180, %v4178
      %v4283 = vpack.c.bf16 %v4181, %v4179
      %v4284 = vpack.c.bf16 %v4184, %v4182
      %v4285 = vpack.c.bf16 %v4185, %v4183
      %v4286 = vpack.c.bf16 %v4188, %v4186
      %v4287 = vpack.c.bf16 %v4189, %v4187
      %v4288 = vpack.c.bf16 %v4192, %v4190
      %v4289 = vpack.c.bf16 %v4193, %v4191
      %v4290 = vpack.c.bf16 %v4196, %v4194
      %v4291 = vpack.c.bf16 %v4197, %v4195
      %v4292 = vpack.c.bf16 %v4200, %v4198
      %v4293 = vpack.c.bf16 %v4201, %v4199
      %v4294 = vpack.c.bf16 %v4204, %v4202
      %v4295 = vpack.c.bf16 %v4205, %v4203
      %v4296 = vpack.c.bf16 %v4208, %v4206
      %v4297 = vpack.c.bf16 %v4209, %v4207
      %v4298 = vpack.c.bf16 %v4212, %v4210
      %v4299 = vpack.c.bf16 %v4213, %v4211
      %v4300 = vpack.c.bf16 %v4216, %v4214
      %v4301 = vpack.c.bf16 %v4217, %v4215
      %v4302 = vpack.c.bf16 %v4220, %v4218
      %v4303 = vpack.c.bf16 %v4221, %v4219
      %v4304 = vpack.c.bf16 %v4224, %v4222
      %v4305 = vpack.c.bf16 %v4225, %v4223
      %v4306 = vpack.c.bf16 %v4228, %v4226
      %v4307 = vpack.c.bf16 %v4229, %v4227
      %v4308 = vpack.c.bf16 %v4232, %v4230
      %v4309 = vpack.c.bf16 %v4233, %v4231
      %v4310 = vpack.c.bf16 %v4236, %v4234
      %v4311 = vpack.c.bf16 %v4237, %v4235
      %v4312 = vpack.c.bf16 %v4240, %v4238
      %v4313 = vpack.c.bf16 %v4241, %v4239
      %v4314 = vpack.c.bf16 %v4244, %v4242
      %v4315 = vpack.c.bf16 %v4245, %v4243
      %v4316 = vpack.c.bf16 %v4248, %v4246
      %v4317 = vpack.c.bf16 %v4249, %v4247
      %v4318 = vpack.c.bf16 %v4252, %v4250
      %v4319 = vpack.c.bf16 %v4253, %v4251
      %v4320 = vpack.c.bf16 %v4256, %v4254
      %v4321 = vpack.c.bf16 %v4257, %v4255
      %v4322 = vld [vmem:[%s2 + $0x440] sm:$0xff]
      %v4323 = vld [vmem:[%s2 + $0x448] sm:$0xff]
      %v4324 = vld [vmem:[%s2 + $0x450] sm:$0xff]
      %v4325 = vld [vmem:[%s2 + $0x458] sm:$0xff]
      %v4326 = vld [vmem:[%s2 + $0x460] sm:$0xff]
      %v4327 = vld [vmem:[%s2 + $0x468] sm:$0xff]
      %v4328 = vld [vmem:[%s2 + $0x470] sm:$0xff]
      %v4329 = vld [vmem:[%s2 + $0x478] sm:$0xff]
      %v4330 = vld [vmem:[%s2 + $0x480] sm:$0xff]
      %v4331 = vld [vmem:[%s2 + $0x488] sm:$0xff]
      %v4332 = vld [vmem:[%s2 + $0x490] sm:$0xff]
      %v4333 = vld [vmem:[%s2 + $0x498] sm:$0xff]
      %v4334 = vld [vmem:[%s2 + $0x4a0] sm:$0xff]
      %v4335 = vld [vmem:[%s2 + $0x4a8] sm:$0xff]
      %v4336 = vld [vmem:[%s2 + $0x4b0] sm:$0xff]
      %v4337 = vld [vmem:[%s2 + $0x4b8] sm:$0xff]
      %v4338 = vld [vmem:[%s2 + $0x4c0] sm:$0xff]
      %v4339 = vld [vmem:[%s2 + $0x4c8] sm:$0xff]
      %v4340 = vld [vmem:[%s2 + $0x4d0] sm:$0xff]
      %v4341 = vld [vmem:[%s2 + $0x4d8] sm:$0xff]
      %v4342 = vld [vmem:[%s2 + $0x4e0] sm:$0xff]
      %v4343 = vld [vmem:[%s2 + $0x4e8] sm:$0xff]
      %v4344 = vld [vmem:[%s2 + $0x4f0] sm:$0xff]
      %v4345 = vld [vmem:[%s2 + $0x4f8] sm:$0xff]
      %v4346 = vld [vmem:[%s2 + $0x500] sm:$0xff]
      %v4347 = vld [vmem:[%s2 + $0x508] sm:$0xff]
      %v4348 = vld [vmem:[%s2 + $0x510] sm:$0xff]
      %v4349 = vld [vmem:[%s2 + $0x518] sm:$0xff]
      %v4350 = vld [vmem:[%s2 + $0x520] sm:$0xff]
      %v4351 = vld [vmem:[%s2 + $0x528] sm:$0xff]
      %v4352 = vld [vmem:[%s2 + $0x530] sm:$0xff]
      %v4353 = vld [vmem:[%s2 + $0x538] sm:$0xff]
      %v4354 = vld [vmem:[%s2 + $0x540] sm:$0xff]
      %v4355 = vld [vmem:[%s2 + $0x548] sm:$0xff]
      %v4356 = vld [vmem:[%s2 + $0x550] sm:$0xff]
      %v4357 = vld [vmem:[%s2 + $0x558] sm:$0xff]
      %v4358 = vld [vmem:[%s2 + $0x560] sm:$0xff]
      %v4359 = vld [vmem:[%s2 + $0x568] sm:$0xff]
      %v4360 = vld [vmem:[%s2 + $0x570] sm:$0xff]
      %v4361 = vld [vmem:[%s2 + $0x578] sm:$0xff]
      %v4394 = vunpack.c.l.b16 %v4330
      %v4395 = vunpack.c.h.b16 %v4330
      %v4396 = vunpack.c.l.b16 %v4331
      %v4397 = vunpack.c.h.b16 %v4331
      %v4398 = vunpack.c.l.b16 %v4332
      %v4399 = vunpack.c.h.b16 %v4332
      %v4400 = vunpack.c.l.b16 %v4333
      %v4401 = vunpack.c.h.b16 %v4333
      %v4402 = vunpack.c.l.b16 %v4334
      %v4403 = vunpack.c.h.b16 %v4334
      %v4404 = vunpack.c.l.b16 %v4335
      %v4405 = vunpack.c.h.b16 %v4335
      %v4406 = vunpack.c.l.b16 %v4336
      %v4407 = vunpack.c.h.b16 %v4336
      %v4408 = vunpack.c.l.b16 %v4337
      %v4409 = vunpack.c.h.b16 %v4337
      %v4410 = vunpack.c.l.b16 %v4338
      %v4411 = vunpack.c.h.b16 %v4338
      %v4412 = vunpack.c.l.b16 %v4339
      %v4413 = vunpack.c.h.b16 %v4339
      %v4414 = vunpack.c.l.b16 %v4340
      %v4415 = vunpack.c.h.b16 %v4340
      %v4416 = vunpack.c.l.b16 %v4341
      %v4417 = vunpack.c.h.b16 %v4341
      %v4418 = vunpack.c.l.b16 %v4342
      %v4419 = vunpack.c.h.b16 %v4342
      %v4420 = vunpack.c.l.b16 %v4343
      %v4421 = vunpack.c.h.b16 %v4343
      %v4422 = vunpack.c.l.b16 %v4344
      %v4423 = vunpack.c.h.b16 %v4344
      %v4424 = vunpack.c.l.b16 %v4345
      %v4425 = vunpack.c.h.b16 %v4345
      %v4426 = vunpack.c.l.b16 %v4346
      %v4427 = vunpack.c.h.b16 %v4346
      %v4428 = vunpack.c.l.b16 %v4347
      %v4429 = vunpack.c.h.b16 %v4347
      %v4430 = vunpack.c.l.b16 %v4348
      %v4431 = vunpack.c.h.b16 %v4348
      %v4432 = vunpack.c.l.b16 %v4349
      %v4433 = vunpack.c.h.b16 %v4349
      %v4434 = vunpack.c.l.b16 %v4350
      %v4435 = vunpack.c.h.b16 %v4350
      %v4436 = vunpack.c.l.b16 %v4351
      %v4437 = vunpack.c.h.b16 %v4351
      %v4438 = vunpack.c.l.b16 %v4352
      %v4439 = vunpack.c.h.b16 %v4352
      %v4440 = vunpack.c.l.b16 %v4353
      %v4441 = vunpack.c.h.b16 %v4353
      %v4442 = vunpack.c.l.b16 %v4354
      %v4443 = vunpack.c.h.b16 %v4354
      %v4444 = vunpack.c.l.b16 %v4355
      %v4445 = vunpack.c.h.b16 %v4355
      %v4446 = vunpack.c.l.b16 %v4356
      %v4447 = vunpack.c.h.b16 %v4356
      %v4448 = vunpack.c.l.b16 %v4357
      %v4449 = vunpack.c.h.b16 %v4357
      %v4450 = vunpack.c.l.b16 %v4358
      %v4451 = vunpack.c.h.b16 %v4358
      %v4452 = vunpack.c.l.b16 %v4359
      %v4453 = vunpack.c.h.b16 %v4359
      %v4454 = vunpack.c.l.b16 %v4360
      %v4455 = vunpack.c.h.b16 %v4360
      %v4456 = vunpack.c.l.b16 %v4361
      %v4457 = vunpack.c.h.b16 %v4361
      %v4458 = vpack.c.b16 %v4396, %v4394
      %v4459 = vpack.c.b16 %v4397, %v4395
      %v4460 = vpack.c.b16 %v4400, %v4398
      %v4461 = vpack.c.b16 %v4401, %v4399
      %v4462 = vpack.c.b16 %v4404, %v4402
      %v4463 = vpack.c.b16 %v4405, %v4403
      %v4464 = vpack.c.b16 %v4408, %v4406
      %v4465 = vpack.c.b16 %v4409, %v4407
      %v4466 = vpack.c.b16 %v4412, %v4410
      %v4467 = vpack.c.b16 %v4413, %v4411
      %v4468 = vpack.c.b16 %v4416, %v4414
      %v4469 = vpack.c.b16 %v4417, %v4415
      %v4470 = vpack.c.b16 %v4420, %v4418
      %v4471 = vpack.c.b16 %v4421, %v4419
      %v4472 = vpack.c.b16 %v4424, %v4422
      %v4473 = vpack.c.b16 %v4425, %v4423
      %v4474 = vpack.c.b16 %v4428, %v4426
      %v4475 = vpack.c.b16 %v4429, %v4427
      %v4476 = vpack.c.b16 %v4432, %v4430
      %v4477 = vpack.c.b16 %v4433, %v4431
      %v4478 = vpack.c.b16 %v4436, %v4434
      %v4479 = vpack.c.b16 %v4437, %v4435
      %v4480 = vpack.c.b16 %v4440, %v4438
      %v4481 = vpack.c.b16 %v4441, %v4439
      %v4482 = vpack.c.b16 %v4444, %v4442
      %v4483 = vpack.c.b16 %v4445, %v4443
      %v4484 = vpack.c.b16 %v4448, %v4446
      %v4485 = vpack.c.b16 %v4449, %v4447
      %v4486 = vpack.c.b16 %v4452, %v4450
      %v4487 = vpack.c.b16 %v4453, %v4451
      %v4488 = vpack.c.b16 %v4456, %v4454
      %v4489 = vpack.c.b16 %v4457, %v4455
      %4522 = vmatprep.subr.bf16.mxu0 %v4473
      %4523 = vmatpush1.bf16.msra.mxu0 %v4472
      %4524 = vmatprep.subr.bf16.mxu0 %v4471
      %4525 = vmatpush1.bf16.msra.mxu0 %v4470
      %4526 = vmatprep.subr.bf16.mxu0 %v4469
      %4527 = vmatpush1.bf16.msra.mxu0 %v4468
      %4528 = vmatprep.subr.bf16.mxu0 %v4467
      %4529 = vmatpush1.bf16.msra.mxu0 %v4466
      %4530 = vmatprep.subr.bf16.mxu0 %v4465
      %4531 = vmatpush1.bf16.msra.mxu0 %v4464
      %4532 = vmatprep.subr.bf16.mxu0 %v4463
      %4533 = vmatpush1.bf16.msra.mxu0 %v4462
      %4534 = vmatprep.subr.bf16.mxu0 %v4461
      %4535 = vmatpush1.bf16.msra.mxu0 %v4460
      %4536 = vmatprep.subr.bf16.mxu0 %v4459
      %4537 = vmatpush1.bf16.msra.mxu0 %v4458
      %4538 = vmatprep.subr.bf16.mxu0 %v4489
      %4539 = vmatpush2.bf16.msra.mxu0 %v4488
      %4540 = vmatprep.subr.bf16.mxu0 %v4487
      %4541 = vmatpush2.bf16.msra.mxu0 %v4486
      %4542 = vmatprep.subr.bf16.mxu0 %v4485
      %4543 = vmatpush2.bf16.msra.mxu0 %v4484
      %4544 = vmatprep.subr.bf16.mxu0 %v4483
      %4545 = vmatpush2.bf16.msra.mxu0 %v4482
      %4546 = vmatprep.subr.bf16.mxu0 %v4481
      %4547 = vmatpush2.bf16.msra.mxu0 %v4480
      %4548 = vmatprep.subr.bf16.mxu0 %v4479
      %4549 = vmatpush2.bf16.msra.mxu0 %v4478
      %4550 = vmatprep.subr.bf16.mxu0 %v4477
      %4551 = vmatpush2.bf16.msra.mxu0 %v4476
      %4552 = vmatprep.subr.bf16.mxu0 %v4475
      %4553 = vmatpush2.bf16.msra.mxu0 %v4474
      %4554 = vmatprep.mubr.bf16.mxu0 %v4259
      %4555 = vmatmul.mubr.bf16.gmra.mxu0 %v4258
      %v4556 = vpop.f32.mrf.mxu0
      %v4557 = vadd.f32 0.0, %v4556
      %v4558 = vpop.f32.mrf.mxu0
      %v4559 = vadd.f32 0.0, %v4558
      %v4560 = vpop.f32.mrf.mxu0
      %v4561 = vadd.f32 0.0, %v4560
      %v4562 = vpop.f32.mrf.mxu0
      %v4563 = vadd.f32 0.0, %v4562
      %4564 = vmatprep.mubr.bf16.mxu0 %v4261
      %4565 = vmatmul.mubr.bf16.gmra.mxu0 %v4260
      %v4566 = vpop.f32.mrf.mxu0
      %v4567 = vadd.f32 0.0, %v4566
      %v4568 = vpop.f32.mrf.mxu0
      %v4569 = vadd.f32 0.0, %v4568
      %v4570 = vpop.f32.mrf.mxu0
      %v4571 = vadd.f32 0.0, %v4570
      %v4572 = vpop.f32.mrf.mxu0
      %v4573 = vadd.f32 0.0, %v4572
      %4574 = vmatprep.mubr.bf16.mxu0 %v4263
      %4575 = vmatmul.mubr.bf16.gmra.mxu0 %v4262
      %v4576 = vpop.f32.mrf.mxu0
      %v4577 = vadd.f32 0.0, %v4576
      %v4578 = vpop.f32.mrf.mxu0
      %v4579 = vadd.f32 0.0, %v4578
      %v4580 = vpop.f32.mrf.mxu0
      %v4581 = vadd.f32 0.0, %v4580
      %v4582 = vpop.f32.mrf.mxu0
      %v4583 = vadd.f32 0.0, %v4582
      %4584 = vmatprep.mubr.bf16.mxu0 %v4265
      %4585 = vmatmul.mubr.bf16.gmra.mxu0 %v4264
      %v4586 = vpop.f32.mrf.mxu0
      %v4587 = vadd.f32 0.0, %v4586
      %v4588 = vpop.f32.mrf.mxu0
      %v4589 = vadd.f32 0.0, %v4588
      %v4590 = vpop.f32.mrf.mxu0
      %v4591 = vadd.f32 0.0, %v4590
      %v4592 = vpop.f32.mrf.mxu0
      %v4593 = vadd.f32 0.0, %v4592
      %4594 = vmatprep.mubr.bf16.mxu0 %v4267
      %4595 = vmatmul.mubr.bf16.gmra.mxu0 %v4266
      %v4596 = vpop.f32.mrf.mxu0
      %v4597 = vadd.f32 0.0, %v4596
      %v4598 = vpop.f32.mrf.mxu0
      %v4599 = vadd.f32 0.0, %v4598
      %v4600 = vpop.f32.mrf.mxu0
      %v4601 = vadd.f32 0.0, %v4600
      %v4602 = vpop.f32.mrf.mxu0
      %v4603 = vadd.f32 0.0, %v4602
      %4604 = vmatprep.mubr.bf16.mxu0 %v4269
      %4605 = vmatmul.mubr.bf16.gmra.mxu0 %v4268
      %v4606 = vpop.f32.mrf.mxu0
      %v4607 = vadd.f32 0.0, %v4606
      %v4608 = vpop.f32.mrf.mxu0
      %v4609 = vadd.f32 0.0, %v4608
      %v4610 = vpop.f32.mrf.mxu0
      %v4611 = vadd.f32 0.0, %v4610
      %v4612 = vpop.f32.mrf.mxu0
      %v4613 = vadd.f32 0.0, %v4612
      %4614 = vmatprep.mubr.bf16.mxu0 %v4271
      %4615 = vmatmul.mubr.bf16.gmra.mxu0 %v4270
      %v4616 = vpop.f32.mrf.mxu0
      %v4617 = vadd.f32 0.0, %v4616
      %v4618 = vpop.f32.mrf.mxu0
      %v4619 = vadd.f32 0.0, %v4618
      %v4620 = vpop.f32.mrf.mxu0
      %v4621 = vadd.f32 0.0, %v4620
      %v4622 = vpop.f32.mrf.mxu0
      %v4623 = vadd.f32 0.0, %v4622
      %4624 = vmatprep.mubr.bf16.mxu0 %v4273
      %4625 = vmatmul.mubr.bf16.gmra.mxu0 %v4272
      %v4626 = vpop.f32.mrf.mxu0
      %v4627 = vadd.f32 0.0, %v4626
      %v4628 = vpop.f32.mrf.mxu0
      %v4629 = vadd.f32 0.0, %v4628
      %v4630 = vpop.f32.mrf.mxu0
      %v4631 = vadd.f32 0.0, %v4630
      %v4632 = vpop.f32.mrf.mxu0
      %v4633 = vadd.f32 0.0, %v4632
      %4634 = vmatprep.mubr.bf16.mxu0 %v4275
      %4635 = vmatmul.mubr.bf16.gmra.mxu0 %v4274
      %v4636 = vpop.f32.mrf.mxu0
      %v4637 = vadd.f32 0.0, %v4636
      %v4638 = vpop.f32.mrf.mxu0
      %v4639 = vadd.f32 0.0, %v4638
      %v4640 = vpop.f32.mrf.mxu0
      %v4641 = vadd.f32 0.0, %v4640
      %v4642 = vpop.f32.mrf.mxu0
      %v4643 = vadd.f32 0.0, %v4642
      %4644 = vmatprep.mubr.bf16.mxu0 %v4277
      %4645 = vmatmul.mubr.bf16.gmra.mxu0 %v4276
      %v4646 = vpop.f32.mrf.mxu0
      %v4647 = vadd.f32 0.0, %v4646
      %v4648 = vpop.f32.mrf.mxu0
      %v4649 = vadd.f32 0.0, %v4648
      %v4650 = vpop.f32.mrf.mxu0
      %v4651 = vadd.f32 0.0, %v4650
      %v4652 = vpop.f32.mrf.mxu0
      %v4653 = vadd.f32 0.0, %v4652
      %4654 = vmatprep.mubr.bf16.mxu0 %v4279
      %4655 = vmatmul.mubr.bf16.gmra.mxu0 %v4278
      %v4656 = vpop.f32.mrf.mxu0
      %v4657 = vadd.f32 0.0, %v4656
      %v4658 = vpop.f32.mrf.mxu0
      %v4659 = vadd.f32 0.0, %v4658
      %v4660 = vpop.f32.mrf.mxu0
      %v4661 = vadd.f32 0.0, %v4660
      %v4662 = vpop.f32.mrf.mxu0
      %v4663 = vadd.f32 0.0, %v4662
      %4664 = vmatprep.mubr.bf16.mxu0 %v4281
      %4665 = vmatmul.mubr.bf16.gmra.mxu0 %v4280
      %v4666 = vpop.f32.mrf.mxu0
      %v4667 = vadd.f32 0.0, %v4666
      %v4668 = vpop.f32.mrf.mxu0
      %v4669 = vadd.f32 0.0, %v4668
      %v4670 = vpop.f32.mrf.mxu0
      %v4671 = vadd.f32 0.0, %v4670
      %v4672 = vpop.f32.mrf.mxu0
      %v4673 = vadd.f32 0.0, %v4672
      %4674 = vmatprep.mubr.bf16.mxu0 %v4283
      %4675 = vmatmul.mubr.bf16.gmra.mxu0 %v4282
      %v4676 = vpop.f32.mrf.mxu0
      %v4677 = vadd.f32 0.0, %v4676
      %v4678 = vpop.f32.mrf.mxu0
      %v4679 = vadd.f32 0.0, %v4678
      %v4680 = vpop.f32.mrf.mxu0
      %v4681 = vadd.f32 0.0, %v4680
      %v4682 = vpop.f32.mrf.mxu0
      %v4683 = vadd.f32 0.0, %v4682
      %4684 = vmatprep.mubr.bf16.mxu0 %v4285
      %4685 = vmatmul.mubr.bf16.gmra.mxu0 %v4284
      %v4686 = vpop.f32.mrf.mxu0
      %v4687 = vadd.f32 0.0, %v4686
      %v4688 = vpop.f32.mrf.mxu0
      %v4689 = vadd.f32 0.0, %v4688
      %v4690 = vpop.f32.mrf.mxu0
      %v4691 = vadd.f32 0.0, %v4690
      %v4692 = vpop.f32.mrf.mxu0
      %v4693 = vadd.f32 0.0, %v4692
      %4694 = vmatprep.mubr.bf16.mxu0 %v4287
      %4695 = vmatmul.mubr.bf16.gmra.mxu0 %v4286
      %v4696 = vpop.f32.mrf.mxu0
      %v4697 = vadd.f32 0.0, %v4696
      %v4698 = vpop.f32.mrf.mxu0
      %v4699 = vadd.f32 0.0, %v4698
      %v4700 = vpop.f32.mrf.mxu0
      %v4701 = vadd.f32 0.0, %v4700
      %v4702 = vpop.f32.mrf.mxu0
      %v4703 = vadd.f32 0.0, %v4702
      %4704 = vmatprep.mubr.bf16.mxu0 %v4289
      %4705 = vmatmul.mubr.bf16.gmra.mxu0 %v4288
      %v4706 = vpop.f32.mrf.mxu0
      %v4707 = vadd.f32 0.0, %v4706
      %v4708 = vpop.f32.mrf.mxu0
      %v4709 = vadd.f32 0.0, %v4708
      %v4710 = vpop.f32.mrf.mxu0
      %v4711 = vadd.f32 0.0, %v4710
      %v4712 = vpop.f32.mrf.mxu0
      %v4713 = vadd.f32 0.0, %v4712
      %4714 = vmatprep.mubr.bf16.mxu0 %v4291
      %4715 = vmatmul.mubr.bf16.gmra.mxu0 %v4290
      %v4716 = vpop.f32.mrf.mxu0
      %v4717 = vadd.f32 0.0, %v4716
      %v4718 = vpop.f32.mrf.mxu0
      %v4719 = vadd.f32 0.0, %v4718
      %v4720 = vpop.f32.mrf.mxu0
      %v4721 = vadd.f32 0.0, %v4720
      %v4722 = vpop.f32.mrf.mxu0
      %v4723 = vadd.f32 0.0, %v4722
      %4724 = vmatprep.mubr.bf16.mxu0 %v4293
      %4725 = vmatmul.mubr.bf16.gmra.mxu0 %v4292
      %v4726 = vpop.f32.mrf.mxu0
      %v4727 = vadd.f32 0.0, %v4726
      %v4728 = vpop.f32.mrf.mxu0
      %v4729 = vadd.f32 0.0, %v4728
      %v4730 = vpop.f32.mrf.mxu0
      %v4731 = vadd.f32 0.0, %v4730
      %v4732 = vpop.f32.mrf.mxu0
      %v4733 = vadd.f32 0.0, %v4732
      %4734 = vmatprep.mubr.bf16.mxu0 %v4295
      %4735 = vmatmul.mubr.bf16.gmra.mxu0 %v4294
      %v4736 = vpop.f32.mrf.mxu0
      %v4737 = vadd.f32 0.0, %v4736
      %v4738 = vpop.f32.mrf.mxu0
      %v4739 = vadd.f32 0.0, %v4738
      %v4740 = vpop.f32.mrf.mxu0
      %v4741 = vadd.f32 0.0, %v4740
      %v4742 = vpop.f32.mrf.mxu0
      %v4743 = vadd.f32 0.0, %v4742
      %4744 = vmatprep.mubr.bf16.mxu0 %v4297
      %4745 = vmatmul.mubr.bf16.gmra.mxu0 %v4296
      %v4746 = vpop.f32.mrf.mxu0
      %v4747 = vadd.f32 0.0, %v4746
      %v4748 = vpop.f32.mrf.mxu0
      %v4749 = vadd.f32 0.0, %v4748
      %v4750 = vpop.f32.mrf.mxu0
      %v4751 = vadd.f32 0.0, %v4750
      %v4752 = vpop.f32.mrf.mxu0
      %v4753 = vadd.f32 0.0, %v4752
      %4754 = vmatprep.mubr.bf16.mxu0 %v4299
      %4755 = vmatmul.mubr.bf16.gmra.mxu0 %v4298
      %v4756 = vpop.f32.mrf.mxu0
      %v4757 = vadd.f32 0.0, %v4756
      %v4758 = vpop.f32.mrf.mxu0
      %v4759 = vadd.f32 0.0, %v4758
      %v4760 = vpop.f32.mrf.mxu0
      %v4761 = vadd.f32 0.0, %v4760
      %v4762 = vpop.f32.mrf.mxu0
      %v4763 = vadd.f32 0.0, %v4762
      %4764 = vmatprep.mubr.bf16.mxu0 %v4301
      %4765 = vmatmul.mubr.bf16.gmra.mxu0 %v4300
      %v4766 = vpop.f32.mrf.mxu0
      %v4767 = vadd.f32 0.0, %v4766
      %v4768 = vpop.f32.mrf.mxu0
      %v4769 = vadd.f32 0.0, %v4768
      %v4770 = vpop.f32.mrf.mxu0
      %v4771 = vadd.f32 0.0, %v4770
      %v4772 = vpop.f32.mrf.mxu0
      %v4773 = vadd.f32 0.0, %v4772
      %4774 = vmatprep.mubr.bf16.mxu0 %v4303
      %4775 = vmatmul.mubr.bf16.gmra.mxu0 %v4302
      %v4776 = vpop.f32.mrf.mxu0
      %v4777 = vadd.f32 0.0, %v4776
      %v4778 = vpop.f32.mrf.mxu0
      %v4779 = vadd.f32 0.0, %v4778
      %v4780 = vpop.f32.mrf.mxu0
      %v4781 = vadd.f32 0.0, %v4780
      %v4782 = vpop.f32.mrf.mxu0
      %v4783 = vadd.f32 0.0, %v4782
      %4784 = vmatprep.mubr.bf16.mxu0 %v4305
      %4785 = vmatmul.mubr.bf16.gmra.mxu0 %v4304
      %v4786 = vpop.f32.mrf.mxu0
      %v4787 = vadd.f32 0.0, %v4786
      %v4788 = vpop.f32.mrf.mxu0
      %v4789 = vadd.f32 0.0, %v4788
      %v4790 = vpop.f32.mrf.mxu0
      %v4791 = vadd.f32 0.0, %v4790
      %v4792 = vpop.f32.mrf.mxu0
      %v4793 = vadd.f32 0.0, %v4792
      %4794 = vmatprep.mubr.bf16.mxu0 %v4307
      %4795 = vmatmul.mubr.bf16.gmra.mxu0 %v4306
      %v4796 = vpop.f32.mrf.mxu0
      %v4797 = vadd.f32 0.0, %v4796
      %v4798 = vpop.f32.mrf.mxu0
      %v4799 = vadd.f32 0.0, %v4798
      %v4800 = vpop.f32.mrf.mxu0
      %v4801 = vadd.f32 0.0, %v4800
      %v4802 = vpop.f32.mrf.mxu0
      %v4803 = vadd.f32 0.0, %v4802
      %4804 = vmatprep.mubr.bf16.mxu0 %v4309
      %4805 = vmatmul.mubr.bf16.gmra.mxu0 %v4308
      %v4806 = vpop.f32.mrf.mxu0
      %v4807 = vadd.f32 0.0, %v4806
      %v4808 = vpop.f32.mrf.mxu0
      %v4809 = vadd.f32 0.0, %v4808
      %v4810 = vpop.f32.mrf.mxu0
      %v4811 = vadd.f32 0.0, %v4810
      %v4812 = vpop.f32.mrf.mxu0
      %v4813 = vadd.f32 0.0, %v4812
      %4814 = vmatprep.mubr.bf16.mxu0 %v4311
      %4815 = vmatmul.mubr.bf16.gmra.mxu0 %v4310
      %v4816 = vpop.f32.mrf.mxu0
      %v4817 = vadd.f32 0.0, %v4816
      %v4818 = vpop.f32.mrf.mxu0
      %v4819 = vadd.f32 0.0, %v4818
      %v4820 = vpop.f32.mrf.mxu0
      %v4821 = vadd.f32 0.0, %v4820
      %v4822 = vpop.f32.mrf.mxu0
      %v4823 = vadd.f32 0.0, %v4822
      %4824 = vmatprep.mubr.bf16.mxu0 %v4313
      %4825 = vmatmul.mubr.bf16.gmra.mxu0 %v4312
      %v4826 = vpop.f32.mrf.mxu0
      %v4827 = vadd.f32 0.0, %v4826
      %v4828 = vpop.f32.mrf.mxu0
      %v4829 = vadd.f32 0.0, %v4828
      %v4830 = vpop.f32.mrf.mxu0
      %v4831 = vadd.f32 0.0, %v4830
      %v4832 = vpop.f32.mrf.mxu0
      %v4833 = vadd.f32 0.0, %v4832
      %4834 = vmatprep.mubr.bf16.mxu0 %v4315
      %4835 = vmatmul.mubr.bf16.gmra.mxu0 %v4314
      %v4836 = vpop.f32.mrf.mxu0
      %v4837 = vadd.f32 0.0, %v4836
      %v4838 = vpop.f32.mrf.mxu0
      %v4839 = vadd.f32 0.0, %v4838
      %v4840 = vpop.f32.mrf.mxu0
      %v4841 = vadd.f32 0.0, %v4840
      %v4842 = vpop.f32.mrf.mxu0
      %v4843 = vadd.f32 0.0, %v4842
      %4844 = vmatprep.mubr.bf16.mxu0 %v4317
      %4845 = vmatmul.mubr.bf16.gmra.mxu0 %v4316
      %v4846 = vpop.f32.mrf.mxu0
      %v4847 = vadd.f32 0.0, %v4846
      %v4848 = vpop.f32.mrf.mxu0
      %v4849 = vadd.f32 0.0, %v4848
      %v4850 = vpop.f32.mrf.mxu0
      %v4851 = vadd.f32 0.0, %v4850
      %v4852 = vpop.f32.mrf.mxu0
      %v4853 = vadd.f32 0.0, %v4852
      %4854 = vmatprep.mubr.bf16.mxu0 %v4319
      %4855 = vmatmul.mubr.bf16.gmra.mxu0 %v4318
      %v4856 = vpop.f32.mrf.mxu0
      %v4857 = vadd.f32 0.0, %v4856
      %v4858 = vpop.f32.mrf.mxu0
      %v4859 = vadd.f32 0.0, %v4858
      %v4860 = vpop.f32.mrf.mxu0
      %v4861 = vadd.f32 0.0, %v4860
      %v4862 = vpop.f32.mrf.mxu0
      %v4863 = vadd.f32 0.0, %v4862
      %4864 = vmatprep.mubr.bf16.mxu0 %v4321
      %4865 = vmatmul.mubr.bf16.gmra.mxu0 %v4320
      %v4866 = vpop.f32.mrf.mxu0
      %v4867 = vadd.f32 0.0, %v4866
      %v4868 = vpop.f32.mrf.mxu0
      %v4869 = vadd.f32 0.0, %v4868
      %v4870 = vpop.f32.mrf.mxu0
      %v4871 = vadd.f32 0.0, %v4870
      %v4872 = vpop.f32.mrf.mxu0
      %v4873 = vadd.f32 0.0, %v4872
      %4874 = vdwg.mxu0
      %v4883 = vunpack.c.l.b16 %v4322
      %v4884 = vunpack.c.h.b16 %v4322
      %v4885 = vunpack.c.l.b16 %v4323
      %v4886 = vunpack.c.h.b16 %v4323
      %v4887 = vunpack.c.l.b16 %v4324
      %v4888 = vunpack.c.h.b16 %v4324
      %v4889 = vunpack.c.l.b16 %v4325
      %v4890 = vunpack.c.h.b16 %v4325
      %v4891 = vunpack.c.l.b16 %v4326
      %v4892 = vunpack.c.h.b16 %v4326
      %v4893 = vunpack.c.l.b16 %v4327
      %v4894 = vunpack.c.h.b16 %v4327
      %v4895 = vunpack.c.l.b16 %v4328
      %v4896 = vunpack.c.h.b16 %v4328
      %v4897 = vunpack.c.l.b16 %v4329
      %v4898 = vunpack.c.h.b16 %v4329
      %v4899 = vpack.c.b16 %v4885, %v4883
      %v4900 = vpack.c.b16 %v4886, %v4884
      %v4901 = vpack.c.b16 %v4889, %v4887
      %v4902 = vpack.c.b16 %v4890, %v4888
      %v4903 = vpack.c.b16 %v4893, %v4891
      %v4904 = vpack.c.b16 %v4894, %v4892
      %v4905 = vpack.c.b16 %v4897, %v4895
      %v4906 = vpack.c.b16 %v4898, %v4896
      %4915 = vmatprep.subr.bf16.mxu0 0
      %4916 = vmatpush1.bf16.msra.mxu0 0
      %4917 = vmatprep.subr.bf16.mxu0 0
      %4918 = vmatpush1.bf16.msra.mxu0 0
      %4919 = vmatprep.subr.bf16.mxu0 0
      %4920 = vmatpush1.bf16.msra.mxu0 0
      %4921 = vmatprep.subr.bf16.mxu0 0
      %4922 = vmatpush1.bf16.msra.mxu0 0
      %4923 = vmatprep.subr.bf16.mxu0 %v4906
      %4924 = vmatpush1.bf16.msra.mxu0 %v4905
      %4925 = vmatprep.subr.bf16.mxu0 %v4904
      %4926 = vmatpush1.bf16.msra.mxu0 %v4903
      %4927 = vmatprep.subr.bf16.mxu0 %v4902
      %4928 = vmatpush1.bf16.msra.mxu0 %v4901
      %4929 = vmatprep.subr.bf16.mxu0 %v4900
      %4930 = vmatpush1.bf16.msra.mxu0 %v4899
      %4931 = vmatprep.subr.bf16.mxu0 0
      %4932 = vmatpush2.bf16.msra.mxu0 0
      %4933 = vmatprep.subr.bf16.mxu0 0
      %4934 = vmatpush2.bf16.msra.mxu0 0
      %4935 = vmatprep.subr.bf16.mxu0 0
      %4936 = vmatpush2.bf16.msra.mxu0 0
      %4937 = vmatprep.subr.bf16.mxu0 0
      %4938 = vmatpush2.bf16.msra.mxu0 0
      %4939 = vmatprep.subr.bf16.mxu0 0
      %4940 = vmatpush2.bf16.msra.mxu0 0
      %4941 = vmatprep.subr.bf16.mxu0 0
      %4942 = vmatpush2.bf16.msra.mxu0 0
      %4943 = vmatprep.subr.bf16.mxu0 0
      %4944 = vmatpush2.bf16.msra.mxu0 0
      %4945 = vmatprep.subr.bf16.mxu0 0
      %4946 = vmatpush2.bf16.msra.mxu0 0
      %4947 = vmatprep.mubr.bf16.mxu0 0
      %4948 = vmatmul.mubr.bf16.gmra.mxu0 %v682
      %v4949 = vpop.f32.mrf.mxu0
      %v4950 = vadd.f32 %v4557, %v4949
      %v4951 = vpop.f32.mrf.mxu0
      %v4952 = vadd.f32 %v4559, %v4951
      %v4953 = vpop.f32.mrf.mxu0
      %v4954 = vadd.f32 %v4561, %v4953
      %v4955 = vpop.f32.mrf.mxu0
      %v4956 = vadd.f32 %v4563, %v4955
      %4957 = vmatprep.mubr.bf16.mxu0 0
      %4958 = vmatmul.mubr.bf16.gmra.mxu0 %v685
      %v4959 = vpop.f32.mrf.mxu0
      %v4960 = vadd.f32 %v4567, %v4959
      %v4961 = vpop.f32.mrf.mxu0
      %v4962 = vadd.f32 %v4569, %v4961
      %v4963 = vpop.f32.mrf.mxu0
      %v4964 = vadd.f32 %v4571, %v4963
      %v4965 = vpop.f32.mrf.mxu0
      %v4966 = vadd.f32 %v4573, %v4965
      %4967 = vmatprep.mubr.bf16.mxu0 0
      %4968 = vmatmul.mubr.bf16.gmra.mxu0 %v688
      %v4969 = vpop.f32.mrf.mxu0
      %v4970 = vadd.f32 %v4577, %v4969
      %v4971 = vpop.f32.mrf.mxu0
      %v4972 = vadd.f32 %v4579, %v4971
      %v4973 = vpop.f32.mrf.mxu0
      %v4974 = vadd.f32 %v4581, %v4973
      %v4975 = vpop.f32.mrf.mxu0
      %v4976 = vadd.f32 %v4583, %v4975
      %4977 = vmatprep.mubr.bf16.mxu0 0
      %4978 = vmatmul.mubr.bf16.gmra.mxu0 %v691
      %v4979 = vpop.f32.mrf.mxu0
      %v4980 = vadd.f32 %v4587, %v4979
      %v4981 = vpop.f32.mrf.mxu0
      %v4982 = vadd.f32 %v4589, %v4981
      %v4983 = vpop.f32.mrf.mxu0
      %v4984 = vadd.f32 %v4591, %v4983
      %v4985 = vpop.f32.mrf.mxu0
      %v4986 = vadd.f32 %v4593, %v4985
      %4987 = vmatprep.mubr.bf16.mxu0 0
      %4988 = vmatmul.mubr.bf16.gmra.mxu0 %v694
      %v4989 = vpop.f32.mrf.mxu0
      %v4990 = vadd.f32 %v4597, %v4989
      %v4991 = vpop.f32.mrf.mxu0
      %v4992 = vadd.f32 %v4599, %v4991
      %v4993 = vpop.f32.mrf.mxu0
      %v4994 = vadd.f32 %v4601, %v4993
      %v4995 = vpop.f32.mrf.mxu0
      %v4996 = vadd.f32 %v4603, %v4995
      %4997 = vmatprep.mubr.bf16.mxu0 0
      %4998 = vmatmul.mubr.bf16.gmra.mxu0 %v697
      %v4999 = vpop.f32.mrf.mxu0
      %v5000 = vadd.f32 %v4607, %v4999
      %v5001 = vpop.f32.mrf.mxu0
      %v5002 = vadd.f32 %v4609, %v5001
      %v5003 = vpop.f32.mrf.mxu0
      %v5004 = vadd.f32 %v4611, %v5003
      %v5005 = vpop.f32.mrf.mxu0
      %v5006 = vadd.f32 %v4613, %v5005
      %5007 = vmatprep.mubr.bf16.mxu0 0
      %5008 = vmatmul.mubr.bf16.gmra.mxu0 %v700
      %v5009 = vpop.f32.mrf.mxu0
      %v5010 = vadd.f32 %v4617, %v5009
      %v5011 = vpop.f32.mrf.mxu0
      %v5012 = vadd.f32 %v4619, %v5011
      %v5013 = vpop.f32.mrf.mxu0
      %v5014 = vadd.f32 %v4621, %v5013
      %v5015 = vpop.f32.mrf.mxu0
      %v5016 = vadd.f32 %v4623, %v5015
      %5017 = vmatprep.mubr.bf16.mxu0 0
      %5018 = vmatmul.mubr.bf16.gmra.mxu0 %v703
      %v5019 = vpop.f32.mrf.mxu0
      %v5020 = vadd.f32 %v4627, %v5019
      %v5021 = vpop.f32.mrf.mxu0
      %v5022 = vadd.f32 %v4629, %v5021
      %v5023 = vpop.f32.mrf.mxu0
      %v5024 = vadd.f32 %v4631, %v5023
      %v5025 = vpop.f32.mrf.mxu0
      %v5026 = vadd.f32 %v4633, %v5025
      %5027 = vmatprep.mubr.bf16.mxu0 0
      %5028 = vmatmul.mubr.bf16.gmra.mxu0 %v706
      %v5029 = vpop.f32.mrf.mxu0
      %v5030 = vadd.f32 %v4637, %v5029
      %v5031 = vpop.f32.mrf.mxu0
      %v5032 = vadd.f32 %v4639, %v5031
      %v5033 = vpop.f32.mrf.mxu0
      %v5034 = vadd.f32 %v4641, %v5033
      %v5035 = vpop.f32.mrf.mxu0
      %v5036 = vadd.f32 %v4643, %v5035
      %5037 = vmatprep.mubr.bf16.mxu0 0
      %5038 = vmatmul.mubr.bf16.gmra.mxu0 %v709
      %v5039 = vpop.f32.mrf.mxu0
      %v5040 = vadd.f32 %v4647, %v5039
      %v5041 = vpop.f32.mrf.mxu0
      %v5042 = vadd.f32 %v4649, %v5041
      %v5043 = vpop.f32.mrf.mxu0
      %v5044 = vadd.f32 %v4651, %v5043
      %v5045 = vpop.f32.mrf.mxu0
      %v5046 = vadd.f32 %v4653, %v5045
      %5047 = vmatprep.mubr.bf16.mxu0 0
      %5048 = vmatmul.mubr.bf16.gmra.mxu0 %v712
      %v5049 = vpop.f32.mrf.mxu0
      %v5050 = vadd.f32 %v4657, %v5049
      %v5051 = vpop.f32.mrf.mxu0
      %v5052 = vadd.f32 %v4659, %v5051
      %v5053 = vpop.f32.mrf.mxu0
      %v5054 = vadd.f32 %v4661, %v5053
      %v5055 = vpop.f32.mrf.mxu0
      %v5056 = vadd.f32 %v4663, %v5055
      %5057 = vmatprep.mubr.bf16.mxu0 0
      %5058 = vmatmul.mubr.bf16.gmra.mxu0 %v715
      %v5059 = vpop.f32.mrf.mxu0
      %v5060 = vadd.f32 %v4667, %v5059
      %v5061 = vpop.f32.mrf.mxu0
      %v5062 = vadd.f32 %v4669, %v5061
      %v5063 = vpop.f32.mrf.mxu0
      %v5064 = vadd.f32 %v4671, %v5063
      %v5065 = vpop.f32.mrf.mxu0
      %v5066 = vadd.f32 %v4673, %v5065
      %5067 = vmatprep.mubr.bf16.mxu0 0
      %5068 = vmatmul.mubr.bf16.gmra.mxu0 %v718
      %v5069 = vpop.f32.mrf.mxu0
      %v5070 = vadd.f32 %v4677, %v5069
      %v5071 = vpop.f32.mrf.mxu0
      %v5072 = vadd.f32 %v4679, %v5071
      %v5073 = vpop.f32.mrf.mxu0
      %v5074 = vadd.f32 %v4681, %v5073
      %v5075 = vpop.f32.mrf.mxu0
      %v5076 = vadd.f32 %v4683, %v5075
      %5077 = vmatprep.mubr.bf16.mxu0 0
      %5078 = vmatmul.mubr.bf16.gmra.mxu0 %v721
      %v5079 = vpop.f32.mrf.mxu0
      %v5080 = vadd.f32 %v4687, %v5079
      %v5081 = vpop.f32.mrf.mxu0
      %v5082 = vadd.f32 %v4689, %v5081
      %v5083 = vpop.f32.mrf.mxu0
      %v5084 = vadd.f32 %v4691, %v5083
      %v5085 = vpop.f32.mrf.mxu0
      %v5086 = vadd.f32 %v4693, %v5085
      %5087 = vmatprep.mubr.bf16.mxu0 0
      %5088 = vmatmul.mubr.bf16.gmra.mxu0 %v724
      %v5089 = vpop.f32.mrf.mxu0
      %v5090 = vadd.f32 %v4697, %v5089
      %v5091 = vpop.f32.mrf.mxu0
      %v5092 = vadd.f32 %v4699, %v5091
      %v5093 = vpop.f32.mrf.mxu0
      %v5094 = vadd.f32 %v4701, %v5093
      %v5095 = vpop.f32.mrf.mxu0
      %v5096 = vadd.f32 %v4703, %v5095
      %5097 = vmatprep.mubr.bf16.mxu0 0
      %5098 = vmatmul.mubr.bf16.gmra.mxu0 %v727
      %v5099 = vpop.f32.mrf.mxu0
      %v5100 = vadd.f32 %v4707, %v5099
      %v5101 = vpop.f32.mrf.mxu0
      %v5102 = vadd.f32 %v4709, %v5101
      %v5103 = vpop.f32.mrf.mxu0
      %v5104 = vadd.f32 %v4711, %v5103
      %v5105 = vpop.f32.mrf.mxu0
      %v5106 = vadd.f32 %v4713, %v5105
      %5107 = vmatprep.mubr.bf16.mxu0 0
      %5108 = vmatmul.mubr.bf16.gmra.mxu0 %v730
      %v5109 = vpop.f32.mrf.mxu0
      %v5110 = vadd.f32 %v4717, %v5109
      %v5111 = vpop.f32.mrf.mxu0
      %v5112 = vadd.f32 %v4719, %v5111
      %v5113 = vpop.f32.mrf.mxu0
      %v5114 = vadd.f32 %v4721, %v5113
      %v5115 = vpop.f32.mrf.mxu0
      %v5116 = vadd.f32 %v4723, %v5115
      %5117 = vmatprep.mubr.bf16.mxu0 0
      %5118 = vmatmul.mubr.bf16.gmra.mxu0 %v733
      %v5119 = vpop.f32.mrf.mxu0
      %v5120 = vadd.f32 %v4727, %v5119
      %v5121 = vpop.f32.mrf.mxu0
      %v5122 = vadd.f32 %v4729, %v5121
      %v5123 = vpop.f32.mrf.mxu0
      %v5124 = vadd.f32 %v4731, %v5123
      %v5125 = vpop.f32.mrf.mxu0
      %v5126 = vadd.f32 %v4733, %v5125
      %5127 = vmatprep.mubr.bf16.mxu0 0
      %5128 = vmatmul.mubr.bf16.gmra.mxu0 %v736
      %v5129 = vpop.f32.mrf.mxu0
      %v5130 = vadd.f32 %v4737, %v5129
      %v5131 = vpop.f32.mrf.mxu0
      %v5132 = vadd.f32 %v4739, %v5131
      %v5133 = vpop.f32.mrf.mxu0
      %v5134 = vadd.f32 %v4741, %v5133
      %v5135 = vpop.f32.mrf.mxu0
      %v5136 = vadd.f32 %v4743, %v5135
      %5137 = vmatprep.mubr.bf16.mxu0 0
      %5138 = vmatmul.mubr.bf16.gmra.mxu0 %v739
      %v5139 = vpop.f32.mrf.mxu0
      %v5140 = vadd.f32 %v4747, %v5139
      %v5141 = vpop.f32.mrf.mxu0
      %v5142 = vadd.f32 %v4749, %v5141
      %v5143 = vpop.f32.mrf.mxu0
      %v5144 = vadd.f32 %v4751, %v5143
      %v5145 = vpop.f32.mrf.mxu0
      %v5146 = vadd.f32 %v4753, %v5145
      %5147 = vmatprep.mubr.bf16.mxu0 0
      %5148 = vmatmul.mubr.bf16.gmra.mxu0 %v742
      %v5149 = vpop.f32.mrf.mxu0
      %v5150 = vadd.f32 %v4757, %v5149
      %v5151 = vpop.f32.mrf.mxu0
      %v5152 = vadd.f32 %v4759, %v5151
      %v5153 = vpop.f32.mrf.mxu0
      %v5154 = vadd.f32 %v4761, %v5153
      %v5155 = vpop.f32.mrf.mxu0
      %v5156 = vadd.f32 %v4763, %v5155
      %5157 = vmatprep.mubr.bf16.mxu0 0
      %5158 = vmatmul.mubr.bf16.gmra.mxu0 %v745
      %v5159 = vpop.f32.mrf.mxu0
      %v5160 = vadd.f32 %v4767, %v5159
      %v5161 = vpop.f32.mrf.mxu0
      %v5162 = vadd.f32 %v4769, %v5161
      %v5163 = vpop.f32.mrf.mxu0
      %v5164 = vadd.f32 %v4771, %v5163
      %v5165 = vpop.f32.mrf.mxu0
      %v5166 = vadd.f32 %v4773, %v5165
      %5167 = vmatprep.mubr.bf16.mxu0 0
      %5168 = vmatmul.mubr.bf16.gmra.mxu0 %v748
      %v5169 = vpop.f32.mrf.mxu0
      %v5170 = vadd.f32 %v4777, %v5169
      %v5171 = vpop.f32.mrf.mxu0
      %v5172 = vadd.f32 %v4779, %v5171
      %v5173 = vpop.f32.mrf.mxu0
      %v5174 = vadd.f32 %v4781, %v5173
      %v5175 = vpop.f32.mrf.mxu0
      %v5176 = vadd.f32 %v4783, %v5175
      %5177 = vmatprep.mubr.bf16.mxu0 0
      %5178 = vmatmul.mubr.bf16.gmra.mxu0 %v751
      %v5179 = vpop.f32.mrf.mxu0
      %v5180 = vadd.f32 %v4787, %v5179
      %v5181 = vpop.f32.mrf.mxu0
      %v5182 = vadd.f32 %v4789, %v5181
      %v5183 = vpop.f32.mrf.mxu0
      %v5184 = vadd.f32 %v4791, %v5183
      %v5185 = vpop.f32.mrf.mxu0
      %v5186 = vadd.f32 %v4793, %v5185
      %5187 = vmatprep.mubr.bf16.mxu0 0
      %5188 = vmatmul.mubr.bf16.gmra.mxu0 %v754
      %v5189 = vpop.f32.mrf.mxu0
      %v5190 = vadd.f32 %v4797, %v5189
      %v5191 = vpop.f32.mrf.mxu0
      %v5192 = vadd.f32 %v4799, %v5191
      %v5193 = vpop.f32.mrf.mxu0
      %v5194 = vadd.f32 %v4801, %v5193
      %v5195 = vpop.f32.mrf.mxu0
      %v5196 = vadd.f32 %v4803, %v5195
      %5197 = vmatprep.mubr.bf16.mxu0 0
      %5198 = vmatmul.mubr.bf16.gmra.mxu0 %v757
      %v5199 = vpop.f32.mrf.mxu0
      %v5200 = vadd.f32 %v4807, %v5199
      %v5201 = vpop.f32.mrf.mxu0
      %v5202 = vadd.f32 %v4809, %v5201
      %v5203 = vpop.f32.mrf.mxu0
      %v5204 = vadd.f32 %v4811, %v5203
      %v5205 = vpop.f32.mrf.mxu0
      %v5206 = vadd.f32 %v4813, %v5205
      %5207 = vmatprep.mubr.bf16.mxu0 0
      %5208 = vmatmul.mubr.bf16.gmra.mxu0 %v760
      %v5209 = vpop.f32.mrf.mxu0
      %v5210 = vadd.f32 %v4817, %v5209
      %v5211 = vpop.f32.mrf.mxu0
      %v5212 = vadd.f32 %v4819, %v5211
      %v5213 = vpop.f32.mrf.mxu0
      %v5214 = vadd.f32 %v4821, %v5213
      %v5215 = vpop.f32.mrf.mxu0
      %v5216 = vadd.f32 %v4823, %v5215
      %5217 = vmatprep.mubr.bf16.mxu0 0
      %5218 = vmatmul.mubr.bf16.gmra.mxu0 %v763
      %v5219 = vpop.f32.mrf.mxu0
      %v5220 = vadd.f32 %v4827, %v5219
      %v5221 = vpop.f32.mrf.mxu0
      %v5222 = vadd.f32 %v4829, %v5221
      %v5223 = vpop.f32.mrf.mxu0
      %v5224 = vadd.f32 %v4831, %v5223
      %v5225 = vpop.f32.mrf.mxu0
      %v5226 = vadd.f32 %v4833, %v5225
      %5227 = vmatprep.mubr.bf16.mxu0 0
      %5228 = vmatmul.mubr.bf16.gmra.mxu0 %v766
      %v5229 = vpop.f32.mrf.mxu0
      %v5230 = vadd.f32 %v4837, %v5229
      %v5231 = vpop.f32.mrf.mxu0
      %v5232 = vadd.f32 %v4839, %v5231
      %v5233 = vpop.f32.mrf.mxu0
      %v5234 = vadd.f32 %v4841, %v5233
      %v5235 = vpop.f32.mrf.mxu0
      %v5236 = vadd.f32 %v4843, %v5235
      %5237 = vmatprep.mubr.bf16.mxu0 0
      %5238 = vmatmul.mubr.bf16.gmra.mxu0 %v769
      %v5239 = vpop.f32.mrf.mxu0
      %v5240 = vadd.f32 %v4847, %v5239
      %v5241 = vpop.f32.mrf.mxu0
      %v5242 = vadd.f32 %v4849, %v5241
      %v5243 = vpop.f32.mrf.mxu0
      %v5244 = vadd.f32 %v4851, %v5243
      %v5245 = vpop.f32.mrf.mxu0
      %v5246 = vadd.f32 %v4853, %v5245
      %5247 = vmatprep.mubr.bf16.mxu0 0
      %5248 = vmatmul.mubr.bf16.gmra.mxu0 %v772
      %v5249 = vpop.f32.mrf.mxu0
      %v5250 = vadd.f32 %v4857, %v5249
      %v5251 = vpop.f32.mrf.mxu0
      %v5252 = vadd.f32 %v4859, %v5251
      %v5253 = vpop.f32.mrf.mxu0
      %v5254 = vadd.f32 %v4861, %v5253
      %v5255 = vpop.f32.mrf.mxu0
      %v5256 = vadd.f32 %v4863, %v5255
      %5257 = vmatprep.mubr.bf16.mxu0 0
      %5258 = vmatmul.mubr.bf16.gmra.mxu0 %v775
      %v5259 = vpop.f32.mrf.mxu0
      %v5260 = vadd.f32 %v4867, %v5259
      %v5261 = vpop.f32.mrf.mxu0
      %v5262 = vadd.f32 %v4869, %v5261
      %v5263 = vpop.f32.mrf.mxu0
      %v5264 = vadd.f32 %v4871, %v5263
      %v5265 = vpop.f32.mrf.mxu0
      %v5266 = vadd.f32 %v4873, %v5265
      %5267 = vdwg.mxu0
      %s5268 = scalar_lea.vmem %s3, 5
      %v5269 = vld [vmem:[%s5268] ss:$8 sm:$0x3]
      %v5271 = vlaneseq
      %v5272 = vshrl.u32 %v5271, 7
      %v5273 = vsub.s32 0, %v5272
      %v5274 = vrot.slane %v5269, %v5273
      %v5275 = vlaneseq
      %v5276 = vshrl.u32 %v5275, 7
      %v5277 = vsub.s32 1, %v5276
      %v5278 = vrot.slane %v5269, %v5277
      %v5281 = vadd.f32 %v4950, %v5274
      %v5282 = vadd.f32 %v4952, %v5278
      %v5283 = vadd.f32 %v4954, %v5274
      %v5284 = vadd.f32 %v4956, %v5278
      %v5285 = vadd.f32 %v4960, %v5274
      %v5286 = vadd.f32 %v4962, %v5278
      %v5287 = vadd.f32 %v4964, %v5274
      %v5288 = vadd.f32 %v4966, %v5278
      %v5289 = vadd.f32 %v4970, %v5274
      %v5290 = vadd.f32 %v4972, %v5278
      %v5291 = vadd.f32 %v4974, %v5274
      %v5292 = vadd.f32 %v4976, %v5278
      %v5293 = vadd.f32 %v4980, %v5274
      %v5294 = vadd.f32 %v4982, %v5278
      %v5295 = vadd.f32 %v4984, %v5274
      %v5296 = vadd.f32 %v4986, %v5278
      %v5297 = vadd.f32 %v4990, %v5274
      %v5298 = vadd.f32 %v4992, %v5278
      %v5299 = vadd.f32 %v4994, %v5274
      %v5300 = vadd.f32 %v4996, %v5278
      %v5301 = vadd.f32 %v5000, %v5274
      %v5302 = vadd.f32 %v5002, %v5278
      %v5303 = vadd.f32 %v5004, %v5274
      %v5304 = vadd.f32 %v5006, %v5278
      %v5305 = vadd.f32 %v5010, %v5274
      %v5306 = vadd.f32 %v5012, %v5278
      %v5307 = vadd.f32 %v5014, %v5274
      %v5308 = vadd.f32 %v5016, %v5278
      %v5309 = vadd.f32 %v5020, %v5274
      %v5310 = vadd.f32 %v5022, %v5278
      %v5311 = vadd.f32 %v5024, %v5274
      %v5312 = vadd.f32 %v5026, %v5278
      %v5313 = vadd.f32 %v5030, %v5274
      %v5314 = vadd.f32 %v5032, %v5278
      %v5315 = vadd.f32 %v5034, %v5274
      %v5316 = vadd.f32 %v5036, %v5278
      %v5317 = vadd.f32 %v5040, %v5274
      %v5318 = vadd.f32 %v5042, %v5278
      %v5319 = vadd.f32 %v5044, %v5274
      %v5320 = vadd.f32 %v5046, %v5278
      %v5321 = vadd.f32 %v5050, %v5274
      %v5322 = vadd.f32 %v5052, %v5278
      %v5323 = vadd.f32 %v5054, %v5274
      %v5324 = vadd.f32 %v5056, %v5278
      %v5325 = vadd.f32 %v5060, %v5274
      %v5326 = vadd.f32 %v5062, %v5278
      %v5327 = vadd.f32 %v5064, %v5274
      %v5328 = vadd.f32 %v5066, %v5278
      %v5329 = vadd.f32 %v5070, %v5274
      %v5330 = vadd.f32 %v5072, %v5278
      %v5331 = vadd.f32 %v5074, %v5274
      %v5332 = vadd.f32 %v5076, %v5278
      %v5333 = vadd.f32 %v5080, %v5274
      %v5334 = vadd.f32 %v5082, %v5278
      %v5335 = vadd.f32 %v5084, %v5274
      %v5336 = vadd.f32 %v5086, %v5278
      %v5337 = vadd.f32 %v5090, %v5274
      %v5338 = vadd.f32 %v5092, %v5278
      %v5339 = vadd.f32 %v5094, %v5274
      %v5340 = vadd.f32 %v5096, %v5278
      %v5341 = vadd.f32 %v5100, %v5274
      %v5342 = vadd.f32 %v5102, %v5278
      %v5343 = vadd.f32 %v5104, %v5274
      %v5344 = vadd.f32 %v5106, %v5278
      %v5345 = vadd.f32 %v5110, %v5274
      %v5346 = vadd.f32 %v5112, %v5278
      %v5347 = vadd.f32 %v5114, %v5274
      %v5348 = vadd.f32 %v5116, %v5278
      %v5349 = vadd.f32 %v5120, %v5274
      %v5350 = vadd.f32 %v5122, %v5278
      %v5351 = vadd.f32 %v5124, %v5274
      %v5352 = vadd.f32 %v5126, %v5278
      %v5353 = vadd.f32 %v5130, %v5274
      %v5354 = vadd.f32 %v5132, %v5278
      %v5355 = vadd.f32 %v5134, %v5274
      %v5356 = vadd.f32 %v5136, %v5278
      %v5357 = vadd.f32 %v5140, %v5274
      %v5358 = vadd.f32 %v5142, %v5278
      %v5359 = vadd.f32 %v5144, %v5274
      %v5360 = vadd.f32 %v5146, %v5278
      %v5361 = vadd.f32 %v5150, %v5274
      %v5362 = vadd.f32 %v5152, %v5278
      %v5363 = vadd.f32 %v5154, %v5274
      %v5364 = vadd.f32 %v5156, %v5278
      %v5365 = vadd.f32 %v5160, %v5274
      %v5366 = vadd.f32 %v5162, %v5278
      %v5367 = vadd.f32 %v5164, %v5274
      %v5368 = vadd.f32 %v5166, %v5278
      %v5369 = vadd.f32 %v5170, %v5274
      %v5370 = vadd.f32 %v5172, %v5278
      %v5371 = vadd.f32 %v5174, %v5274
      %v5372 = vadd.f32 %v5176, %v5278
      %v5373 = vadd.f32 %v5180, %v5274
      %v5374 = vadd.f32 %v5182, %v5278
      %v5375 = vadd.f32 %v5184, %v5274
      %v5376 = vadd.f32 %v5186, %v5278
      %v5377 = vadd.f32 %v5190, %v5274
      %v5378 = vadd.f32 %v5192, %v5278
      %v5379 = vadd.f32 %v5194, %v5274
      %v5380 = vadd.f32 %v5196, %v5278
      %v5381 = vadd.f32 %v5200, %v5274
      %v5382 = vadd.f32 %v5202, %v5278
      %v5383 = vadd.f32 %v5204, %v5274
      %v5384 = vadd.f32 %v5206, %v5278
      %v5385 = vadd.f32 %v5210, %v5274
      %v5386 = vadd.f32 %v5212, %v5278
      %v5387 = vadd.f32 %v5214, %v5274
      %v5388 = vadd.f32 %v5216, %v5278
      %v5389 = vadd.f32 %v5220, %v5274
      %v5390 = vadd.f32 %v5222, %v5278
      %v5391 = vadd.f32 %v5224, %v5274
      %v5392 = vadd.f32 %v5226, %v5278
      %v5393 = vadd.f32 %v5230, %v5274
      %v5394 = vadd.f32 %v5232, %v5278
      %v5395 = vadd.f32 %v5234, %v5274
      %v5396 = vadd.f32 %v5236, %v5278
      %v5397 = vadd.f32 %v5240, %v5274
      %v5398 = vadd.f32 %v5242, %v5278
      %v5399 = vadd.f32 %v5244, %v5274
      %v5400 = vadd.f32 %v5246, %v5278
      %v5401 = vadd.f32 %v5250, %v5274
      %v5402 = vadd.f32 %v5252, %v5278
      %v5403 = vadd.f32 %v5254, %v5274
      %v5404 = vadd.f32 %v5256, %v5278
      %v5405 = vadd.f32 %v5260, %v5274
      %v5406 = vadd.f32 %v5262, %v5278
      %v5407 = vadd.f32 %v5264, %v5274
      %v5408 = vadd.f32 %v5266, %v5278
      %v5409 = vmax.f32 %v5281, 0.0
      %v5410 = vmax.f32 %v5282, 0.0
      %v5411 = vmax.f32 %v5283, 0.0
      %v5412 = vmax.f32 %v5284, 0.0
      %v5413 = vmax.f32 %v5285, 0.0
      %v5414 = vmax.f32 %v5286, 0.0
      %v5415 = vmax.f32 %v5287, 0.0
      %v5416 = vmax.f32 %v5288, 0.0
      %v5417 = vmax.f32 %v5289, 0.0
      %v5418 = vmax.f32 %v5290, 0.0
      %v5419 = vmax.f32 %v5291, 0.0
      %v5420 = vmax.f32 %v5292, 0.0
      %v5421 = vmax.f32 %v5293, 0.0
      %v5422 = vmax.f32 %v5294, 0.0
      %v5423 = vmax.f32 %v5295, 0.0
      %v5424 = vmax.f32 %v5296, 0.0
      %v5425 = vmax.f32 %v5297, 0.0
      %v5426 = vmax.f32 %v5298, 0.0
      %v5427 = vmax.f32 %v5299, 0.0
      %v5428 = vmax.f32 %v5300, 0.0
      %v5429 = vmax.f32 %v5301, 0.0
      %v5430 = vmax.f32 %v5302, 0.0
      %v5431 = vmax.f32 %v5303, 0.0
      %v5432 = vmax.f32 %v5304, 0.0
      %v5433 = vmax.f32 %v5305, 0.0
      %v5434 = vmax.f32 %v5306, 0.0
      %v5435 = vmax.f32 %v5307, 0.0
      %v5436 = vmax.f32 %v5308, 0.0
      %v5437 = vmax.f32 %v5309, 0.0
      %v5438 = vmax.f32 %v5310, 0.0
      %v5439 = vmax.f32 %v5311, 0.0
      %v5440 = vmax.f32 %v5312, 0.0
      %v5441 = vmax.f32 %v5313, 0.0
      %v5442 = vmax.f32 %v5314, 0.0
      %v5443 = vmax.f32 %v5315, 0.0
      %v5444 = vmax.f32 %v5316, 0.0
      %v5445 = vmax.f32 %v5317, 0.0
      %v5446 = vmax.f32 %v5318, 0.0
      %v5447 = vmax.f32 %v5319, 0.0
      %v5448 = vmax.f32 %v5320, 0.0
      %v5449 = vmax.f32 %v5321, 0.0
      %v5450 = vmax.f32 %v5322, 0.0
      %v5451 = vmax.f32 %v5323, 0.0
      %v5452 = vmax.f32 %v5324, 0.0
      %v5453 = vmax.f32 %v5325, 0.0
      %v5454 = vmax.f32 %v5326, 0.0
      %v5455 = vmax.f32 %v5327, 0.0
      %v5456 = vmax.f32 %v5328, 0.0
      %v5457 = vmax.f32 %v5329, 0.0
      %v5458 = vmax.f32 %v5330, 0.0
      %v5459 = vmax.f32 %v5331, 0.0
      %v5460 = vmax.f32 %v5332, 0.0
      %v5461 = vmax.f32 %v5333, 0.0
      %v5462 = vmax.f32 %v5334, 0.0
      %v5463 = vmax.f32 %v5335, 0.0
      %v5464 = vmax.f32 %v5336, 0.0
      %v5465 = vmax.f32 %v5337, 0.0
      %v5466 = vmax.f32 %v5338, 0.0
      %v5467 = vmax.f32 %v5339, 0.0
      %v5468 = vmax.f32 %v5340, 0.0
      %v5469 = vmax.f32 %v5341, 0.0
      %v5470 = vmax.f32 %v5342, 0.0
      %v5471 = vmax.f32 %v5343, 0.0
      %v5472 = vmax.f32 %v5344, 0.0
      %v5473 = vmax.f32 %v5345, 0.0
      %v5474 = vmax.f32 %v5346, 0.0
      %v5475 = vmax.f32 %v5347, 0.0
      %v5476 = vmax.f32 %v5348, 0.0
      %v5477 = vmax.f32 %v5349, 0.0
      %v5478 = vmax.f32 %v5350, 0.0
      %v5479 = vmax.f32 %v5351, 0.0
      %v5480 = vmax.f32 %v5352, 0.0
      %v5481 = vmax.f32 %v5353, 0.0
      %v5482 = vmax.f32 %v5354, 0.0
      %v5483 = vmax.f32 %v5355, 0.0
      %v5484 = vmax.f32 %v5356, 0.0
      %v5485 = vmax.f32 %v5357, 0.0
      %v5486 = vmax.f32 %v5358, 0.0
      %v5487 = vmax.f32 %v5359, 0.0
      %v5488 = vmax.f32 %v5360, 0.0
      %v5489 = vmax.f32 %v5361, 0.0
      %v5490 = vmax.f32 %v5362, 0.0
      %v5491 = vmax.f32 %v5363, 0.0
      %v5492 = vmax.f32 %v5364, 0.0
      %v5493 = vmax.f32 %v5365, 0.0
      %v5494 = vmax.f32 %v5366, 0.0
      %v5495 = vmax.f32 %v5367, 0.0
      %v5496 = vmax.f32 %v5368, 0.0
      %v5497 = vmax.f32 %v5369, 0.0
      %v5498 = vmax.f32 %v5370, 0.0
      %v5499 = vmax.f32 %v5371, 0.0
      %v5500 = vmax.f32 %v5372, 0.0
      %v5501 = vmax.f32 %v5373, 0.0
      %v5502 = vmax.f32 %v5374, 0.0
      %v5503 = vmax.f32 %v5375, 0.0
      %v5504 = vmax.f32 %v5376, 0.0
      %v5505 = vmax.f32 %v5377, 0.0
      %v5506 = vmax.f32 %v5378, 0.0
      %v5507 = vmax.f32 %v5379, 0.0
      %v5508 = vmax.f32 %v5380, 0.0
      %v5509 = vmax.f32 %v5381, 0.0
      %v5510 = vmax.f32 %v5382, 0.0
      %v5511 = vmax.f32 %v5383, 0.0
      %v5512 = vmax.f32 %v5384, 0.0
      %v5513 = vmax.f32 %v5385, 0.0
      %v5514 = vmax.f32 %v5386, 0.0
      %v5515 = vmax.f32 %v5387, 0.0
      %v5516 = vmax.f32 %v5388, 0.0
      %v5517 = vmax.f32 %v5389, 0.0
      %v5518 = vmax.f32 %v5390, 0.0
      %v5519 = vmax.f32 %v5391, 0.0
      %v5520 = vmax.f32 %v5392, 0.0
      %v5521 = vmax.f32 %v5393, 0.0
      %v5522 = vmax.f32 %v5394, 0.0
      %v5523 = vmax.f32 %v5395, 0.0
      %v5524 = vmax.f32 %v5396, 0.0
      %v5525 = vmax.f32 %v5397, 0.0
      %v5526 = vmax.f32 %v5398, 0.0
      %v5527 = vmax.f32 %v5399, 0.0
      %v5528 = vmax.f32 %v5400, 0.0
      %v5529 = vmax.f32 %v5401, 0.0
      %v5530 = vmax.f32 %v5402, 0.0
      %v5531 = vmax.f32 %v5403, 0.0
      %v5532 = vmax.f32 %v5404, 0.0
      %v5533 = vmax.f32 %v5405, 0.0
      %v5534 = vmax.f32 %v5406, 0.0
      %v5535 = vmax.f32 %v5407, 0.0
      %v5536 = vmax.f32 %v5408, 0.0
      %v5537 = vpack.c.bf16 %v5411, %v5409
      %v5538 = vpack.c.bf16 %v5412, %v5410
      %v5539 = vpack.c.bf16 %v5415, %v5413
      %v5540 = vpack.c.bf16 %v5416, %v5414
      %v5541 = vpack.c.bf16 %v5419, %v5417
      %v5542 = vpack.c.bf16 %v5420, %v5418
      %v5543 = vpack.c.bf16 %v5423, %v5421
      %v5544 = vpack.c.bf16 %v5424, %v5422
      %v5545 = vpack.c.bf16 %v5427, %v5425
      %v5546 = vpack.c.bf16 %v5428, %v5426
      %v5547 = vpack.c.bf16 %v5431, %v5429
      %v5548 = vpack.c.bf16 %v5432, %v5430
      %v5549 = vpack.c.bf16 %v5435, %v5433
      %v5550 = vpack.c.bf16 %v5436, %v5434
      %v5551 = vpack.c.bf16 %v5439, %v5437
      %v5552 = vpack.c.bf16 %v5440, %v5438
      %v5553 = vpack.c.bf16 %v5443, %v5441
      %v5554 = vpack.c.bf16 %v5444, %v5442
      %v5555 = vpack.c.bf16 %v5447, %v5445
      %v5556 = vpack.c.bf16 %v5448, %v5446
      %v5557 = vpack.c.bf16 %v5451, %v5449
      %v5558 = vpack.c.bf16 %v5452, %v5450
      %v5559 = vpack.c.bf16 %v5455, %v5453
      %v5560 = vpack.c.bf16 %v5456, %v5454
      %v5561 = vpack.c.bf16 %v5459, %v5457
      %v5562 = vpack.c.bf16 %v5460, %v5458
      %v5563 = vpack.c.bf16 %v5463, %v5461
      %v5564 = vpack.c.bf16 %v5464, %v5462
      %v5565 = vpack.c.bf16 %v5467, %v5465
      %v5566 = vpack.c.bf16 %v5468, %v5466
      %v5567 = vpack.c.bf16 %v5471, %v5469
      %v5568 = vpack.c.bf16 %v5472, %v5470
      %v5569 = vpack.c.bf16 %v5475, %v5473
      %v5570 = vpack.c.bf16 %v5476, %v5474
      %v5571 = vpack.c.bf16 %v5479, %v5477
      %v5572 = vpack.c.bf16 %v5480, %v5478
      %v5573 = vpack.c.bf16 %v5483, %v5481
      %v5574 = vpack.c.bf16 %v5484, %v5482
      %v5575 = vpack.c.bf16 %v5487, %v5485
      %v5576 = vpack.c.bf16 %v5488, %v5486
      %v5577 = vpack.c.bf16 %v5491, %v5489
      %v5578 = vpack.c.bf16 %v5492, %v5490
      %v5579 = vpack.c.bf16 %v5495, %v5493
      %v5580 = vpack.c.bf16 %v5496, %v5494
      %v5581 = vpack.c.bf16 %v5499, %v5497
      %v5582 = vpack.c.bf16 %v5500, %v5498
      %v5583 = vpack.c.bf16 %v5503, %v5501
      %v5584 = vpack.c.bf16 %v5504, %v5502
      %v5585 = vpack.c.bf16 %v5507, %v5505
      %v5586 = vpack.c.bf16 %v5508, %v5506
      %v5587 = vpack.c.bf16 %v5511, %v5509
      %v5588 = vpack.c.bf16 %v5512, %v5510
      %v5589 = vpack.c.bf16 %v5515, %v5513
      %v5590 = vpack.c.bf16 %v5516, %v5514
      %v5591 = vpack.c.bf16 %v5519, %v5517
      %v5592 = vpack.c.bf16 %v5520, %v5518
      %v5593 = vpack.c.bf16 %v5523, %v5521
      %v5594 = vpack.c.bf16 %v5524, %v5522
      %v5595 = vpack.c.bf16 %v5527, %v5525
      %v5596 = vpack.c.bf16 %v5528, %v5526
      %v5597 = vpack.c.bf16 %v5531, %v5529
      %v5598 = vpack.c.bf16 %v5532, %v5530
      %v5599 = vpack.c.bf16 %v5535, %v5533
      %v5600 = vpack.c.bf16 %v5536, %v5534
      %v5601 = vld [vmem:[%s2 + $0x580] sm:$0xff]
      %v5602 = vld [vmem:[%s2 + $0x588] sm:$0xff]
      %v5603 = vld [vmem:[%s2 + $0x590] sm:$0xff]
      %v5604 = vld [vmem:[%s2 + $0x598] sm:$0xff]
      %v5605 = vld [vmem:[%s2 + $0x5a0] sm:$0xff]
      %v5606 = vld [vmem:[%s2 + $0x5a8] sm:$0xff]
      %v5607 = vld [vmem:[%s2 + $0x5b0] sm:$0xff]
      %v5608 = vld [vmem:[%s2 + $0x5b8] sm:$0xff]
      %v5609 = vld [vmem:[%s2 + $0x5c0] sm:$0xff]
      %v5610 = vld [vmem:[%s2 + $0x5c8] sm:$0xff]
      %v5611 = vld [vmem:[%s2 + $0x5d0] sm:$0xff]
      %v5612 = vld [vmem:[%s2 + $0x5d8] sm:$0xff]
      %v5613 = vld [vmem:[%s2 + $0x5e0] sm:$0xff]
      %v5614 = vld [vmem:[%s2 + $0x5e8] sm:$0xff]
      %v5615 = vld [vmem:[%s2 + $0x5f0] sm:$0xff]
      %v5616 = vld [vmem:[%s2 + $0x5f8] sm:$0xff]
      %v5617 = vld [vmem:[%s2 + $0x600] sm:$0xff]
      %v5618 = vld [vmem:[%s2 + $0x608] sm:$0xff]
      %v5619 = vld [vmem:[%s2 + $0x610] sm:$0xff]
      %v5620 = vld [vmem:[%s2 + $0x618] sm:$0xff]
      %v5621 = vld [vmem:[%s2 + $0x620] sm:$0xff]
      %v5622 = vld [vmem:[%s2 + $0x628] sm:$0xff]
      %v5623 = vld [vmem:[%s2 + $0x630] sm:$0xff]
      %v5624 = vld [vmem:[%s2 + $0x638] sm:$0xff]
      %v5625 = vld [vmem:[%s2 + $0x640] sm:$0xff]
      %v5626 = vld [vmem:[%s2 + $0x648] sm:$0xff]
      %v5627 = vld [vmem:[%s2 + $0x650] sm:$0xff]
      %v5628 = vld [vmem:[%s2 + $0x658] sm:$0xff]
      %v5629 = vld [vmem:[%s2 + $0x660] sm:$0xff]
      %v5630 = vld [vmem:[%s2 + $0x668] sm:$0xff]
      %v5631 = vld [vmem:[%s2 + $0x670] sm:$0xff]
      %v5632 = vld [vmem:[%s2 + $0x678] sm:$0xff]
      %s5633 = scalar_lea.vmem %s3, 6
      %v5634 = vld [vmem:[%s5633] ss:$8 sm:$0x3]
      %v5636 = vlaneseq
      %v5637 = vshrl.u32 %v5636, 7
      %v5638 = vsub.s32 0, %v5637
      %v5639 = vrot.slane %v5634, %v5638
      %v5640 = vlaneseq
      %v5641 = vshrl.u32 %v5640, 7
      %v5642 = vsub.s32 1, %v5641
      %v5643 = vrot.slane %v5634, %v5642
      %v5678 = vunpack.c.l.b16 %v5601
      %v5679 = vunpack.c.h.b16 %v5601
      %v5680 = vunpack.c.l.b16 %v5602
      %v5681 = vunpack.c.h.b16 %v5602
      %v5682 = vunpack.c.l.b16 %v5603
      %v5683 = vunpack.c.h.b16 %v5603
      %v5684 = vunpack.c.l.b16 %v5604
      %v5685 = vunpack.c.h.b16 %v5604
      %v5686 = vunpack.c.l.b16 %v5605
      %v5687 = vunpack.c.h.b16 %v5605
      %v5688 = vunpack.c.l.b16 %v5606
      %v5689 = vunpack.c.h.b16 %v5606
      %v5690 = vunpack.c.l.b16 %v5607
      %v5691 = vunpack.c.h.b16 %v5607
      %v5692 = vunpack.c.l.b16 %v5608
      %v5693 = vunpack.c.h.b16 %v5608
      %v5694 = vunpack.c.l.b16 %v5609
      %v5695 = vunpack.c.h.b16 %v5609
      %v5696 = vunpack.c.l.b16 %v5610
      %v5697 = vunpack.c.h.b16 %v5610
      %v5698 = vunpack.c.l.b16 %v5611
      %v5699 = vunpack.c.h.b16 %v5611
      %v5700 = vunpack.c.l.b16 %v5612
      %v5701 = vunpack.c.h.b16 %v5612
      %v5702 = vunpack.c.l.b16 %v5613
      %v5703 = vunpack.c.h.b16 %v5613
      %v5704 = vunpack.c.l.b16 %v5614
      %v5705 = vunpack.c.h.b16 %v5614
      %v5706 = vunpack.c.l.b16 %v5615
      %v5707 = vunpack.c.h.b16 %v5615
      %v5708 = vunpack.c.l.b16 %v5616
      %v5709 = vunpack.c.h.b16 %v5616
      %v5710 = vunpack.c.l.b16 %v5617
      %v5711 = vunpack.c.h.b16 %v5617
      %v5712 = vunpack.c.l.b16 %v5618
      %v5713 = vunpack.c.h.b16 %v5618
      %v5714 = vunpack.c.l.b16 %v5619
      %v5715 = vunpack.c.h.b16 %v5619
      %v5716 = vunpack.c.l.b16 %v5620
      %v5717 = vunpack.c.h.b16 %v5620
      %v5718 = vunpack.c.l.b16 %v5621
      %v5719 = vunpack.c.h.b16 %v5621
      %v5720 = vunpack.c.l.b16 %v5622
      %v5721 = vunpack.c.h.b16 %v5622
      %v5722 = vunpack.c.l.b16 %v5623
      %v5723 = vunpack.c.h.b16 %v5623
      %v5724 = vunpack.c.l.b16 %v5624
      %v5725 = vunpack.c.h.b16 %v5624
      %v5726 = vunpack.c.l.b16 %v5625
      %v5727 = vunpack.c.h.b16 %v5625
      %v5728 = vunpack.c.l.b16 %v5626
      %v5729 = vunpack.c.h.b16 %v5626
      %v5730 = vunpack.c.l.b16 %v5627
      %v5731 = vunpack.c.h.b16 %v5627
      %v5732 = vunpack.c.l.b16 %v5628
      %v5733 = vunpack.c.h.b16 %v5628
      %v5734 = vunpack.c.l.b16 %v5629
      %v5735 = vunpack.c.h.b16 %v5629
      %v5736 = vunpack.c.l.b16 %v5630
      %v5737 = vunpack.c.h.b16 %v5630
      %v5738 = vunpack.c.l.b16 %v5631
      %v5739 = vunpack.c.h.b16 %v5631
      %v5740 = vunpack.c.l.b16 %v5632
      %v5741 = vunpack.c.h.b16 %v5632
      %v5742 = vpack.c.b16 %v5680, %v5678
      %v5743 = vpack.c.b16 %v5681, %v5679
      %v5744 = vpack.c.b16 %v5684, %v5682
      %v5745 = vpack.c.b16 %v5685, %v5683
      %v5746 = vpack.c.b16 %v5688, %v5686
      %v5747 = vpack.c.b16 %v5689, %v5687
      %v5748 = vpack.c.b16 %v5692, %v5690
      %v5749 = vpack.c.b16 %v5693, %v5691
      %v5750 = vpack.c.b16 %v5696, %v5694
      %v5751 = vpack.c.b16 %v5697, %v5695
      %v5752 = vpack.c.b16 %v5700, %v5698
      %v5753 = vpack.c.b16 %v5701, %v5699
      %v5754 = vpack.c.b16 %v5704, %v5702
      %v5755 = vpack.c.b16 %v5705, %v5703
      %v5756 = vpack.c.b16 %v5708, %v5706
      %v5757 = vpack.c.b16 %v5709, %v5707
      %v5758 = vpack.c.b16 %v5712, %v5710
      %v5759 = vpack.c.b16 %v5713, %v5711
      %v5760 = vpack.c.b16 %v5716, %v5714
      %v5761 = vpack.c.b16 %v5717, %v5715
      %v5762 = vpack.c.b16 %v5720, %v5718
      %v5763 = vpack.c.b16 %v5721, %v5719
      %v5764 = vpack.c.b16 %v5724, %v5722
      %v5765 = vpack.c.b16 %v5725, %v5723
      %v5766 = vpack.c.b16 %v5728, %v5726
      %v5767 = vpack.c.b16 %v5729, %v5727
      %v5768 = vpack.c.b16 %v5732, %v5730
      %v5769 = vpack.c.b16 %v5733, %v5731
      %v5770 = vpack.c.b16 %v5736, %v5734
      %v5771 = vpack.c.b16 %v5737, %v5735
      %v5772 = vpack.c.b16 %v5740, %v5738
      %v5773 = vpack.c.b16 %v5741, %v5739
      %5806 = vmatprep.subr.bf16.mxu0 %v5757
      %5807 = vmatpush1.bf16.msra.mxu0 %v5756
      %5808 = vmatprep.subr.bf16.mxu0 %v5755
      %5809 = vmatpush1.bf16.msra.mxu0 %v5754
      %5810 = vmatprep.subr.bf16.mxu0 %v5753
      %5811 = vmatpush1.bf16.msra.mxu0 %v5752
      %5812 = vmatprep.subr.bf16.mxu0 %v5751
      %5813 = vmatpush1.bf16.msra.mxu0 %v5750
      %5814 = vmatprep.subr.bf16.mxu0 %v5749
      %5815 = vmatpush1.bf16.msra.mxu0 %v5748
      %5816 = vmatprep.subr.bf16.mxu0 %v5747
      %5817 = vmatpush1.bf16.msra.mxu0 %v5746
      %5818 = vmatprep.subr.bf16.mxu0 %v5745
      %5819 = vmatpush1.bf16.msra.mxu0 %v5744
      %5820 = vmatprep.subr.bf16.mxu0 %v5743
      %5821 = vmatpush1.bf16.msra.mxu0 %v5742
      %5822 = vmatprep.subr.bf16.mxu0 %v5773
      %5823 = vmatpush2.bf16.msra.mxu0 %v5772
      %5824 = vmatprep.subr.bf16.mxu0 %v5771
      %5825 = vmatpush2.bf16.msra.mxu0 %v5770
      %5826 = vmatprep.subr.bf16.mxu0 %v5769
      %5827 = vmatpush2.bf16.msra.mxu0 %v5768
      %5828 = vmatprep.subr.bf16.mxu0 %v5767
      %5829 = vmatpush2.bf16.msra.mxu0 %v5766
      %5830 = vmatprep.subr.bf16.mxu0 %v5765
      %5831 = vmatpush2.bf16.msra.mxu0 %v5764
      %5832 = vmatprep.subr.bf16.mxu0 %v5763
      %5833 = vmatpush2.bf16.msra.mxu0 %v5762
      %5834 = vmatprep.subr.bf16.mxu0 %v5761
      %5835 = vmatpush2.bf16.msra.mxu0 %v5760
      %5836 = vmatprep.subr.bf16.mxu0 %v5759
      %5837 = vmatpush2.bf16.msra.mxu0 %v5758
      %5838 = vmatprep.mubr.bf16.mxu0 %v5538
      %5839 = vmatmul.mubr.bf16.gmra.mxu0 %v5537
      %v5840 = vpop.f32.mrf.mxu0
      %v5841 = vadd.f32 %v5639, %v5840
      %v5842 = vpop.f32.mrf.mxu0
      %v5843 = vadd.f32 %v5643, %v5842
      %v5844 = vpop.f32.mrf.mxu0
      %v5845 = vadd.f32 %v5639, %v5844
      %v5846 = vpop.f32.mrf.mxu0
      %v5847 = vadd.f32 %v5643, %v5846
      %5848 = vmatprep.mubr.bf16.mxu0 %v5540
      %5849 = vmatmul.mubr.bf16.gmra.mxu0 %v5539
      %v5850 = vpop.f32.mrf.mxu0
      %v5851 = vadd.f32 %v5639, %v5850
      %v5852 = vpop.f32.mrf.mxu0
      %v5853 = vadd.f32 %v5643, %v5852
      %v5854 = vpop.f32.mrf.mxu0
      %v5855 = vadd.f32 %v5639, %v5854
      %v5856 = vpop.f32.mrf.mxu0
      %v5857 = vadd.f32 %v5643, %v5856
      %5858 = vmatprep.mubr.bf16.mxu0 %v5542
      %5859 = vmatmul.mubr.bf16.gmra.mxu0 %v5541
      %v5860 = vpop.f32.mrf.mxu0
      %v5861 = vadd.f32 %v5639, %v5860
      %v5862 = vpop.f32.mrf.mxu0
      %v5863 = vadd.f32 %v5643, %v5862
      %v5864 = vpop.f32.mrf.mxu0
      %v5865 = vadd.f32 %v5639, %v5864
      %v5866 = vpop.f32.mrf.mxu0
      %v5867 = vadd.f32 %v5643, %v5866
      %5868 = vmatprep.mubr.bf16.mxu0 %v5544
      %5869 = vmatmul.mubr.bf16.gmra.mxu0 %v5543
      %v5870 = vpop.f32.mrf.mxu0
      %v5871 = vadd.f32 %v5639, %v5870
      %v5872 = vpop.f32.mrf.mxu0
      %v5873 = vadd.f32 %v5643, %v5872
      %v5874 = vpop.f32.mrf.mxu0
      %v5875 = vadd.f32 %v5639, %v5874
      %v5876 = vpop.f32.mrf.mxu0
      %v5877 = vadd.f32 %v5643, %v5876
      %5878 = vmatprep.mubr.bf16.mxu0 %v5546
      %5879 = vmatmul.mubr.bf16.gmra.mxu0 %v5545
      %v5880 = vpop.f32.mrf.mxu0
      %v5881 = vadd.f32 %v5639, %v5880
      %v5882 = vpop.f32.mrf.mxu0
      %v5883 = vadd.f32 %v5643, %v5882
      %v5884 = vpop.f32.mrf.mxu0
      %v5885 = vadd.f32 %v5639, %v5884
      %v5886 = vpop.f32.mrf.mxu0
      %v5887 = vadd.f32 %v5643, %v5886
      %5888 = vmatprep.mubr.bf16.mxu0 %v5548
      %5889 = vmatmul.mubr.bf16.gmra.mxu0 %v5547
      %v5890 = vpop.f32.mrf.mxu0
      %v5891 = vadd.f32 %v5639, %v5890
      %v5892 = vpop.f32.mrf.mxu0
      %v5893 = vadd.f32 %v5643, %v5892
      %v5894 = vpop.f32.mrf.mxu0
      %v5895 = vadd.f32 %v5639, %v5894
      %v5896 = vpop.f32.mrf.mxu0
      %v5897 = vadd.f32 %v5643, %v5896
      %5898 = vmatprep.mubr.bf16.mxu0 %v5550
      %5899 = vmatmul.mubr.bf16.gmra.mxu0 %v5549
      %v5900 = vpop.f32.mrf.mxu0
      %v5901 = vadd.f32 %v5639, %v5900
      %v5902 = vpop.f32.mrf.mxu0
      %v5903 = vadd.f32 %v5643, %v5902
      %v5904 = vpop.f32.mrf.mxu0
      %v5905 = vadd.f32 %v5639, %v5904
      %v5906 = vpop.f32.mrf.mxu0
      %v5907 = vadd.f32 %v5643, %v5906
      %5908 = vmatprep.mubr.bf16.mxu0 %v5552
      %5909 = vmatmul.mubr.bf16.gmra.mxu0 %v5551
      %v5910 = vpop.f32.mrf.mxu0
      %v5911 = vadd.f32 %v5639, %v5910
      %v5912 = vpop.f32.mrf.mxu0
      %v5913 = vadd.f32 %v5643, %v5912
      %v5914 = vpop.f32.mrf.mxu0
      %v5915 = vadd.f32 %v5639, %v5914
      %v5916 = vpop.f32.mrf.mxu0
      %v5917 = vadd.f32 %v5643, %v5916
      %5918 = vmatprep.mubr.bf16.mxu0 %v5554
      %5919 = vmatmul.mubr.bf16.gmra.mxu0 %v5553
      %v5920 = vpop.f32.mrf.mxu0
      %v5921 = vadd.f32 %v5639, %v5920
      %v5922 = vpop.f32.mrf.mxu0
      %v5923 = vadd.f32 %v5643, %v5922
      %v5924 = vpop.f32.mrf.mxu0
      %v5925 = vadd.f32 %v5639, %v5924
      %v5926 = vpop.f32.mrf.mxu0
      %v5927 = vadd.f32 %v5643, %v5926
      %5928 = vmatprep.mubr.bf16.mxu0 %v5556
      %5929 = vmatmul.mubr.bf16.gmra.mxu0 %v5555
      %v5930 = vpop.f32.mrf.mxu0
      %v5931 = vadd.f32 %v5639, %v5930
      %v5932 = vpop.f32.mrf.mxu0
      %v5933 = vadd.f32 %v5643, %v5932
      %v5934 = vpop.f32.mrf.mxu0
      %v5935 = vadd.f32 %v5639, %v5934
      %v5936 = vpop.f32.mrf.mxu0
      %v5937 = vadd.f32 %v5643, %v5936
      %5938 = vmatprep.mubr.bf16.mxu0 %v5558
      %5939 = vmatmul.mubr.bf16.gmra.mxu0 %v5557
      %v5940 = vpop.f32.mrf.mxu0
      %v5941 = vadd.f32 %v5639, %v5940
      %v5942 = vpop.f32.mrf.mxu0
      %v5943 = vadd.f32 %v5643, %v5942
      %v5944 = vpop.f32.mrf.mxu0
      %v5945 = vadd.f32 %v5639, %v5944
      %v5946 = vpop.f32.mrf.mxu0
      %v5947 = vadd.f32 %v5643, %v5946
      %5948 = vmatprep.mubr.bf16.mxu0 %v5560
      %5949 = vmatmul.mubr.bf16.gmra.mxu0 %v5559
      %v5950 = vpop.f32.mrf.mxu0
      %v5951 = vadd.f32 %v5639, %v5950
      %v5952 = vpop.f32.mrf.mxu0
      %v5953 = vadd.f32 %v5643, %v5952
      %v5954 = vpop.f32.mrf.mxu0
      %v5955 = vadd.f32 %v5639, %v5954
      %v5956 = vpop.f32.mrf.mxu0
      %v5957 = vadd.f32 %v5643, %v5956
      %5958 = vmatprep.mubr.bf16.mxu0 %v5562
      %5959 = vmatmul.mubr.bf16.gmra.mxu0 %v5561
      %v5960 = vpop.f32.mrf.mxu0
      %v5961 = vadd.f32 %v5639, %v5960
      %v5962 = vpop.f32.mrf.mxu0
      %v5963 = vadd.f32 %v5643, %v5962
      %v5964 = vpop.f32.mrf.mxu0
      %v5965 = vadd.f32 %v5639, %v5964
      %v5966 = vpop.f32.mrf.mxu0
      %v5967 = vadd.f32 %v5643, %v5966
      %5968 = vmatprep.mubr.bf16.mxu0 %v5564
      %5969 = vmatmul.mubr.bf16.gmra.mxu0 %v5563
      %v5970 = vpop.f32.mrf.mxu0
      %v5971 = vadd.f32 %v5639, %v5970
      %v5972 = vpop.f32.mrf.mxu0
      %v5973 = vadd.f32 %v5643, %v5972
      %v5974 = vpop.f32.mrf.mxu0
      %v5975 = vadd.f32 %v5639, %v5974
      %v5976 = vpop.f32.mrf.mxu0
      %v5977 = vadd.f32 %v5643, %v5976
      %5978 = vmatprep.mubr.bf16.mxu0 %v5566
      %5979 = vmatmul.mubr.bf16.gmra.mxu0 %v5565
      %v5980 = vpop.f32.mrf.mxu0
      %v5981 = vadd.f32 %v5639, %v5980
      %v5982 = vpop.f32.mrf.mxu0
      %v5983 = vadd.f32 %v5643, %v5982
      %v5984 = vpop.f32.mrf.mxu0
      %v5985 = vadd.f32 %v5639, %v5984
      %v5986 = vpop.f32.mrf.mxu0
      %v5987 = vadd.f32 %v5643, %v5986
      %5988 = vmatprep.mubr.bf16.mxu0 %v5568
      %5989 = vmatmul.mubr.bf16.gmra.mxu0 %v5567
      %v5990 = vpop.f32.mrf.mxu0
      %v5991 = vadd.f32 %v5639, %v5990
      %v5992 = vpop.f32.mrf.mxu0
      %v5993 = vadd.f32 %v5643, %v5992
      %v5994 = vpop.f32.mrf.mxu0
      %v5995 = vadd.f32 %v5639, %v5994
      %v5996 = vpop.f32.mrf.mxu0
      %v5997 = vadd.f32 %v5643, %v5996
      %5998 = vmatprep.mubr.bf16.mxu0 %v5570
      %5999 = vmatmul.mubr.bf16.gmra.mxu0 %v5569
      %v6000 = vpop.f32.mrf.mxu0
      %v6001 = vadd.f32 %v5639, %v6000
      %v6002 = vpop.f32.mrf.mxu0
      %v6003 = vadd.f32 %v5643, %v6002
      %v6004 = vpop.f32.mrf.mxu0
      %v6005 = vadd.f32 %v5639, %v6004
      %v6006 = vpop.f32.mrf.mxu0
      %v6007 = vadd.f32 %v5643, %v6006
      %6008 = vmatprep.mubr.bf16.mxu0 %v5572
      %6009 = vmatmul.mubr.bf16.gmra.mxu0 %v5571
      %v6010 = vpop.f32.mrf.mxu0
      %v6011 = vadd.f32 %v5639, %v6010
      %v6012 = vpop.f32.mrf.mxu0
      %v6013 = vadd.f32 %v5643, %v6012
      %v6014 = vpop.f32.mrf.mxu0
      %v6015 = vadd.f32 %v5639, %v6014
      %v6016 = vpop.f32.mrf.mxu0
      %v6017 = vadd.f32 %v5643, %v6016
      %6018 = vmatprep.mubr.bf16.mxu0 %v5574
      %6019 = vmatmul.mubr.bf16.gmra.mxu0 %v5573
      %v6020 = vpop.f32.mrf.mxu0
      %v6021 = vadd.f32 %v5639, %v6020
      %v6022 = vpop.f32.mrf.mxu0
      %v6023 = vadd.f32 %v5643, %v6022
      %v6024 = vpop.f32.mrf.mxu0
      %v6025 = vadd.f32 %v5639, %v6024
      %v6026 = vpop.f32.mrf.mxu0
      %v6027 = vadd.f32 %v5643, %v6026
      %6028 = vmatprep.mubr.bf16.mxu0 %v5576
      %6029 = vmatmul.mubr.bf16.gmra.mxu0 %v5575
      %v6030 = vpop.f32.mrf.mxu0
      %v6031 = vadd.f32 %v5639, %v6030
      %v6032 = vpop.f32.mrf.mxu0
      %v6033 = vadd.f32 %v5643, %v6032
      %v6034 = vpop.f32.mrf.mxu0
      %v6035 = vadd.f32 %v5639, %v6034
      %v6036 = vpop.f32.mrf.mxu0
      %v6037 = vadd.f32 %v5643, %v6036
      %6038 = vmatprep.mubr.bf16.mxu0 %v5578
      %6039 = vmatmul.mubr.bf16.gmra.mxu0 %v5577
      %v6040 = vpop.f32.mrf.mxu0
      %v6041 = vadd.f32 %v5639, %v6040
      %v6042 = vpop.f32.mrf.mxu0
      %v6043 = vadd.f32 %v5643, %v6042
      %v6044 = vpop.f32.mrf.mxu0
      %v6045 = vadd.f32 %v5639, %v6044
      %v6046 = vpop.f32.mrf.mxu0
      %v6047 = vadd.f32 %v5643, %v6046
      %6048 = vmatprep.mubr.bf16.mxu0 %v5580
      %6049 = vmatmul.mubr.bf16.gmra.mxu0 %v5579
      %v6050 = vpop.f32.mrf.mxu0
      %v6051 = vadd.f32 %v5639, %v6050
      %v6052 = vpop.f32.mrf.mxu0
      %v6053 = vadd.f32 %v5643, %v6052
      %v6054 = vpop.f32.mrf.mxu0
      %v6055 = vadd.f32 %v5639, %v6054
      %v6056 = vpop.f32.mrf.mxu0
      %v6057 = vadd.f32 %v5643, %v6056
      %6058 = vmatprep.mubr.bf16.mxu0 %v5582
      %6059 = vmatmul.mubr.bf16.gmra.mxu0 %v5581
      %v6060 = vpop.f32.mrf.mxu0
      %v6061 = vadd.f32 %v5639, %v6060
      %v6062 = vpop.f32.mrf.mxu0
      %v6063 = vadd.f32 %v5643, %v6062
      %v6064 = vpop.f32.mrf.mxu0
      %v6065 = vadd.f32 %v5639, %v6064
      %v6066 = vpop.f32.mrf.mxu0
      %v6067 = vadd.f32 %v5643, %v6066
      %6068 = vmatprep.mubr.bf16.mxu0 %v5584
      %6069 = vmatmul.mubr.bf16.gmra.mxu0 %v5583
      %v6070 = vpop.f32.mrf.mxu0
      %v6071 = vadd.f32 %v5639, %v6070
      %v6072 = vpop.f32.mrf.mxu0
      %v6073 = vadd.f32 %v5643, %v6072
      %v6074 = vpop.f32.mrf.mxu0
      %v6075 = vadd.f32 %v5639, %v6074
      %v6076 = vpop.f32.mrf.mxu0
      %v6077 = vadd.f32 %v5643, %v6076
      %6078 = vmatprep.mubr.bf16.mxu0 %v5586
      %6079 = vmatmul.mubr.bf16.gmra.mxu0 %v5585
      %v6080 = vpop.f32.mrf.mxu0
      %v6081 = vadd.f32 %v5639, %v6080
      %v6082 = vpop.f32.mrf.mxu0
      %v6083 = vadd.f32 %v5643, %v6082
      %v6084 = vpop.f32.mrf.mxu0
      %v6085 = vadd.f32 %v5639, %v6084
      %v6086 = vpop.f32.mrf.mxu0
      %v6087 = vadd.f32 %v5643, %v6086
      %6088 = vmatprep.mubr.bf16.mxu0 %v5588
      %6089 = vmatmul.mubr.bf16.gmra.mxu0 %v5587
      %v6090 = vpop.f32.mrf.mxu0
      %v6091 = vadd.f32 %v5639, %v6090
      %v6092 = vpop.f32.mrf.mxu0
      %v6093 = vadd.f32 %v5643, %v6092
      %v6094 = vpop.f32.mrf.mxu0
      %v6095 = vadd.f32 %v5639, %v6094
      %v6096 = vpop.f32.mrf.mxu0
      %v6097 = vadd.f32 %v5643, %v6096
      %6098 = vmatprep.mubr.bf16.mxu0 %v5590
      %6099 = vmatmul.mubr.bf16.gmra.mxu0 %v5589
      %v6100 = vpop.f32.mrf.mxu0
      %v6101 = vadd.f32 %v5639, %v6100
      %v6102 = vpop.f32.mrf.mxu0
      %v6103 = vadd.f32 %v5643, %v6102
      %v6104 = vpop.f32.mrf.mxu0
      %v6105 = vadd.f32 %v5639, %v6104
      %v6106 = vpop.f32.mrf.mxu0
      %v6107 = vadd.f32 %v5643, %v6106
      %6108 = vmatprep.mubr.bf16.mxu0 %v5592
      %6109 = vmatmul.mubr.bf16.gmra.mxu0 %v5591
      %v6110 = vpop.f32.mrf.mxu0
      %v6111 = vadd.f32 %v5639, %v6110
      %v6112 = vpop.f32.mrf.mxu0
      %v6113 = vadd.f32 %v5643, %v6112
      %v6114 = vpop.f32.mrf.mxu0
      %v6115 = vadd.f32 %v5639, %v6114
      %v6116 = vpop.f32.mrf.mxu0
      %v6117 = vadd.f32 %v5643, %v6116
      %6118 = vmatprep.mubr.bf16.mxu0 %v5594
      %6119 = vmatmul.mubr.bf16.gmra.mxu0 %v5593
      %v6120 = vpop.f32.mrf.mxu0
      %v6121 = vadd.f32 %v5639, %v6120
      %v6122 = vpop.f32.mrf.mxu0
      %v6123 = vadd.f32 %v5643, %v6122
      %v6124 = vpop.f32.mrf.mxu0
      %v6125 = vadd.f32 %v5639, %v6124
      %v6126 = vpop.f32.mrf.mxu0
      %v6127 = vadd.f32 %v5643, %v6126
      %6128 = vmatprep.mubr.bf16.mxu0 %v5596
      %6129 = vmatmul.mubr.bf16.gmra.mxu0 %v5595
      %v6130 = vpop.f32.mrf.mxu0
      %v6131 = vadd.f32 %v5639, %v6130
      %v6132 = vpop.f32.mrf.mxu0
      %v6133 = vadd.f32 %v5643, %v6132
      %v6134 = vpop.f32.mrf.mxu0
      %v6135 = vadd.f32 %v5639, %v6134
      %v6136 = vpop.f32.mrf.mxu0
      %v6137 = vadd.f32 %v5643, %v6136
      %6138 = vmatprep.mubr.bf16.mxu0 %v5598
      %6139 = vmatmul.mubr.bf16.gmra.mxu0 %v5597
      %v6140 = vpop.f32.mrf.mxu0
      %v6141 = vadd.f32 %v5639, %v6140
      %v6142 = vpop.f32.mrf.mxu0
      %v6143 = vadd.f32 %v5643, %v6142
      %v6144 = vpop.f32.mrf.mxu0
      %v6145 = vadd.f32 %v5639, %v6144
      %v6146 = vpop.f32.mrf.mxu0
      %v6147 = vadd.f32 %v5643, %v6146
      %6148 = vmatprep.mubr.bf16.mxu0 %v5600
      %6149 = vmatmul.mubr.bf16.gmra.mxu0 %v5599
      %v6150 = vpop.f32.mrf.mxu0
      %v6151 = vadd.f32 %v5639, %v6150
      %v6152 = vpop.f32.mrf.mxu0
      %v6153 = vadd.f32 %v5643, %v6152
      %v6154 = vpop.f32.mrf.mxu0
      %v6155 = vadd.f32 %v5639, %v6154
      %v6156 = vpop.f32.mrf.mxu0
      %v6157 = vadd.f32 %v5643, %v6156
      %6158 = vdwg.mxu0
      %v6159 = vmax.f32 %v5841, 0.0
      %v6160 = vmax.f32 %v5843, 0.0
      %v6161 = vmax.f32 %v5845, 0.0
      %v6162 = vmax.f32 %v5847, 0.0
      %v6163 = vmax.f32 %v5851, 0.0
      %v6164 = vmax.f32 %v5853, 0.0
      %v6165 = vmax.f32 %v5855, 0.0
      %v6166 = vmax.f32 %v5857, 0.0
      %v6167 = vmax.f32 %v5861, 0.0
      %v6168 = vmax.f32 %v5863, 0.0
      %v6169 = vmax.f32 %v5865, 0.0
      %v6170 = vmax.f32 %v5867, 0.0
      %v6171 = vmax.f32 %v5871, 0.0
      %v6172 = vmax.f32 %v5873, 0.0
      %v6173 = vmax.f32 %v5875, 0.0
      %v6174 = vmax.f32 %v5877, 0.0
      %v6175 = vmax.f32 %v5881, 0.0
      %v6176 = vmax.f32 %v5883, 0.0
      %v6177 = vmax.f32 %v5885, 0.0
      %v6178 = vmax.f32 %v5887, 0.0
      %v6179 = vmax.f32 %v5891, 0.0
      %v6180 = vmax.f32 %v5893, 0.0
      %v6181 = vmax.f32 %v5895, 0.0
      %v6182 = vmax.f32 %v5897, 0.0
      %v6183 = vmax.f32 %v5901, 0.0
      %v6184 = vmax.f32 %v5903, 0.0
      %v6185 = vmax.f32 %v5905, 0.0
      %v6186 = vmax.f32 %v5907, 0.0
      %v6187 = vmax.f32 %v5911, 0.0
      %v6188 = vmax.f32 %v5913, 0.0
      %v6189 = vmax.f32 %v5915, 0.0
      %v6190 = vmax.f32 %v5917, 0.0
      %v6191 = vmax.f32 %v5921, 0.0
      %v6192 = vmax.f32 %v5923, 0.0
      %v6193 = vmax.f32 %v5925, 0.0
      %v6194 = vmax.f32 %v5927, 0.0
      %v6195 = vmax.f32 %v5931, 0.0
      %v6196 = vmax.f32 %v5933, 0.0
      %v6197 = vmax.f32 %v5935, 0.0
      %v6198 = vmax.f32 %v5937, 0.0
      %v6199 = vmax.f32 %v5941, 0.0
      %v6200 = vmax.f32 %v5943, 0.0
      %v6201 = vmax.f32 %v5945, 0.0
      %v6202 = vmax.f32 %v5947, 0.0
      %v6203 = vmax.f32 %v5951, 0.0
      %v6204 = vmax.f32 %v5953, 0.0
      %v6205 = vmax.f32 %v5955, 0.0
      %v6206 = vmax.f32 %v5957, 0.0
      %v6207 = vmax.f32 %v5961, 0.0
      %v6208 = vmax.f32 %v5963, 0.0
      %v6209 = vmax.f32 %v5965, 0.0
      %v6210 = vmax.f32 %v5967, 0.0
      %v6211 = vmax.f32 %v5971, 0.0
      %v6212 = vmax.f32 %v5973, 0.0
      %v6213 = vmax.f32 %v5975, 0.0
      %v6214 = vmax.f32 %v5977, 0.0
      %v6215 = vmax.f32 %v5981, 0.0
      %v6216 = vmax.f32 %v5983, 0.0
      %v6217 = vmax.f32 %v5985, 0.0
      %v6218 = vmax.f32 %v5987, 0.0
      %v6219 = vmax.f32 %v5991, 0.0
      %v6220 = vmax.f32 %v5993, 0.0
      %v6221 = vmax.f32 %v5995, 0.0
      %v6222 = vmax.f32 %v5997, 0.0
      %v6223 = vmax.f32 %v6001, 0.0
      %v6224 = vmax.f32 %v6003, 0.0
      %v6225 = vmax.f32 %v6005, 0.0
      %v6226 = vmax.f32 %v6007, 0.0
      %v6227 = vmax.f32 %v6011, 0.0
      %v6228 = vmax.f32 %v6013, 0.0
      %v6229 = vmax.f32 %v6015, 0.0
      %v6230 = vmax.f32 %v6017, 0.0
      %v6231 = vmax.f32 %v6021, 0.0
      %v6232 = vmax.f32 %v6023, 0.0
      %v6233 = vmax.f32 %v6025, 0.0
      %v6234 = vmax.f32 %v6027, 0.0
      %v6235 = vmax.f32 %v6031, 0.0
      %v6236 = vmax.f32 %v6033, 0.0
      %v6237 = vmax.f32 %v6035, 0.0
      %v6238 = vmax.f32 %v6037, 0.0
      %v6239 = vmax.f32 %v6041, 0.0
      %v6240 = vmax.f32 %v6043, 0.0
      %v6241 = vmax.f32 %v6045, 0.0
      %v6242 = vmax.f32 %v6047, 0.0
      %v6243 = vmax.f32 %v6051, 0.0
      %v6244 = vmax.f32 %v6053, 0.0
      %v6245 = vmax.f32 %v6055, 0.0
      %v6246 = vmax.f32 %v6057, 0.0
      %v6247 = vmax.f32 %v6061, 0.0
      %v6248 = vmax.f32 %v6063, 0.0
      %v6249 = vmax.f32 %v6065, 0.0
      %v6250 = vmax.f32 %v6067, 0.0
      %v6251 = vmax.f32 %v6071, 0.0
      %v6252 = vmax.f32 %v6073, 0.0
      %v6253 = vmax.f32 %v6075, 0.0
      %v6254 = vmax.f32 %v6077, 0.0
      %v6255 = vmax.f32 %v6081, 0.0
      %v6256 = vmax.f32 %v6083, 0.0
      %v6257 = vmax.f32 %v6085, 0.0
      %v6258 = vmax.f32 %v6087, 0.0
      %v6259 = vmax.f32 %v6091, 0.0
      %v6260 = vmax.f32 %v6093, 0.0
      %v6261 = vmax.f32 %v6095, 0.0
      %v6262 = vmax.f32 %v6097, 0.0
      %v6263 = vmax.f32 %v6101, 0.0
      %v6264 = vmax.f32 %v6103, 0.0
      %v6265 = vmax.f32 %v6105, 0.0
      %v6266 = vmax.f32 %v6107, 0.0
      %v6267 = vmax.f32 %v6111, 0.0
      %v6268 = vmax.f32 %v6113, 0.0
      %v6269 = vmax.f32 %v6115, 0.0
      %v6270 = vmax.f32 %v6117, 0.0
      %v6271 = vmax.f32 %v6121, 0.0
      %v6272 = vmax.f32 %v6123, 0.0
      %v6273 = vmax.f32 %v6125, 0.0
      %v6274 = vmax.f32 %v6127, 0.0
      %v6275 = vmax.f32 %v6131, 0.0
      %v6276 = vmax.f32 %v6133, 0.0
      %v6277 = vmax.f32 %v6135, 0.0
      %v6278 = vmax.f32 %v6137, 0.0
      %v6279 = vmax.f32 %v6141, 0.0
      %v6280 = vmax.f32 %v6143, 0.0
      %v6281 = vmax.f32 %v6145, 0.0
      %v6282 = vmax.f32 %v6147, 0.0
      %v6283 = vmax.f32 %v6151, 0.0
      %v6284 = vmax.f32 %v6153, 0.0
      %v6285 = vmax.f32 %v6155, 0.0
      %v6286 = vmax.f32 %v6157, 0.0
      %v6287 = vpack.c.bf16 %v6161, %v6159
      %v6288 = vpack.c.bf16 %v6162, %v6160
      %v6289 = vpack.c.bf16 %v6165, %v6163
      %v6290 = vpack.c.bf16 %v6166, %v6164
      %v6291 = vpack.c.bf16 %v6169, %v6167
      %v6292 = vpack.c.bf16 %v6170, %v6168
      %v6293 = vpack.c.bf16 %v6173, %v6171
      %v6294 = vpack.c.bf16 %v6174, %v6172
      %v6295 = vpack.c.bf16 %v6177, %v6175
      %v6296 = vpack.c.bf16 %v6178, %v6176
      %v6297 = vpack.c.bf16 %v6181, %v6179
      %v6298 = vpack.c.bf16 %v6182, %v6180
      %v6299 = vpack.c.bf16 %v6185, %v6183
      %v6300 = vpack.c.bf16 %v6186, %v6184
      %v6301 = vpack.c.bf16 %v6189, %v6187
      %v6302 = vpack.c.bf16 %v6190, %v6188
      %v6303 = vpack.c.bf16 %v6193, %v6191
      %v6304 = vpack.c.bf16 %v6194, %v6192
      %v6305 = vpack.c.bf16 %v6197, %v6195
      %v6306 = vpack.c.bf16 %v6198, %v6196
      %v6307 = vpack.c.bf16 %v6201, %v6199
      %v6308 = vpack.c.bf16 %v6202, %v6200
      %v6309 = vpack.c.bf16 %v6205, %v6203
      %v6310 = vpack.c.bf16 %v6206, %v6204
      %v6311 = vpack.c.bf16 %v6209, %v6207
      %v6312 = vpack.c.bf16 %v6210, %v6208
      %v6313 = vpack.c.bf16 %v6213, %v6211
      %v6314 = vpack.c.bf16 %v6214, %v6212
      %v6315 = vpack.c.bf16 %v6217, %v6215
      %v6316 = vpack.c.bf16 %v6218, %v6216
      %v6317 = vpack.c.bf16 %v6221, %v6219
      %v6318 = vpack.c.bf16 %v6222, %v6220
      %v6319 = vpack.c.bf16 %v6225, %v6223
      %v6320 = vpack.c.bf16 %v6226, %v6224
      %v6321 = vpack.c.bf16 %v6229, %v6227
      %v6322 = vpack.c.bf16 %v6230, %v6228
      %v6323 = vpack.c.bf16 %v6233, %v6231
      %v6324 = vpack.c.bf16 %v6234, %v6232
      %v6325 = vpack.c.bf16 %v6237, %v6235
      %v6326 = vpack.c.bf16 %v6238, %v6236
      %v6327 = vpack.c.bf16 %v6241, %v6239
      %v6328 = vpack.c.bf16 %v6242, %v6240
      %v6329 = vpack.c.bf16 %v6245, %v6243
      %v6330 = vpack.c.bf16 %v6246, %v6244
      %v6331 = vpack.c.bf16 %v6249, %v6247
      %v6332 = vpack.c.bf16 %v6250, %v6248
      %v6333 = vpack.c.bf16 %v6253, %v6251
      %v6334 = vpack.c.bf16 %v6254, %v6252
      %v6335 = vpack.c.bf16 %v6257, %v6255
      %v6336 = vpack.c.bf16 %v6258, %v6256
      %v6337 = vpack.c.bf16 %v6261, %v6259
      %v6338 = vpack.c.bf16 %v6262, %v6260
      %v6339 = vpack.c.bf16 %v6265, %v6263
      %v6340 = vpack.c.bf16 %v6266, %v6264
      %v6341 = vpack.c.bf16 %v6269, %v6267
      %v6342 = vpack.c.bf16 %v6270, %v6268
      %v6343 = vpack.c.bf16 %v6273, %v6271
      %v6344 = vpack.c.bf16 %v6274, %v6272
      %v6345 = vpack.c.bf16 %v6277, %v6275
      %v6346 = vpack.c.bf16 %v6278, %v6276
      %v6347 = vpack.c.bf16 %v6281, %v6279
      %v6348 = vpack.c.bf16 %v6282, %v6280
      %v6349 = vpack.c.bf16 %v6285, %v6283
      %v6350 = vpack.c.bf16 %v6286, %v6284
      %v6351 = vld [vmem:[%s2 + $0x680] sm:$0xff]
      %v6352 = vld [vmem:[%s2 + $0x688] sm:$0xff]
      %v6353 = vld [vmem:[%s2 + $0x690] sm:$0xff]
      %v6354 = vld [vmem:[%s2 + $0x698] sm:$0xff]
      %v6355 = vld [vmem:[%s2 + $0x6a0] sm:$0xff]
      %v6356 = vld [vmem:[%s2 + $0x6a8] sm:$0xff]
      %v6357 = vld [vmem:[%s2 + $0x6b0] sm:$0xff]
      %v6358 = vld [vmem:[%s2 + $0x6b8] sm:$0xff]
      %v6359 = vld [vmem:[%s2 + $0x6c0] sm:$0xff]
      %v6360 = vld [vmem:[%s2 + $0x6c8] sm:$0xff]
      %v6361 = vld [vmem:[%s2 + $0x6d0] sm:$0xff]
      %v6362 = vld [vmem:[%s2 + $0x6d8] sm:$0xff]
      %v6363 = vld [vmem:[%s2 + $0x6e0] sm:$0xff]
      %v6364 = vld [vmem:[%s2 + $0x6e8] sm:$0xff]
      %v6365 = vld [vmem:[%s2 + $0x6f0] sm:$0xff]
      %v6366 = vld [vmem:[%s2 + $0x6f8] sm:$0xff]
      %v6367 = vld [vmem:[%s2 + $0x700] sm:$0xff]
      %v6368 = vld [vmem:[%s2 + $0x708] sm:$0xff]
      %v6369 = vld [vmem:[%s2 + $0x710] sm:$0xff]
      %v6370 = vld [vmem:[%s2 + $0x718] sm:$0xff]
      %v6371 = vld [vmem:[%s2 + $0x720] sm:$0xff]
      %v6372 = vld [vmem:[%s2 + $0x728] sm:$0xff]
      %v6373 = vld [vmem:[%s2 + $0x730] sm:$0xff]
      %v6374 = vld [vmem:[%s2 + $0x738] sm:$0xff]
      %v6375 = vld [vmem:[%s2 + $0x740] sm:$0xff]
      %v6376 = vld [vmem:[%s2 + $0x748] sm:$0xff]
      %v6377 = vld [vmem:[%s2 + $0x750] sm:$0xff]
      %v6378 = vld [vmem:[%s2 + $0x758] sm:$0xff]
      %v6379 = vld [vmem:[%s2 + $0x760] sm:$0xff]
      %v6380 = vld [vmem:[%s2 + $0x768] sm:$0xff]
      %v6381 = vld [vmem:[%s2 + $0x770] sm:$0xff]
      %v6382 = vld [vmem:[%s2 + $0x778] sm:$0xff]
      %s6383 = scalar_lea.vmem %s3, 7
      %v6384 = vld [vmem:[%s6383] ss:$8 sm:$0x3]
      %v6386 = vlaneseq
      %v6387 = vshrl.u32 %v6386, 7
      %v6388 = vsub.s32 0, %v6387
      %v6389 = vrot.slane %v6384, %v6388
      %v6390 = vlaneseq
      %v6391 = vshrl.u32 %v6390, 7
      %v6392 = vsub.s32 1, %v6391
      %v6393 = vrot.slane %v6384, %v6392
      %v6428 = vunpack.c.l.b16 %v6351
      %v6429 = vunpack.c.h.b16 %v6351
      %v6430 = vunpack.c.l.b16 %v6352
      %v6431 = vunpack.c.h.b16 %v6352
      %v6432 = vunpack.c.l.b16 %v6353
      %v6433 = vunpack.c.h.b16 %v6353
      %v6434 = vunpack.c.l.b16 %v6354
      %v6435 = vunpack.c.h.b16 %v6354
      %v6436 = vunpack.c.l.b16 %v6355
      %v6437 = vunpack.c.h.b16 %v6355
      %v6438 = vunpack.c.l.b16 %v6356
      %v6439 = vunpack.c.h.b16 %v6356
      %v6440 = vunpack.c.l.b16 %v6357
      %v6441 = vunpack.c.h.b16 %v6357
      %v6442 = vunpack.c.l.b16 %v6358
      %v6443 = vunpack.c.h.b16 %v6358
      %v6444 = vunpack.c.l.b16 %v6359
      %v6445 = vunpack.c.h.b16 %v6359
      %v6446 = vunpack.c.l.b16 %v6360
      %v6447 = vunpack.c.h.b16 %v6360
      %v6448 = vunpack.c.l.b16 %v6361
      %v6449 = vunpack.c.h.b16 %v6361
      %v6450 = vunpack.c.l.b16 %v6362
      %v6451 = vunpack.c.h.b16 %v6362
      %v6452 = vunpack.c.l.b16 %v6363
      %v6453 = vunpack.c.h.b16 %v6363
      %v6454 = vunpack.c.l.b16 %v6364
      %v6455 = vunpack.c.h.b16 %v6364
      %v6456 = vunpack.c.l.b16 %v6365
      %v6457 = vunpack.c.h.b16 %v6365
      %v6458 = vunpack.c.l.b16 %v6366
      %v6459 = vunpack.c.h.b16 %v6366
      %v6460 = vunpack.c.l.b16 %v6367
      %v6461 = vunpack.c.h.b16 %v6367
      %v6462 = vunpack.c.l.b16 %v6368
      %v6463 = vunpack.c.h.b16 %v6368
      %v6464 = vunpack.c.l.b16 %v6369
      %v6465 = vunpack.c.h.b16 %v6369
      %v6466 = vunpack.c.l.b16 %v6370
      %v6467 = vunpack.c.h.b16 %v6370
      %v6468 = vunpack.c.l.b16 %v6371
      %v6469 = vunpack.c.h.b16 %v6371
      %v6470 = vunpack.c.l.b16 %v6372
      %v6471 = vunpack.c.h.b16 %v6372
      %v6472 = vunpack.c.l.b16 %v6373
      %v6473 = vunpack.c.h.b16 %v6373
      %v6474 = vunpack.c.l.b16 %v6374
      %v6475 = vunpack.c.h.b16 %v6374
      %v6476 = vunpack.c.l.b16 %v6375
      %v6477 = vunpack.c.h.b16 %v6375
      %v6478 = vunpack.c.l.b16 %v6376
      %v6479 = vunpack.c.h.b16 %v6376
      %v6480 = vunpack.c.l.b16 %v6377
      %v6481 = vunpack.c.h.b16 %v6377
      %v6482 = vunpack.c.l.b16 %v6378
      %v6483 = vunpack.c.h.b16 %v6378
      %v6484 = vunpack.c.l.b16 %v6379
      %v6485 = vunpack.c.h.b16 %v6379
      %v6486 = vunpack.c.l.b16 %v6380
      %v6487 = vunpack.c.h.b16 %v6380
      %v6488 = vunpack.c.l.b16 %v6381
      %v6489 = vunpack.c.h.b16 %v6381
      %v6490 = vunpack.c.l.b16 %v6382
      %v6491 = vunpack.c.h.b16 %v6382
      %v6492 = vpack.c.b16 %v6430, %v6428
      %v6493 = vpack.c.b16 %v6431, %v6429
      %v6494 = vpack.c.b16 %v6434, %v6432
      %v6495 = vpack.c.b16 %v6435, %v6433
      %v6496 = vpack.c.b16 %v6438, %v6436
      %v6497 = vpack.c.b16 %v6439, %v6437
      %v6498 = vpack.c.b16 %v6442, %v6440
      %v6499 = vpack.c.b16 %v6443, %v6441
      %v6500 = vpack.c.b16 %v6446, %v6444
      %v6501 = vpack.c.b16 %v6447, %v6445
      %v6502 = vpack.c.b16 %v6450, %v6448
      %v6503 = vpack.c.b16 %v6451, %v6449
      %v6504 = vpack.c.b16 %v6454, %v6452
      %v6505 = vpack.c.b16 %v6455, %v6453
      %v6506 = vpack.c.b16 %v6458, %v6456
      %v6507 = vpack.c.b16 %v6459, %v6457
      %v6508 = vpack.c.b16 %v6462, %v6460
      %v6509 = vpack.c.b16 %v6463, %v6461
      %v6510 = vpack.c.b16 %v6466, %v6464
      %v6511 = vpack.c.b16 %v6467, %v6465
      %v6512 = vpack.c.b16 %v6470, %v6468
      %v6513 = vpack.c.b16 %v6471, %v6469
      %v6514 = vpack.c.b16 %v6474, %v6472
      %v6515 = vpack.c.b16 %v6475, %v6473
      %v6516 = vpack.c.b16 %v6478, %v6476
      %v6517 = vpack.c.b16 %v6479, %v6477
      %v6518 = vpack.c.b16 %v6482, %v6480
      %v6519 = vpack.c.b16 %v6483, %v6481
      %v6520 = vpack.c.b16 %v6486, %v6484
      %v6521 = vpack.c.b16 %v6487, %v6485
      %v6522 = vpack.c.b16 %v6490, %v6488
      %v6523 = vpack.c.b16 %v6491, %v6489
      %6556 = vmatprep.subr.bf16.mxu0 %v6507
      %6557 = vmatpush1.bf16.msra.mxu0 %v6506
      %6558 = vmatprep.subr.bf16.mxu0 %v6505
      %6559 = vmatpush1.bf16.msra.mxu0 %v6504
      %6560 = vmatprep.subr.bf16.mxu0 %v6503
      %6561 = vmatpush1.bf16.msra.mxu0 %v6502
      %6562 = vmatprep.subr.bf16.mxu0 %v6501
      %6563 = vmatpush1.bf16.msra.mxu0 %v6500
      %6564 = vmatprep.subr.bf16.mxu0 %v6499
      %6565 = vmatpush1.bf16.msra.mxu0 %v6498
      %6566 = vmatprep.subr.bf16.mxu0 %v6497
      %6567 = vmatpush1.bf16.msra.mxu0 %v6496
      %6568 = vmatprep.subr.bf16.mxu0 %v6495
      %6569 = vmatpush1.bf16.msra.mxu0 %v6494
      %6570 = vmatprep.subr.bf16.mxu0 %v6493
      %6571 = vmatpush1.bf16.msra.mxu0 %v6492
      %6572 = vmatprep.subr.bf16.mxu0 %v6523
      %6573 = vmatpush2.bf16.msra.mxu0 %v6522
      %6574 = vmatprep.subr.bf16.mxu0 %v6521
      %6575 = vmatpush2.bf16.msra.mxu0 %v6520
      %6576 = vmatprep.subr.bf16.mxu0 %v6519
      %6577 = vmatpush2.bf16.msra.mxu0 %v6518
      %6578 = vmatprep.subr.bf16.mxu0 %v6517
      %6579 = vmatpush2.bf16.msra.mxu0 %v6516
      %6580 = vmatprep.subr.bf16.mxu0 %v6515
      %6581 = vmatpush2.bf16.msra.mxu0 %v6514
      %6582 = vmatprep.subr.bf16.mxu0 %v6513
      %6583 = vmatpush2.bf16.msra.mxu0 %v6512
      %6584 = vmatprep.subr.bf16.mxu0 %v6511
      %6585 = vmatpush2.bf16.msra.mxu0 %v6510
      %6586 = vmatprep.subr.bf16.mxu0 %v6509
      %6587 = vmatpush2.bf16.msra.mxu0 %v6508
      %6588 = vmatprep.mubr.bf16.mxu0 %v6288
      %6589 = vmatmul.mubr.bf16.gmra.mxu0 %v6287
      %v6590 = vpop.f32.mrf.mxu0
      %v6591 = vadd.f32 %v6389, %v6590
      %v6592 = vpop.f32.mrf.mxu0
      %v6593 = vadd.f32 %v6393, %v6592
      %v6594 = vpop.f32.mrf.mxu0
      %v6595 = vadd.f32 %v6389, %v6594
      %v6596 = vpop.f32.mrf.mxu0
      %v6597 = vadd.f32 %v6393, %v6596
      %6598 = vmatprep.mubr.bf16.mxu0 %v6290
      %6599 = vmatmul.mubr.bf16.gmra.mxu0 %v6289
      %v6600 = vpop.f32.mrf.mxu0
      %v6601 = vadd.f32 %v6389, %v6600
      %v6602 = vpop.f32.mrf.mxu0
      %v6603 = vadd.f32 %v6393, %v6602
      %v6604 = vpop.f32.mrf.mxu0
      %v6605 = vadd.f32 %v6389, %v6604
      %v6606 = vpop.f32.mrf.mxu0
      %v6607 = vadd.f32 %v6393, %v6606
      %6608 = vmatprep.mubr.bf16.mxu0 %v6292
      %6609 = vmatmul.mubr.bf16.gmra.mxu0 %v6291
      %v6610 = vpop.f32.mrf.mxu0
      %v6611 = vadd.f32 %v6389, %v6610
      %v6612 = vpop.f32.mrf.mxu0
      %v6613 = vadd.f32 %v6393, %v6612
      %v6614 = vpop.f32.mrf.mxu0
      %v6615 = vadd.f32 %v6389, %v6614
      %v6616 = vpop.f32.mrf.mxu0
      %v6617 = vadd.f32 %v6393, %v6616
      %6618 = vmatprep.mubr.bf16.mxu0 %v6294
      %6619 = vmatmul.mubr.bf16.gmra.mxu0 %v6293
      %v6620 = vpop.f32.mrf.mxu0
      %v6621 = vadd.f32 %v6389, %v6620
      %v6622 = vpop.f32.mrf.mxu0
      %v6623 = vadd.f32 %v6393, %v6622
      %v6624 = vpop.f32.mrf.mxu0
      %v6625 = vadd.f32 %v6389, %v6624
      %v6626 = vpop.f32.mrf.mxu0
      %v6627 = vadd.f32 %v6393, %v6626
      %6628 = vmatprep.mubr.bf16.mxu0 %v6296
      %6629 = vmatmul.mubr.bf16.gmra.mxu0 %v6295
      %v6630 = vpop.f32.mrf.mxu0
      %v6631 = vadd.f32 %v6389, %v6630
      %v6632 = vpop.f32.mrf.mxu0
      %v6633 = vadd.f32 %v6393, %v6632
      %v6634 = vpop.f32.mrf.mxu0
      %v6635 = vadd.f32 %v6389, %v6634
      %v6636 = vpop.f32.mrf.mxu0
      %v6637 = vadd.f32 %v6393, %v6636
      %6638 = vmatprep.mubr.bf16.mxu0 %v6298
      %6639 = vmatmul.mubr.bf16.gmra.mxu0 %v6297
      %v6640 = vpop.f32.mrf.mxu0
      %v6641 = vadd.f32 %v6389, %v6640
      %v6642 = vpop.f32.mrf.mxu0
      %v6643 = vadd.f32 %v6393, %v6642
      %v6644 = vpop.f32.mrf.mxu0
      %v6645 = vadd.f32 %v6389, %v6644
      %v6646 = vpop.f32.mrf.mxu0
      %v6647 = vadd.f32 %v6393, %v6646
      %6648 = vmatprep.mubr.bf16.mxu0 %v6300
      %6649 = vmatmul.mubr.bf16.gmra.mxu0 %v6299
      %v6650 = vpop.f32.mrf.mxu0
      %v6651 = vadd.f32 %v6389, %v6650
      %v6652 = vpop.f32.mrf.mxu0
      %v6653 = vadd.f32 %v6393, %v6652
      %v6654 = vpop.f32.mrf.mxu0
      %v6655 = vadd.f32 %v6389, %v6654
      %v6656 = vpop.f32.mrf.mxu0
      %v6657 = vadd.f32 %v6393, %v6656
      %6658 = vmatprep.mubr.bf16.mxu0 %v6302
      %6659 = vmatmul.mubr.bf16.gmra.mxu0 %v6301
      %v6660 = vpop.f32.mrf.mxu0
      %v6661 = vadd.f32 %v6389, %v6660
      %v6662 = vpop.f32.mrf.mxu0
      %v6663 = vadd.f32 %v6393, %v6662
      %v6664 = vpop.f32.mrf.mxu0
      %v6665 = vadd.f32 %v6389, %v6664
      %v6666 = vpop.f32.mrf.mxu0
      %v6667 = vadd.f32 %v6393, %v6666
      %6668 = vmatprep.mubr.bf16.mxu0 %v6304
      %6669 = vmatmul.mubr.bf16.gmra.mxu0 %v6303
      %v6670 = vpop.f32.mrf.mxu0
      %v6671 = vadd.f32 %v6389, %v6670
      %v6672 = vpop.f32.mrf.mxu0
      %v6673 = vadd.f32 %v6393, %v6672
      %v6674 = vpop.f32.mrf.mxu0
      %v6675 = vadd.f32 %v6389, %v6674
      %v6676 = vpop.f32.mrf.mxu0
      %v6677 = vadd.f32 %v6393, %v6676
      %6678 = vmatprep.mubr.bf16.mxu0 %v6306
      %6679 = vmatmul.mubr.bf16.gmra.mxu0 %v6305
      %v6680 = vpop.f32.mrf.mxu0
      %v6681 = vadd.f32 %v6389, %v6680
      %v6682 = vpop.f32.mrf.mxu0
      %v6683 = vadd.f32 %v6393, %v6682
      %v6684 = vpop.f32.mrf.mxu0
      %v6685 = vadd.f32 %v6389, %v6684
      %v6686 = vpop.f32.mrf.mxu0
      %v6687 = vadd.f32 %v6393, %v6686
      %6688 = vmatprep.mubr.bf16.mxu0 %v6308
      %6689 = vmatmul.mubr.bf16.gmra.mxu0 %v6307
      %v6690 = vpop.f32.mrf.mxu0
      %v6691 = vadd.f32 %v6389, %v6690
      %v6692 = vpop.f32.mrf.mxu0
      %v6693 = vadd.f32 %v6393, %v6692
      %v6694 = vpop.f32.mrf.mxu0
      %v6695 = vadd.f32 %v6389, %v6694
      %v6696 = vpop.f32.mrf.mxu0
      %v6697 = vadd.f32 %v6393, %v6696
      %6698 = vmatprep.mubr.bf16.mxu0 %v6310
      %6699 = vmatmul.mubr.bf16.gmra.mxu0 %v6309
      %v6700 = vpop.f32.mrf.mxu0
      %v6701 = vadd.f32 %v6389, %v6700
      %v6702 = vpop.f32.mrf.mxu0
      %v6703 = vadd.f32 %v6393, %v6702
      %v6704 = vpop.f32.mrf.mxu0
      %v6705 = vadd.f32 %v6389, %v6704
      %v6706 = vpop.f32.mrf.mxu0
      %v6707 = vadd.f32 %v6393, %v6706
      %6708 = vmatprep.mubr.bf16.mxu0 %v6312
      %6709 = vmatmul.mubr.bf16.gmra.mxu0 %v6311
      %v6710 = vpop.f32.mrf.mxu0
      %v6711 = vadd.f32 %v6389, %v6710
      %v6712 = vpop.f32.mrf.mxu0
      %v6713 = vadd.f32 %v6393, %v6712
      %v6714 = vpop.f32.mrf.mxu0
      %v6715 = vadd.f32 %v6389, %v6714
      %v6716 = vpop.f32.mrf.mxu0
      %v6717 = vadd.f32 %v6393, %v6716
      %6718 = vmatprep.mubr.bf16.mxu0 %v6314
      %6719 = vmatmul.mubr.bf16.gmra.mxu0 %v6313
      %v6720 = vpop.f32.mrf.mxu0
      %v6721 = vadd.f32 %v6389, %v6720
      %v6722 = vpop.f32.mrf.mxu0
      %v6723 = vadd.f32 %v6393, %v6722
      %v6724 = vpop.f32.mrf.mxu0
      %v6725 = vadd.f32 %v6389, %v6724
      %v6726 = vpop.f32.mrf.mxu0
      %v6727 = vadd.f32 %v6393, %v6726
      %6728 = vmatprep.mubr.bf16.mxu0 %v6316
      %6729 = vmatmul.mubr.bf16.gmra.mxu0 %v6315
      %v6730 = vpop.f32.mrf.mxu0
      %v6731 = vadd.f32 %v6389, %v6730
      %v6732 = vpop.f32.mrf.mxu0
      %v6733 = vadd.f32 %v6393, %v6732
      %v6734 = vpop.f32.mrf.mxu0
      %v6735 = vadd.f32 %v6389, %v6734
      %v6736 = vpop.f32.mrf.mxu0
      %v6737 = vadd.f32 %v6393, %v6736
      %6738 = vmatprep.mubr.bf16.mxu0 %v6318
      %6739 = vmatmul.mubr.bf16.gmra.mxu0 %v6317
      %v6740 = vpop.f32.mrf.mxu0
      %v6741 = vadd.f32 %v6389, %v6740
      %v6742 = vpop.f32.mrf.mxu0
      %v6743 = vadd.f32 %v6393, %v6742
      %v6744 = vpop.f32.mrf.mxu0
      %v6745 = vadd.f32 %v6389, %v6744
      %v6746 = vpop.f32.mrf.mxu0
      %v6747 = vadd.f32 %v6393, %v6746
      %6748 = vmatprep.mubr.bf16.mxu0 %v6320
      %6749 = vmatmul.mubr.bf16.gmra.mxu0 %v6319
      %v6750 = vpop.f32.mrf.mxu0
      %v6751 = vadd.f32 %v6389, %v6750
      %v6752 = vpop.f32.mrf.mxu0
      %v6753 = vadd.f32 %v6393, %v6752
      %v6754 = vpop.f32.mrf.mxu0
      %v6755 = vadd.f32 %v6389, %v6754
      %v6756 = vpop.f32.mrf.mxu0
      %v6757 = vadd.f32 %v6393, %v6756
      %6758 = vmatprep.mubr.bf16.mxu0 %v6322
      %6759 = vmatmul.mubr.bf16.gmra.mxu0 %v6321
      %v6760 = vpop.f32.mrf.mxu0
      %v6761 = vadd.f32 %v6389, %v6760
      %v6762 = vpop.f32.mrf.mxu0
      %v6763 = vadd.f32 %v6393, %v6762
      %v6764 = vpop.f32.mrf.mxu0
      %v6765 = vadd.f32 %v6389, %v6764
      %v6766 = vpop.f32.mrf.mxu0
      %v6767 = vadd.f32 %v6393, %v6766
      %6768 = vmatprep.mubr.bf16.mxu0 %v6324
      %6769 = vmatmul.mubr.bf16.gmra.mxu0 %v6323
      %v6770 = vpop.f32.mrf.mxu0
      %v6771 = vadd.f32 %v6389, %v6770
      %v6772 = vpop.f32.mrf.mxu0
      %v6773 = vadd.f32 %v6393, %v6772
      %v6774 = vpop.f32.mrf.mxu0
      %v6775 = vadd.f32 %v6389, %v6774
      %v6776 = vpop.f32.mrf.mxu0
      %v6777 = vadd.f32 %v6393, %v6776
      %6778 = vmatprep.mubr.bf16.mxu0 %v6326
      %6779 = vmatmul.mubr.bf16.gmra.mxu0 %v6325
      %v6780 = vpop.f32.mrf.mxu0
      %v6781 = vadd.f32 %v6389, %v6780
      %v6782 = vpop.f32.mrf.mxu0
      %v6783 = vadd.f32 %v6393, %v6782
      %v6784 = vpop.f32.mrf.mxu0
      %v6785 = vadd.f32 %v6389, %v6784
      %v6786 = vpop.f32.mrf.mxu0
      %v6787 = vadd.f32 %v6393, %v6786
      %6788 = vmatprep.mubr.bf16.mxu0 %v6328
      %6789 = vmatmul.mubr.bf16.gmra.mxu0 %v6327
      %v6790 = vpop.f32.mrf.mxu0
      %v6791 = vadd.f32 %v6389, %v6790
      %v6792 = vpop.f32.mrf.mxu0
      %v6793 = vadd.f32 %v6393, %v6792
      %v6794 = vpop.f32.mrf.mxu0
      %v6795 = vadd.f32 %v6389, %v6794
      %v6796 = vpop.f32.mrf.mxu0
      %v6797 = vadd.f32 %v6393, %v6796
      %6798 = vmatprep.mubr.bf16.mxu0 %v6330
      %6799 = vmatmul.mubr.bf16.gmra.mxu0 %v6329
      %v6800 = vpop.f32.mrf.mxu0
      %v6801 = vadd.f32 %v6389, %v6800
      %v6802 = vpop.f32.mrf.mxu0
      %v6803 = vadd.f32 %v6393, %v6802
      %v6804 = vpop.f32.mrf.mxu0
      %v6805 = vadd.f32 %v6389, %v6804
      %v6806 = vpop.f32.mrf.mxu0
      %v6807 = vadd.f32 %v6393, %v6806
      %6808 = vmatprep.mubr.bf16.mxu0 %v6332
      %6809 = vmatmul.mubr.bf16.gmra.mxu0 %v6331
      %v6810 = vpop.f32.mrf.mxu0
      %v6811 = vadd.f32 %v6389, %v6810
      %v6812 = vpop.f32.mrf.mxu0
      %v6813 = vadd.f32 %v6393, %v6812
      %v6814 = vpop.f32.mrf.mxu0
      %v6815 = vadd.f32 %v6389, %v6814
      %v6816 = vpop.f32.mrf.mxu0
      %v6817 = vadd.f32 %v6393, %v6816
      %6818 = vmatprep.mubr.bf16.mxu0 %v6334
      %6819 = vmatmul.mubr.bf16.gmra.mxu0 %v6333
      %v6820 = vpop.f32.mrf.mxu0
      %v6821 = vadd.f32 %v6389, %v6820
      %v6822 = vpop.f32.mrf.mxu0
      %v6823 = vadd.f32 %v6393, %v6822
      %v6824 = vpop.f32.mrf.mxu0
      %v6825 = vadd.f32 %v6389, %v6824
      %v6826 = vpop.f32.mrf.mxu0
      %v6827 = vadd.f32 %v6393, %v6826
      %6828 = vmatprep.mubr.bf16.mxu0 %v6336
      %6829 = vmatmul.mubr.bf16.gmra.mxu0 %v6335
      %v6830 = vpop.f32.mrf.mxu0
      %v6831 = vadd.f32 %v6389, %v6830
      %v6832 = vpop.f32.mrf.mxu0
      %v6833 = vadd.f32 %v6393, %v6832
      %v6834 = vpop.f32.mrf.mxu0
      %v6835 = vadd.f32 %v6389, %v6834
      %v6836 = vpop.f32.mrf.mxu0
      %v6837 = vadd.f32 %v6393, %v6836
      %6838 = vmatprep.mubr.bf16.mxu0 %v6338
      %6839 = vmatmul.mubr.bf16.gmra.mxu0 %v6337
      %v6840 = vpop.f32.mrf.mxu0
      %v6841 = vadd.f32 %v6389, %v6840
      %v6842 = vpop.f32.mrf.mxu0
      %v6843 = vadd.f32 %v6393, %v6842
      %v6844 = vpop.f32.mrf.mxu0
      %v6845 = vadd.f32 %v6389, %v6844
      %v6846 = vpop.f32.mrf.mxu0
      %v6847 = vadd.f32 %v6393, %v6846
      %6848 = vmatprep.mubr.bf16.mxu0 %v6340
      %6849 = vmatmul.mubr.bf16.gmra.mxu0 %v6339
      %v6850 = vpop.f32.mrf.mxu0
      %v6851 = vadd.f32 %v6389, %v6850
      %v6852 = vpop.f32.mrf.mxu0
      %v6853 = vadd.f32 %v6393, %v6852
      %v6854 = vpop.f32.mrf.mxu0
      %v6855 = vadd.f32 %v6389, %v6854
      %v6856 = vpop.f32.mrf.mxu0
      %v6857 = vadd.f32 %v6393, %v6856
      %6858 = vmatprep.mubr.bf16.mxu0 %v6342
      %6859 = vmatmul.mubr.bf16.gmra.mxu0 %v6341
      %v6860 = vpop.f32.mrf.mxu0
      %v6861 = vadd.f32 %v6389, %v6860
      %v6862 = vpop.f32.mrf.mxu0
      %v6863 = vadd.f32 %v6393, %v6862
      %v6864 = vpop.f32.mrf.mxu0
      %v6865 = vadd.f32 %v6389, %v6864
      %v6866 = vpop.f32.mrf.mxu0
      %v6867 = vadd.f32 %v6393, %v6866
      %6868 = vmatprep.mubr.bf16.mxu0 %v6344
      %6869 = vmatmul.mubr.bf16.gmra.mxu0 %v6343
      %v6870 = vpop.f32.mrf.mxu0
      %v6871 = vadd.f32 %v6389, %v6870
      %v6872 = vpop.f32.mrf.mxu0
      %v6873 = vadd.f32 %v6393, %v6872
      %v6874 = vpop.f32.mrf.mxu0
      %v6875 = vadd.f32 %v6389, %v6874
      %v6876 = vpop.f32.mrf.mxu0
      %v6877 = vadd.f32 %v6393, %v6876
      %6878 = vmatprep.mubr.bf16.mxu0 %v6346
      %6879 = vmatmul.mubr.bf16.gmra.mxu0 %v6345
      %v6880 = vpop.f32.mrf.mxu0
      %v6881 = vadd.f32 %v6389, %v6880
      %v6882 = vpop.f32.mrf.mxu0
      %v6883 = vadd.f32 %v6393, %v6882
      %v6884 = vpop.f32.mrf.mxu0
      %v6885 = vadd.f32 %v6389, %v6884
      %v6886 = vpop.f32.mrf.mxu0
      %v6887 = vadd.f32 %v6393, %v6886
      %6888 = vmatprep.mubr.bf16.mxu0 %v6348
      %6889 = vmatmul.mubr.bf16.gmra.mxu0 %v6347
      %v6890 = vpop.f32.mrf.mxu0
      %v6891 = vadd.f32 %v6389, %v6890
      %v6892 = vpop.f32.mrf.mxu0
      %v6893 = vadd.f32 %v6393, %v6892
      %v6894 = vpop.f32.mrf.mxu0
      %v6895 = vadd.f32 %v6389, %v6894
      %v6896 = vpop.f32.mrf.mxu0
      %v6897 = vadd.f32 %v6393, %v6896
      %6898 = vmatprep.mubr.bf16.mxu0 %v6350
      %6899 = vmatmul.mubr.bf16.gmra.mxu0 %v6349
      %v6900 = vpop.f32.mrf.mxu0
      %v6901 = vadd.f32 %v6389, %v6900
      %v6902 = vpop.f32.mrf.mxu0
      %v6903 = vadd.f32 %v6393, %v6902
      %v6904 = vpop.f32.mrf.mxu0
      %v6905 = vadd.f32 %v6389, %v6904
      %v6906 = vpop.f32.mrf.mxu0
      %v6907 = vadd.f32 %v6393, %v6906
      %6908 = vdwg.mxu0
      %v6909 = vmax.f32 %v6591, 0.0
      %v6910 = vmax.f32 %v6593, 0.0
      %v6911 = vmax.f32 %v6595, 0.0
      %v6912 = vmax.f32 %v6597, 0.0
      %v6913 = vmax.f32 %v6601, 0.0
      %v6914 = vmax.f32 %v6603, 0.0
      %v6915 = vmax.f32 %v6605, 0.0
      %v6916 = vmax.f32 %v6607, 0.0
      %v6917 = vmax.f32 %v6611, 0.0
      %v6918 = vmax.f32 %v6613, 0.0
      %v6919 = vmax.f32 %v6615, 0.0
      %v6920 = vmax.f32 %v6617, 0.0
      %v6921 = vmax.f32 %v6621, 0.0
      %v6922 = vmax.f32 %v6623, 0.0
      %v6923 = vmax.f32 %v6625, 0.0
      %v6924 = vmax.f32 %v6627, 0.0
      %v6925 = vmax.f32 %v6631, 0.0
      %v6926 = vmax.f32 %v6633, 0.0
      %v6927 = vmax.f32 %v6635, 0.0
      %v6928 = vmax.f32 %v6637, 0.0
      %v6929 = vmax.f32 %v6641, 0.0
      %v6930 = vmax.f32 %v6643, 0.0
      %v6931 = vmax.f32 %v6645, 0.0
      %v6932 = vmax.f32 %v6647, 0.0
      %v6933 = vmax.f32 %v6651, 0.0
      %v6934 = vmax.f32 %v6653, 0.0
      %v6935 = vmax.f32 %v6655, 0.0
      %v6936 = vmax.f32 %v6657, 0.0
      %v6937 = vmax.f32 %v6661, 0.0
      %v6938 = vmax.f32 %v6663, 0.0
      %v6939 = vmax.f32 %v6665, 0.0
      %v6940 = vmax.f32 %v6667, 0.0
      %v6941 = vmax.f32 %v6671, 0.0
      %v6942 = vmax.f32 %v6673, 0.0
      %v6943 = vmax.f32 %v6675, 0.0
      %v6944 = vmax.f32 %v6677, 0.0
      %v6945 = vmax.f32 %v6681, 0.0
      %v6946 = vmax.f32 %v6683, 0.0
      %v6947 = vmax.f32 %v6685, 0.0
      %v6948 = vmax.f32 %v6687, 0.0
      %v6949 = vmax.f32 %v6691, 0.0
      %v6950 = vmax.f32 %v6693, 0.0
      %v6951 = vmax.f32 %v6695, 0.0
      %v6952 = vmax.f32 %v6697, 0.0
      %v6953 = vmax.f32 %v6701, 0.0
      %v6954 = vmax.f32 %v6703, 0.0
      %v6955 = vmax.f32 %v6705, 0.0
      %v6956 = vmax.f32 %v6707, 0.0
      %v6957 = vmax.f32 %v6711, 0.0
      %v6958 = vmax.f32 %v6713, 0.0
      %v6959 = vmax.f32 %v6715, 0.0
      %v6960 = vmax.f32 %v6717, 0.0
      %v6961 = vmax.f32 %v6721, 0.0
      %v6962 = vmax.f32 %v6723, 0.0
      %v6963 = vmax.f32 %v6725, 0.0
      %v6964 = vmax.f32 %v6727, 0.0
      %v6965 = vmax.f32 %v6731, 0.0
      %v6966 = vmax.f32 %v6733, 0.0
      %v6967 = vmax.f32 %v6735, 0.0
      %v6968 = vmax.f32 %v6737, 0.0
      %v6969 = vmax.f32 %v6741, 0.0
      %v6970 = vmax.f32 %v6743, 0.0
      %v6971 = vmax.f32 %v6745, 0.0
      %v6972 = vmax.f32 %v6747, 0.0
      %v6973 = vmax.f32 %v6751, 0.0
      %v6974 = vmax.f32 %v6753, 0.0
      %v6975 = vmax.f32 %v6755, 0.0
      %v6976 = vmax.f32 %v6757, 0.0
      %v6977 = vmax.f32 %v6761, 0.0
      %v6978 = vmax.f32 %v6763, 0.0
      %v6979 = vmax.f32 %v6765, 0.0
      %v6980 = vmax.f32 %v6767, 0.0
      %v6981 = vmax.f32 %v6771, 0.0
      %v6982 = vmax.f32 %v6773, 0.0
      %v6983 = vmax.f32 %v6775, 0.0
      %v6984 = vmax.f32 %v6777, 0.0
      %v6985 = vmax.f32 %v6781, 0.0
      %v6986 = vmax.f32 %v6783, 0.0
      %v6987 = vmax.f32 %v6785, 0.0
      %v6988 = vmax.f32 %v6787, 0.0
      %v6989 = vmax.f32 %v6791, 0.0
      %v6990 = vmax.f32 %v6793, 0.0
      %v6991 = vmax.f32 %v6795, 0.0
      %v6992 = vmax.f32 %v6797, 0.0
      %v6993 = vmax.f32 %v6801, 0.0
      %v6994 = vmax.f32 %v6803, 0.0
      %v6995 = vmax.f32 %v6805, 0.0
      %v6996 = vmax.f32 %v6807, 0.0
      %v6997 = vmax.f32 %v6811, 0.0
      %v6998 = vmax.f32 %v6813, 0.0
      %v6999 = vmax.f32 %v6815, 0.0
      %v7000 = vmax.f32 %v6817, 0.0
      %v7001 = vmax.f32 %v6821, 0.0
      %v7002 = vmax.f32 %v6823, 0.0
      %v7003 = vmax.f32 %v6825, 0.0
      %v7004 = vmax.f32 %v6827, 0.0
      %v7005 = vmax.f32 %v6831, 0.0
      %v7006 = vmax.f32 %v6833, 0.0
      %v7007 = vmax.f32 %v6835, 0.0
      %v7008 = vmax.f32 %v6837, 0.0
      %v7009 = vmax.f32 %v6841, 0.0
      %v7010 = vmax.f32 %v6843, 0.0
      %v7011 = vmax.f32 %v6845, 0.0
      %v7012 = vmax.f32 %v6847, 0.0
      %v7013 = vmax.f32 %v6851, 0.0
      %v7014 = vmax.f32 %v6853, 0.0
      %v7015 = vmax.f32 %v6855, 0.0
      %v7016 = vmax.f32 %v6857, 0.0
      %v7017 = vmax.f32 %v6861, 0.0
      %v7018 = vmax.f32 %v6863, 0.0
      %v7019 = vmax.f32 %v6865, 0.0
      %v7020 = vmax.f32 %v6867, 0.0
      %v7021 = vmax.f32 %v6871, 0.0
      %v7022 = vmax.f32 %v6873, 0.0
      %v7023 = vmax.f32 %v6875, 0.0
      %v7024 = vmax.f32 %v6877, 0.0
      %v7025 = vmax.f32 %v6881, 0.0
      %v7026 = vmax.f32 %v6883, 0.0
      %v7027 = vmax.f32 %v6885, 0.0
      %v7028 = vmax.f32 %v6887, 0.0
      %v7029 = vmax.f32 %v6891, 0.0
      %v7030 = vmax.f32 %v6893, 0.0
      %v7031 = vmax.f32 %v6895, 0.0
      %v7032 = vmax.f32 %v6897, 0.0
      %v7033 = vmax.f32 %v6901, 0.0
      %v7034 = vmax.f32 %v6903, 0.0
      %v7035 = vmax.f32 %v6905, 0.0
      %v7036 = vmax.f32 %v6907, 0.0
      %v7037 = vpack.c.bf16 %v6911, %v6909
      %v7038 = vpack.c.bf16 %v6912, %v6910
      %v7039 = vpack.c.bf16 %v6915, %v6913
      %v7040 = vpack.c.bf16 %v6916, %v6914
      %v7041 = vpack.c.bf16 %v6919, %v6917
      %v7042 = vpack.c.bf16 %v6920, %v6918
      %v7043 = vpack.c.bf16 %v6923, %v6921
      %v7044 = vpack.c.bf16 %v6924, %v6922
      %v7045 = vpack.c.bf16 %v6927, %v6925
      %v7046 = vpack.c.bf16 %v6928, %v6926
      %v7047 = vpack.c.bf16 %v6931, %v6929
      %v7048 = vpack.c.bf16 %v6932, %v6930
      %v7049 = vpack.c.bf16 %v6935, %v6933
      %v7050 = vpack.c.bf16 %v6936, %v6934
      %v7051 = vpack.c.bf16 %v6939, %v6937
      %v7052 = vpack.c.bf16 %v6940, %v6938
      %v7053 = vpack.c.bf16 %v6943, %v6941
      %v7054 = vpack.c.bf16 %v6944, %v6942
      %v7055 = vpack.c.bf16 %v6947, %v6945
      %v7056 = vpack.c.bf16 %v6948, %v6946
      %v7057 = vpack.c.bf16 %v6951, %v6949
      %v7058 = vpack.c.bf16 %v6952, %v6950
      %v7059 = vpack.c.bf16 %v6955, %v6953
      %v7060 = vpack.c.bf16 %v6956, %v6954
      %v7061 = vpack.c.bf16 %v6959, %v6957
      %v7062 = vpack.c.bf16 %v6960, %v6958
      %v7063 = vpack.c.bf16 %v6963, %v6961
      %v7064 = vpack.c.bf16 %v6964, %v6962
      %v7065 = vpack.c.bf16 %v6967, %v6965
      %v7066 = vpack.c.bf16 %v6968, %v6966
      %v7067 = vpack.c.bf16 %v6971, %v6969
      %v7068 = vpack.c.bf16 %v6972, %v6970
      %v7069 = vpack.c.bf16 %v6975, %v6973
      %v7070 = vpack.c.bf16 %v6976, %v6974
      %v7071 = vpack.c.bf16 %v6979, %v6977
      %v7072 = vpack.c.bf16 %v6980, %v6978
      %v7073 = vpack.c.bf16 %v6983, %v6981
      %v7074 = vpack.c.bf16 %v6984, %v6982
      %v7075 = vpack.c.bf16 %v6987, %v6985
      %v7076 = vpack.c.bf16 %v6988, %v6986
      %v7077 = vpack.c.bf16 %v6991, %v6989
      %v7078 = vpack.c.bf16 %v6992, %v6990
      %v7079 = vpack.c.bf16 %v6995, %v6993
      %v7080 = vpack.c.bf16 %v6996, %v6994
      %v7081 = vpack.c.bf16 %v6999, %v6997
      %v7082 = vpack.c.bf16 %v7000, %v6998
      %v7083 = vpack.c.bf16 %v7003, %v7001
      %v7084 = vpack.c.bf16 %v7004, %v7002
      %v7085 = vpack.c.bf16 %v7007, %v7005
      %v7086 = vpack.c.bf16 %v7008, %v7006
      %v7087 = vpack.c.bf16 %v7011, %v7009
      %v7088 = vpack.c.bf16 %v7012, %v7010
      %v7089 = vpack.c.bf16 %v7015, %v7013
      %v7090 = vpack.c.bf16 %v7016, %v7014
      %v7091 = vpack.c.bf16 %v7019, %v7017
      %v7092 = vpack.c.bf16 %v7020, %v7018
      %v7093 = vpack.c.bf16 %v7023, %v7021
      %v7094 = vpack.c.bf16 %v7024, %v7022
      %v7095 = vpack.c.bf16 %v7027, %v7025
      %v7096 = vpack.c.bf16 %v7028, %v7026
      %v7097 = vpack.c.bf16 %v7031, %v7029
      %v7098 = vpack.c.bf16 %v7032, %v7030
      %v7099 = vpack.c.bf16 %v7035, %v7033
      %v7100 = vpack.c.bf16 %v7036, %v7034
      %v7101 = vld [vmem:[%s4] sm:$0xff]
      %v7102 = vld [vmem:[%s4 + $0x8] sm:$0xff]
      %v7103 = vld [vmem:[%s4 + $0x10] sm:$0xff]
      %v7104 = vld [vmem:[%s4 + $0x18] sm:$0xff]
      %v7105 = vld [vmem:[%s4 + $0x20] sm:$0xff]
      %v7106 = vld [vmem:[%s4 + $0x28] sm:$0xff]
      %v7107 = vld [vmem:[%s4 + $0x30] sm:$0xff]
      %v7108 = vld [vmem:[%s4 + $0x38] sm:$0xff]
      %v7109 = vld [vmem:[%s4 + $0x40] sm:$0xff]
      %v7110 = vld [vmem:[%s4 + $0x48] sm:$0xff]
      %v7111 = vld [vmem:[%s4 + $0x50] sm:$0xff]
      %v7112 = vld [vmem:[%s4 + $0x58] sm:$0xff]
      %v7113 = vld [vmem:[%s4 + $0x60] sm:$0xff]
      %v7114 = vld [vmem:[%s4 + $0x68] sm:$0xff]
      %v7115 = vld [vmem:[%s4 + $0x70] sm:$0xff]
      %v7116 = vld [vmem:[%s4 + $0x78] sm:$0xff]
      %v7117 = vld [vmem:[%s4 + $0x80] sm:$0xff]
      %v7118 = vld [vmem:[%s4 + $0x88] sm:$0xff]
      %v7119 = vld [vmem:[%s4 + $0x90] sm:$0xff]
      %v7120 = vld [vmem:[%s4 + $0x98] sm:$0xff]
      %v7121 = vld [vmem:[%s4 + $0xa0] sm:$0xff]
      %v7122 = vld [vmem:[%s4 + $0xa8] sm:$0xff]
      %v7123 = vld [vmem:[%s4 + $0xb0] sm:$0xff]
      %v7124 = vld [vmem:[%s4 + $0xb8] sm:$0xff]
      %v7125 = vld [vmem:[%s4 + $0xc0] sm:$0xff]
      %v7126 = vld [vmem:[%s4 + $0xc8] sm:$0xff]
      %v7127 = vld [vmem:[%s4 + $0xd0] sm:$0xff]
      %v7128 = vld [vmem:[%s4 + $0xd8] sm:$0xff]
      %v7129 = vld [vmem:[%s4 + $0xe0] sm:$0xff]
      %v7130 = vld [vmem:[%s4 + $0xe8] sm:$0xff]
      %v7131 = vld [vmem:[%s4 + $0xf0] sm:$0xff]
      %v7132 = vld [vmem:[%s4 + $0xf8] sm:$0xff]
      %v7133 = vld [vmem:[%s5] ss:$8 sm:$0x3]
      %v7135 = vlaneseq
      %v7136 = vshrl.u32 %v7135, 7
      %v7137 = vsub.s32 0, %v7136
      %v7138 = vrot.slane %v7133, %v7137
      %v7139 = vlaneseq
      %v7140 = vshrl.u32 %v7139, 7
      %v7141 = vsub.s32 1, %v7140
      %v7142 = vrot.slane %v7133, %v7141
      %v7177 = vunpack.c.l.b16 %v7101
      %v7178 = vunpack.c.h.b16 %v7101
      %v7179 = vunpack.c.l.b16 %v7102
      %v7180 = vunpack.c.h.b16 %v7102
      %v7181 = vunpack.c.l.b16 %v7103
      %v7182 = vunpack.c.h.b16 %v7103
      %v7183 = vunpack.c.l.b16 %v7104
      %v7184 = vunpack.c.h.b16 %v7104
      %v7185 = vunpack.c.l.b16 %v7105
      %v7186 = vunpack.c.h.b16 %v7105
      %v7187 = vunpack.c.l.b16 %v7106
      %v7188 = vunpack.c.h.b16 %v7106
      %v7189 = vunpack.c.l.b16 %v7107
      %v7190 = vunpack.c.h.b16 %v7107
      %v7191 = vunpack.c.l.b16 %v7108
      %v7192 = vunpack.c.h.b16 %v7108
      %v7193 = vunpack.c.l.b16 %v7109
      %v7194 = vunpack.c.h.b16 %v7109
      %v7195 = vunpack.c.l.b16 %v7110
      %v7196 = vunpack.c.h.b16 %v7110
      %v7197 = vunpack.c.l.b16 %v7111
      %v7198 = vunpack.c.h.b16 %v7111
      %v7199 = vunpack.c.l.b16 %v7112
      %v7200 = vunpack.c.h.b16 %v7112
      %v7201 = vunpack.c.l.b16 %v7113
      %v7202 = vunpack.c.h.b16 %v7113
      %v7203 = vunpack.c.l.b16 %v7114
      %v7204 = vunpack.c.h.b16 %v7114
      %v7205 = vunpack.c.l.b16 %v7115
      %v7206 = vunpack.c.h.b16 %v7115
      %v7207 = vunpack.c.l.b16 %v7116
      %v7208 = vunpack.c.h.b16 %v7116
      %v7209 = vunpack.c.l.b16 %v7117
      %v7210 = vunpack.c.h.b16 %v7117
      %v7211 = vunpack.c.l.b16 %v7118
      %v7212 = vunpack.c.h.b16 %v7118
      %v7213 = vunpack.c.l.b16 %v7119
      %v7214 = vunpack.c.h.b16 %v7119
      %v7215 = vunpack.c.l.b16 %v7120
      %v7216 = vunpack.c.h.b16 %v7120
      %v7217 = vunpack.c.l.b16 %v7121
      %v7218 = vunpack.c.h.b16 %v7121
      %v7219 = vunpack.c.l.b16 %v7122
      %v7220 = vunpack.c.h.b16 %v7122
      %v7221 = vunpack.c.l.b16 %v7123
      %v7222 = vunpack.c.h.b16 %v7123
      %v7223 = vunpack.c.l.b16 %v7124
      %v7224 = vunpack.c.h.b16 %v7124
      %v7225 = vunpack.c.l.b16 %v7125
      %v7226 = vunpack.c.h.b16 %v7125
      %v7227 = vunpack.c.l.b16 %v7126
      %v7228 = vunpack.c.h.b16 %v7126
      %v7229 = vunpack.c.l.b16 %v7127
      %v7230 = vunpack.c.h.b16 %v7127
      %v7231 = vunpack.c.l.b16 %v7128
      %v7232 = vunpack.c.h.b16 %v7128
      %v7233 = vunpack.c.l.b16 %v7129
      %v7234 = vunpack.c.h.b16 %v7129
      %v7235 = vunpack.c.l.b16 %v7130
      %v7236 = vunpack.c.h.b16 %v7130
      %v7237 = vunpack.c.l.b16 %v7131
      %v7238 = vunpack.c.h.b16 %v7131
      %v7239 = vunpack.c.l.b16 %v7132
      %v7240 = vunpack.c.h.b16 %v7132
      %v7241 = vpack.c.b16 %v7179, %v7177
      %v7242 = vpack.c.b16 %v7180, %v7178
      %v7243 = vpack.c.b16 %v7183, %v7181
      %v7244 = vpack.c.b16 %v7184, %v7182
      %v7245 = vpack.c.b16 %v7187, %v7185
      %v7246 = vpack.c.b16 %v7188, %v7186
      %v7247 = vpack.c.b16 %v7191, %v7189
      %v7248 = vpack.c.b16 %v7192, %v7190
      %v7249 = vpack.c.b16 %v7195, %v7193
      %v7250 = vpack.c.b16 %v7196, %v7194
      %v7251 = vpack.c.b16 %v7199, %v7197
      %v7252 = vpack.c.b16 %v7200, %v7198
      %v7253 = vpack.c.b16 %v7203, %v7201
      %v7254 = vpack.c.b16 %v7204, %v7202
      %v7255 = vpack.c.b16 %v7207, %v7205
      %v7256 = vpack.c.b16 %v7208, %v7206
      %v7257 = vpack.c.b16 %v7211, %v7209
      %v7258 = vpack.c.b16 %v7212, %v7210
      %v7259 = vpack.c.b16 %v7215, %v7213
      %v7260 = vpack.c.b16 %v7216, %v7214
      %v7261 = vpack.c.b16 %v7219, %v7217
      %v7262 = vpack.c.b16 %v7220, %v7218
      %v7263 = vpack.c.b16 %v7223, %v7221
      %v7264 = vpack.c.b16 %v7224, %v7222
      %v7265 = vpack.c.b16 %v7227, %v7225
      %v7266 = vpack.c.b16 %v7228, %v7226
      %v7267 = vpack.c.b16 %v7231, %v7229
      %v7268 = vpack.c.b16 %v7232, %v7230
      %v7269 = vpack.c.b16 %v7235, %v7233
      %v7270 = vpack.c.b16 %v7236, %v7234
      %v7271 = vpack.c.b16 %v7239, %v7237
      %v7272 = vpack.c.b16 %v7240, %v7238
      %7305 = vmatprep.subr.bf16.mxu0 %v7256
      %7306 = vmatpush1.bf16.msra.mxu0 %v7255
      %7307 = vmatprep.subr.bf16.mxu0 %v7254
      %7308 = vmatpush1.bf16.msra.mxu0 %v7253
      %7309 = vmatprep.subr.bf16.mxu0 %v7252
      %7310 = vmatpush1.bf16.msra.mxu0 %v7251
      %7311 = vmatprep.subr.bf16.mxu0 %v7250
      %7312 = vmatpush1.bf16.msra.mxu0 %v7249
      %7313 = vmatprep.subr.bf16.mxu0 %v7248
      %7314 = vmatpush1.bf16.msra.mxu0 %v7247
      %7315 = vmatprep.subr.bf16.mxu0 %v7246
      %7316 = vmatpush1.bf16.msra.mxu0 %v7245
      %7317 = vmatprep.subr.bf16.mxu0 %v7244
      %7318 = vmatpush1.bf16.msra.mxu0 %v7243
      %7319 = vmatprep.subr.bf16.mxu0 %v7242
      %7320 = vmatpush1.bf16.msra.mxu0 %v7241
      %7321 = vmatprep.subr.bf16.mxu0 %v7272
      %7322 = vmatpush2.bf16.msra.mxu0 %v7271
      %7323 = vmatprep.subr.bf16.mxu0 %v7270
      %7324 = vmatpush2.bf16.msra.mxu0 %v7269
      %7325 = vmatprep.subr.bf16.mxu0 %v7268
      %7326 = vmatpush2.bf16.msra.mxu0 %v7267
      %7327 = vmatprep.subr.bf16.mxu0 %v7266
      %7328 = vmatpush2.bf16.msra.mxu0 %v7265
      %7329 = vmatprep.subr.bf16.mxu0 %v7264
      %7330 = vmatpush2.bf16.msra.mxu0 %v7263
      %7331 = vmatprep.subr.bf16.mxu0 %v7262
      %7332 = vmatpush2.bf16.msra.mxu0 %v7261
      %7333 = vmatprep.subr.bf16.mxu0 %v7260
      %7334 = vmatpush2.bf16.msra.mxu0 %v7259
      %7335 = vmatprep.subr.bf16.mxu0 %v7258
      %7336 = vmatpush2.bf16.msra.mxu0 %v7257
      %7337 = vmatprep.mubr.bf16.mxu0 %v7038
      %7338 = vmatmul.mubr.bf16.gmra.mxu0 %v7037
      %v7339 = vpop.f32.mrf.mxu0
      %v7340 = vadd.f32 %v7138, %v7339
      %v7341 = vpop.f32.mrf.mxu0
      %v7342 = vadd.f32 %v7142, %v7341
      %v7343 = vpop.f32.mrf.mxu0
      %v7344 = vadd.f32 %v7138, %v7343
      %v7345 = vpop.f32.mrf.mxu0
      %v7346 = vadd.f32 %v7142, %v7345
      %7347 = vmatprep.mubr.bf16.mxu0 %v7040
      %7348 = vmatmul.mubr.bf16.gmra.mxu0 %v7039
      %v7349 = vpop.f32.mrf.mxu0
      %v7350 = vadd.f32 %v7138, %v7349
      %v7351 = vpop.f32.mrf.mxu0
      %v7352 = vadd.f32 %v7142, %v7351
      %v7353 = vpop.f32.mrf.mxu0
      %v7354 = vadd.f32 %v7138, %v7353
      %v7355 = vpop.f32.mrf.mxu0
      %v7356 = vadd.f32 %v7142, %v7355
      %7357 = vmatprep.mubr.bf16.mxu0 %v7042
      %7358 = vmatmul.mubr.bf16.gmra.mxu0 %v7041
      %v7359 = vpop.f32.mrf.mxu0
      %v7360 = vadd.f32 %v7138, %v7359
      %v7361 = vpop.f32.mrf.mxu0
      %v7362 = vadd.f32 %v7142, %v7361
      %v7363 = vpop.f32.mrf.mxu0
      %v7364 = vadd.f32 %v7138, %v7363
      %v7365 = vpop.f32.mrf.mxu0
      %v7366 = vadd.f32 %v7142, %v7365
      %7367 = vmatprep.mubr.bf16.mxu0 %v7044
      %7368 = vmatmul.mubr.bf16.gmra.mxu0 %v7043
      %v7369 = vpop.f32.mrf.mxu0
      %v7370 = vadd.f32 %v7138, %v7369
      %v7371 = vpop.f32.mrf.mxu0
      %v7372 = vadd.f32 %v7142, %v7371
      %v7373 = vpop.f32.mrf.mxu0
      %v7374 = vadd.f32 %v7138, %v7373
      %v7375 = vpop.f32.mrf.mxu0
      %v7376 = vadd.f32 %v7142, %v7375
      %7377 = vmatprep.mubr.bf16.mxu0 %v7046
      %7378 = vmatmul.mubr.bf16.gmra.mxu0 %v7045
      %v7379 = vpop.f32.mrf.mxu0
      %v7380 = vadd.f32 %v7138, %v7379
      %v7381 = vpop.f32.mrf.mxu0
      %v7382 = vadd.f32 %v7142, %v7381
      %v7383 = vpop.f32.mrf.mxu0
      %v7384 = vadd.f32 %v7138, %v7383
      %v7385 = vpop.f32.mrf.mxu0
      %v7386 = vadd.f32 %v7142, %v7385
      %7387 = vmatprep.mubr.bf16.mxu0 %v7048
      %7388 = vmatmul.mubr.bf16.gmra.mxu0 %v7047
      %v7389 = vpop.f32.mrf.mxu0
      %v7390 = vadd.f32 %v7138, %v7389
      %v7391 = vpop.f32.mrf.mxu0
      %v7392 = vadd.f32 %v7142, %v7391
      %v7393 = vpop.f32.mrf.mxu0
      %v7394 = vadd.f32 %v7138, %v7393
      %v7395 = vpop.f32.mrf.mxu0
      %v7396 = vadd.f32 %v7142, %v7395
      %7397 = vmatprep.mubr.bf16.mxu0 %v7050
      %7398 = vmatmul.mubr.bf16.gmra.mxu0 %v7049
      %v7399 = vpop.f32.mrf.mxu0
      %v7400 = vadd.f32 %v7138, %v7399
      %v7401 = vpop.f32.mrf.mxu0
      %v7402 = vadd.f32 %v7142, %v7401
      %v7403 = vpop.f32.mrf.mxu0
      %v7404 = vadd.f32 %v7138, %v7403
      %v7405 = vpop.f32.mrf.mxu0
      %v7406 = vadd.f32 %v7142, %v7405
      %7407 = vmatprep.mubr.bf16.mxu0 %v7052
      %7408 = vmatmul.mubr.bf16.gmra.mxu0 %v7051
      %v7409 = vpop.f32.mrf.mxu0
      %v7410 = vadd.f32 %v7138, %v7409
      %v7411 = vpop.f32.mrf.mxu0
      %v7412 = vadd.f32 %v7142, %v7411
      %v7413 = vpop.f32.mrf.mxu0
      %v7414 = vadd.f32 %v7138, %v7413
      %v7415 = vpop.f32.mrf.mxu0
      %v7416 = vadd.f32 %v7142, %v7415
      %7417 = vmatprep.mubr.bf16.mxu0 %v7054
      %7418 = vmatmul.mubr.bf16.gmra.mxu0 %v7053
      %v7419 = vpop.f32.mrf.mxu0
      %v7420 = vadd.f32 %v7138, %v7419
      %v7421 = vpop.f32.mrf.mxu0
      %v7422 = vadd.f32 %v7142, %v7421
      %v7423 = vpop.f32.mrf.mxu0
      %v7424 = vadd.f32 %v7138, %v7423
      %v7425 = vpop.f32.mrf.mxu0
      %v7426 = vadd.f32 %v7142, %v7425
      %7427 = vmatprep.mubr.bf16.mxu0 %v7056
      %7428 = vmatmul.mubr.bf16.gmra.mxu0 %v7055
      %v7429 = vpop.f32.mrf.mxu0
      %v7430 = vadd.f32 %v7138, %v7429
      %v7431 = vpop.f32.mrf.mxu0
      %v7432 = vadd.f32 %v7142, %v7431
      %v7433 = vpop.f32.mrf.mxu0
      %v7434 = vadd.f32 %v7138, %v7433
      %v7435 = vpop.f32.mrf.mxu0
      %v7436 = vadd.f32 %v7142, %v7435
      %7437 = vmatprep.mubr.bf16.mxu0 %v7058
      %7438 = vmatmul.mubr.bf16.gmra.mxu0 %v7057
      %v7439 = vpop.f32.mrf.mxu0
      %v7440 = vadd.f32 %v7138, %v7439
      %v7441 = vpop.f32.mrf.mxu0
      %v7442 = vadd.f32 %v7142, %v7441
      %v7443 = vpop.f32.mrf.mxu0
      %v7444 = vadd.f32 %v7138, %v7443
      %v7445 = vpop.f32.mrf.mxu0
      %v7446 = vadd.f32 %v7142, %v7445
      %7447 = vmatprep.mubr.bf16.mxu0 %v7060
      %7448 = vmatmul.mubr.bf16.gmra.mxu0 %v7059
      %v7449 = vpop.f32.mrf.mxu0
      %v7450 = vadd.f32 %v7138, %v7449
      %v7451 = vpop.f32.mrf.mxu0
      %v7452 = vadd.f32 %v7142, %v7451
      %v7453 = vpop.f32.mrf.mxu0
      %v7454 = vadd.f32 %v7138, %v7453
      %v7455 = vpop.f32.mrf.mxu0
      %v7456 = vadd.f32 %v7142, %v7455
      %7457 = vmatprep.mubr.bf16.mxu0 %v7062
      %7458 = vmatmul.mubr.bf16.gmra.mxu0 %v7061
      %v7459 = vpop.f32.mrf.mxu0
      %v7460 = vadd.f32 %v7138, %v7459
      %v7461 = vpop.f32.mrf.mxu0
      %v7462 = vadd.f32 %v7142, %v7461
      %v7463 = vpop.f32.mrf.mxu0
      %v7464 = vadd.f32 %v7138, %v7463
      %v7465 = vpop.f32.mrf.mxu0
      %v7466 = vadd.f32 %v7142, %v7465
      %7467 = vmatprep.mubr.bf16.mxu0 %v7064
      %7468 = vmatmul.mubr.bf16.gmra.mxu0 %v7063
      %v7469 = vpop.f32.mrf.mxu0
      %v7470 = vadd.f32 %v7138, %v7469
      %v7471 = vpop.f32.mrf.mxu0
      %v7472 = vadd.f32 %v7142, %v7471
      %v7473 = vpop.f32.mrf.mxu0
      %v7474 = vadd.f32 %v7138, %v7473
      %v7475 = vpop.f32.mrf.mxu0
      %v7476 = vadd.f32 %v7142, %v7475
      %7477 = vmatprep.mubr.bf16.mxu0 %v7066
      %7478 = vmatmul.mubr.bf16.gmra.mxu0 %v7065
      %v7479 = vpop.f32.mrf.mxu0
      %v7480 = vadd.f32 %v7138, %v7479
      %v7481 = vpop.f32.mrf.mxu0
      %v7482 = vadd.f32 %v7142, %v7481
      %v7483 = vpop.f32.mrf.mxu0
      %v7484 = vadd.f32 %v7138, %v7483
      %v7485 = vpop.f32.mrf.mxu0
      %v7486 = vadd.f32 %v7142, %v7485
      %7487 = vmatprep.mubr.bf16.mxu0 %v7068
      %7488 = vmatmul.mubr.bf16.gmra.mxu0 %v7067
      %v7489 = vpop.f32.mrf.mxu0
      %v7490 = vadd.f32 %v7138, %v7489
      %v7491 = vpop.f32.mrf.mxu0
      %v7492 = vadd.f32 %v7142, %v7491
      %v7493 = vpop.f32.mrf.mxu0
      %v7494 = vadd.f32 %v7138, %v7493
      %v7495 = vpop.f32.mrf.mxu0
      %v7496 = vadd.f32 %v7142, %v7495
      %7497 = vmatprep.mubr.bf16.mxu0 %v7070
      %7498 = vmatmul.mubr.bf16.gmra.mxu0 %v7069
      %v7499 = vpop.f32.mrf.mxu0
      %v7500 = vadd.f32 %v7138, %v7499
      %v7501 = vpop.f32.mrf.mxu0
      %v7502 = vadd.f32 %v7142, %v7501
      %v7503 = vpop.f32.mrf.mxu0
      %v7504 = vadd.f32 %v7138, %v7503
      %v7505 = vpop.f32.mrf.mxu0
      %v7506 = vadd.f32 %v7142, %v7505
      %7507 = vmatprep.mubr.bf16.mxu0 %v7072
      %7508 = vmatmul.mubr.bf16.gmra.mxu0 %v7071
      %v7509 = vpop.f32.mrf.mxu0
      %v7510 = vadd.f32 %v7138, %v7509
      %v7511 = vpop.f32.mrf.mxu0
      %v7512 = vadd.f32 %v7142, %v7511
      %v7513 = vpop.f32.mrf.mxu0
      %v7514 = vadd.f32 %v7138, %v7513
      %v7515 = vpop.f32.mrf.mxu0
      %v7516 = vadd.f32 %v7142, %v7515
      %7517 = vmatprep.mubr.bf16.mxu0 %v7074
      %7518 = vmatmul.mubr.bf16.gmra.mxu0 %v7073
      %v7519 = vpop.f32.mrf.mxu0
      %v7520 = vadd.f32 %v7138, %v7519
      %v7521 = vpop.f32.mrf.mxu0
      %v7522 = vadd.f32 %v7142, %v7521
      %v7523 = vpop.f32.mrf.mxu0
      %v7524 = vadd.f32 %v7138, %v7523
      %v7525 = vpop.f32.mrf.mxu0
      %v7526 = vadd.f32 %v7142, %v7525
      %7527 = vmatprep.mubr.bf16.mxu0 %v7076
      %7528 = vmatmul.mubr.bf16.gmra.mxu0 %v7075
      %v7529 = vpop.f32.mrf.mxu0
      %v7530 = vadd.f32 %v7138, %v7529
      %v7531 = vpop.f32.mrf.mxu0
      %v7532 = vadd.f32 %v7142, %v7531
      %v7533 = vpop.f32.mrf.mxu0
      %v7534 = vadd.f32 %v7138, %v7533
      %v7535 = vpop.f32.mrf.mxu0
      %v7536 = vadd.f32 %v7142, %v7535
      %7537 = vmatprep.mubr.bf16.mxu0 %v7078
      %7538 = vmatmul.mubr.bf16.gmra.mxu0 %v7077
      %v7539 = vpop.f32.mrf.mxu0
      %v7540 = vadd.f32 %v7138, %v7539
      %v7541 = vpop.f32.mrf.mxu0
      %v7542 = vadd.f32 %v7142, %v7541
      %v7543 = vpop.f32.mrf.mxu0
      %v7544 = vadd.f32 %v7138, %v7543
      %v7545 = vpop.f32.mrf.mxu0
      %v7546 = vadd.f32 %v7142, %v7545
      %7547 = vmatprep.mubr.bf16.mxu0 %v7080
      %7548 = vmatmul.mubr.bf16.gmra.mxu0 %v7079
      %v7549 = vpop.f32.mrf.mxu0
      %v7550 = vadd.f32 %v7138, %v7549
      %v7551 = vpop.f32.mrf.mxu0
      %v7552 = vadd.f32 %v7142, %v7551
      %v7553 = vpop.f32.mrf.mxu0
      %v7554 = vadd.f32 %v7138, %v7553
      %v7555 = vpop.f32.mrf.mxu0
      %v7556 = vadd.f32 %v7142, %v7555
      %7557 = vmatprep.mubr.bf16.mxu0 %v7082
      %7558 = vmatmul.mubr.bf16.gmra.mxu0 %v7081
      %v7559 = vpop.f32.mrf.mxu0
      %v7560 = vadd.f32 %v7138, %v7559
      %v7561 = vpop.f32.mrf.mxu0
      %v7562 = vadd.f32 %v7142, %v7561
      %v7563 = vpop.f32.mrf.mxu0
      %v7564 = vadd.f32 %v7138, %v7563
      %v7565 = vpop.f32.mrf.mxu0
      %v7566 = vadd.f32 %v7142, %v7565
      %7567 = vmatprep.mubr.bf16.mxu0 %v7084
      %7568 = vmatmul.mubr.bf16.gmra.mxu0 %v7083
      %v7569 = vpop.f32.mrf.mxu0
      %v7570 = vadd.f32 %v7138, %v7569
      %v7571 = vpop.f32.mrf.mxu0
      %v7572 = vadd.f32 %v7142, %v7571
      %v7573 = vpop.f32.mrf.mxu0
      %v7574 = vadd.f32 %v7138, %v7573
      %v7575 = vpop.f32.mrf.mxu0
      %v7576 = vadd.f32 %v7142, %v7575
      %7577 = vmatprep.mubr.bf16.mxu0 %v7086
      %7578 = vmatmul.mubr.bf16.gmra.mxu0 %v7085
      %v7579 = vpop.f32.mrf.mxu0
      %v7580 = vadd.f32 %v7138, %v7579
      %v7581 = vpop.f32.mrf.mxu0
      %v7582 = vadd.f32 %v7142, %v7581
      %v7583 = vpop.f32.mrf.mxu0
      %v7584 = vadd.f32 %v7138, %v7583
      %v7585 = vpop.f32.mrf.mxu0
      %v7586 = vadd.f32 %v7142, %v7585
      %7587 = vmatprep.mubr.bf16.mxu0 %v7088
      %7588 = vmatmul.mubr.bf16.gmra.mxu0 %v7087
      %v7589 = vpop.f32.mrf.mxu0
      %v7590 = vadd.f32 %v7138, %v7589
      %v7591 = vpop.f32.mrf.mxu0
      %v7592 = vadd.f32 %v7142, %v7591
      %v7593 = vpop.f32.mrf.mxu0
      %v7594 = vadd.f32 %v7138, %v7593
      %v7595 = vpop.f32.mrf.mxu0
      %v7596 = vadd.f32 %v7142, %v7595
      %7597 = vmatprep.mubr.bf16.mxu0 %v7090
      %7598 = vmatmul.mubr.bf16.gmra.mxu0 %v7089
      %v7599 = vpop.f32.mrf.mxu0
      %v7600 = vadd.f32 %v7138, %v7599
      %v7601 = vpop.f32.mrf.mxu0
      %v7602 = vadd.f32 %v7142, %v7601
      %v7603 = vpop.f32.mrf.mxu0
      %v7604 = vadd.f32 %v7138, %v7603
      %v7605 = vpop.f32.mrf.mxu0
      %v7606 = vadd.f32 %v7142, %v7605
      %7607 = vmatprep.mubr.bf16.mxu0 %v7092
      %7608 = vmatmul.mubr.bf16.gmra.mxu0 %v7091
      %v7609 = vpop.f32.mrf.mxu0
      %v7610 = vadd.f32 %v7138, %v7609
      %v7611 = vpop.f32.mrf.mxu0
      %v7612 = vadd.f32 %v7142, %v7611
      %v7613 = vpop.f32.mrf.mxu0
      %v7614 = vadd.f32 %v7138, %v7613
      %v7615 = vpop.f32.mrf.mxu0
      %v7616 = vadd.f32 %v7142, %v7615
      %7617 = vmatprep.mubr.bf16.mxu0 %v7094
      %7618 = vmatmul.mubr.bf16.gmra.mxu0 %v7093
      %v7619 = vpop.f32.mrf.mxu0
      %v7620 = vadd.f32 %v7138, %v7619
      %v7621 = vpop.f32.mrf.mxu0
      %v7622 = vadd.f32 %v7142, %v7621
      %v7623 = vpop.f32.mrf.mxu0
      %v7624 = vadd.f32 %v7138, %v7623
      %v7625 = vpop.f32.mrf.mxu0
      %v7626 = vadd.f32 %v7142, %v7625
      %7627 = vmatprep.mubr.bf16.mxu0 %v7096
      %7628 = vmatmul.mubr.bf16.gmra.mxu0 %v7095
      %v7629 = vpop.f32.mrf.mxu0
      %v7630 = vadd.f32 %v7138, %v7629
      %v7631 = vpop.f32.mrf.mxu0
      %v7632 = vadd.f32 %v7142, %v7631
      %v7633 = vpop.f32.mrf.mxu0
      %v7634 = vadd.f32 %v7138, %v7633
      %v7635 = vpop.f32.mrf.mxu0
      %v7636 = vadd.f32 %v7142, %v7635
      %7637 = vmatprep.mubr.bf16.mxu0 %v7098
      %7638 = vmatmul.mubr.bf16.gmra.mxu0 %v7097
      %v7639 = vpop.f32.mrf.mxu0
      %v7640 = vadd.f32 %v7138, %v7639
      %v7641 = vpop.f32.mrf.mxu0
      %v7642 = vadd.f32 %v7142, %v7641
      %v7643 = vpop.f32.mrf.mxu0
      %v7644 = vadd.f32 %v7138, %v7643
      %v7645 = vpop.f32.mrf.mxu0
      %v7646 = vadd.f32 %v7142, %v7645
      %7647 = vmatprep.mubr.bf16.mxu0 %v7100
      %7648 = vmatmul.mubr.bf16.gmra.mxu0 %v7099
      %v7649 = vpop.f32.mrf.mxu0
      %v7650 = vadd.f32 %v7138, %v7649
      %v7651 = vpop.f32.mrf.mxu0
      %v7652 = vadd.f32 %v7142, %v7651
      %v7653 = vpop.f32.mrf.mxu0
      %v7654 = vadd.f32 %v7138, %v7653
      %v7655 = vpop.f32.mrf.mxu0
      %v7656 = vadd.f32 %v7142, %v7655
      %7657 = vdwg.mxu0
      %v7658 = vpack.c.bf16 %v7344, %v7340
      %v7659 = vpack.c.bf16 %v7346, %v7342
      %v7660 = vpack.c.bf16 %v7354, %v7350
      %v7661 = vpack.c.bf16 %v7356, %v7352
      %v7662 = vpack.c.bf16 %v7364, %v7360
      %v7663 = vpack.c.bf16 %v7366, %v7362
      %v7664 = vpack.c.bf16 %v7374, %v7370
      %v7665 = vpack.c.bf16 %v7376, %v7372
      %v7666 = vpack.c.bf16 %v7384, %v7380
      %v7667 = vpack.c.bf16 %v7386, %v7382
      %v7668 = vpack.c.bf16 %v7394, %v7390
      %v7669 = vpack.c.bf16 %v7396, %v7392
      %v7670 = vpack.c.bf16 %v7404, %v7400
      %v7671 = vpack.c.bf16 %v7406, %v7402
      %v7672 = vpack.c.bf16 %v7414, %v7410
      %v7673 = vpack.c.bf16 %v7416, %v7412
      %v7674 = vpack.c.bf16 %v7424, %v7420
      %v7675 = vpack.c.bf16 %v7426, %v7422
      %v7676 = vpack.c.bf16 %v7434, %v7430
      %v7677 = vpack.c.bf16 %v7436, %v7432
      %v7678 = vpack.c.bf16 %v7444, %v7440
      %v7679 = vpack.c.bf16 %v7446, %v7442
      %v7680 = vpack.c.bf16 %v7454, %v7450
      %v7681 = vpack.c.bf16 %v7456, %v7452
      %v7682 = vpack.c.bf16 %v7464, %v7460
      %v7683 = vpack.c.bf16 %v7466, %v7462
      %v7684 = vpack.c.bf16 %v7474, %v7470
      %v7685 = vpack.c.bf16 %v7476, %v7472
      %v7686 = vpack.c.bf16 %v7484, %v7480
      %v7687 = vpack.c.bf16 %v7486, %v7482
      %v7688 = vpack.c.bf16 %v7494, %v7490
      %v7689 = vpack.c.bf16 %v7496, %v7492
      %v7690 = vpack.c.bf16 %v7504, %v7500
      %v7691 = vpack.c.bf16 %v7506, %v7502
      %v7692 = vpack.c.bf16 %v7514, %v7510
      %v7693 = vpack.c.bf16 %v7516, %v7512
      %v7694 = vpack.c.bf16 %v7524, %v7520
      %v7695 = vpack.c.bf16 %v7526, %v7522
      %v7696 = vpack.c.bf16 %v7534, %v7530
      %v7697 = vpack.c.bf16 %v7536, %v7532
      %v7698 = vpack.c.bf16 %v7544, %v7540
      %v7699 = vpack.c.bf16 %v7546, %v7542
      %v7700 = vpack.c.bf16 %v7554, %v7550
      %v7701 = vpack.c.bf16 %v7556, %v7552
      %v7702 = vpack.c.bf16 %v7564, %v7560
      %v7703 = vpack.c.bf16 %v7566, %v7562
      %v7704 = vpack.c.bf16 %v7574, %v7570
      %v7705 = vpack.c.bf16 %v7576, %v7572
      %v7706 = vpack.c.bf16 %v7584, %v7580
      %v7707 = vpack.c.bf16 %v7586, %v7582
      %v7708 = vpack.c.bf16 %v7594, %v7590
      %v7709 = vpack.c.bf16 %v7596, %v7592
      %v7710 = vpack.c.bf16 %v7604, %v7600
      %v7711 = vpack.c.bf16 %v7606, %v7602
      %v7712 = vpack.c.bf16 %v7614, %v7610
      %v7713 = vpack.c.bf16 %v7616, %v7612
      %v7714 = vpack.c.bf16 %v7624, %v7620
      %v7715 = vpack.c.bf16 %v7626, %v7622
      %v7716 = vpack.c.bf16 %v7634, %v7630
      %v7717 = vpack.c.bf16 %v7636, %v7632
      %v7718 = vpack.c.bf16 %v7644, %v7640
      %v7719 = vpack.c.bf16 %v7646, %v7642
      %v7720 = vpack.c.bf16 %v7654, %v7650
      %v7721 = vpack.c.bf16 %v7656, %v7652
      %v7722 = vunpack.c.l.bf16 %v7037
      %v7723 = vunpack.c.l.bf16 %v7038
      %v7724 = vunpack.c.h.bf16 %v7037
      %v7725 = vunpack.c.h.bf16 %v7038
      %v7726 = vunpack.c.l.bf16 %v7039
      %v7727 = vunpack.c.l.bf16 %v7040
      %v7728 = vunpack.c.h.bf16 %v7039
      %v7729 = vunpack.c.h.bf16 %v7040
      %v7730 = vunpack.c.l.bf16 %v7041
      %v7731 = vunpack.c.l.bf16 %v7042
      %v7732 = vunpack.c.h.bf16 %v7041
      %v7733 = vunpack.c.h.bf16 %v7042
      %v7734 = vunpack.c.l.bf16 %v7043
      %v7735 = vunpack.c.l.bf16 %v7044
      %v7736 = vunpack.c.h.bf16 %v7043
      %v7737 = vunpack.c.h.bf16 %v7044
      %v7738 = vunpack.c.l.bf16 %v7045
      %v7739 = vunpack.c.l.bf16 %v7046
      %v7740 = vunpack.c.h.bf16 %v7045
      %v7741 = vunpack.c.h.bf16 %v7046
      %v7742 = vunpack.c.l.bf16 %v7047
      %v7743 = vunpack.c.l.bf16 %v7048
      %v7744 = vunpack.c.h.bf16 %v7047
      %v7745 = vunpack.c.h.bf16 %v7048
      %v7746 = vunpack.c.l.bf16 %v7049
      %v7747 = vunpack.c.l.bf16 %v7050
      %v7748 = vunpack.c.h.bf16 %v7049
      %v7749 = vunpack.c.h.bf16 %v7050
      %v7750 = vunpack.c.l.bf16 %v7051
      %v7751 = vunpack.c.l.bf16 %v7052
      %v7752 = vunpack.c.h.bf16 %v7051
      %v7753 = vunpack.c.h.bf16 %v7052
      %v7754 = vunpack.c.l.bf16 %v7053
      %v7755 = vunpack.c.l.bf16 %v7054
      %v7756 = vunpack.c.h.bf16 %v7053
      %v7757 = vunpack.c.h.bf16 %v7054
      %v7758 = vunpack.c.l.bf16 %v7055
      %v7759 = vunpack.c.l.bf16 %v7056
      %v7760 = vunpack.c.h.bf16 %v7055
      %v7761 = vunpack.c.h.bf16 %v7056
      %v7762 = vunpack.c.l.bf16 %v7057
      %v7763 = vunpack.c.l.bf16 %v7058
      %v7764 = vunpack.c.h.bf16 %v7057
      %v7765 = vunpack.c.h.bf16 %v7058
      %v7766 = vunpack.c.l.bf16 %v7059
      %v7767 = vunpack.c.l.bf16 %v7060
      %v7768 = vunpack.c.h.bf16 %v7059
      %v7769 = vunpack.c.h.bf16 %v7060
      %v7770 = vunpack.c.l.bf16 %v7061
      %v7771 = vunpack.c.l.bf16 %v7062
      %v7772 = vunpack.c.h.bf16 %v7061
      %v7773 = vunpack.c.h.bf16 %v7062
      %v7774 = vunpack.c.l.bf16 %v7063
      %v7775 = vunpack.c.l.bf16 %v7064
      %v7776 = vunpack.c.h.bf16 %v7063
      %v7777 = vunpack.c.h.bf16 %v7064
      %v7778 = vunpack.c.l.bf16 %v7065
      %v7779 = vunpack.c.l.bf16 %v7066
      %v7780 = vunpack.c.h.bf16 %v7065
      %v7781 = vunpack.c.h.bf16 %v7066
      %v7782 = vunpack.c.l.bf16 %v7067
      %v7783 = vunpack.c.l.bf16 %v7068
      %v7784 = vunpack.c.h.bf16 %v7067
      %v7785 = vunpack.c.h.bf16 %v7068
      %v7786 = vunpack.c.l.bf16 %v7069
      %v7787 = vunpack.c.l.bf16 %v7070
      %v7788 = vunpack.c.h.bf16 %v7069
      %v7789 = vunpack.c.h.bf16 %v7070
      %v7790 = vunpack.c.l.bf16 %v7071
      %v7791 = vunpack.c.l.bf16 %v7072
      %v7792 = vunpack.c.h.bf16 %v7071
      %v7793 = vunpack.c.h.bf16 %v7072
      %v7794 = vunpack.c.l.bf16 %v7073
      %v7795 = vunpack.c.l.bf16 %v7074
      %v7796 = vunpack.c.h.bf16 %v7073
      %v7797 = vunpack.c.h.bf16 %v7074
      %v7798 = vunpack.c.l.bf16 %v7075
      %v7799 = vunpack.c.l.bf16 %v7076
      %v7800 = vunpack.c.h.bf16 %v7075
      %v7801 = vunpack.c.h.bf16 %v7076
      %v7802 = vunpack.c.l.bf16 %v7077
      %v7803 = vunpack.c.l.bf16 %v7078
      %v7804 = vunpack.c.h.bf16 %v7077
      %v7805 = vunpack.c.h.bf16 %v7078
      %v7806 = vunpack.c.l.bf16 %v7079
      %v7807 = vunpack.c.l.bf16 %v7080
      %v7808 = vunpack.c.h.bf16 %v7079
      %v7809 = vunpack.c.h.bf16 %v7080
      %v7810 = vunpack.c.l.bf16 %v7081
      %v7811 = vunpack.c.l.bf16 %v7082
      %v7812 = vunpack.c.h.bf16 %v7081
      %v7813 = vunpack.c.h.bf16 %v7082
      %v7814 = vunpack.c.l.bf16 %v7083
      %v7815 = vunpack.c.l.bf16 %v7084
      %v7816 = vunpack.c.h.bf16 %v7083
      %v7817 = vunpack.c.h.bf16 %v7084
      %v7818 = vunpack.c.l.bf16 %v7085
      %v7819 = vunpack.c.l.bf16 %v7086
      %v7820 = vunpack.c.h.bf16 %v7085
      %v7821 = vunpack.c.h.bf16 %v7086
      %v7822 = vunpack.c.l.bf16 %v7087
      %v7823 = vunpack.c.l.bf16 %v7088
      %v7824 = vunpack.c.h.bf16 %v7087
      %v7825 = vunpack.c.h.bf16 %v7088
      %v7826 = vunpack.c.l.bf16 %v7089
      %v7827 = vunpack.c.l.bf16 %v7090
      %v7828 = vunpack.c.h.bf16 %v7089
      %v7829 = vunpack.c.h.bf16 %v7090
      %v7830 = vunpack.c.l.bf16 %v7091
      %v7831 = vunpack.c.l.bf16 %v7092
      %v7832 = vunpack.c.h.bf16 %v7091
      %v7833 = vunpack.c.h.bf16 %v7092
      %v7834 = vunpack.c.l.bf16 %v7093
      %v7835 = vunpack.c.l.bf16 %v7094
      %v7836 = vunpack.c.h.bf16 %v7093
      %v7837 = vunpack.c.h.bf16 %v7094
      %v7838 = vunpack.c.l.bf16 %v7095
      %v7839 = vunpack.c.l.bf16 %v7096
      %v7840 = vunpack.c.h.bf16 %v7095
      %v7841 = vunpack.c.h.bf16 %v7096
      %v7842 = vunpack.c.l.bf16 %v7097
      %v7843 = vunpack.c.l.bf16 %v7098
      %v7844 = vunpack.c.h.bf16 %v7097
      %v7845 = vunpack.c.h.bf16 %v7098
      %v7846 = vunpack.c.l.bf16 %v7099
      %v7847 = vunpack.c.l.bf16 %v7100
      %v7848 = vunpack.c.h.bf16 %v7099
      %v7849 = vunpack.c.h.bf16 %v7100
      %s7850 = scalar_lea.vmem %s5, 1
      %v7851 = vld [vmem:[%s7850] ss:$8 sm:$0x3]
      %v7853 = vlaneseq
      %v7854 = vshrl.u32 %v7853, 7
      %v7855 = vsub.s32 0, %v7854
      %v7856 = vrot.slane %v7851, %v7855
      %v7857 = vlaneseq
      %v7858 = vshrl.u32 %v7857, 7
      %v7859 = vsub.s32 1, %v7858
      %v7860 = vrot.slane %v7851, %v7859
      %v7863 = vmul.f32 %v7722, %v7856
      %v7864 = vmul.f32 %v7723, %v7860
      %v7865 = vmul.f32 %v7724, %v7856
      %v7866 = vmul.f32 %v7725, %v7860
      %v7867 = vmul.f32 %v7726, %v7856
      %v7868 = vmul.f32 %v7727, %v7860
      %v7869 = vmul.f32 %v7728, %v7856
      %v7870 = vmul.f32 %v7729, %v7860
      %v7871 = vmul.f32 %v7730, %v7856
      %v7872 = vmul.f32 %v7731, %v7860
      %v7873 = vmul.f32 %v7732, %v7856
      %v7874 = vmul.f32 %v7733, %v7860
      %v7875 = vmul.f32 %v7734, %v7856
      %v7876 = vmul.f32 %v7735, %v7860
      %v7877 = vmul.f32 %v7736, %v7856
      %v7878 = vmul.f32 %v7737, %v7860
      %v7879 = vmul.f32 %v7738, %v7856
      %v7880 = vmul.f32 %v7739, %v7860
      %v7881 = vmul.f32 %v7740, %v7856
      %v7882 = vmul.f32 %v7741, %v7860
      %v7883 = vmul.f32 %v7742, %v7856
      %v7884 = vmul.f32 %v7743, %v7860
      %v7885 = vmul.f32 %v7744, %v7856
      %v7886 = vmul.f32 %v7745, %v7860
      %v7887 = vmul.f32 %v7746, %v7856
      %v7888 = vmul.f32 %v7747, %v7860
      %v7889 = vmul.f32 %v7748, %v7856
      %v7890 = vmul.f32 %v7749, %v7860
      %v7891 = vmul.f32 %v7750, %v7856
      %v7892 = vmul.f32 %v7751, %v7860
      %v7893 = vmul.f32 %v7752, %v7856
      %v7894 = vmul.f32 %v7753, %v7860
      %v7895 = vmul.f32 %v7754, %v7856
      %v7896 = vmul.f32 %v7755, %v7860
      %v7897 = vmul.f32 %v7756, %v7856
      %v7898 = vmul.f32 %v7757, %v7860
      %v7899 = vmul.f32 %v7758, %v7856
      %v7900 = vmul.f32 %v7759, %v7860
      %v7901 = vmul.f32 %v7760, %v7856
      %v7902 = vmul.f32 %v7761, %v7860
      %v7903 = vmul.f32 %v7762, %v7856
      %v7904 = vmul.f32 %v7763, %v7860
      %v7905 = vmul.f32 %v7764, %v7856
      %v7906 = vmul.f32 %v7765, %v7860
      %v7907 = vmul.f32 %v7766, %v7856
      %v7908 = vmul.f32 %v7767, %v7860
      %v7909 = vmul.f32 %v7768, %v7856
      %v7910 = vmul.f32 %v7769, %v7860
      %v7911 = vmul.f32 %v7770, %v7856
      %v7912 = vmul.f32 %v7771, %v7860
      %v7913 = vmul.f32 %v7772, %v7856
      %v7914 = vmul.f32 %v7773, %v7860
      %v7915 = vmul.f32 %v7774, %v7856
      %v7916 = vmul.f32 %v7775, %v7860
      %v7917 = vmul.f32 %v7776, %v7856
      %v7918 = vmul.f32 %v7777, %v7860
      %v7919 = vmul.f32 %v7778, %v7856
      %v7920 = vmul.f32 %v7779, %v7860
      %v7921 = vmul.f32 %v7780, %v7856
      %v7922 = vmul.f32 %v7781, %v7860
      %v7923 = vmul.f32 %v7782, %v7856
      %v7924 = vmul.f32 %v7783, %v7860
      %v7925 = vmul.f32 %v7784, %v7856
      %v7926 = vmul.f32 %v7785, %v7860
      %v7927 = vmul.f32 %v7786, %v7856
      %v7928 = vmul.f32 %v7787, %v7860
      %v7929 = vmul.f32 %v7788, %v7856
      %v7930 = vmul.f32 %v7789, %v7860
      %v7931 = vmul.f32 %v7790, %v7856
      %v7932 = vmul.f32 %v7791, %v7860
      %v7933 = vmul.f32 %v7792, %v7856
      %v7934 = vmul.f32 %v7793, %v7860
      %v7935 = vmul.f32 %v7794, %v7856
      %v7936 = vmul.f32 %v7795, %v7860
      %v7937 = vmul.f32 %v7796, %v7856
      %v7938 = vmul.f32 %v7797, %v7860
      %v7939 = vmul.f32 %v7798, %v7856
      %v7940 = vmul.f32 %v7799, %v7860
      %v7941 = vmul.f32 %v7800, %v7856
      %v7942 = vmul.f32 %v7801, %v7860
      %v7943 = vmul.f32 %v7802, %v7856
      %v7944 = vmul.f32 %v7803, %v7860
      %v7945 = vmul.f32 %v7804, %v7856
      %v7946 = vmul.f32 %v7805, %v7860
      %v7947 = vmul.f32 %v7806, %v7856
      %v7948 = vmul.f32 %v7807, %v7860
      %v7949 = vmul.f32 %v7808, %v7856
      %v7950 = vmul.f32 %v7809, %v7860
      %v7951 = vmul.f32 %v7810, %v7856
      %v7952 = vmul.f32 %v7811, %v7860
      %v7953 = vmul.f32 %v7812, %v7856
      %v7954 = vmul.f32 %v7813, %v7860
      %v7955 = vmul.f32 %v7814, %v7856
      %v7956 = vmul.f32 %v7815, %v7860
      %v7957 = vmul.f32 %v7816, %v7856
      %v7958 = vmul.f32 %v7817, %v7860
      %v7959 = vmul.f32 %v7818, %v7856
      %v7960 = vmul.f32 %v7819, %v7860
      %v7961 = vmul.f32 %v7820, %v7856
      %v7962 = vmul.f32 %v7821, %v7860
      %v7963 = vmul.f32 %v7822, %v7856
      %v7964 = vmul.f32 %v7823, %v7860
      %v7965 = vmul.f32 %v7824, %v7856
      %v7966 = vmul.f32 %v7825, %v7860
      %v7967 = vmul.f32 %v7826, %v7856
      %v7968 = vmul.f32 %v7827, %v7860
      %v7969 = vmul.f32 %v7828, %v7856
      %v7970 = vmul.f32 %v7829, %v7860
      %v7971 = vmul.f32 %v7830, %v7856
      %v7972 = vmul.f32 %v7831, %v7860
      %v7973 = vmul.f32 %v7832, %v7856
      %v7974 = vmul.f32 %v7833, %v7860
      %v7975 = vmul.f32 %v7834, %v7856
      %v7976 = vmul.f32 %v7835, %v7860
      %v7977 = vmul.f32 %v7836, %v7856
      %v7978 = vmul.f32 %v7837, %v7860
      %v7979 = vmul.f32 %v7838, %v7856
      %v7980 = vmul.f32 %v7839, %v7860
      %v7981 = vmul.f32 %v7840, %v7856
      %v7982 = vmul.f32 %v7841, %v7860
      %v7983 = vmul.f32 %v7842, %v7856
      %v7984 = vmul.f32 %v7843, %v7860
      %v7985 = vmul.f32 %v7844, %v7856
      %v7986 = vmul.f32 %v7845, %v7860
      %v7987 = vmul.f32 %v7846, %v7856
      %v7988 = vmul.f32 %v7847, %v7860
      %v7989 = vmul.f32 %v7848, %v7856
      %v7990 = vmul.f32 %v7849, %v7860
      %v7991 = vadd.f32 %v7863, %v7864
      %7992 = vadd.xlane.f32.xlu0 %v7991
      %v7993 = vpop.xlane.xlu0 %7992
      %v7994 = vadd.f32 %v7865, %v7866
      %7995 = vadd.xlane.f32.xlu0 %v7994
      %v7996 = vpop.xlane.xlu0 %7995
      %v7997 = vadd.f32 %v7867, %v7868
      %7998 = vadd.xlane.f32.xlu0 %v7997
      %v7999 = vpop.xlane.xlu0 %7998
      %v8000 = vadd.f32 %v7869, %v7870
      %8001 = vadd.xlane.f32.xlu0 %v8000
      %v8002 = vpop.xlane.xlu0 %8001
      %v8003 = vadd.f32 %v7871, %v7872
      %8004 = vadd.xlane.f32.xlu0 %v8003
      %v8005 = vpop.xlane.xlu0 %8004
      %v8006 = vadd.f32 %v7873, %v7874
      %8007 = vadd.xlane.f32.xlu0 %v8006
      %v8008 = vpop.xlane.xlu0 %8007
      %v8009 = vadd.f32 %v7875, %v7876
      %8010 = vadd.xlane.f32.xlu0 %v8009
      %v8011 = vpop.xlane.xlu0 %8010
      %v8012 = vadd.f32 %v7877, %v7878
      %8013 = vadd.xlane.f32.xlu0 %v8012
      %v8014 = vpop.xlane.xlu0 %8013
      %v8015 = vadd.f32 %v7879, %v7880
      %8016 = vadd.xlane.f32.xlu0 %v8015
      %v8017 = vpop.xlane.xlu0 %8016
      %v8018 = vadd.f32 %v7881, %v7882
      %8019 = vadd.xlane.f32.xlu0 %v8018
      %v8020 = vpop.xlane.xlu0 %8019
      %v8021 = vadd.f32 %v7883, %v7884
      %8022 = vadd.xlane.f32.xlu0 %v8021
      %v8023 = vpop.xlane.xlu0 %8022
      %v8024 = vadd.f32 %v7885, %v7886
      %8025 = vadd.xlane.f32.xlu0 %v8024
      %v8026 = vpop.xlane.xlu0 %8025
      %v8027 = vadd.f32 %v7887, %v7888
      %8028 = vadd.xlane.f32.xlu0 %v8027
      %v8029 = vpop.xlane.xlu0 %8028
      %v8030 = vadd.f32 %v7889, %v7890
      %8031 = vadd.xlane.f32.xlu0 %v8030
      %v8032 = vpop.xlane.xlu0 %8031
      %v8033 = vadd.f32 %v7891, %v7892
      %8034 = vadd.xlane.f32.xlu0 %v8033
      %v8035 = vpop.xlane.xlu0 %8034
      %v8036 = vadd.f32 %v7893, %v7894
      %8037 = vadd.xlane.f32.xlu0 %v8036
      %v8038 = vpop.xlane.xlu0 %8037
      %v8039 = vadd.f32 %v7895, %v7896
      %8040 = vadd.xlane.f32.xlu0 %v8039
      %v8041 = vpop.xlane.xlu0 %8040
      %v8042 = vadd.f32 %v7897, %v7898
      %8043 = vadd.xlane.f32.xlu0 %v8042
      %v8044 = vpop.xlane.xlu0 %8043
      %v8045 = vadd.f32 %v7899, %v7900
      %8046 = vadd.xlane.f32.xlu0 %v8045
      %v8047 = vpop.xlane.xlu0 %8046
      %v8048 = vadd.f32 %v7901, %v7902
      %8049 = vadd.xlane.f32.xlu0 %v8048
      %v8050 = vpop.xlane.xlu0 %8049
      %v8051 = vadd.f32 %v7903, %v7904
      %8052 = vadd.xlane.f32.xlu0 %v8051
      %v8053 = vpop.xlane.xlu0 %8052
      %v8054 = vadd.f32 %v7905, %v7906
      %8055 = vadd.xlane.f32.xlu0 %v8054
      %v8056 = vpop.xlane.xlu0 %8055
      %v8057 = vadd.f32 %v7907, %v7908
      %8058 = vadd.xlane.f32.xlu0 %v8057
      %v8059 = vpop.xlane.xlu0 %8058
      %v8060 = vadd.f32 %v7909, %v7910
      %8061 = vadd.xlane.f32.xlu0 %v8060
      %v8062 = vpop.xlane.xlu0 %8061
      %v8063 = vadd.f32 %v7911, %v7912
      %8064 = vadd.xlane.f32.xlu0 %v8063
      %v8065 = vpop.xlane.xlu0 %8064
      %v8066 = vadd.f32 %v7913, %v7914
      %8067 = vadd.xlane.f32.xlu0 %v8066
      %v8068 = vpop.xlane.xlu0 %8067
      %v8069 = vadd.f32 %v7915, %v7916
      %8070 = vadd.xlane.f32.xlu0 %v8069
      %v8071 = vpop.xlane.xlu0 %8070
      %v8072 = vadd.f32 %v7917, %v7918
      %8073 = vadd.xlane.f32.xlu0 %v8072
      %v8074 = vpop.xlane.xlu0 %8073
      %v8075 = vadd.f32 %v7919, %v7920
      %8076 = vadd.xlane.f32.xlu0 %v8075
      %v8077 = vpop.xlane.xlu0 %8076
      %v8078 = vadd.f32 %v7921, %v7922
      %8079 = vadd.xlane.f32.xlu0 %v8078
      %v8080 = vpop.xlane.xlu0 %8079
      %v8081 = vadd.f32 %v7923, %v7924
      %8082 = vadd.xlane.f32.xlu0 %v8081
      %v8083 = vpop.xlane.xlu0 %8082
      %v8084 = vadd.f32 %v7925, %v7926
      %8085 = vadd.xlane.f32.xlu0 %v8084
      %v8086 = vpop.xlane.xlu0 %8085
      %v8087 = vadd.f32 %v7927, %v7928
      %8088 = vadd.xlane.f32.xlu0 %v8087
      %v8089 = vpop.xlane.xlu0 %8088
      %v8090 = vadd.f32 %v7929, %v7930
      %8091 = vadd.xlane.f32.xlu0 %v8090
      %v8092 = vpop.xlane.xlu0 %8091
      %v8093 = vadd.f32 %v7931, %v7932
      %8094 = vadd.xlane.f32.xlu0 %v8093
      %v8095 = vpop.xlane.xlu0 %8094
      %v8096 = vadd.f32 %v7933, %v7934
      %8097 = vadd.xlane.f32.xlu0 %v8096
      %v8098 = vpop.xlane.xlu0 %8097
      %v8099 = vadd.f32 %v7935, %v7936
      %8100 = vadd.xlane.f32.xlu0 %v8099
      %v8101 = vpop.xlane.xlu0 %8100
      %v8102 = vadd.f32 %v7937, %v7938
      %8103 = vadd.xlane.f32.xlu0 %v8102
      %v8104 = vpop.xlane.xlu0 %8103
      %v8105 = vadd.f32 %v7939, %v7940
      %8106 = vadd.xlane.f32.xlu0 %v8105
      %v8107 = vpop.xlane.xlu0 %8106
      %v8108 = vadd.f32 %v7941, %v7942
      %8109 = vadd.xlane.f32.xlu0 %v8108
      %v8110 = vpop.xlane.xlu0 %8109
      %v8111 = vadd.f32 %v7943, %v7944
      %8112 = vadd.xlane.f32.xlu0 %v8111
      %v8113 = vpop.xlane.xlu0 %8112
      %v8114 = vadd.f32 %v7945, %v7946
      %8115 = vadd.xlane.f32.xlu0 %v8114
      %v8116 = vpop.xlane.xlu0 %8115
      %v8117 = vadd.f32 %v7947, %v7948
      %8118 = vadd.xlane.f32.xlu0 %v8117
      %v8119 = vpop.xlane.xlu0 %8118
      %v8120 = vadd.f32 %v7949, %v7950
      %8121 = vadd.xlane.f32.xlu0 %v8120
      %v8122 = vpop.xlane.xlu0 %8121
      %v8123 = vadd.f32 %v7951, %v7952
      %8124 = vadd.xlane.f32.xlu0 %v8123
      %v8125 = vpop.xlane.xlu0 %8124
      %v8126 = vadd.f32 %v7953, %v7954
      %8127 = vadd.xlane.f32.xlu0 %v8126
      %v8128 = vpop.xlane.xlu0 %8127
      %v8129 = vadd.f32 %v7955, %v7956
      %8130 = vadd.xlane.f32.xlu0 %v8129
      %v8131 = vpop.xlane.xlu0 %8130
      %v8132 = vadd.f32 %v7957, %v7958
      %8133 = vadd.xlane.f32.xlu0 %v8132
      %v8134 = vpop.xlane.xlu0 %8133
      %v8135 = vadd.f32 %v7959, %v7960
      %8136 = vadd.xlane.f32.xlu0 %v8135
      %v8137 = vpop.xlane.xlu0 %8136
      %v8138 = vadd.f32 %v7961, %v7962
      %8139 = vadd.xlane.f32.xlu0 %v8138
      %v8140 = vpop.xlane.xlu0 %8139
      %v8141 = vadd.f32 %v7963, %v7964
      %8142 = vadd.xlane.f32.xlu0 %v8141
      %v8143 = vpop.xlane.xlu0 %8142
      %v8144 = vadd.f32 %v7965, %v7966
      %8145 = vadd.xlane.f32.xlu0 %v8144
      %v8146 = vpop.xlane.xlu0 %8145
      %v8147 = vadd.f32 %v7967, %v7968
      %8148 = vadd.xlane.f32.xlu0 %v8147
      %v8149 = vpop.xlane.xlu0 %8148
      %v8150 = vadd.f32 %v7969, %v7970
      %8151 = vadd.xlane.f32.xlu0 %v8150
      %v8152 = vpop.xlane.xlu0 %8151
      %v8153 = vadd.f32 %v7971, %v7972
      %8154 = vadd.xlane.f32.xlu0 %v8153
      %v8155 = vpop.xlane.xlu0 %8154
      %v8156 = vadd.f32 %v7973, %v7974
      %8157 = vadd.xlane.f32.xlu0 %v8156
      %v8158 = vpop.xlane.xlu0 %8157
      %v8159 = vadd.f32 %v7975, %v7976
      %8160 = vadd.xlane.f32.xlu0 %v8159
      %v8161 = vpop.xlane.xlu0 %8160
      %v8162 = vadd.f32 %v7977, %v7978
      %8163 = vadd.xlane.f32.xlu0 %v8162
      %v8164 = vpop.xlane.xlu0 %8163
      %v8165 = vadd.f32 %v7979, %v7980
      %8166 = vadd.xlane.f32.xlu0 %v8165
      %v8167 = vpop.xlane.xlu0 %8166
      %v8168 = vadd.f32 %v7981, %v7982
      %8169 = vadd.xlane.f32.xlu0 %v8168
      %v8170 = vpop.xlane.xlu0 %8169
      %v8171 = vadd.f32 %v7983, %v7984
      %8172 = vadd.xlane.f32.xlu0 %v8171
      %v8173 = vpop.xlane.xlu0 %8172
      %v8174 = vadd.f32 %v7985, %v7986
      %8175 = vadd.xlane.f32.xlu0 %v8174
      %v8176 = vpop.xlane.xlu0 %8175
      %v8177 = vadd.f32 %v7987, %v7988
      %8178 = vadd.xlane.f32.xlu0 %v8177
      %v8179 = vpop.xlane.xlu0 %8178
      %v8180 = vadd.f32 %v7989, %v7990
      %8181 = vadd.xlane.f32.xlu0 %v8180
      %v8182 = vpop.xlane.xlu0 %8181
      %v8183 = vld [vmem:[%s5 + $0x2] ss:$0 sm:$0xff]
      %v8184 = vadd.f32 %v7993, %v8183
      %v8185 = vadd.f32 %v7996, %v8183
      %v8186 = vadd.f32 %v7999, %v8183
      %v8187 = vadd.f32 %v8002, %v8183
      %v8188 = vadd.f32 %v8005, %v8183
      %v8189 = vadd.f32 %v8008, %v8183
      %v8190 = vadd.f32 %v8011, %v8183
      %v8191 = vadd.f32 %v8014, %v8183
      %v8192 = vadd.f32 %v8017, %v8183
      %v8193 = vadd.f32 %v8020, %v8183
      %v8194 = vadd.f32 %v8023, %v8183
      %v8195 = vadd.f32 %v8026, %v8183
      %v8196 = vadd.f32 %v8029, %v8183
      %v8197 = vadd.f32 %v8032, %v8183
      %v8198 = vadd.f32 %v8035, %v8183
      %v8199 = vadd.f32 %v8038, %v8183
      %v8200 = vadd.f32 %v8041, %v8183
      %v8201 = vadd.f32 %v8044, %v8183
      %v8202 = vadd.f32 %v8047, %v8183
      %v8203 = vadd.f32 %v8050, %v8183
      %v8204 = vadd.f32 %v8053, %v8183
      %v8205 = vadd.f32 %v8056, %v8183
      %v8206 = vadd.f32 %v8059, %v8183
      %v8207 = vadd.f32 %v8062, %v8183
      %v8208 = vadd.f32 %v8065, %v8183
      %v8209 = vadd.f32 %v8068, %v8183
      %v8210 = vadd.f32 %v8071, %v8183
      %v8211 = vadd.f32 %v8074, %v8183
      %v8212 = vadd.f32 %v8077, %v8183
      %v8213 = vadd.f32 %v8080, %v8183
      %v8214 = vadd.f32 %v8083, %v8183
      %v8215 = vadd.f32 %v8086, %v8183
      %v8216 = vadd.f32 %v8089, %v8183
      %v8217 = vadd.f32 %v8092, %v8183
      %v8218 = vadd.f32 %v8095, %v8183
      %v8219 = vadd.f32 %v8098, %v8183
      %v8220 = vadd.f32 %v8101, %v8183
      %v8221 = vadd.f32 %v8104, %v8183
      %v8222 = vadd.f32 %v8107, %v8183
      %v8223 = vadd.f32 %v8110, %v8183
      %v8224 = vadd.f32 %v8113, %v8183
      %v8225 = vadd.f32 %v8116, %v8183
      %v8226 = vadd.f32 %v8119, %v8183
      %v8227 = vadd.f32 %v8122, %v8183
      %v8228 = vadd.f32 %v8125, %v8183
      %v8229 = vadd.f32 %v8128, %v8183
      %v8230 = vadd.f32 %v8131, %v8183
      %v8231 = vadd.f32 %v8134, %v8183
      %v8232 = vadd.f32 %v8137, %v8183
      %v8233 = vadd.f32 %v8140, %v8183
      %v8234 = vadd.f32 %v8143, %v8183
      %v8235 = vadd.f32 %v8146, %v8183
      %v8236 = vadd.f32 %v8149, %v8183
      %v8237 = vadd.f32 %v8152, %v8183
      %v8238 = vadd.f32 %v8155, %v8183
      %v8239 = vadd.f32 %v8158, %v8183
      %v8240 = vadd.f32 %v8161, %v8183
      %v8241 = vadd.f32 %v8164, %v8183
      %v8242 = vadd.f32 %v8167, %v8183
      %v8243 = vadd.f32 %v8170, %v8183
      %v8244 = vadd.f32 %v8173, %v8183
      %v8245 = vadd.f32 %v8176, %v8183
      %v8246 = vadd.f32 %v8179, %v8183
      %v8247 = vadd.f32 %v8182, %v8183
      %v8248 = vld [vmem:[%s6] sm:$0xf]
      %v8249 = vld [vmem:[%s6 + $0x4] sm:$0xf]
      %v8250 = vld [vmem:[%s6 + $0x8] sm:$0xf]
      %v8251 = vld [vmem:[%s6 + $0xc] sm:$0xf]
      %v8252 = vld [vmem:[%s6 + $0x10] sm:$0xf]
      %v8253 = vld [vmem:[%s6 + $0x14] sm:$0xf]
      %v8254 = vld [vmem:[%s6 + $0x18] sm:$0xf]
      %v8255 = vld [vmem:[%s6 + $0x1c] sm:$0xf]
      %v8256 = vld [vmem:[%s6 + $0x20] sm:$0xf]
      %v8257 = vld [vmem:[%s6 + $0x24] sm:$0xf]
      %v8258 = vld [vmem:[%s6 + $0x28] sm:$0xf]
      %v8259 = vld [vmem:[%s6 + $0x2c] sm:$0xf]
      %v8260 = vld [vmem:[%s6 + $0x30] sm:$0xf]
      %v8261 = vld [vmem:[%s6 + $0x34] sm:$0xf]
      %v8262 = vld [vmem:[%s6 + $0x38] sm:$0xf]
      %v8263 = vld [vmem:[%s6 + $0x3c] sm:$0xf]
      %v8264 = vld [vmem:[%s6 + $0x40] sm:$0xf]
      %v8265 = vld [vmem:[%s6 + $0x44] sm:$0xf]
      %v8266 = vld [vmem:[%s6 + $0x48] sm:$0xf]
      %v8267 = vld [vmem:[%s6 + $0x4c] sm:$0xf]
      %v8268 = vld [vmem:[%s6 + $0x50] sm:$0xf]
      %v8269 = vld [vmem:[%s6 + $0x54] sm:$0xf]
      %v8270 = vld [vmem:[%s6 + $0x58] sm:$0xf]
      %v8271 = vld [vmem:[%s6 + $0x5c] sm:$0xf]
      %v8272 = vld [vmem:[%s6 + $0x60] sm:$0xf]
      %v8273 = vld [vmem:[%s6 + $0x64] sm:$0xf]
      %v8274 = vld [vmem:[%s6 + $0x68] sm:$0xf]
      %v8275 = vld [vmem:[%s6 + $0x6c] sm:$0xf]
      %v8276 = vld [vmem:[%s6 + $0x70] sm:$0xf]
      %v8277 = vld [vmem:[%s6 + $0x74] sm:$0xf]
      %v8278 = vld [vmem:[%s6 + $0x78] sm:$0xf]
      %v8279 = vld [vmem:[%s6 + $0x7c] sm:$0xf]
      %v8280 = vld [vmem:[%s6 + $0x80] sm:$0xf]
      %v8281 = vld [vmem:[%s6 + $0x84] sm:$0xf]
      %v8282 = vld [vmem:[%s6 + $0x88] sm:$0xf]
      %v8283 = vld [vmem:[%s6 + $0x8c] sm:$0xf]
      %v8284 = vld [vmem:[%s6 + $0x90] sm:$0xf]
      %v8285 = vld [vmem:[%s6 + $0x94] sm:$0xf]
      %v8286 = vld [vmem:[%s6 + $0x98] sm:$0xf]
      %v8287 = vld [vmem:[%s6 + $0x9c] sm:$0xf]
      %v8352 = vunpack.c.l.b16 %v396
      %v8353 = vunpack.c.l.b16 %v397
      %v8354 = vunpack.c.l.b16 %v398
      %v8355 = vunpack.c.l.b16 %v399
      %v8356 = vunpack.c.l.b16 %v400
      %v8357 = vunpack.c.l.b16 %v401
      %v8358 = vunpack.c.l.b16 %v402
      %v8359 = vunpack.c.l.b16 %v403
      %v8360 = vunpack.c.l.b16 %v404
      %v8361 = vunpack.c.l.b16 %v405
      %v8362 = vunpack.c.l.b16 %v406
      %v8363 = vunpack.c.l.b16 %v407
      %v8364 = vunpack.c.l.b16 %v408
      %v8365 = vunpack.c.l.b16 %v409
      %v8366 = vunpack.c.l.b16 %v410
      %v8367 = vunpack.c.l.b16 %v411
      %v8368 = vunpack.c.l.b16 %v412
      %v8369 = vunpack.c.l.b16 %v413
      %v8370 = vunpack.c.l.b16 %v414
      %v8371 = vunpack.c.l.b16 %v415
      %v8372 = vunpack.c.l.b16 %v416
      %v8373 = vunpack.c.l.b16 %v417
      %v8374 = vunpack.c.l.b16 %v418
      %v8375 = vunpack.c.l.b16 %v419
      %v8376 = vunpack.c.l.b16 %v420
      %v8377 = vunpack.c.l.b16 %v421
      %v8378 = vunpack.c.l.b16 %v422
      %v8379 = vunpack.c.l.b16 %v423
      %v8380 = vunpack.c.l.b16 %v424
      %v8381 = vunpack.c.l.b16 %v425
      %v8382 = vunpack.c.l.b16 %v426
      %v8383 = vunpack.c.l.b16 %v427
      %v8384 = vunpack.c.l.b16 %v428
      %v8385 = vunpack.c.l.b16 %v429
      %v8386 = vunpack.c.l.b16 %v430
      %v8387 = vunpack.c.l.b16 %v431
      %v8388 = vunpack.c.l.b16 %v432
      %v8389 = vunpack.c.l.b16 %v433
      %v8390 = vunpack.c.l.b16 %v434
      %v8391 = vunpack.c.l.b16 %v435
      %v8392 = vunpack.c.l.b16 %v436
      %v8393 = vunpack.c.l.b16 %v437
      %v8394 = vunpack.c.l.b16 %v438
      %v8395 = vunpack.c.l.b16 %v439
      %v8396 = vunpack.c.l.b16 %v440
      %v8397 = vunpack.c.l.b16 %v441
      %v8398 = vunpack.c.l.b16 %v442
      %v8399 = vunpack.c.l.b16 %v443
      %v8400 = vunpack.c.l.b16 %v444
      %v8401 = vunpack.c.l.b16 %v445
      %v8402 = vunpack.c.l.b16 %v446
      %v8403 = vunpack.c.l.b16 %v447
      %v8404 = vunpack.c.l.b16 %v448
      %v8405 = vunpack.c.l.b16 %v449
      %v8406 = vunpack.c.l.b16 %v450
      %v8407 = vunpack.c.l.b16 %v451
      %v8408 = vunpack.c.l.b16 %v452
      %v8409 = vunpack.c.l.b16 %v453
      %v8410 = vunpack.c.l.b16 %v454
      %v8411 = vunpack.c.l.b16 %v455
      %v8412 = vunpack.c.l.b16 %v456
      %v8413 = vunpack.c.l.b16 %v457
      %v8414 = vunpack.c.l.b16 %v458
      %v8415 = vunpack.c.l.b16 %v459
      %v8416 = vpack.c.b16 %v8353, %v8352
      %v8417 = vpack.c.b16 %v8355, %v8354
      %v8418 = vpack.c.b16 %v8357, %v8356
      %v8419 = vpack.c.b16 %v8359, %v8358
      %v8420 = vpack.c.b16 %v8361, %v8360
      %v8421 = vpack.c.b16 %v8363, %v8362
      %v8422 = vpack.c.b16 %v8365, %v8364
      %v8423 = vpack.c.b16 %v8367, %v8366
      %v8424 = vpack.c.b16 %v8369, %v8368
      %v8425 = vpack.c.b16 %v8371, %v8370
      %v8426 = vpack.c.b16 %v8373, %v8372
      %v8427 = vpack.c.b16 %v8375, %v8374
      %v8428 = vpack.c.b16 %v8377, %v8376
      %v8429 = vpack.c.b16 %v8379, %v8378
      %v8430 = vpack.c.b16 %v8381, %v8380
      %v8431 = vpack.c.b16 %v8383, %v8382
      %v8432 = vpack.c.b16 %v8385, %v8384
      %v8433 = vpack.c.b16 %v8387, %v8386
      %v8434 = vpack.c.b16 %v8389, %v8388
      %v8435 = vpack.c.b16 %v8391, %v8390
      %v8436 = vpack.c.b16 %v8393, %v8392
      %v8437 = vpack.c.b16 %v8395, %v8394
      %v8438 = vpack.c.b16 %v8397, %v8396
      %v8439 = vpack.c.b16 %v8399, %v8398
      %v8440 = vpack.c.b16 %v8401, %v8400
      %v8441 = vpack.c.b16 %v8403, %v8402
      %v8442 = vpack.c.b16 %v8405, %v8404
      %v8443 = vpack.c.b16 %v8407, %v8406
      %v8444 = vpack.c.b16 %v8409, %v8408
      %v8445 = vpack.c.b16 %v8411, %v8410
      %v8446 = vpack.c.b16 %v8413, %v8412
      %v8447 = vpack.c.b16 %v8415, %v8414
      %v8456 = vunpack.c.l.b16 %v8280
      %v8457 = vunpack.c.l.b16 %v8281
      %v8458 = vunpack.c.l.b16 %v8282
      %v8459 = vunpack.c.l.b16 %v8283
      %v8460 = vunpack.c.l.b16 %v8284
      %v8461 = vunpack.c.l.b16 %v8285
      %v8462 = vunpack.c.l.b16 %v8286
      %v8463 = vunpack.c.l.b16 %v8287
      %v8464 = vpack.c.b16 %v8457, %v8456
      %v8465 = vpack.c.b16 %v8459, %v8458
      %v8466 = vpack.c.b16 %v8461, %v8460
      %v8467 = vpack.c.b16 %v8463, %v8462
      %v8473 = vsel %vm680, %v8416, 0
      %v8476 = vsel %vm680, %v8417, 0
      %v8479 = vsel %vm680, %v8418, 0
      %v8482 = vsel %vm680, %v8419, 0
      %v8485 = vsel %vm680, %v8420, 0
      %v8488 = vsel %vm680, %v8421, 0
      %v8491 = vsel %vm680, %v8422, 0
      %v8494 = vsel %vm680, %v8423, 0
      %v8497 = vsel %vm680, %v8424, 0
      %v8500 = vsel %vm680, %v8425, 0
      %v8503 = vsel %vm680, %v8426, 0
      %v8506 = vsel %vm680, %v8427, 0
      %v8509 = vsel %vm680, %v8428, 0
      %v8512 = vsel %vm680, %v8429, 0
      %v8515 = vsel %vm680, %v8430, 0
      %v8518 = vsel %vm680, %v8431, 0
      %v8521 = vsel %vm680, %v8432, 0
      %v8524 = vsel %vm680, %v8433, 0
      %v8527 = vsel %vm680, %v8434, 0
      %v8530 = vsel %vm680, %v8435, 0
      %v8533 = vsel %vm680, %v8436, 0
      %v8536 = vsel %vm680, %v8437, 0
      %v8539 = vsel %vm680, %v8438, 0
      %v8542 = vsel %vm680, %v8439, 0
      %v8545 = vsel %vm680, %v8440, 0
      %v8548 = vsel %vm680, %v8441, 0
      %v8551 = vsel %vm680, %v8442, 0
      %v8554 = vsel %vm680, %v8443, 0
      %v8557 = vsel %vm680, %v8444, 0
      %v8560 = vsel %vm680, %v8445, 0
      %v8563 = vsel %vm680, %v8446, 0
      %v8566 = vsel %vm680, %v8447, 0
      %8568 = vmatprep.subr.bf16.mxu0 0
      %8569 = vmatpush1.bf16.msra.mxu0 0
      %8570 = vmatprep.subr.bf16.mxu0 0
      %8571 = vmatpush1.bf16.msra.mxu0 0
      %8572 = vmatprep.subr.bf16.mxu0 0
      %8573 = vmatpush1.bf16.msra.mxu0 0
      %8574 = vmatprep.subr.bf16.mxu0 0
      %8575 = vmatpush1.bf16.msra.mxu0 0
      %8576 = vmatprep.subr.bf16.mxu0 0
      %8577 = vmatpush1.bf16.msra.mxu0 %v8467
      %8578 = vmatprep.subr.bf16.mxu0 0
      %8579 = vmatpush1.bf16.msra.mxu0 %v8466
      %8580 = vmatprep.subr.bf16.mxu0 0
      %8581 = vmatpush1.bf16.msra.mxu0 %v8465
      %8582 = vmatprep.subr.bf16.mxu0 0
      %8583 = vmatpush1.bf16.msra.mxu0 %v8464
      %8584 = vmatprep.subr.bf16.mxu0 0
      %8585 = vmatpush2.bf16.msra.mxu0 0
      %8586 = vmatprep.subr.bf16.mxu0 0
      %8587 = vmatpush2.bf16.msra.mxu0 0
      %8588 = vmatprep.subr.bf16.mxu0 0
      %8589 = vmatpush2.bf16.msra.mxu0 0
      %8590 = vmatprep.subr.bf16.mxu0 0
      %8591 = vmatpush2.bf16.msra.mxu0 0
      %8592 = vmatprep.subr.bf16.mxu0 0
      %8593 = vmatpush2.bf16.msra.mxu0 0
      %8594 = vmatprep.subr.bf16.mxu0 0
      %8595 = vmatpush2.bf16.msra.mxu0 0
      %8596 = vmatprep.subr.bf16.mxu0 0
      %8597 = vmatpush2.bf16.msra.mxu0 0
      %8598 = vmatprep.subr.bf16.mxu0 0
      %8599 = vmatpush2.bf16.msra.mxu0 0
      %8600 = vmatprep.mubr.bf16.mxu0 0
      %8601 = vmatmul.mubr.bf16.gmra.mxu0 %v8473
      %v8602 = vpop.f32.mrf.mxu0
      %v8603 = vadd.f32 0.0, %v8602
      %v8604 = vpop.f32.mrf.mxu0
      %v8605 = vpop.f32.mrf.mxu0
      %v8606 = vadd.f32 0.0, %v8605
      %v8607 = vpop.f32.mrf.mxu0
      %8608 = vmatprep.mubr.bf16.mxu0 0
      %8609 = vmatmul.mubr.bf16.gmra.mxu0 %v8476
      %v8610 = vpop.f32.mrf.mxu0
      %v8611 = vadd.f32 0.0, %v8610
      %v8612 = vpop.f32.mrf.mxu0
      %v8613 = vpop.f32.mrf.mxu0
      %v8614 = vadd.f32 0.0, %v8613
      %v8615 = vpop.f32.mrf.mxu0
      %8616 = vmatprep.mubr.bf16.mxu0 0
      %8617 = vmatmul.mubr.bf16.gmra.mxu0 %v8479
      %v8618 = vpop.f32.mrf.mxu0
      %v8619 = vadd.f32 0.0, %v8618
      %v8620 = vpop.f32.mrf.mxu0
      %v8621 = vpop.f32.mrf.mxu0
      %v8622 = vadd.f32 0.0, %v8621
      %v8623 = vpop.f32.mrf.mxu0
      %8624 = vmatprep.mubr.bf16.mxu0 0
      %8625 = vmatmul.mubr.bf16.gmra.mxu0 %v8482
      %v8626 = vpop.f32.mrf.mxu0
      %v8627 = vadd.f32 0.0, %v8626
      %v8628 = vpop.f32.mrf.mxu0
      %v8629 = vpop.f32.mrf.mxu0
      %v8630 = vadd.f32 0.0, %v8629
      %v8631 = vpop.f32.mrf.mxu0
      %8632 = vmatprep.mubr.bf16.mxu0 0
      %8633 = vmatmul.mubr.bf16.gmra.mxu0 %v8485
      %v8634 = vpop.f32.mrf.mxu0
      %v8635 = vadd.f32 0.0, %v8634
      %v8636 = vpop.f32.mrf.mxu0
      %v8637 = vpop.f32.mrf.mxu0
      %v8638 = vadd.f32 0.0, %v8637
      %v8639 = vpop.f32.mrf.mxu0
      %8640 = vmatprep.mubr.bf16.mxu0 0
      %8641 = vmatmul.mubr.bf16.gmra.mxu0 %v8488
      %v8642 = vpop.f32.mrf.mxu0
      %v8643 = vadd.f32 0.0, %v8642
      %v8644 = vpop.f32.mrf.mxu0
      %v8645 = vpop.f32.mrf.mxu0
      %v8646 = vadd.f32 0.0, %v8645
      %v8647 = vpop.f32.mrf.mxu0
      %8648 = vmatprep.mubr.bf16.mxu0 0
      %8649 = vmatmul.mubr.bf16.gmra.mxu0 %v8491
      %v8650 = vpop.f32.mrf.mxu0
      %v8651 = vadd.f32 0.0, %v8650
      %v8652 = vpop.f32.mrf.mxu0
      %v8653 = vpop.f32.mrf.mxu0
      %v8654 = vadd.f32 0.0, %v8653
      %v8655 = vpop.f32.mrf.mxu0
      %8656 = vmatprep.mubr.bf16.mxu0 0
      %8657 = vmatmul.mubr.bf16.gmra.mxu0 %v8494
      %v8658 = vpop.f32.mrf.mxu0
      %v8659 = vadd.f32 0.0, %v8658
      %v8660 = vpop.f32.mrf.mxu0
      %v8661 = vpop.f32.mrf.mxu0
      %v8662 = vadd.f32 0.0, %v8661
      %v8663 = vpop.f32.mrf.mxu0
      %8664 = vmatprep.mubr.bf16.mxu0 0
      %8665 = vmatmul.mubr.bf16.gmra.mxu0 %v8497
      %v8666 = vpop.f32.mrf.mxu0
      %v8667 = vadd.f32 0.0, %v8666
      %v8668 = vpop.f32.mrf.mxu0
      %v8669 = vpop.f32.mrf.mxu0
      %v8670 = vadd.f32 0.0, %v8669
      %v8671 = vpop.f32.mrf.mxu0
      %8672 = vmatprep.mubr.bf16.mxu0 0
      %8673 = vmatmul.mubr.bf16.gmra.mxu0 %v8500
      %v8674 = vpop.f32.mrf.mxu0
      %v8675 = vadd.f32 0.0, %v8674
      %v8676 = vpop.f32.mrf.mxu0
      %v8677 = vpop.f32.mrf.mxu0
      %v8678 = vadd.f32 0.0, %v8677
      %v8679 = vpop.f32.mrf.mxu0
      %8680 = vmatprep.mubr.bf16.mxu0 0
      %8681 = vmatmul.mubr.bf16.gmra.mxu0 %v8503
      %v8682 = vpop.f32.mrf.mxu0
      %v8683 = vadd.f32 0.0, %v8682
      %v8684 = vpop.f32.mrf.mxu0
      %v8685 = vpop.f32.mrf.mxu0
      %v8686 = vadd.f32 0.0, %v8685
      %v8687 = vpop.f32.mrf.mxu0
      %8688 = vmatprep.mubr.bf16.mxu0 0
      %8689 = vmatmul.mubr.bf16.gmra.mxu0 %v8506
      %v8690 = vpop.f32.mrf.mxu0
      %v8691 = vadd.f32 0.0, %v8690
      %v8692 = vpop.f32.mrf.mxu0
      %v8693 = vpop.f32.mrf.mxu0
      %v8694 = vadd.f32 0.0, %v8693
      %v8695 = vpop.f32.mrf.mxu0
      %8696 = vmatprep.mubr.bf16.mxu0 0
      %8697 = vmatmul.mubr.bf16.gmra.mxu0 %v8509
      %v8698 = vpop.f32.mrf.mxu0
      %v8699 = vadd.f32 0.0, %v8698
      %v8700 = vpop.f32.mrf.mxu0
      %v8701 = vpop.f32.mrf.mxu0
      %v8702 = vadd.f32 0.0, %v8701
      %v8703 = vpop.f32.mrf.mxu0
      %8704 = vmatprep.mubr.bf16.mxu0 0
      %8705 = vmatmul.mubr.bf16.gmra.mxu0 %v8512
      %v8706 = vpop.f32.mrf.mxu0
      %v8707 = vadd.f32 0.0, %v8706
      %v8708 = vpop.f32.mrf.mxu0
      %v8709 = vpop.f32.mrf.mxu0
      %v8710 = vadd.f32 0.0, %v8709
      %v8711 = vpop.f32.mrf.mxu0
      %8712 = vmatprep.mubr.bf16.mxu0 0
      %8713 = vmatmul.mubr.bf16.gmra.mxu0 %v8515
      %v8714 = vpop.f32.mrf.mxu0
      %v8715 = vadd.f32 0.0, %v8714
      %v8716 = vpop.f32.mrf.mxu0
      %v8717 = vpop.f32.mrf.mxu0
      %v8718 = vadd.f32 0.0, %v8717
      %v8719 = vpop.f32.mrf.mxu0
      %8720 = vmatprep.mubr.bf16.mxu0 0
      %8721 = vmatmul.mubr.bf16.gmra.mxu0 %v8518
      %v8722 = vpop.f32.mrf.mxu0
      %v8723 = vadd.f32 0.0, %v8722
      %v8724 = vpop.f32.mrf.mxu0
      %v8725 = vpop.f32.mrf.mxu0
      %v8726 = vadd.f32 0.0, %v8725
      %v8727 = vpop.f32.mrf.mxu0
      %8728 = vmatprep.mubr.bf16.mxu0 0
      %8729 = vmatmul.mubr.bf16.gmra.mxu0 %v8521
      %v8730 = vpop.f32.mrf.mxu0
      %v8731 = vadd.f32 0.0, %v8730
      %v8732 = vpop.f32.mrf.mxu0
      %v8733 = vpop.f32.mrf.mxu0
      %v8734 = vadd.f32 0.0, %v8733
      %v8735 = vpop.f32.mrf.mxu0
      %8736 = vmatprep.mubr.bf16.mxu0 0
      %8737 = vmatmul.mubr.bf16.gmra.mxu0 %v8524
      %v8738 = vpop.f32.mrf.mxu0
      %v8739 = vadd.f32 0.0, %v8738
      %v8740 = vpop.f32.mrf.mxu0
      %v8741 = vpop.f32.mrf.mxu0
      %v8742 = vadd.f32 0.0, %v8741
      %v8743 = vpop.f32.mrf.mxu0
      %8744 = vmatprep.mubr.bf16.mxu0 0
      %8745 = vmatmul.mubr.bf16.gmra.mxu0 %v8527
      %v8746 = vpop.f32.mrf.mxu0
      %v8747 = vadd.f32 0.0, %v8746
      %v8748 = vpop.f32.mrf.mxu0
      %v8749 = vpop.f32.mrf.mxu0
      %v8750 = vadd.f32 0.0, %v8749
      %v8751 = vpop.f32.mrf.mxu0
      %8752 = vmatprep.mubr.bf16.mxu0 0
      %8753 = vmatmul.mubr.bf16.gmra.mxu0 %v8530
      %v8754 = vpop.f32.mrf.mxu0
      %v8755 = vadd.f32 0.0, %v8754
      %v8756 = vpop.f32.mrf.mxu0
      %v8757 = vpop.f32.mrf.mxu0
      %v8758 = vadd.f32 0.0, %v8757
      %v8759 = vpop.f32.mrf.mxu0
      %8760 = vmatprep.mubr.bf16.mxu0 0
      %8761 = vmatmul.mubr.bf16.gmra.mxu0 %v8533
      %v8762 = vpop.f32.mrf.mxu0
      %v8763 = vadd.f32 0.0, %v8762
      %v8764 = vpop.f32.mrf.mxu0
      %v8765 = vpop.f32.mrf.mxu0
      %v8766 = vadd.f32 0.0, %v8765
      %v8767 = vpop.f32.mrf.mxu0
      %8768 = vmatprep.mubr.bf16.mxu0 0
      %8769 = vmatmul.mubr.bf16.gmra.mxu0 %v8536
      %v8770 = vpop.f32.mrf.mxu0
      %v8771 = vadd.f32 0.0, %v8770
      %v8772 = vpop.f32.mrf.mxu0
      %v8773 = vpop.f32.mrf.mxu0
      %v8774 = vadd.f32 0.0, %v8773
      %v8775 = vpop.f32.mrf.mxu0
      %8776 = vmatprep.mubr.bf16.mxu0 0
      %8777 = vmatmul.mubr.bf16.gmra.mxu0 %v8539
      %v8778 = vpop.f32.mrf.mxu0
      %v8779 = vadd.f32 0.0, %v8778
      %v8780 = vpop.f32.mrf.mxu0
      %v8781 = vpop.f32.mrf.mxu0
      %v8782 = vadd.f32 0.0, %v8781
      %v8783 = vpop.f32.mrf.mxu0
      %8784 = vmatprep.mubr.bf16.mxu0 0
      %8785 = vmatmul.mubr.bf16.gmra.mxu0 %v8542
      %v8786 = vpop.f32.mrf.mxu0
      %v8787 = vadd.f32 0.0, %v8786
      %v8788 = vpop.f32.mrf.mxu0
      %v8789 = vpop.f32.mrf.mxu0
      %v8790 = vadd.f32 0.0, %v8789
      %v8791 = vpop.f32.mrf.mxu0
      %8792 = vmatprep.mubr.bf16.mxu0 0
      %8793 = vmatmul.mubr.bf16.gmra.mxu0 %v8545
      %v8794 = vpop.f32.mrf.mxu0
      %v8795 = vadd.f32 0.0, %v8794
      %v8796 = vpop.f32.mrf.mxu0
      %v8797 = vpop.f32.mrf.mxu0
      %v8798 = vadd.f32 0.0, %v8797
      %v8799 = vpop.f32.mrf.mxu0
      %8800 = vmatprep.mubr.bf16.mxu0 0
      %8801 = vmatmul.mubr.bf16.gmra.mxu0 %v8548
      %v8802 = vpop.f32.mrf.mxu0
      %v8803 = vadd.f32 0.0, %v8802
      %v8804 = vpop.f32.mrf.mxu0
      %v8805 = vpop.f32.mrf.mxu0
      %v8806 = vadd.f32 0.0, %v8805
      %v8807 = vpop.f32.mrf.mxu0
      %8808 = vmatprep.mubr.bf16.mxu0 0
      %8809 = vmatmul.mubr.bf16.gmra.mxu0 %v8551
      %v8810 = vpop.f32.mrf.mxu0
      %v8811 = vadd.f32 0.0, %v8810
      %v8812 = vpop.f32.mrf.mxu0
      %v8813 = vpop.f32.mrf.mxu0
      %v8814 = vadd.f32 0.0, %v8813
      %v8815 = vpop.f32.mrf.mxu0
      %8816 = vmatprep.mubr.bf16.mxu0 0
      %8817 = vmatmul.mubr.bf16.gmra.mxu0 %v8554
      %v8818 = vpop.f32.mrf.mxu0
      %v8819 = vadd.f32 0.0, %v8818
      %v8820 = vpop.f32.mrf.mxu0
      %v8821 = vpop.f32.mrf.mxu0
      %v8822 = vadd.f32 0.0, %v8821
      %v8823 = vpop.f32.mrf.mxu0
      %8824 = vmatprep.mubr.bf16.mxu0 0
      %8825 = vmatmul.mubr.bf16.gmra.mxu0 %v8557
      %v8826 = vpop.f32.mrf.mxu0
      %v8827 = vadd.f32 0.0, %v8826
      %v8828 = vpop.f32.mrf.mxu0
      %v8829 = vpop.f32.mrf.mxu0
      %v8830 = vadd.f32 0.0, %v8829
      %v8831 = vpop.f32.mrf.mxu0
      %8832 = vmatprep.mubr.bf16.mxu0 0
      %8833 = vmatmul.mubr.bf16.gmra.mxu0 %v8560
      %v8834 = vpop.f32.mrf.mxu0
      %v8835 = vadd.f32 0.0, %v8834
      %v8836 = vpop.f32.mrf.mxu0
      %v8837 = vpop.f32.mrf.mxu0
      %v8838 = vadd.f32 0.0, %v8837
      %v8839 = vpop.f32.mrf.mxu0
      %8840 = vmatprep.mubr.bf16.mxu0 0
      %8841 = vmatmul.mubr.bf16.gmra.mxu0 %v8563
      %v8842 = vpop.f32.mrf.mxu0
      %v8843 = vadd.f32 0.0, %v8842
      %v8844 = vpop.f32.mrf.mxu0
      %v8845 = vpop.f32.mrf.mxu0
      %v8846 = vadd.f32 0.0, %v8845
      %v8847 = vpop.f32.mrf.mxu0
      %8848 = vmatprep.mubr.bf16.mxu0 0
      %8849 = vmatmul.mubr.bf16.gmra.mxu0 %v8566
      %v8850 = vpop.f32.mrf.mxu0
      %v8851 = vadd.f32 0.0, %v8850
      %v8852 = vpop.f32.mrf.mxu0
      %v8853 = vpop.f32.mrf.mxu0
      %v8854 = vadd.f32 0.0, %v8853
      %v8855 = vpop.f32.mrf.mxu0
      %8856 = vdwg.mxu0
      %v8889 = vunpack.c.l.b16 %v8248
      %v8890 = vunpack.c.l.b16 %v8249
      %v8891 = vunpack.c.l.b16 %v8250
      %v8892 = vunpack.c.l.b16 %v8251
      %v8893 = vunpack.c.l.b16 %v8252
      %v8894 = vunpack.c.l.b16 %v8253
      %v8895 = vunpack.c.l.b16 %v8254
      %v8896 = vunpack.c.l.b16 %v8255
      %v8897 = vunpack.c.l.b16 %v8256
      %v8898 = vunpack.c.l.b16 %v8257
      %v8899 = vunpack.c.l.b16 %v8258
      %v8900 = vunpack.c.l.b16 %v8259
      %v8901 = vunpack.c.l.b16 %v8260
      %v8902 = vunpack.c.l.b16 %v8261
      %v8903 = vunpack.c.l.b16 %v8262
      %v8904 = vunpack.c.l.b16 %v8263
      %v8905 = vunpack.c.l.b16 %v8264
      %v8906 = vunpack.c.l.b16 %v8265
      %v8907 = vunpack.c.l.b16 %v8266
      %v8908 = vunpack.c.l.b16 %v8267
      %v8909 = vunpack.c.l.b16 %v8268
      %v8910 = vunpack.c.l.b16 %v8269
      %v8911 = vunpack.c.l.b16 %v8270
      %v8912 = vunpack.c.l.b16 %v8271
      %v8913 = vunpack.c.l.b16 %v8272
      %v8914 = vunpack.c.l.b16 %v8273
      %v8915 = vunpack.c.l.b16 %v8274
      %v8916 = vunpack.c.l.b16 %v8275
      %v8917 = vunpack.c.l.b16 %v8276
      %v8918 = vunpack.c.l.b16 %v8277
      %v8919 = vunpack.c.l.b16 %v8278
      %v8920 = vunpack.c.l.b16 %v8279
      %v8921 = vpack.c.b16 %v8890, %v8889
      %v8922 = vpack.c.b16 %v8892, %v8891
      %v8923 = vpack.c.b16 %v8894, %v8893
      %v8924 = vpack.c.b16 %v8896, %v8895
      %v8925 = vpack.c.b16 %v8898, %v8897
      %v8926 = vpack.c.b16 %v8900, %v8899
      %v8927 = vpack.c.b16 %v8902, %v8901
      %v8928 = vpack.c.b16 %v8904, %v8903
      %v8929 = vpack.c.b16 %v8906, %v8905
      %v8930 = vpack.c.b16 %v8908, %v8907
      %v8931 = vpack.c.b16 %v8910, %v8909
      %v8932 = vpack.c.b16 %v8912, %v8911
      %v8933 = vpack.c.b16 %v8914, %v8913
      %v8934 = vpack.c.b16 %v8916, %v8915
      %v8935 = vpack.c.b16 %v8918, %v8917
      %v8936 = vpack.c.b16 %v8920, %v8919
      %8953 = vmatprep.subr.bf16.mxu0 0
      %8954 = vmatpush1.bf16.msra.mxu0 %v8928
      %8955 = vmatprep.subr.bf16.mxu0 0
      %8956 = vmatpush1.bf16.msra.mxu0 %v8927
      %8957 = vmatprep.subr.bf16.mxu0 0
      %8958 = vmatpush1.bf16.msra.mxu0 %v8926
      %8959 = vmatprep.subr.bf16.mxu0 0
      %8960 = vmatpush1.bf16.msra.mxu0 %v8925
      %8961 = vmatprep.subr.bf16.mxu0 0
      %8962 = vmatpush1.bf16.msra.mxu0 %v8924
      %8963 = vmatprep.subr.bf16.mxu0 0
      %8964 = vmatpush1.bf16.msra.mxu0 %v8923
      %8965 = vmatprep.subr.bf16.mxu0 0
      %8966 = vmatpush1.bf16.msra.mxu0 %v8922
      %8967 = vmatprep.subr.bf16.mxu0 0
      %8968 = vmatpush1.bf16.msra.mxu0 %v8921
      %8969 = vmatprep.subr.bf16.mxu0 0
      %8970 = vmatpush2.bf16.msra.mxu0 %v8936
      %8971 = vmatprep.subr.bf16.mxu0 0
      %8972 = vmatpush2.bf16.msra.mxu0 %v8935
      %8973 = vmatprep.subr.bf16.mxu0 0
      %8974 = vmatpush2.bf16.msra.mxu0 %v8934
      %8975 = vmatprep.subr.bf16.mxu0 0
      %8976 = vmatpush2.bf16.msra.mxu0 %v8933
      %8977 = vmatprep.subr.bf16.mxu0 0
      %8978 = vmatpush2.bf16.msra.mxu0 %v8932
      %8979 = vmatprep.subr.bf16.mxu0 0
      %8980 = vmatpush2.bf16.msra.mxu0 %v8931
      %8981 = vmatprep.subr.bf16.mxu0 0
      %8982 = vmatpush2.bf16.msra.mxu0 %v8930
      %8983 = vmatprep.subr.bf16.mxu0 0
      %8984 = vmatpush2.bf16.msra.mxu0 %v8929
      %8985 = vmatprep.mubr.bf16.mxu0 %v7659
      %8986 = vmatmul.mubr.bf16.gmra.mxu0 %v7658
      %v8987 = vpop.f32.mrf.mxu0
      %v8988 = vadd.f32 %v8603, %v8987
      %v8989 = vpop.f32.mrf.mxu0
      %v8990 = vpop.f32.mrf.mxu0
      %v8991 = vadd.f32 %v8606, %v8990
      %v8992 = vpop.f32.mrf.mxu0
      %8993 = vmatprep.mubr.bf16.mxu0 %v7661
      %8994 = vmatmul.mubr.bf16.gmra.mxu0 %v7660
      %v8995 = vpop.f32.mrf.mxu0
      %v8996 = vadd.f32 %v8611, %v8995
      %v8997 = vpop.f32.mrf.mxu0
      %v8998 = vpop.f32.mrf.mxu0
      %v8999 = vadd.f32 %v8614, %v8998
      %v9000 = vpop.f32.mrf.mxu0
      %9001 = vmatprep.mubr.bf16.mxu0 %v7663
      %9002 = vmatmul.mubr.bf16.gmra.mxu0 %v7662
      %v9003 = vpop.f32.mrf.mxu0
      %v9004 = vadd.f32 %v8619, %v9003
      %v9005 = vpop.f32.mrf.mxu0
      %v9006 = vpop.f32.mrf.mxu0
      %v9007 = vadd.f32 %v8622, %v9006
      %v9008 = vpop.f32.mrf.mxu0
      %9009 = vmatprep.mubr.bf16.mxu0 %v7665
      %9010 = vmatmul.mubr.bf16.gmra.mxu0 %v7664
      %v9011 = vpop.f32.mrf.mxu0
      %v9012 = vadd.f32 %v8627, %v9011
      %v9013 = vpop.f32.mrf.mxu0
      %v9014 = vpop.f32.mrf.mxu0
      %v9015 = vadd.f32 %v8630, %v9014
      %v9016 = vpop.f32.mrf.mxu0
      %9017 = vmatprep.mubr.bf16.mxu0 %v7667
      %9018 = vmatmul.mubr.bf16.gmra.mxu0 %v7666
      %v9019 = vpop.f32.mrf.mxu0
      %v9020 = vadd.f32 %v8635, %v9019
      %v9021 = vpop.f32.mrf.mxu0
      %v9022 = vpop.f32.mrf.mxu0
      %v9023 = vadd.f32 %v8638, %v9022
      %v9024 = vpop.f32.mrf.mxu0
      %9025 = vmatprep.mubr.bf16.mxu0 %v7669
      %9026 = vmatmul.mubr.bf16.gmra.mxu0 %v7668
      %v9027 = vpop.f32.mrf.mxu0
      %v9028 = vadd.f32 %v8643, %v9027
      %v9029 = vpop.f32.mrf.mxu0
      %v9030 = vpop.f32.mrf.mxu0
      %v9031 = vadd.f32 %v8646, %v9030
      %v9032 = vpop.f32.mrf.mxu0
      %9033 = vmatprep.mubr.bf16.mxu0 %v7671
      %9034 = vmatmul.mubr.bf16.gmra.mxu0 %v7670
      %v9035 = vpop.f32.mrf.mxu0
      %v9036 = vadd.f32 %v8651, %v9035
      %v9037 = vpop.f32.mrf.mxu0
      %v9038 = vpop.f32.mrf.mxu0
      %v9039 = vadd.f32 %v8654, %v9038
      %v9040 = vpop.f32.mrf.mxu0
      %9041 = vmatprep.mubr.bf16.mxu0 %v7673
      %9042 = vmatmul.mubr.bf16.gmra.mxu0 %v7672
      %v9043 = vpop.f32.mrf.mxu0
      %v9044 = vadd.f32 %v8659, %v9043
      %v9045 = vpop.f32.mrf.mxu0
      %v9046 = vpop.f32.mrf.mxu0
      %v9047 = vadd.f32 %v8662, %v9046
      %v9048 = vpop.f32.mrf.mxu0
      %9049 = vmatprep.mubr.bf16.mxu0 %v7675
      %9050 = vmatmul.mubr.bf16.gmra.mxu0 %v7674
      %v9051 = vpop.f32.mrf.mxu0
      %v9052 = vadd.f32 %v8667, %v9051
      %v9053 = vpop.f32.mrf.mxu0
      %v9054 = vpop.f32.mrf.mxu0
      %v9055 = vadd.f32 %v8670, %v9054
      %v9056 = vpop.f32.mrf.mxu0
      %9057 = vmatprep.mubr.bf16.mxu0 %v7677
      %9058 = vmatmul.mubr.bf16.gmra.mxu0 %v7676
      %v9059 = vpop.f32.mrf.mxu0
      %v9060 = vadd.f32 %v8675, %v9059
      %v9061 = vpop.f32.mrf.mxu0
      %v9062 = vpop.f32.mrf.mxu0
      %v9063 = vadd.f32 %v8678, %v9062
      %v9064 = vpop.f32.mrf.mxu0
      %9065 = vmatprep.mubr.bf16.mxu0 %v7679
      %9066 = vmatmul.mubr.bf16.gmra.mxu0 %v7678
      %v9067 = vpop.f32.mrf.mxu0
      %v9068 = vadd.f32 %v8683, %v9067
      %v9069 = vpop.f32.mrf.mxu0
      %v9070 = vpop.f32.mrf.mxu0
      %v9071 = vadd.f32 %v8686, %v9070
      %v9072 = vpop.f32.mrf.mxu0
      %9073 = vmatprep.mubr.bf16.mxu0 %v7681
      %9074 = vmatmul.mubr.bf16.gmra.mxu0 %v7680
      %v9075 = vpop.f32.mrf.mxu0
      %v9076 = vadd.f32 %v8691, %v9075
      %v9077 = vpop.f32.mrf.mxu0
      %v9078 = vpop.f32.mrf.mxu0
      %v9079 = vadd.f32 %v8694, %v9078
      %v9080 = vpop.f32.mrf.mxu0
      %9081 = vmatprep.mubr.bf16.mxu0 %v7683
      %9082 = vmatmul.mubr.bf16.gmra.mxu0 %v7682
      %v9083 = vpop.f32.mrf.mxu0
      %v9084 = vadd.f32 %v8699, %v9083
      %v9085 = vpop.f32.mrf.mxu0
      %v9086 = vpop.f32.mrf.mxu0
      %v9087 = vadd.f32 %v8702, %v9086
      %v9088 = vpop.f32.mrf.mxu0
      %9089 = vmatprep.mubr.bf16.mxu0 %v7685
      %9090 = vmatmul.mubr.bf16.gmra.mxu0 %v7684
      %v9091 = vpop.f32.mrf.mxu0
      %v9092 = vadd.f32 %v8707, %v9091
      %v9093 = vpop.f32.mrf.mxu0
      %v9094 = vpop.f32.mrf.mxu0
      %v9095 = vadd.f32 %v8710, %v9094
      %v9096 = vpop.f32.mrf.mxu0
      %9097 = vmatprep.mubr.bf16.mxu0 %v7687
      %9098 = vmatmul.mubr.bf16.gmra.mxu0 %v7686
      %v9099 = vpop.f32.mrf.mxu0
      %v9100 = vadd.f32 %v8715, %v9099
      %v9101 = vpop.f32.mrf.mxu0
      %v9102 = vpop.f32.mrf.mxu0
      %v9103 = vadd.f32 %v8718, %v9102
      %v9104 = vpop.f32.mrf.mxu0
      %9105 = vmatprep.mubr.bf16.mxu0 %v7689
      %9106 = vmatmul.mubr.bf16.gmra.mxu0 %v7688
      %v9107 = vpop.f32.mrf.mxu0
      %v9108 = vadd.f32 %v8723, %v9107
      %v9109 = vpop.f32.mrf.mxu0
      %v9110 = vpop.f32.mrf.mxu0
      %v9111 = vadd.f32 %v8726, %v9110
      %v9112 = vpop.f32.mrf.mxu0
      %9113 = vmatprep.mubr.bf16.mxu0 %v7691
      %9114 = vmatmul.mubr.bf16.gmra.mxu0 %v7690
      %v9115 = vpop.f32.mrf.mxu0
      %v9116 = vadd.f32 %v8731, %v9115
      %v9117 = vpop.f32.mrf.mxu0
      %v9118 = vpop.f32.mrf.mxu0
      %v9119 = vadd.f32 %v8734, %v9118
      %v9120 = vpop.f32.mrf.mxu0
      %9121 = vmatprep.mubr.bf16.mxu0 %v7693
      %9122 = vmatmul.mubr.bf16.gmra.mxu0 %v7692
      %v9123 = vpop.f32.mrf.mxu0
      %v9124 = vadd.f32 %v8739, %v9123
      %v9125 = vpop.f32.mrf.mxu0
      %v9126 = vpop.f32.mrf.mxu0
      %v9127 = vadd.f32 %v8742, %v9126
      %v9128 = vpop.f32.mrf.mxu0
      %9129 = vmatprep.mubr.bf16.mxu0 %v7695
      %9130 = vmatmul.mubr.bf16.gmra.mxu0 %v7694
      %v9131 = vpop.f32.mrf.mxu0
      %v9132 = vadd.f32 %v8747, %v9131
      %v9133 = vpop.f32.mrf.mxu0
      %v9134 = vpop.f32.mrf.mxu0
      %v9135 = vadd.f32 %v8750, %v9134
      %v9136 = vpop.f32.mrf.mxu0
      %9137 = vmatprep.mubr.bf16.mxu0 %v7697
      %9138 = vmatmul.mubr.bf16.gmra.mxu0 %v7696
      %v9139 = vpop.f32.mrf.mxu0
      %v9140 = vadd.f32 %v8755, %v9139
      %v9141 = vpop.f32.mrf.mxu0
      %v9142 = vpop.f32.mrf.mxu0
      %v9143 = vadd.f32 %v8758, %v9142
      %v9144 = vpop.f32.mrf.mxu0
      %9145 = vmatprep.mubr.bf16.mxu0 %v7699
      %9146 = vmatmul.mubr.bf16.gmra.mxu0 %v7698
      %v9147 = vpop.f32.mrf.mxu0
      %v9148 = vadd.f32 %v8763, %v9147
      %v9149 = vpop.f32.mrf.mxu0
      %v9150 = vpop.f32.mrf.mxu0
      %v9151 = vadd.f32 %v8766, %v9150
      %v9152 = vpop.f32.mrf.mxu0
      %9153 = vmatprep.mubr.bf16.mxu0 %v7701
      %9154 = vmatmul.mubr.bf16.gmra.mxu0 %v7700
      %v9155 = vpop.f32.mrf.mxu0
      %v9156 = vadd.f32 %v8771, %v9155
      %v9157 = vpop.f32.mrf.mxu0
      %v9158 = vpop.f32.mrf.mxu0
      %v9159 = vadd.f32 %v8774, %v9158
      %v9160 = vpop.f32.mrf.mxu0
      %9161 = vmatprep.mubr.bf16.mxu0 %v7703
      %9162 = vmatmul.mubr.bf16.gmra.mxu0 %v7702
      %v9163 = vpop.f32.mrf.mxu0
      %v9164 = vadd.f32 %v8779, %v9163
      %v9165 = vpop.f32.mrf.mxu0
      %v9166 = vpop.f32.mrf.mxu0
      %v9167 = vadd.f32 %v8782, %v9166
      %v9168 = vpop.f32.mrf.mxu0
      %9169 = vmatprep.mubr.bf16.mxu0 %v7705
      %9170 = vmatmul.mubr.bf16.gmra.mxu0 %v7704
      %v9171 = vpop.f32.mrf.mxu0
      %v9172 = vadd.f32 %v8787, %v9171
      %v9173 = vpop.f32.mrf.mxu0
      %v9174 = vpop.f32.mrf.mxu0
      %v9175 = vadd.f32 %v8790, %v9174
      %v9176 = vpop.f32.mrf.mxu0
      %9177 = vmatprep.mubr.bf16.mxu0 %v7707
      %9178 = vmatmul.mubr.bf16.gmra.mxu0 %v7706
      %v9179 = vpop.f32.mrf.mxu0
      %v9180 = vadd.f32 %v8795, %v9179
      %v9181 = vpop.f32.mrf.mxu0
      %v9182 = vpop.f32.mrf.mxu0
      %v9183 = vadd.f32 %v8798, %v9182
      %v9184 = vpop.f32.mrf.mxu0
      %9185 = vmatprep.mubr.bf16.mxu0 %v7709
      %9186 = vmatmul.mubr.bf16.gmra.mxu0 %v7708
      %v9187 = vpop.f32.mrf.mxu0
      %v9188 = vadd.f32 %v8803, %v9187
      %v9189 = vpop.f32.mrf.mxu0
      %v9190 = vpop.f32.mrf.mxu0
      %v9191 = vadd.f32 %v8806, %v9190
      %v9192 = vpop.f32.mrf.mxu0
      %9193 = vmatprep.mubr.bf16.mxu0 %v7711
      %9194 = vmatmul.mubr.bf16.gmra.mxu0 %v7710
      %v9195 = vpop.f32.mrf.mxu0
      %v9196 = vadd.f32 %v8811, %v9195
      %v9197 = vpop.f32.mrf.mxu0
      %v9198 = vpop.f32.mrf.mxu0
      %v9199 = vadd.f32 %v8814, %v9198
      %v9200 = vpop.f32.mrf.mxu0
      %9201 = vmatprep.mubr.bf16.mxu0 %v7713
      %9202 = vmatmul.mubr.bf16.gmra.mxu0 %v7712
      %v9203 = vpop.f32.mrf.mxu0
      %v9204 = vadd.f32 %v8819, %v9203
      %v9205 = vpop.f32.mrf.mxu0
      %v9206 = vpop.f32.mrf.mxu0
      %v9207 = vadd.f32 %v8822, %v9206
      %v9208 = vpop.f32.mrf.mxu0
      %9209 = vmatprep.mubr.bf16.mxu0 %v7715
      %9210 = vmatmul.mubr.bf16.gmra.mxu0 %v7714
      %v9211 = vpop.f32.mrf.mxu0
      %v9212 = vadd.f32 %v8827, %v9211
      %v9213 = vpop.f32.mrf.mxu0
      %v9214 = vpop.f32.mrf.mxu0
      %v9215 = vadd.f32 %v8830, %v9214
      %v9216 = vpop.f32.mrf.mxu0
      %9217 = vmatprep.mubr.bf16.mxu0 %v7717
      %9218 = vmatmul.mubr.bf16.gmra.mxu0 %v7716
      %v9219 = vpop.f32.mrf.mxu0
      %v9220 = vadd.f32 %v8835, %v9219
      %v9221 = vpop.f32.mrf.mxu0
      %v9222 = vpop.f32.mrf.mxu0
      %v9223 = vadd.f32 %v8838, %v9222
      %v9224 = vpop.f32.mrf.mxu0
      %9225 = vmatprep.mubr.bf16.mxu0 %v7719
      %9226 = vmatmul.mubr.bf16.gmra.mxu0 %v7718
      %v9227 = vpop.f32.mrf.mxu0
      %v9228 = vadd.f32 %v8843, %v9227
      %v9229 = vpop.f32.mrf.mxu0
      %v9230 = vpop.f32.mrf.mxu0
      %v9231 = vadd.f32 %v8846, %v9230
      %v9232 = vpop.f32.mrf.mxu0
      %9233 = vmatprep.mubr.bf16.mxu0 %v7721
      %9234 = vmatmul.mubr.bf16.gmra.mxu0 %v7720
      %v9235 = vpop.f32.mrf.mxu0
      %v9236 = vadd.f32 %v8851, %v9235
      %v9237 = vpop.f32.mrf.mxu0
      %v9238 = vpop.f32.mrf.mxu0
      %v9239 = vadd.f32 %v8854, %v9238
      %v9240 = vpop.f32.mrf.mxu0
      %9241 = vdwg.mxu0
      %v9242 = vld [vmem:[%s7] sm:$0x1]
      %v9243 = vlaneseq
      %v9244 = vshrl.u32 %v9243, 7
      %v9245 = vsub.s32 0, %v9244
      %v9246 = vrot.slane %v9242, %v9245
      %v9247 = vadd.f32 %v8988, %v9246
      %v9248 = vadd.f32 %v8991, %v9246
      %v9249 = vadd.f32 %v8996, %v9246
      %v9250 = vadd.f32 %v8999, %v9246
      %v9251 = vadd.f32 %v9004, %v9246
      %v9252 = vadd.f32 %v9007, %v9246
      %v9253 = vadd.f32 %v9012, %v9246
      %v9254 = vadd.f32 %v9015, %v9246
      %v9255 = vadd.f32 %v9020, %v9246
      %v9256 = vadd.f32 %v9023, %v9246
      %v9257 = vadd.f32 %v9028, %v9246
      %v9258 = vadd.f32 %v9031, %v9246
      %v9259 = vadd.f32 %v9036, %v9246
      %v9260 = vadd.f32 %v9039, %v9246
      %v9261 = vadd.f32 %v9044, %v9246
      %v9262 = vadd.f32 %v9047, %v9246
      %v9263 = vadd.f32 %v9052, %v9246
      %v9264 = vadd.f32 %v9055, %v9246
      %v9265 = vadd.f32 %v9060, %v9246
      %v9266 = vadd.f32 %v9063, %v9246
      %v9267 = vadd.f32 %v9068, %v9246
      %v9268 = vadd.f32 %v9071, %v9246
      %v9269 = vadd.f32 %v9076, %v9246
      %v9270 = vadd.f32 %v9079, %v9246
      %v9271 = vadd.f32 %v9084, %v9246
      %v9272 = vadd.f32 %v9087, %v9246
      %v9273 = vadd.f32 %v9092, %v9246
      %v9274 = vadd.f32 %v9095, %v9246
      %v9275 = vadd.f32 %v9100, %v9246
      %v9276 = vadd.f32 %v9103, %v9246
      %v9277 = vadd.f32 %v9108, %v9246
      %v9278 = vadd.f32 %v9111, %v9246
      %v9279 = vadd.f32 %v9116, %v9246
      %v9280 = vadd.f32 %v9119, %v9246
      %v9281 = vadd.f32 %v9124, %v9246
      %v9282 = vadd.f32 %v9127, %v9246
      %v9283 = vadd.f32 %v9132, %v9246
      %v9284 = vadd.f32 %v9135, %v9246
      %v9285 = vadd.f32 %v9140, %v9246
      %v9286 = vadd.f32 %v9143, %v9246
      %v9287 = vadd.f32 %v9148, %v9246
      %v9288 = vadd.f32 %v9151, %v9246
      %v9289 = vadd.f32 %v9156, %v9246
      %v9290 = vadd.f32 %v9159, %v9246
      %v9291 = vadd.f32 %v9164, %v9246
      %v9292 = vadd.f32 %v9167, %v9246
      %v9293 = vadd.f32 %v9172, %v9246
      %v9294 = vadd.f32 %v9175, %v9246
      %v9295 = vadd.f32 %v9180, %v9246
      %v9296 = vadd.f32 %v9183, %v9246
      %v9297 = vadd.f32 %v9188, %v9246
      %v9298 = vadd.f32 %v9191, %v9246
      %v9299 = vadd.f32 %v9196, %v9246
      %v9300 = vadd.f32 %v9199, %v9246
      %v9301 = vadd.f32 %v9204, %v9246
      %v9302 = vadd.f32 %v9207, %v9246
      %v9303 = vadd.f32 %v9212, %v9246
      %v9304 = vadd.f32 %v9215, %v9246
      %v9305 = vadd.f32 %v9220, %v9246
      %v9306 = vadd.f32 %v9223, %v9246
      %v9307 = vadd.f32 %v9228, %v9246
      %v9308 = vadd.f32 %v9231, %v9246
      %v9309 = vadd.f32 %v9236, %v9246
      %v9310 = vadd.f32 %v9239, %v9246
      %v9311 = vmax.f32 %v9247, 0.0
      %v9312 = vmax.f32 %v9248, 0.0
      %v9313 = vmax.f32 %v9249, 0.0
      %v9314 = vmax.f32 %v9250, 0.0
      %v9315 = vmax.f32 %v9251, 0.0
      %v9316 = vmax.f32 %v9252, 0.0
      %v9317 = vmax.f32 %v9253, 0.0
      %v9318 = vmax.f32 %v9254, 0.0
      %v9319 = vmax.f32 %v9255, 0.0
      %v9320 = vmax.f32 %v9256, 0.0
      %v9321 = vmax.f32 %v9257, 0.0
      %v9322 = vmax.f32 %v9258, 0.0
      %v9323 = vmax.f32 %v9259, 0.0
      %v9324 = vmax.f32 %v9260, 0.0
      %v9325 = vmax.f32 %v9261, 0.0
      %v9326 = vmax.f32 %v9262, 0.0
      %v9327 = vmax.f32 %v9263, 0.0
      %v9328 = vmax.f32 %v9264, 0.0
      %v9329 = vmax.f32 %v9265, 0.0
      %v9330 = vmax.f32 %v9266, 0.0
      %v9331 = vmax.f32 %v9267, 0.0
      %v9332 = vmax.f32 %v9268, 0.0
      %v9333 = vmax.f32 %v9269, 0.0
      %v9334 = vmax.f32 %v9270, 0.0
      %v9335 = vmax.f32 %v9271, 0.0
      %v9336 = vmax.f32 %v9272, 0.0
      %v9337 = vmax.f32 %v9273, 0.0
      %v9338 = vmax.f32 %v9274, 0.0
      %v9339 = vmax.f32 %v9275, 0.0
      %v9340 = vmax.f32 %v9276, 0.0
      %v9341 = vmax.f32 %v9277, 0.0
      %v9342 = vmax.f32 %v9278, 0.0
      %v9343 = vmax.f32 %v9279, 0.0
      %v9344 = vmax.f32 %v9280, 0.0
      %v9345 = vmax.f32 %v9281, 0.0
      %v9346 = vmax.f32 %v9282, 0.0
      %v9347 = vmax.f32 %v9283, 0.0
      %v9348 = vmax.f32 %v9284, 0.0
      %v9349 = vmax.f32 %v9285, 0.0
      %v9350 = vmax.f32 %v9286, 0.0
      %v9351 = vmax.f32 %v9287, 0.0
      %v9352 = vmax.f32 %v9288, 0.0
      %v9353 = vmax.f32 %v9289, 0.0
      %v9354 = vmax.f32 %v9290, 0.0
      %v9355 = vmax.f32 %v9291, 0.0
      %v9356 = vmax.f32 %v9292, 0.0
      %v9357 = vmax.f32 %v9293, 0.0
      %v9358 = vmax.f32 %v9294, 0.0
      %v9359 = vmax.f32 %v9295, 0.0
      %v9360 = vmax.f32 %v9296, 0.0
      %v9361 = vmax.f32 %v9297, 0.0
      %v9362 = vmax.f32 %v9298, 0.0
      %v9363 = vmax.f32 %v9299, 0.0
      %v9364 = vmax.f32 %v9300, 0.0
      %v9365 = vmax.f32 %v9301, 0.0
      %v9366 = vmax.f32 %v9302, 0.0
      %v9367 = vmax.f32 %v9303, 0.0
      %v9368 = vmax.f32 %v9304, 0.0
      %v9369 = vmax.f32 %v9305, 0.0
      %v9370 = vmax.f32 %v9306, 0.0
      %v9371 = vmax.f32 %v9307, 0.0
      %v9372 = vmax.f32 %v9308, 0.0
      %v9373 = vmax.f32 %v9309, 0.0
      %v9374 = vmax.f32 %v9310, 0.0
      %v9375 = vpack.c.bf16 %v9312, %v9311
      %v9376 = vpack.c.bf16 %v9314, %v9313
      %v9377 = vpack.c.bf16 %v9316, %v9315
      %v9378 = vpack.c.bf16 %v9318, %v9317
      %v9379 = vpack.c.bf16 %v9320, %v9319
      %v9380 = vpack.c.bf16 %v9322, %v9321
      %v9381 = vpack.c.bf16 %v9324, %v9323
      %v9382 = vpack.c.bf16 %v9326, %v9325
      %v9383 = vpack.c.bf16 %v9328, %v9327
      %v9384 = vpack.c.bf16 %v9330, %v9329
      %v9385 = vpack.c.bf16 %v9332, %v9331
      %v9386 = vpack.c.bf16 %v9334, %v9333
      %v9387 = vpack.c.bf16 %v9336, %v9335
      %v9388 = vpack.c.bf16 %v9338, %v9337
      %v9389 = vpack.c.bf16 %v9340, %v9339
      %v9390 = vpack.c.bf16 %v9342, %v9341
      %v9391 = vpack.c.bf16 %v9344, %v9343
      %v9392 = vpack.c.bf16 %v9346, %v9345
      %v9393 = vpack.c.bf16 %v9348, %v9347
      %v9394 = vpack.c.bf16 %v9350, %v9349
      %v9395 = vpack.c.bf16 %v9352, %v9351
      %v9396 = vpack.c.bf16 %v9354, %v9353
      %v9397 = vpack.c.bf16 %v9356, %v9355
      %v9398 = vpack.c.bf16 %v9358, %v9357
      %v9399 = vpack.c.bf16 %v9360, %v9359
      %v9400 = vpack.c.bf16 %v9362, %v9361
      %v9401 = vpack.c.bf16 %v9364, %v9363
      %v9402 = vpack.c.bf16 %v9366, %v9365
      %v9403 = vpack.c.bf16 %v9368, %v9367
      %v9404 = vpack.c.bf16 %v9370, %v9369
      %v9405 = vpack.c.bf16 %v9372, %v9371
      %v9406 = vpack.c.bf16 %v9374, %v9373
      %v9407 = vld [vmem:[%s6 + $0xa0] sm:$0xf]
      %v9408 = vld [vmem:[%s6 + $0xa4] sm:$0xf]
      %v9409 = vld [vmem:[%s6 + $0xa8] sm:$0xf]
      %v9410 = vld [vmem:[%s6 + $0xac] sm:$0xf]
      %v9411 = vld [vmem:[%s6 + $0xb0] sm:$0xf]
      %v9412 = vld [vmem:[%s6 + $0xb4] sm:$0xf]
      %v9413 = vld [vmem:[%s6 + $0xb8] sm:$0xf]
      %v9414 = vld [vmem:[%s6 + $0xbc] sm:$0xf]
      %v9415 = vld [vmem:[%s6 + $0xc0] sm:$0xf]
      %v9416 = vld [vmem:[%s6 + $0xc4] sm:$0xf]
      %v9417 = vld [vmem:[%s6 + $0xc8] sm:$0xf]
      %v9418 = vld [vmem:[%s6 + $0xcc] sm:$0xf]
      %v9419 = vld [vmem:[%s6 + $0xd0] sm:$0xf]
      %v9420 = vld [vmem:[%s6 + $0xd4] sm:$0xf]
      %v9421 = vld [vmem:[%s6 + $0xd8] sm:$0xf]
      %v9422 = vld [vmem:[%s6 + $0xdc] sm:$0xf]
      %v9423 = vld [vmem:[%s7 + $0x1] sm:$0x1]
      %v9424 = vlaneseq
      %v9425 = vshrl.u32 %v9424, 7
      %v9426 = vsub.s32 0, %v9425
      %v9427 = vrot.slane %v9423, %v9426
      %v9444 = vunpack.c.l.b16 %v9407
      %v9445 = vunpack.c.l.b16 %v9408
      %v9446 = vunpack.c.l.b16 %v9409
      %v9447 = vunpack.c.l.b16 %v9410
      %v9448 = vunpack.c.l.b16 %v9411
      %v9449 = vunpack.c.l.b16 %v9412
      %v9450 = vunpack.c.l.b16 %v9413
      %v9451 = vunpack.c.l.b16 %v9414
      %v9452 = vunpack.c.l.b16 %v9415
      %v9453 = vunpack.c.l.b16 %v9416
      %v9454 = vunpack.c.l.b16 %v9417
      %v9455 = vunpack.c.l.b16 %v9418
      %v9456 = vunpack.c.l.b16 %v9419
      %v9457 = vunpack.c.l.b16 %v9420
      %v9458 = vunpack.c.l.b16 %v9421
      %v9459 = vunpack.c.l.b16 %v9422
      %v9460 = vpack.c.b16 %v9445, %v9444
      %v9461 = vpack.c.b16 %v9447, %v9446
      %v9462 = vpack.c.b16 %v9449, %v9448
      %v9463 = vpack.c.b16 %v9451, %v9450
      %v9464 = vpack.c.b16 %v9453, %v9452
      %v9465 = vpack.c.b16 %v9455, %v9454
      %v9466 = vpack.c.b16 %v9457, %v9456
      %v9467 = vpack.c.b16 %v9459, %v9458
      %9476 = vmatprep.subr.bf16.mxu0 0
      %9477 = vmatpush1.bf16.msra.mxu0 %v9467
      %9478 = vmatprep.subr.bf16.mxu0 0
      %9479 = vmatpush1.bf16.msra.mxu0 %v9466
      %9480 = vmatprep.subr.bf16.mxu0 0
      %9481 = vmatpush1.bf16.msra.mxu0 %v9465
      %9482 = vmatprep.subr.bf16.mxu0 0
      %9483 = vmatpush1.bf16.msra.mxu0 %v9464
      %9484 = vmatprep.subr.bf16.mxu0 0
      %9485 = vmatpush1.bf16.msra.mxu0 %v9463
      %9486 = vmatprep.subr.bf16.mxu0 0
      %9487 = vmatpush1.bf16.msra.mxu0 %v9462
      %9488 = vmatprep.subr.bf16.mxu0 0
      %9489 = vmatpush1.bf16.msra.mxu0 %v9461
      %9490 = vmatprep.subr.bf16.mxu0 0
      %9491 = vmatpush1.bf16.msra.mxu0 %v9460
      %9492 = vmatprep.subr.bf16.mxu0 0
      %9493 = vmatpush2.bf16.msra.mxu0 0
      %9494 = vmatprep.subr.bf16.mxu0 0
      %9495 = vmatpush2.bf16.msra.mxu0 0
      %9496 = vmatprep.subr.bf16.mxu0 0
      %9497 = vmatpush2.bf16.msra.mxu0 0
      %9498 = vmatprep.subr.bf16.mxu0 0
      %9499 = vmatpush2.bf16.msra.mxu0 0
      %9500 = vmatprep.subr.bf16.mxu0 0
      %9501 = vmatpush2.bf16.msra.mxu0 0
      %9502 = vmatprep.subr.bf16.mxu0 0
      %9503 = vmatpush2.bf16.msra.mxu0 0
      %9504 = vmatprep.subr.bf16.mxu0 0
      %9505 = vmatpush2.bf16.msra.mxu0 0
      %9506 = vmatprep.subr.bf16.mxu0 0
      %9507 = vmatpush2.bf16.msra.mxu0 0
      %9508 = vmatprep.mubr.bf16.mxu0 0
      %9509 = vmatmul.mubr.bf16.gmra.mxu0 %v9375
      %v9510 = vpop.f32.mrf.mxu0
      %v9511 = vadd.f32 %v9427, %v9510
      %v9512 = vpop.f32.mrf.mxu0
      %v9513 = vpop.f32.mrf.mxu0
      %v9514 = vadd.f32 %v9427, %v9513
      %v9515 = vpop.f32.mrf.mxu0
      %9516 = vmatprep.mubr.bf16.mxu0 0
      %9517 = vmatmul.mubr.bf16.gmra.mxu0 %v9376
      %v9518 = vpop.f32.mrf.mxu0
      %v9519 = vadd.f32 %v9427, %v9518
      %v9520 = vpop.f32.mrf.mxu0
      %v9521 = vpop.f32.mrf.mxu0
      %v9522 = vadd.f32 %v9427, %v9521
      %v9523 = vpop.f32.mrf.mxu0
      %9524 = vmatprep.mubr.bf16.mxu0 0
      %9525 = vmatmul.mubr.bf16.gmra.mxu0 %v9377
      %v9526 = vpop.f32.mrf.mxu0
      %v9527 = vadd.f32 %v9427, %v9526
      %v9528 = vpop.f32.mrf.mxu0
      %v9529 = vpop.f32.mrf.mxu0
      %v9530 = vadd.f32 %v9427, %v9529
      %v9531 = vpop.f32.mrf.mxu0
      %9532 = vmatprep.mubr.bf16.mxu0 0
      %9533 = vmatmul.mubr.bf16.gmra.mxu0 %v9378
      %v9534 = vpop.f32.mrf.mxu0
      %v9535 = vadd.f32 %v9427, %v9534
      %v9536 = vpop.f32.mrf.mxu0
      %v9537 = vpop.f32.mrf.mxu0
      %v9538 = vadd.f32 %v9427, %v9537
      %v9539 = vpop.f32.mrf.mxu0
      %9540 = vmatprep.mubr.bf16.mxu0 0
      %9541 = vmatmul.mubr.bf16.gmra.mxu0 %v9379
      %v9542 = vpop.f32.mrf.mxu0
      %v9543 = vadd.f32 %v9427, %v9542
      %v9544 = vpop.f32.mrf.mxu0
      %v9545 = vpop.f32.mrf.mxu0
      %v9546 = vadd.f32 %v9427, %v9545
      %v9547 = vpop.f32.mrf.mxu0
      %9548 = vmatprep.mubr.bf16.mxu0 0
      %9549 = vmatmul.mubr.bf16.gmra.mxu0 %v9380
      %v9550 = vpop.f32.mrf.mxu0
      %v9551 = vadd.f32 %v9427, %v9550
      %v9552 = vpop.f32.mrf.mxu0
      %v9553 = vpop.f32.mrf.mxu0
      %v9554 = vadd.f32 %v9427, %v9553
      %v9555 = vpop.f32.mrf.mxu0
      %9556 = vmatprep.mubr.bf16.mxu0 0
      %9557 = vmatmul.mubr.bf16.gmra.mxu0 %v9381
      %v9558 = vpop.f32.mrf.mxu0
      %v9559 = vadd.f32 %v9427, %v9558
      %v9560 = vpop.f32.mrf.mxu0
      %v9561 = vpop.f32.mrf.mxu0
      %v9562 = vadd.f32 %v9427, %v9561
      %v9563 = vpop.f32.mrf.mxu0
      %9564 = vmatprep.mubr.bf16.mxu0 0
      %9565 = vmatmul.mubr.bf16.gmra.mxu0 %v9382
      %v9566 = vpop.f32.mrf.mxu0
      %v9567 = vadd.f32 %v9427, %v9566
      %v9568 = vpop.f32.mrf.mxu0
      %v9569 = vpop.f32.mrf.mxu0
      %v9570 = vadd.f32 %v9427, %v9569
      %v9571 = vpop.f32.mrf.mxu0
      %9572 = vmatprep.mubr.bf16.mxu0 0
      %9573 = vmatmul.mubr.bf16.gmra.mxu0 %v9383
      %v9574 = vpop.f32.mrf.mxu0
      %v9575 = vadd.f32 %v9427, %v9574
      %v9576 = vpop.f32.mrf.mxu0
      %v9577 = vpop.f32.mrf.mxu0
      %v9578 = vadd.f32 %v9427, %v9577
      %v9579 = vpop.f32.mrf.mxu0
      %9580 = vmatprep.mubr.bf16.mxu0 0
      %9581 = vmatmul.mubr.bf16.gmra.mxu0 %v9384
      %v9582 = vpop.f32.mrf.mxu0
      %v9583 = vadd.f32 %v9427, %v9582
      %v9584 = vpop.f32.mrf.mxu0
      %v9585 = vpop.f32.mrf.mxu0
      %v9586 = vadd.f32 %v9427, %v9585
      %v9587 = vpop.f32.mrf.mxu0
      %9588 = vmatprep.mubr.bf16.mxu0 0
      %9589 = vmatmul.mubr.bf16.gmra.mxu0 %v9385
      %v9590 = vpop.f32.mrf.mxu0
      %v9591 = vadd.f32 %v9427, %v9590
      %v9592 = vpop.f32.mrf.mxu0
      %v9593 = vpop.f32.mrf.mxu0
      %v9594 = vadd.f32 %v9427, %v9593
      %v9595 = vpop.f32.mrf.mxu0
      %9596 = vmatprep.mubr.bf16.mxu0 0
      %9597 = vmatmul.mubr.bf16.gmra.mxu0 %v9386
      %v9598 = vpop.f32.mrf.mxu0
      %v9599 = vadd.f32 %v9427, %v9598
      %v9600 = vpop.f32.mrf.mxu0
      %v9601 = vpop.f32.mrf.mxu0
      %v9602 = vadd.f32 %v9427, %v9601
      %v9603 = vpop.f32.mrf.mxu0
      %9604 = vmatprep.mubr.bf16.mxu0 0
      %9605 = vmatmul.mubr.bf16.gmra.mxu0 %v9387
      %v9606 = vpop.f32.mrf.mxu0
      %v9607 = vadd.f32 %v9427, %v9606
      %v9608 = vpop.f32.mrf.mxu0
      %v9609 = vpop.f32.mrf.mxu0
      %v9610 = vadd.f32 %v9427, %v9609
      %v9611 = vpop.f32.mrf.mxu0
      %9612 = vmatprep.mubr.bf16.mxu0 0
      %9613 = vmatmul.mubr.bf16.gmra.mxu0 %v9388
      %v9614 = vpop.f32.mrf.mxu0
      %v9615 = vadd.f32 %v9427, %v9614
      %v9616 = vpop.f32.mrf.mxu0
      %v9617 = vpop.f32.mrf.mxu0
      %v9618 = vadd.f32 %v9427, %v9617
      %v9619 = vpop.f32.mrf.mxu0
      %9620 = vmatprep.mubr.bf16.mxu0 0
      %9621 = vmatmul.mubr.bf16.gmra.mxu0 %v9389
      %v9622 = vpop.f32.mrf.mxu0
      %v9623 = vadd.f32 %v9427, %v9622
      %v9624 = vpop.f32.mrf.mxu0
      %v9625 = vpop.f32.mrf.mxu0
      %v9626 = vadd.f32 %v9427, %v9625
      %v9627 = vpop.f32.mrf.mxu0
      %9628 = vmatprep.mubr.bf16.mxu0 0
      %9629 = vmatmul.mubr.bf16.gmra.mxu0 %v9390
      %v9630 = vpop.f32.mrf.mxu0
      %v9631 = vadd.f32 %v9427, %v9630
      %v9632 = vpop.f32.mrf.mxu0
      %v9633 = vpop.f32.mrf.mxu0
      %v9634 = vadd.f32 %v9427, %v9633
      %v9635 = vpop.f32.mrf.mxu0
      %9636 = vmatprep.mubr.bf16.mxu0 0
      %9637 = vmatmul.mubr.bf16.gmra.mxu0 %v9391
      %v9638 = vpop.f32.mrf.mxu0
      %v9639 = vadd.f32 %v9427, %v9638
      %v9640 = vpop.f32.mrf.mxu0
      %v9641 = vpop.f32.mrf.mxu0
      %v9642 = vadd.f32 %v9427, %v9641
      %v9643 = vpop.f32.mrf.mxu0
      %9644 = vmatprep.mubr.bf16.mxu0 0
      %9645 = vmatmul.mubr.bf16.gmra.mxu0 %v9392
      %v9646 = vpop.f32.mrf.mxu0
      %v9647 = vadd.f32 %v9427, %v9646
      %v9648 = vpop.f32.mrf.mxu0
      %v9649 = vpop.f32.mrf.mxu0
      %v9650 = vadd.f32 %v9427, %v9649
      %v9651 = vpop.f32.mrf.mxu0
      %9652 = vmatprep.mubr.bf16.mxu0 0
      %9653 = vmatmul.mubr.bf16.gmra.mxu0 %v9393
      %v9654 = vpop.f32.mrf.mxu0
      %v9655 = vadd.f32 %v9427, %v9654
      %v9656 = vpop.f32.mrf.mxu0
      %v9657 = vpop.f32.mrf.mxu0
      %v9658 = vadd.f32 %v9427, %v9657
      %v9659 = vpop.f32.mrf.mxu0
      %9660 = vmatprep.mubr.bf16.mxu0 0
      %9661 = vmatmul.mubr.bf16.gmra.mxu0 %v9394
      %v9662 = vpop.f32.mrf.mxu0
      %v9663 = vadd.f32 %v9427, %v9662
      %v9664 = vpop.f32.mrf.mxu0
      %v9665 = vpop.f32.mrf.mxu0
      %v9666 = vadd.f32 %v9427, %v9665
      %v9667 = vpop.f32.mrf.mxu0
      %9668 = vmatprep.mubr.bf16.mxu0 0
      %9669 = vmatmul.mubr.bf16.gmra.mxu0 %v9395
      %v9670 = vpop.f32.mrf.mxu0
      %v9671 = vadd.f32 %v9427, %v9670
      %v9672 = vpop.f32.mrf.mxu0
      %v9673 = vpop.f32.mrf.mxu0
      %v9674 = vadd.f32 %v9427, %v9673
      %v9675 = vpop.f32.mrf.mxu0
      %9676 = vmatprep.mubr.bf16.mxu0 0
      %9677 = vmatmul.mubr.bf16.gmra.mxu0 %v9396
      %v9678 = vpop.f32.mrf.mxu0
      %v9679 = vadd.f32 %v9427, %v9678
      %v9680 = vpop.f32.mrf.mxu0
      %v9681 = vpop.f32.mrf.mxu0
      %v9682 = vadd.f32 %v9427, %v9681
      %v9683 = vpop.f32.mrf.mxu0
      %9684 = vmatprep.mubr.bf16.mxu0 0
      %9685 = vmatmul.mubr.bf16.gmra.mxu0 %v9397
      %v9686 = vpop.f32.mrf.mxu0
      %v9687 = vadd.f32 %v9427, %v9686
      %v9688 = vpop.f32.mrf.mxu0
      %v9689 = vpop.f32.mrf.mxu0
      %v9690 = vadd.f32 %v9427, %v9689
      %v9691 = vpop.f32.mrf.mxu0
      %9692 = vmatprep.mubr.bf16.mxu0 0
      %9693 = vmatmul.mubr.bf16.gmra.mxu0 %v9398
      %v9694 = vpop.f32.mrf.mxu0
      %v9695 = vadd.f32 %v9427, %v9694
      %v9696 = vpop.f32.mrf.mxu0
      %v9697 = vpop.f32.mrf.mxu0
      %v9698 = vadd.f32 %v9427, %v9697
      %v9699 = vpop.f32.mrf.mxu0
      %9700 = vmatprep.mubr.bf16.mxu0 0
      %9701 = vmatmul.mubr.bf16.gmra.mxu0 %v9399
      %v9702 = vpop.f32.mrf.mxu0
      %v9703 = vadd.f32 %v9427, %v9702
      %v9704 = vpop.f32.mrf.mxu0
      %v9705 = vpop.f32.mrf.mxu0
      %v9706 = vadd.f32 %v9427, %v9705
      %v9707 = vpop.f32.mrf.mxu0
      %9708 = vmatprep.mubr.bf16.mxu0 0
      %9709 = vmatmul.mubr.bf16.gmra.mxu0 %v9400
      %v9710 = vpop.f32.mrf.mxu0
      %v9711 = vadd.f32 %v9427, %v9710
      %v9712 = vpop.f32.mrf.mxu0
      %v9713 = vpop.f32.mrf.mxu0
      %v9714 = vadd.f32 %v9427, %v9713
      %v9715 = vpop.f32.mrf.mxu0
      %9716 = vmatprep.mubr.bf16.mxu0 0
      %9717 = vmatmul.mubr.bf16.gmra.mxu0 %v9401
      %v9718 = vpop.f32.mrf.mxu0
      %v9719 = vadd.f32 %v9427, %v9718
      %v9720 = vpop.f32.mrf.mxu0
      %v9721 = vpop.f32.mrf.mxu0
      %v9722 = vadd.f32 %v9427, %v9721
      %v9723 = vpop.f32.mrf.mxu0
      %9724 = vmatprep.mubr.bf16.mxu0 0
      %9725 = vmatmul.mubr.bf16.gmra.mxu0 %v9402
      %v9726 = vpop.f32.mrf.mxu0
      %v9727 = vadd.f32 %v9427, %v9726
      %v9728 = vpop.f32.mrf.mxu0
      %v9729 = vpop.f32.mrf.mxu0
      %v9730 = vadd.f32 %v9427, %v9729
      %v9731 = vpop.f32.mrf.mxu0
      %9732 = vmatprep.mubr.bf16.mxu0 0
      %9733 = vmatmul.mubr.bf16.gmra.mxu0 %v9403
      %v9734 = vpop.f32.mrf.mxu0
      %v9735 = vadd.f32 %v9427, %v9734
      %v9736 = vpop.f32.mrf.mxu0
      %v9737 = vpop.f32.mrf.mxu0
      %v9738 = vadd.f32 %v9427, %v9737
      %v9739 = vpop.f32.mrf.mxu0
      %9740 = vmatprep.mubr.bf16.mxu0 0
      %9741 = vmatmul.mubr.bf16.gmra.mxu0 %v9404
      %v9742 = vpop.f32.mrf.mxu0
      %v9743 = vadd.f32 %v9427, %v9742
      %v9744 = vpop.f32.mrf.mxu0
      %v9745 = vpop.f32.mrf.mxu0
      %v9746 = vadd.f32 %v9427, %v9745
      %v9747 = vpop.f32.mrf.mxu0
      %9748 = vmatprep.mubr.bf16.mxu0 0
      %9749 = vmatmul.mubr.bf16.gmra.mxu0 %v9405
      %v9750 = vpop.f32.mrf.mxu0
      %v9751 = vadd.f32 %v9427, %v9750
      %v9752 = vpop.f32.mrf.mxu0
      %v9753 = vpop.f32.mrf.mxu0
      %v9754 = vadd.f32 %v9427, %v9753
      %v9755 = vpop.f32.mrf.mxu0
      %9756 = vmatprep.mubr.bf16.mxu0 0
      %9757 = vmatmul.mubr.bf16.gmra.mxu0 %v9406
      %v9758 = vpop.f32.mrf.mxu0
      %v9759 = vadd.f32 %v9427, %v9758
      %v9760 = vpop.f32.mrf.mxu0
      %v9761 = vpop.f32.mrf.mxu0
      %v9762 = vadd.f32 %v9427, %v9761
      %v9763 = vpop.f32.mrf.mxu0
      %9764 = vdwg.mxu0
      %v9765 = vxor.u32 %v9511, 2147483648
      %v9766 = vxor.u32 %v9514, 2147483648
      %v9767 = vxor.u32 %v9519, 2147483648
      %v9768 = vxor.u32 %v9522, 2147483648
      %v9769 = vxor.u32 %v9527, 2147483648
      %v9770 = vxor.u32 %v9530, 2147483648
      %v9771 = vxor.u32 %v9535, 2147483648
      %v9772 = vxor.u32 %v9538, 2147483648
      %v9773 = vxor.u32 %v9543, 2147483648
      %v9774 = vxor.u32 %v9546, 2147483648
      %v9775 = vxor.u32 %v9551, 2147483648
      %v9776 = vxor.u32 %v9554, 2147483648
      %v9777 = vxor.u32 %v9559, 2147483648
      %v9778 = vxor.u32 %v9562, 2147483648
      %v9779 = vxor.u32 %v9567, 2147483648
      %v9780 = vxor.u32 %v9570, 2147483648
      %v9781 = vxor.u32 %v9575, 2147483648
      %v9782 = vxor.u32 %v9578, 2147483648
      %v9783 = vxor.u32 %v9583, 2147483648
      %v9784 = vxor.u32 %v9586, 2147483648
      %v9785 = vxor.u32 %v9591, 2147483648
      %v9786 = vxor.u32 %v9594, 2147483648
      %v9787 = vxor.u32 %v9599, 2147483648
      %v9788 = vxor.u32 %v9602, 2147483648
      %v9789 = vxor.u32 %v9607, 2147483648
      %v9790 = vxor.u32 %v9610, 2147483648
      %v9791 = vxor.u32 %v9615, 2147483648
      %v9792 = vxor.u32 %v9618, 2147483648
      %v9793 = vxor.u32 %v9623, 2147483648
      %v9794 = vxor.u32 %v9626, 2147483648
      %v9795 = vxor.u32 %v9631, 2147483648
      %v9796 = vxor.u32 %v9634, 2147483648
      %v9797 = vxor.u32 %v9639, 2147483648
      %v9798 = vxor.u32 %v9642, 2147483648
      %v9799 = vxor.u32 %v9647, 2147483648
      %v9800 = vxor.u32 %v9650, 2147483648
      %v9801 = vxor.u32 %v9655, 2147483648
      %v9802 = vxor.u32 %v9658, 2147483648
      %v9803 = vxor.u32 %v9663, 2147483648
      %v9804 = vxor.u32 %v9666, 2147483648
      %v9805 = vxor.u32 %v9671, 2147483648
      %v9806 = vxor.u32 %v9674, 2147483648
      %v9807 = vxor.u32 %v9679, 2147483648
      %v9808 = vxor.u32 %v9682, 2147483648
      %v9809 = vxor.u32 %v9687, 2147483648
      %v9810 = vxor.u32 %v9690, 2147483648
      %v9811 = vxor.u32 %v9695, 2147483648
      %v9812 = vxor.u32 %v9698, 2147483648
      %v9813 = vxor.u32 %v9703, 2147483648
      %v9814 = vxor.u32 %v9706, 2147483648
      %v9815 = vxor.u32 %v9711, 2147483648
      %v9816 = vxor.u32 %v9714, 2147483648
      %v9817 = vxor.u32 %v9719, 2147483648
      %v9818 = vxor.u32 %v9722, 2147483648
      %v9819 = vxor.u32 %v9727, 2147483648
      %v9820 = vxor.u32 %v9730, 2147483648
      %v9821 = vxor.u32 %v9735, 2147483648
      %v9822 = vxor.u32 %v9738, 2147483648
      %v9823 = vxor.u32 %v9743, 2147483648
      %v9824 = vxor.u32 %v9746, 2147483648
      %v9825 = vxor.u32 %v9751, 2147483648
      %v9826 = vxor.u32 %v9754, 2147483648
      %v9827 = vxor.u32 %v9759, 2147483648
      %v9828 = vxor.u32 %v9762, 2147483648
      %v9829 = vmul.f32 %v9765, 1.442695
      %v9830 = vpow.pop %v9829
      %v9831 = vmul.f32 %v9766, 1.442695
      %v9832 = vpow.pop %v9831
      %v9833 = vmul.f32 %v9767, 1.442695
      %v9834 = vpow.pop %v9833
      %v9835 = vmul.f32 %v9768, 1.442695
      %v9836 = vpow.pop %v9835
      %v9837 = vmul.f32 %v9769, 1.442695
      %v9838 = vpow.pop %v9837
      %v9839 = vmul.f32 %v9770, 1.442695
      %v9840 = vpow.pop %v9839
      %v9841 = vmul.f32 %v9771, 1.442695
      %v9842 = vpow.pop %v9841
      %v9843 = vmul.f32 %v9772, 1.442695
      %v9844 = vpow.pop %v9843
      %v9845 = vmul.f32 %v9773, 1.442695
      %v9846 = vpow.pop %v9845
      %v9847 = vmul.f32 %v9774, 1.442695
      %v9848 = vpow.pop %v9847
      %v9849 = vmul.f32 %v9775, 1.442695
      %v9850 = vpow.pop %v9849
      %v9851 = vmul.f32 %v9776, 1.442695
      %v9852 = vpow.pop %v9851
      %v9853 = vmul.f32 %v9777, 1.442695
      %v9854 = vpow.pop %v9853
      %v9855 = vmul.f32 %v9778, 1.442695
      %v9856 = vpow.pop %v9855
      %v9857 = vmul.f32 %v9779, 1.442695
      %v9858 = vpow.pop %v9857
      %v9859 = vmul.f32 %v9780, 1.442695
      %v9860 = vpow.pop %v9859
      %v9861 = vmul.f32 %v9781, 1.442695
      %v9862 = vpow.pop %v9861
      %v9863 = vmul.f32 %v9782, 1.442695
      %v9864 = vpow.pop %v9863
      %v9865 = vmul.f32 %v9783, 1.442695
      %v9866 = vpow.pop %v9865
      %v9867 = vmul.f32 %v9784, 1.442695
      %v9868 = vpow.pop %v9867
      %v9869 = vmul.f32 %v9785, 1.442695
      %v9870 = vpow.pop %v9869
      %v9871 = vmul.f32 %v9786, 1.442695
      %v9872 = vpow.pop %v9871
      %v9873 = vmul.f32 %v9787, 1.442695
      %v9874 = vpow.pop %v9873
      %v9875 = vmul.f32 %v9788, 1.442695
      %v9876 = vpow.pop %v9875
      %v9877 = vmul.f32 %v9789, 1.442695
      %v9878 = vpow.pop %v9877
      %v9879 = vmul.f32 %v9790, 1.442695
      %v9880 = vpow.pop %v9879
      %v9881 = vmul.f32 %v9791, 1.442695
      %v9882 = vpow.pop %v9881
      %v9883 = vmul.f32 %v9792, 1.442695
      %v9884 = vpow.pop %v9883
      %v9885 = vmul.f32 %v9793, 1.442695
      %v9886 = vpow.pop %v9885
      %v9887 = vmul.f32 %v9794, 1.442695
      %v9888 = vpow.pop %v9887
      %v9889 = vmul.f32 %v9795, 1.442695
      %v9890 = vpow.pop %v9889
      %v9891 = vmul.f32 %v9796, 1.442695
      %v9892 = vpow.pop %v9891
      %v9893 = vmul.f32 %v9797, 1.442695
      %v9894 = vpow.pop %v9893
      %v9895 = vmul.f32 %v9798, 1.442695
      %v9896 = vpow.pop %v9895
      %v9897 = vmul.f32 %v9799, 1.442695
      %v9898 = vpow.pop %v9897
      %v9899 = vmul.f32 %v9800, 1.442695
      %v9900 = vpow.pop %v9899
      %v9901 = vmul.f32 %v9801, 1.442695
      %v9902 = vpow.pop %v9901
      %v9903 = vmul.f32 %v9802, 1.442695
      %v9904 = vpow.pop %v9903
      %v9905 = vmul.f32 %v9803, 1.442695
      %v9906 = vpow.pop %v9905
      %v9907 = vmul.f32 %v9804, 1.442695
      %v9908 = vpow.pop %v9907
      %v9909 = vmul.f32 %v9805, 1.442695
      %v9910 = vpow.pop %v9909
      %v9911 = vmul.f32 %v9806, 1.442695
      %v9912 = vpow.pop %v9911
      %v9913 = vmul.f32 %v9807, 1.442695
      %v9914 = vpow.pop %v9913
      %v9915 = vmul.f32 %v9808, 1.442695
      %v9916 = vpow.pop %v9915
      %v9917 = vmul.f32 %v9809, 1.442695
      %v9918 = vpow.pop %v9917
      %v9919 = vmul.f32 %v9810, 1.442695
      %v9920 = vpow.pop %v9919
      %v9921 = vmul.f32 %v9811, 1.442695
      %v9922 = vpow.pop %v9921
      %v9923 = vmul.f32 %v9812, 1.442695
      %v9924 = vpow.pop %v9923
      %v9925 = vmul.f32 %v9813, 1.442695
      %v9926 = vpow.pop %v9925
      %v9927 = vmul.f32 %v9814, 1.442695
      %v9928 = vpow.pop %v9927
      %v9929 = vmul.f32 %v9815, 1.442695
      %v9930 = vpow.pop %v9929
      %v9931 = vmul.f32 %v9816, 1.442695
      %v9932 = vpow.pop %v9931
      %v9933 = vmul.f32 %v9817, 1.442695
      %v9934 = vpow.pop %v9933
      %v9935 = vmul.f32 %v9818, 1.442695
      %v9936 = vpow.pop %v9935
      %v9937 = vmul.f32 %v9819, 1.442695
      %v9938 = vpow.pop %v9937
      %v9939 = vmul.f32 %v9820, 1.442695
      %v9940 = vpow.pop %v9939
      %v9941 = vmul.f32 %v9821, 1.442695
      %v9942 = vpow.pop %v9941
      %v9943 = vmul.f32 %v9822, 1.442695
      %v9944 = vpow.pop %v9943
      %v9945 = vmul.f32 %v9823, 1.442695
      %v9946 = vpow.pop %v9945
      %v9947 = vmul.f32 %v9824, 1.442695
      %v9948 = vpow.pop %v9947
      %v9949 = vmul.f32 %v9825, 1.442695
      %v9950 = vpow.pop %v9949
      %v9951 = vmul.f32 %v9826, 1.442695
      %v9952 = vpow.pop %v9951
      %v9953 = vmul.f32 %v9827, 1.442695
      %v9954 = vpow.pop %v9953
      %v9955 = vmul.f32 %v9828, 1.442695
      %v9956 = vpow.pop %v9955
      %v9957 = vadd.f32 %v9830, 1.0
      %v9958 = vadd.f32 %v9832, 1.0
      %v9959 = vadd.f32 %v9834, 1.0
      %v9960 = vadd.f32 %v9836, 1.0
      %v9961 = vadd.f32 %v9838, 1.0
      %v9962 = vadd.f32 %v9840, 1.0
      %v9963 = vadd.f32 %v9842, 1.0
      %v9964 = vadd.f32 %v9844, 1.0
      %v9965 = vadd.f32 %v9846, 1.0
      %v9966 = vadd.f32 %v9848, 1.0
      %v9967 = vadd.f32 %v9850, 1.0
      %v9968 = vadd.f32 %v9852, 1.0
      %v9969 = vadd.f32 %v9854, 1.0
      %v9970 = vadd.f32 %v9856, 1.0
      %v9971 = vadd.f32 %v9858, 1.0
      %v9972 = vadd.f32 %v9860, 1.0
      %v9973 = vadd.f32 %v9862, 1.0
      %v9974 = vadd.f32 %v9864, 1.0
      %v9975 = vadd.f32 %v9866, 1.0
      %v9976 = vadd.f32 %v9868, 1.0
      %v9977 = vadd.f32 %v9870, 1.0
      %v9978 = vadd.f32 %v9872, 1.0
      %v9979 = vadd.f32 %v9874, 1.0
      %v9980 = vadd.f32 %v9876, 1.0
      %v9981 = vadd.f32 %v9878, 1.0
      %v9982 = vadd.f32 %v9880, 1.0
      %v9983 = vadd.f32 %v9882, 1.0
      %v9984 = vadd.f32 %v9884, 1.0
      %v9985 = vadd.f32 %v9886, 1.0
      %v9986 = vadd.f32 %v9888, 1.0
      %v9987 = vadd.f32 %v9890, 1.0
      %v9988 = vadd.f32 %v9892, 1.0
      %v9989 = vadd.f32 %v9894, 1.0
      %v9990 = vadd.f32 %v9896, 1.0
      %v9991 = vadd.f32 %v9898, 1.0
      %v9992 = vadd.f32 %v9900, 1.0
      %v9993 = vadd.f32 %v9902, 1.0
      %v9994 = vadd.f32 %v9904, 1.0
      %v9995 = vadd.f32 %v9906, 1.0
      %v9996 = vadd.f32 %v9908, 1.0
      %v9997 = vadd.f32 %v9910, 1.0
      %v9998 = vadd.f32 %v9912, 1.0
      %v9999 = vadd.f32 %v9914, 1.0
      %v10000 = vadd.f32 %v9916, 1.0
      %v10001 = vadd.f32 %v9918, 1.0
      %v10002 = vadd.f32 %v9920, 1.0
      %v10003 = vadd.f32 %v9922, 1.0
      %v10004 = vadd.f32 %v9924, 1.0
      %v10005 = vadd.f32 %v9926, 1.0
      %v10006 = vadd.f32 %v9928, 1.0
      %v10007 = vadd.f32 %v9930, 1.0
      %v10008 = vadd.f32 %v9932, 1.0
      %v10009 = vadd.f32 %v9934, 1.0
      %v10010 = vadd.f32 %v9936, 1.0
      %v10011 = vadd.f32 %v9938, 1.0
      %v10012 = vadd.f32 %v9940, 1.0
      %v10013 = vadd.f32 %v9942, 1.0
      %v10014 = vadd.f32 %v9944, 1.0
      %v10015 = vadd.f32 %v9946, 1.0
      %v10016 = vadd.f32 %v9948, 1.0
      %v10017 = vadd.f32 %v9950, 1.0
      %v10018 = vadd.f32 %v9952, 1.0
      %v10019 = vadd.f32 %v9954, 1.0
      %v10020 = vadd.f32 %v9956, 1.0
      %v10021 = vrcp.pop %v9957
      %v10022 = vmul.f32 1.0, %v10021
      %v10023 = vrcp.pop %v9958
      %v10024 = vmul.f32 1.0, %v10023
      %v10025 = vrcp.pop %v9959
      %v10026 = vmul.f32 1.0, %v10025
      %v10027 = vrcp.pop %v9960
      %v10028 = vmul.f32 1.0, %v10027
      %v10029 = vrcp.pop %v9961
      %v10030 = vmul.f32 1.0, %v10029
      %v10031 = vrcp.pop %v9962
      %v10032 = vmul.f32 1.0, %v10031
      %v10033 = vrcp.pop %v9963
      %v10034 = vmul.f32 1.0, %v10033
      %v10035 = vrcp.pop %v9964
      %v10036 = vmul.f32 1.0, %v10035
      %v10037 = vrcp.pop %v9965
      %v10038 = vmul.f32 1.0, %v10037
      %v10039 = vrcp.pop %v9966
      %v10040 = vmul.f32 1.0, %v10039
      %v10041 = vrcp.pop %v9967
      %v10042 = vmul.f32 1.0, %v10041
      %v10043 = vrcp.pop %v9968
      %v10044 = vmul.f32 1.0, %v10043
      %v10045 = vrcp.pop %v9969
      %v10046 = vmul.f32 1.0, %v10045
      %v10047 = vrcp.pop %v9970
      %v10048 = vmul.f32 1.0, %v10047
      %v10049 = vrcp.pop %v9971
      %v10050 = vmul.f32 1.0, %v10049
      %v10051 = vrcp.pop %v9972
      %v10052 = vmul.f32 1.0, %v10051
      %v10053 = vrcp.pop %v9973
      %v10054 = vmul.f32 1.0, %v10053
      %v10055 = vrcp.pop %v9974
      %v10056 = vmul.f32 1.0, %v10055
      %v10057 = vrcp.pop %v9975
      %v10058 = vmul.f32 1.0, %v10057
      %v10059 = vrcp.pop %v9976
      %v10060 = vmul.f32 1.0, %v10059
      %v10061 = vrcp.pop %v9977
      %v10062 = vmul.f32 1.0, %v10061
      %v10063 = vrcp.pop %v9978
      %v10064 = vmul.f32 1.0, %v10063
      %v10065 = vrcp.pop %v9979
      %v10066 = vmul.f32 1.0, %v10065
      %v10067 = vrcp.pop %v9980
      %v10068 = vmul.f32 1.0, %v10067
      %v10069 = vrcp.pop %v9981
      %v10070 = vmul.f32 1.0, %v10069
      %v10071 = vrcp.pop %v9982
      %v10072 = vmul.f32 1.0, %v10071
      %v10073 = vrcp.pop %v9983
      %v10074 = vmul.f32 1.0, %v10073
      %v10075 = vrcp.pop %v9984
      %v10076 = vmul.f32 1.0, %v10075
      %v10077 = vrcp.pop %v9985
      %v10078 = vmul.f32 1.0, %v10077
      %v10079 = vrcp.pop %v9986
      %v10080 = vmul.f32 1.0, %v10079
      %v10081 = vrcp.pop %v9987
      %v10082 = vmul.f32 1.0, %v10081
      %v10083 = vrcp.pop %v9988
      %v10084 = vmul.f32 1.0, %v10083
      %v10085 = vrcp.pop %v9989
      %v10086 = vmul.f32 1.0, %v10085
      %v10087 = vrcp.pop %v9990
      %v10088 = vmul.f32 1.0, %v10087
      %v10089 = vrcp.pop %v9991
      %v10090 = vmul.f32 1.0, %v10089
      %v10091 = vrcp.pop %v9992
      %v10092 = vmul.f32 1.0, %v10091
      %v10093 = vrcp.pop %v9993
      %v10094 = vmul.f32 1.0, %v10093
      %v10095 = vrcp.pop %v9994
      %v10096 = vmul.f32 1.0, %v10095
      %v10097 = vrcp.pop %v9995
      %v10098 = vmul.f32 1.0, %v10097
      %v10099 = vrcp.pop %v9996
      %v10100 = vmul.f32 1.0, %v10099
      %v10101 = vrcp.pop %v9997
      %v10102 = vmul.f32 1.0, %v10101
      %v10103 = vrcp.pop %v9998
      %v10104 = vmul.f32 1.0, %v10103
      %v10105 = vrcp.pop %v9999
      %v10106 = vmul.f32 1.0, %v10105
      %v10107 = vrcp.pop %v10000
      %v10108 = vmul.f32 1.0, %v10107
      %v10109 = vrcp.pop %v10001
      %v10110 = vmul.f32 1.0, %v10109
      %v10111 = vrcp.pop %v10002
      %v10112 = vmul.f32 1.0, %v10111
      %v10113 = vrcp.pop %v10003
      %v10114 = vmul.f32 1.0, %v10113
      %v10115 = vrcp.pop %v10004
      %v10116 = vmul.f32 1.0, %v10115
      %v10117 = vrcp.pop %v10005
      %v10118 = vmul.f32 1.0, %v10117
      %v10119 = vrcp.pop %v10006
      %v10120 = vmul.f32 1.0, %v10119
      %v10121 = vrcp.pop %v10007
      %v10122 = vmul.f32 1.0, %v10121
      %v10123 = vrcp.pop %v10008
      %v10124 = vmul.f32 1.0, %v10123
      %v10125 = vrcp.pop %v10009
      %v10126 = vmul.f32 1.0, %v10125
      %v10127 = vrcp.pop %v10010
      %v10128 = vmul.f32 1.0, %v10127
      %v10129 = vrcp.pop %v10011
      %v10130 = vmul.f32 1.0, %v10129
      %v10131 = vrcp.pop %v10012
      %v10132 = vmul.f32 1.0, %v10131
      %v10133 = vrcp.pop %v10013
      %v10134 = vmul.f32 1.0, %v10133
      %v10135 = vrcp.pop %v10014
      %v10136 = vmul.f32 1.0, %v10135
      %v10137 = vrcp.pop %v10015
      %v10138 = vmul.f32 1.0, %v10137
      %v10139 = vrcp.pop %v10016
      %v10140 = vmul.f32 1.0, %v10139
      %v10141 = vrcp.pop %v10017
      %v10142 = vmul.f32 1.0, %v10141
      %v10143 = vrcp.pop %v10018
      %v10144 = vmul.f32 1.0, %v10143
      %v10145 = vrcp.pop %v10019
      %v10146 = vmul.f32 1.0, %v10145
      %v10147 = vrcp.pop %v10020
      %v10148 = vmul.f32 1.0, %v10147
      %v10149 = vlaneseq
      %v10150 = vand.u32 %v10149, 127
      %vm10151 = vcmp.eq.s32.totalorder %v10150, 3
      %10153 = vset.pattern.permute.xlu0 0
      %10154 = vperm.xlu0 %10153, %v8184
      %v10155 = vpop.permute.xlu0 %10154
      %10158 = vset.pattern.permute.xlu0 0
      %10159 = vperm.xlu0 %10158, %v8185
      %v10160 = vpop.permute.xlu0 %10159
      %10163 = vset.pattern.permute.xlu0 0
      %10164 = vperm.xlu0 %10163, %v8186
      %v10165 = vpop.permute.xlu0 %10164
      %10168 = vset.pattern.permute.xlu0 0
      %10169 = vperm.xlu0 %10168, %v8187
      %v10170 = vpop.permute.xlu0 %10169
      %10173 = vset.pattern.permute.xlu0 0
      %10174 = vperm.xlu0 %10173, %v8188
      %v10175 = vpop.permute.xlu0 %10174
      %10178 = vset.pattern.permute.xlu0 0
      %10179 = vperm.xlu0 %10178, %v8189
      %v10180 = vpop.permute.xlu0 %10179
      %10183 = vset.pattern.permute.xlu0 0
      %10184 = vperm.xlu0 %10183, %v8190
      %v10185 = vpop.permute.xlu0 %10184
      %10188 = vset.pattern.permute.xlu0 0
      %10189 = vperm.xlu0 %10188, %v8191
      %v10190 = vpop.permute.xlu0 %10189
      %10193 = vset.pattern.permute.xlu0 0
      %10194 = vperm.xlu0 %10193, %v8192
      %v10195 = vpop.permute.xlu0 %10194
      %10198 = vset.pattern.permute.xlu0 0
      %10199 = vperm.xlu0 %10198, %v8193
      %v10200 = vpop.permute.xlu0 %10199
      %10203 = vset.pattern.permute.xlu0 0
      %10204 = vperm.xlu0 %10203, %v8194
      %v10205 = vpop.permute.xlu0 %10204
      %10208 = vset.pattern.permute.xlu0 0
      %10209 = vperm.xlu0 %10208, %v8195
      %v10210 = vpop.permute.xlu0 %10209
      %10213 = vset.pattern.permute.xlu0 0
      %10214 = vperm.xlu0 %10213, %v8196
      %v10215 = vpop.permute.xlu0 %10214
      %10218 = vset.pattern.permute.xlu0 0
      %10219 = vperm.xlu0 %10218, %v8197
      %v10220 = vpop.permute.xlu0 %10219
      %10223 = vset.pattern.permute.xlu0 0
      %10224 = vperm.xlu0 %10223, %v8198
      %v10225 = vpop.permute.xlu0 %10224
      %10228 = vset.pattern.permute.xlu0 0
      %10229 = vperm.xlu0 %10228, %v8199
      %v10230 = vpop.permute.xlu0 %10229
      %10233 = vset.pattern.permute.xlu0 0
      %10234 = vperm.xlu0 %10233, %v8200
      %v10235 = vpop.permute.xlu0 %10234
      %10238 = vset.pattern.permute.xlu0 0
      %10239 = vperm.xlu0 %10238, %v8201
      %v10240 = vpop.permute.xlu0 %10239
      %10243 = vset.pattern.permute.xlu0 0
      %10244 = vperm.xlu0 %10243, %v8202
      %v10245 = vpop.permute.xlu0 %10244
      %10248 = vset.pattern.permute.xlu0 0
      %10249 = vperm.xlu0 %10248, %v8203
      %v10250 = vpop.permute.xlu0 %10249
      %10253 = vset.pattern.permute.xlu0 0
      %10254 = vperm.xlu0 %10253, %v8204
      %v10255 = vpop.permute.xlu0 %10254
      %10258 = vset.pattern.permute.xlu0 0
      %10259 = vperm.xlu0 %10258, %v8205
      %v10260 = vpop.permute.xlu0 %10259
      %10263 = vset.pattern.permute.xlu0 0
      %10264 = vperm.xlu0 %10263, %v8206
      %v10265 = vpop.permute.xlu0 %10264
      %10268 = vset.pattern.permute.xlu0 0
      %10269 = vperm.xlu0 %10268, %v8207
      %v10270 = vpop.permute.xlu0 %10269
      %10273 = vset.pattern.permute.xlu0 0
      %10274 = vperm.xlu0 %10273, %v8208
      %v10275 = vpop.permute.xlu0 %10274
      %10278 = vset.pattern.permute.xlu0 0
      %10279 = vperm.xlu0 %10278, %v8209
      %v10280 = vpop.permute.xlu0 %10279
      %10283 = vset.pattern.permute.xlu0 0
      %10284 = vperm.xlu0 %10283, %v8210
      %v10285 = vpop.permute.xlu0 %10284
      %10288 = vset.pattern.permute.xlu0 0
      %10289 = vperm.xlu0 %10288, %v8211
      %v10290 = vpop.permute.xlu0 %10289
      %10293 = vset.pattern.permute.xlu0 0
      %10294 = vperm.xlu0 %10293, %v8212
      %v10295 = vpop.permute.xlu0 %10294
      %10298 = vset.pattern.permute.xlu0 0
      %10299 = vperm.xlu0 %10298, %v8213
      %v10300 = vpop.permute.xlu0 %10299
      %10303 = vset.pattern.permute.xlu0 0
      %10304 = vperm.xlu0 %10303, %v8214
      %v10305 = vpop.permute.xlu0 %10304
      %10308 = vset.pattern.permute.xlu0 0
      %10309 = vperm.xlu0 %10308, %v8215
      %v10310 = vpop.permute.xlu0 %10309
      %10313 = vset.pattern.permute.xlu0 0
      %10314 = vperm.xlu0 %10313, %v8216
      %v10315 = vpop.permute.xlu0 %10314
      %10318 = vset.pattern.permute.xlu0 0
      %10319 = vperm.xlu0 %10318, %v8217
      %v10320 = vpop.permute.xlu0 %10319
      %10323 = vset.pattern.permute.xlu0 0
      %10324 = vperm.xlu0 %10323, %v8218
      %v10325 = vpop.permute.xlu0 %10324
      %10328 = vset.pattern.permute.xlu0 0
      %10329 = vperm.xlu0 %10328, %v8219
      %v10330 = vpop.permute.xlu0 %10329
      %10333 = vset.pattern.permute.xlu0 0
      %10334 = vperm.xlu0 %10333, %v8220
      %v10335 = vpop.permute.xlu0 %10334
      %10338 = vset.pattern.permute.xlu0 0
      %10339 = vperm.xlu0 %10338, %v8221
      %v10340 = vpop.permute.xlu0 %10339
      %10343 = vset.pattern.permute.xlu0 0
      %10344 = vperm.xlu0 %10343, %v8222
      %v10345 = vpop.permute.xlu0 %10344
      %10348 = vset.pattern.permute.xlu0 0
      %10349 = vperm.xlu0 %10348, %v8223
      %v10350 = vpop.permute.xlu0 %10349
      %10353 = vset.pattern.permute.xlu0 0
      %10354 = vperm.xlu0 %10353, %v8224
      %v10355 = vpop.permute.xlu0 %10354
      %10358 = vset.pattern.permute.xlu0 0
      %10359 = vperm.xlu0 %10358, %v8225
      %v10360 = vpop.permute.xlu0 %10359
      %10363 = vset.pattern.permute.xlu0 0
      %10364 = vperm.xlu0 %10363, %v8226
      %v10365 = vpop.permute.xlu0 %10364
      %10368 = vset.pattern.permute.xlu0 0
      %10369 = vperm.xlu0 %10368, %v8227
      %v10370 = vpop.permute.xlu0 %10369
      %10373 = vset.pattern.permute.xlu0 0
      %10374 = vperm.xlu0 %10373, %v8228
      %v10375 = vpop.permute.xlu0 %10374
      %10378 = vset.pattern.permute.xlu0 0
      %10379 = vperm.xlu0 %10378, %v8229
      %v10380 = vpop.permute.xlu0 %10379
      %10383 = vset.pattern.permute.xlu0 0
      %10384 = vperm.xlu0 %10383, %v8230
      %v10385 = vpop.permute.xlu0 %10384
      %10388 = vset.pattern.permute.xlu0 0
      %10389 = vperm.xlu0 %10388, %v8231
      %v10390 = vpop.permute.xlu0 %10389
      %10393 = vset.pattern.permute.xlu0 0
      %10394 = vperm.xlu0 %10393, %v8232
      %v10395 = vpop.permute.xlu0 %10394
      %10398 = vset.pattern.permute.xlu0 0
      %10399 = vperm.xlu0 %10398, %v8233
      %v10400 = vpop.permute.xlu0 %10399
      %10403 = vset.pattern.permute.xlu0 0
      %10404 = vperm.xlu0 %10403, %v8234
      %v10405 = vpop.permute.xlu0 %10404
      %10408 = vset.pattern.permute.xlu0 0
      %10409 = vperm.xlu0 %10408, %v8235
      %v10410 = vpop.permute.xlu0 %10409
      %10413 = vset.pattern.permute.xlu0 0
      %10414 = vperm.xlu0 %10413, %v8236
      %v10415 = vpop.permute.xlu0 %10414
      %10418 = vset.pattern.permute.xlu0 0
      %10419 = vperm.xlu0 %10418, %v8237
      %v10420 = vpop.permute.xlu0 %10419
      %10423 = vset.pattern.permute.xlu0 0
      %10424 = vperm.xlu0 %10423, %v8238
      %v10425 = vpop.permute.xlu0 %10424
      %10428 = vset.pattern.permute.xlu0 0
      %10429 = vperm.xlu0 %10428, %v8239
      %v10430 = vpop.permute.xlu0 %10429
      %10433 = vset.pattern.permute.xlu0 0
      %10434 = vperm.xlu0 %10433, %v8240
      %v10435 = vpop.permute.xlu0 %10434
      %10438 = vset.pattern.permute.xlu0 0
      %10439 = vperm.xlu0 %10438, %v8241
      %v10440 = vpop.permute.xlu0 %10439
      %10443 = vset.pattern.permute.xlu0 0
      %10444 = vperm.xlu0 %10443, %v8242
      %v10445 = vpop.permute.xlu0 %10444
      %10448 = vset.pattern.permute.xlu0 0
      %10449 = vperm.xlu0 %10448, %v8243
      %v10450 = vpop.permute.xlu0 %10449
      %10453 = vset.pattern.permute.xlu0 0
      %10454 = vperm.xlu0 %10453, %v8244
      %v10455 = vpop.permute.xlu0 %10454
      %10458 = vset.pattern.permute.xlu0 0
      %10459 = vperm.xlu0 %10458, %v8245
      %v10460 = vpop.permute.xlu0 %10459
      %10463 = vset.pattern.permute.xlu0 0
      %10464 = vperm.xlu0 %10463, %v8246
      %v10465 = vpop.permute.xlu0 %10464
      %10468 = vset.pattern.permute.xlu0 0
      %10469 = vperm.xlu0 %10468, %v8247
      %v10470 = vpop.permute.xlu0 %10469
      %v10472 = vsel %vm10151, %v10155, %v10022
      %v10473 = vsel %vm10151, %v10160, %v10024
      %v10474 = vsel %vm10151, %v10165, %v10026
      %v10475 = vsel %vm10151, %v10170, %v10028
      %v10476 = vsel %vm10151, %v10175, %v10030
      %v10477 = vsel %vm10151, %v10180, %v10032
      %v10478 = vsel %vm10151, %v10185, %v10034
      %v10479 = vsel %vm10151, %v10190, %v10036
      %v10480 = vsel %vm10151, %v10195, %v10038
      %v10481 = vsel %vm10151, %v10200, %v10040
      %v10482 = vsel %vm10151, %v10205, %v10042
      %v10483 = vsel %vm10151, %v10210, %v10044
      %v10484 = vsel %vm10151, %v10215, %v10046
      %v10485 = vsel %vm10151, %v10220, %v10048
      %v10486 = vsel %vm10151, %v10225, %v10050
      %v10487 = vsel %vm10151, %v10230, %v10052
      %v10488 = vsel %vm10151, %v10235, %v10054
      %v10489 = vsel %vm10151, %v10240, %v10056
      %v10490 = vsel %vm10151, %v10245, %v10058
      %v10491 = vsel %vm10151, %v10250, %v10060
      %v10492 = vsel %vm10151, %v10255, %v10062
      %v10493 = vsel %vm10151, %v10260, %v10064
      %v10494 = vsel %vm10151, %v10265, %v10066
      %v10495 = vsel %vm10151, %v10270, %v10068
      %v10496 = vsel %vm10151, %v10275, %v10070
      %v10497 = vsel %vm10151, %v10280, %v10072
      %v10498 = vsel %vm10151, %v10285, %v10074
      %v10499 = vsel %vm10151, %v10290, %v10076
      %v10500 = vsel %vm10151, %v10295, %v10078
      %v10501 = vsel %vm10151, %v10300, %v10080
      %v10502 = vsel %vm10151, %v10305, %v10082
      %v10503 = vsel %vm10151, %v10310, %v10084
      %v10504 = vsel %vm10151, %v10315, %v10086
      %v10505 = vsel %vm10151, %v10320, %v10088
      %v10506 = vsel %vm10151, %v10325, %v10090
      %v10507 = vsel %vm10151, %v10330, %v10092
      %v10508 = vsel %vm10151, %v10335, %v10094
      %v10509 = vsel %vm10151, %v10340, %v10096
      %v10510 = vsel %vm10151, %v10345, %v10098
      %v10511 = vsel %vm10151, %v10350, %v10100
      %v10512 = vsel %vm10151, %v10355, %v10102
      %v10513 = vsel %vm10151, %v10360, %v10104
      %v10514 = vsel %vm10151, %v10365, %v10106
      %v10515 = vsel %vm10151, %v10370, %v10108
      %v10516 = vsel %vm10151, %v10375, %v10110
      %v10517 = vsel %vm10151, %v10380, %v10112
      %v10518 = vsel %vm10151, %v10385, %v10114
      %v10519 = vsel %vm10151, %v10390, %v10116
      %v10520 = vsel %vm10151, %v10395, %v10118
      %v10521 = vsel %vm10151, %v10400, %v10120
      %v10522 = vsel %vm10151, %v10405, %v10122
      %v10523 = vsel %vm10151, %v10410, %v10124
      %v10524 = vsel %vm10151, %v10415, %v10126
      %v10525 = vsel %vm10151, %v10420, %v10128
      %v10526 = vsel %vm10151, %v10425, %v10130
      %v10527 = vsel %vm10151, %v10430, %v10132
      %v10528 = vsel %vm10151, %v10435, %v10134
      %v10529 = vsel %vm10151, %v10440, %v10136
      %v10530 = vsel %vm10151, %v10445, %v10138
      %v10531 = vsel %vm10151, %v10450, %v10140
      %v10532 = vsel %vm10151, %v10455, %v10142
      %v10533 = vsel %vm10151, %v10460, %v10144
      %v10534 = vsel %vm10151, %v10465, %v10146
      %v10535 = vsel %vm10151, %v10470, %v10148
      %10536 = vst [vmem:[%s329] sm:$0xff] %v10472
      %10537 = vst [vmem:[%s329 + $0x8] sm:$0xff] %v10473
      %10538 = vst [vmem:[%s329 + $0x10] sm:$0xff] %v10474
      %10539 = vst [vmem:[%s329 + $0x18] sm:$0xff] %v10475
      %10540 = vst [vmem:[%s329 + $0x20] sm:$0xff] %v10476
      %10541 = vst [vmem:[%s329 + $0x28] sm:$0xff] %v10477
      %10542 = vst [vmem:[%s329 + $0x30] sm:$0xff] %v10478
      %10543 = vst [vmem:[%s329 + $0x38] sm:$0xff] %v10479
      %10544 = vst [vmem:[%s329 + $0x40] sm:$0xff] %v10480
      %10545 = vst [vmem:[%s329 + $0x48] sm:$0xff] %v10481
      %10546 = vst [vmem:[%s329 + $0x50] sm:$0xff] %v10482
      %10547 = vst [vmem:[%s329 + $0x58] sm:$0xff] %v10483
      %10548 = vst [vmem:[%s329 + $0x60] sm:$0xff] %v10484
      %10549 = vst [vmem:[%s329 + $0x68] sm:$0xff] %v10485
      %10550 = vst [vmem:[%s329 + $0x70] sm:$0xff] %v10486
      %10551 = vst [vmem:[%s329 + $0x78] sm:$0xff] %v10487
      %10552 = vst [vmem:[%s329 + $0x80] sm:$0xff] %v10488
      %10553 = vst [vmem:[%s329 + $0x88] sm:$0xff] %v10489
      %10554 = vst [vmem:[%s329 + $0x90] sm:$0xff] %v10490
      %10555 = vst [vmem:[%s329 + $0x98] sm:$0xff] %v10491
      %10556 = vst [vmem:[%s329 + $0xa0] sm:$0xff] %v10492
      %10557 = vst [vmem:[%s329 + $0xa8] sm:$0xff] %v10493
      %10558 = vst [vmem:[%s329 + $0xb0] sm:$0xff] %v10494
      %10559 = vst [vmem:[%s329 + $0xb8] sm:$0xff] %v10495
      %10560 = vst [vmem:[%s329 + $0xc0] sm:$0xff] %v10496
      %10561 = vst [vmem:[%s329 + $0xc8] sm:$0xff] %v10497
      %10562 = vst [vmem:[%s329 + $0xd0] sm:$0xff] %v10498
      %10563 = vst [vmem:[%s329 + $0xd8] sm:$0xff] %v10499
      %10564 = vst [vmem:[%s329 + $0xe0] sm:$0xff] %v10500
      %10565 = vst [vmem:[%s329 + $0xe8] sm:$0xff] %v10501
      %10566 = vst [vmem:[%s329 + $0xf0] sm:$0xff] %v10502
      %10567 = vst [vmem:[%s329 + $0xf8] sm:$0xff] %v10503
      %10568 = vst [vmem:[%s329 + $0x100] sm:$0xff] %v10504
      %10569 = vst [vmem:[%s329 + $0x108] sm:$0xff] %v10505
      %10570 = vst [vmem:[%s329 + $0x110] sm:$0xff] %v10506
      %10571 = vst [vmem:[%s329 + $0x118] sm:$0xff] %v10507
      %10572 = vst [vmem:[%s329 + $0x120] sm:$0xff] %v10508
      %10573 = vst [vmem:[%s329 + $0x128] sm:$0xff] %v10509
      %10574 = vst [vmem:[%s329 + $0x130] sm:$0xff] %v10510
      %10575 = vst [vmem:[%s329 + $0x138] sm:$0xff] %v10511
      %10576 = vst [vmem:[%s329 + $0x140] sm:$0xff] %v10512
      %10577 = vst [vmem:[%s329 + $0x148] sm:$0xff] %v10513
      %10578 = vst [vmem:[%s329 + $0x150] sm:$0xff] %v10514
      %10579 = vst [vmem:[%s329 + $0x158] sm:$0xff] %v10515
      %10580 = vst [vmem:[%s329 + $0x160] sm:$0xff] %v10516
      %10581 = vst [vmem:[%s329 + $0x168] sm:$0xff] %v10517
      %10582 = vst [vmem:[%s329 + $0x170] sm:$0xff] %v10518
      %10583 = vst [vmem:[%s329 + $0x178] sm:$0xff] %v10519
      %10584 = vst [vmem:[%s329 + $0x180] sm:$0xff] %v10520
      %10585 = vst [vmem:[%s329 + $0x188] sm:$0xff] %v10521
      %10586 = vst [vmem:[%s329 + $0x190] sm:$0xff] %v10522
      %10587 = vst [vmem:[%s329 + $0x198] sm:$0xff] %v10523
      %10588 = vst [vmem:[%s329 + $0x1a0] sm:$0xff] %v10524
      %10589 = vst [vmem:[%s329 + $0x1a8] sm:$0xff] %v10525
      %10590 = vst [vmem:[%s329 + $0x1b0] sm:$0xff] %v10526
      %10591 = vst [vmem:[%s329 + $0x1b8] sm:$0xff] %v10527
      %10592 = vst [vmem:[%s329 + $0x1c0] sm:$0xff] %v10528
      %10593 = vst [vmem:[%s329 + $0x1c8] sm:$0xff] %v10529
      %10594 = vst [vmem:[%s329 + $0x1d0] sm:$0xff] %v10530
      %10595 = vst [vmem:[%s329 + $0x1d8] sm:$0xff] %v10531
      %10596 = vst [vmem:[%s329 + $0x1e0] sm:$0xff] %v10532
      %10597 = vst [vmem:[%s329 + $0x1e8] sm:$0xff] %v10533
      %10598 = vst [vmem:[%s329 + $0x1f0] sm:$0xff] %v10534
      %10599 = vst [vmem:[%s329 + $0x1f8] sm:$0xff] %v10535
      %s10600 = smul.u32 64, %s19
      %p10601 = scmp.lt.s32.totalorder %s10600, 255
      %s10602 = scalar_select %p10601, %s10600, 255
      %s10603 = smul.addr %s10602, 8
      %s10604 = scalar_lea.vmem %s8, %s10603
      // Predicated region
      $region53: #{nerf_forward.1} parent=51 // pred_check
        %p10605 = pneg %p215
      $region54: #{nerf_forward.1} parent=51 // pred_check_branch
        %10607 = sbr.rel (%p10605) target = $region56
      $region55: #{nerf_forward.1} parent=51 // pred_region
        %s10608 = smul.u32 64, %s19
      $region56: #{nerf_forward.1} parent=51 // pred_fallthru
        _
    $region52: #{nerf_forward.1} parent=5 // pred_fallthru
      _
    %p10609 = scmp.le.s32.totalorder 2, %s14
    // Predicated region
    $region57: #{nerf_forward.1} parent=5 // pred_check
      %p10610 = pneg %p10609
    $region58: #{nerf_forward.1} parent=5 // pred_check_branch
      %10612 = sbr.rel (%p10610) target = $region60
    $region59: #{nerf_forward.1} parent=5 // pred_region
      %s10613 = ssub.s32 %s14, 2
      // Predicated region
      $region61: #{nerf_forward.1} parent=59 // pred_check
        %p10614 = pneg %p221
      $region62: #{nerf_forward.1} parent=59 // pred_check_branch
        %10616 = sbr.rel (%p10614) target = $region64
      $region63: #{nerf_forward.1} parent=59 // pred_region
        %s10617 = smul.u32 64, %s20
        %p10618 = scmp.lt.s32.totalorder %s10617, 255
        %s10619 = scalar_select %p10618, %s10617, 255
        %s10620 = smul.addr %s10619, 8
        %s10621 = scalar_lea.vmem %s8, %s10620
      $region64: #{nerf_forward.1} parent=59 // pred_fallthru
        _
    $region60: #{nerf_forward.1} parent=5 // pred_fallthru
      _
  $region6: #{nerf_forward.1} parent=0 // loop_footer
    %s18 = sadd.s32 1, %s14
  $region7: #{nerf_forward.1} parent=0 // loop_footer_branch
    %13 = sbr.rel target = $region3
  $region8: #{nerf_forward.1} parent=0 // loop_exit
    _

</llo_original>
